<compile_context>
chip_gen: v7x
topology: tpu7x:2x2x1
jax: 0.10.0
libtpu: 0.0.40
codegen_flags: <defaults>
</compile_context>

<pallas_src>
import functools

import jax
import jax.numpy as jnp
from jax.experimental import pallas as pl
from jax.experimental.pallas import tpu as pltpu


MXU_DTYPE = jnp.bfloat16   # matmul-operand dtype for the dense channel mixes


def _pick_tile_m(M, max_tile=256):
    """Largest row tile <= max_tile that divides M and is a multiple of 8."""
    if M <= max_tile:
        return M
    for t in range(max_tile, 0, -8):
        if t % 8 == 0 and M % t == 0:
            return t
    return M  # fall back to a single full-array step (always layout-legal)


# --------------------------------------------------------------------------
# Pallas kernels
# --------------------------------------------------------------------------

def _fc0_kernel(x_ref, w_ref, b_ref, o_ref):
    """Lift (tm, 3) -> (tm, width) with 3 VPU broadcast-FMAs (K=3 MXU dot
    would use 3/256 of the contraction dim; pure relayout overhead)."""
    x = x_ref[...]                                   # (tm, 3)  f32
    w = w_ref[...]                                   # (3, N)   f32
    y = (x[:, 0:1] * w[0:1, :]
         + x[:, 1:2] * w[1:2, :]
         + x[:, 2:3] * w[2:3, :]
         + b_ref[...])
    o_ref[...] = y


def _residual_mix_kernel(x_ref, spec_ref, w_ref, b_ref, o_ref, *, relu):
    """x = [relu]( spectral_branch + x @ W_1x1 + b )  fused."""
    y = jnp.dot(x_ref[...].astype(MXU_DTYPE), w_ref[...].astype(MXU_DTYPE),
                preferred_element_type=jnp.float32)
    y = y + b_ref[...] + spec_ref[...]
    if relu:
        y = jnp.maximum(y, 0.0)
    o_ref[...] = y


def _mlp_head_kernel(x_ref, w1_ref, b1_ref, w2_ref, b2_ref, o_ref):
    """Fused fc1 (ReLU) + fc2: the (tm, 128) intermediate never leaves VMEM."""
    h = jnp.dot(x_ref[...].astype(MXU_DTYPE), w1_ref[...].astype(MXU_DTYPE),
                preferred_element_type=jnp.float32)
    h = jnp.maximum(h + b1_ref[...], 0.0)
    y = jnp.dot(h.astype(MXU_DTYPE), w2_ref[...].astype(MXU_DTYPE),
                preferred_element_type=jnp.float32)
    o_ref[...] = y + b2_ref[...]


def _spectral_mix_kernel(a_ref, w_ref, o_ref):
    """Complex-packed mode mixing: one batched real matmul per retained mode
    (batch over modes m): (B, 2Cin) @ (2Cin, 2Cout) -> (B, 2Cout)."""
    o_ref[...] = jnp.einsum("mbi,mio->mbo", a_ref[...], w_ref[...],
                            preferred_element_type=jnp.float32)


# --------------------------------------------------------------------------
# pallas_call wrappers
# --------------------------------------------------------------------------

def fc0_lift(x2d, w, b):
    M, K = x2d.shape
    N = w.shape[1]
    tm = _pick_tile_m(M)
    return pl.pallas_call(
        _fc0_kernel,
        out_shape=jax.ShapeDtypeStruct((M, N), jnp.float32),
        grid_spec=pltpu.PrefetchScalarGridSpec(
            num_scalar_prefetch=0,
            grid=(M // tm,),
            in_specs=[
                pl.BlockSpec((tm, K), lambda i: (i, 0)),
                pl.BlockSpec((K, N), lambda i: (0, 0)),
                pl.BlockSpec((1, N), lambda i: (0, 0)),
            ],
            out_specs=pl.BlockSpec((tm, N), lambda i: (i, 0)),
        ),
        compiler_params=pltpu.CompilerParams(
            dimension_semantics=("parallel",)),
    )(x2d, w, b.reshape(1, N))


def fourier_block_mix(x2d, spec2d, w, b, relu):
    M, C = x2d.shape
    N = w.shape[1]
    tm = _pick_tile_m(M)
    kern = functools.partial(_residual_mix_kernel, relu=relu)
    return pl.pallas_call(
        kern,
        out_shape=jax.ShapeDtypeStruct((M, N), jnp.float32),
        grid_spec=pltpu.PrefetchScalarGridSpec(
            num_scalar_prefetch=0,
            grid=(M // tm,),
            in_specs=[
                pl.BlockSpec((tm, C), lambda i: (i, 0)),
                pl.BlockSpec((tm, N), lambda i: (i, 0)),
                pl.BlockSpec((C, N), lambda i: (0, 0)),
                pl.BlockSpec((1, N), lambda i: (0, 0)),
            ],
            out_specs=pl.BlockSpec((tm, N), lambda i: (i, 0)),
        ),
        compiler_params=pltpu.CompilerParams(
            dimension_semantics=("parallel",)),
    )(x2d, spec2d, w, b.reshape(1, N))


def mlp_head(x2d, w1, b1, w2, b2):
    M, C = x2d.shape
    H1 = w1.shape[1]
    N = w2.shape[1]
    tm = _pick_tile_m(M)
    return pl.pallas_call(
        _mlp_head_kernel,
        out_shape=jax.ShapeDtypeStruct((M, N), jnp.float32),
        grid_spec=pltpu.PrefetchScalarGridSpec(
            num_scalar_prefetch=0,
            grid=(M // tm,),
            in_specs=[
                pl.BlockSpec((tm, C), lambda i: (i, 0)),
                pl.BlockSpec((C, H1), lambda i: (0, 0)),
                pl.BlockSpec((1, H1), lambda i: (0, 0)),
                pl.BlockSpec((H1, N), lambda i: (0, 0)),
                pl.BlockSpec((1, N), lambda i: (0, 0)),
            ],
            out_specs=pl.BlockSpec((tm, N), lambda i: (i, 0)),
        ),
        compiler_params=pltpu.CompilerParams(
            dimension_semantics=("parallel",)),
    )(x2d, w1, b1.reshape(1, H1), w2, b2.reshape(1, N))


def spectral_mode_mix(a_packed, w_packed):
    """a: (M, B, 2Cin) f32; w: (M, 2Cin, 2Cout) f32 -> (M, B, 2Cout) f32."""
    M, B, Ci2 = a_packed.shape
    Co2 = w_packed.shape[2]
    g = 2 if M % 2 == 0 else 1          # split mode batch over 2 TCs on v7x
    mblk = M // g
    return pl.pallas_call(
        _spectral_mix_kernel,
        out_shape=jax.ShapeDtypeStruct((M, B, Co2), jnp.float32),
        grid_spec=pltpu.PrefetchScalarGridSpec(
            num_scalar_prefetch=0,
            grid=(g,),
            in_specs=[
                pl.BlockSpec((mblk, B, Ci2), lambda i: (i, 0, 0)),
                pl.BlockSpec((mblk, Ci2, Co2), lambda i: (i, 0, 0)),
            ],
            out_specs=pl.BlockSpec((mblk, B, Co2), lambda i: (i, 0, 0)),
        ),
        compiler_params=pltpu.CompilerParams(
            dimension_semantics=("parallel",)),
    )(a_packed, w_packed)


# --------------------------------------------------------------------------
# SpectralConv2d — FFT glue in JAX (NHWC, axes (1,2)), mode mixing in Pallas
# --------------------------------------------------------------------------

def _pack_complex_weight(wr, wi):
    """(Cin, Cout, m1, m2) real/imag -> (m1*m2, 2Cin, 2Cout) real 2x2 block
    [[wr, wi], [-wi, wr]] so that [ar|ai] @ W = [real | imag]."""
    Cin, Cout, m1, m2 = wr.shape
    wrt = jnp.transpose(wr, (2, 3, 0, 1)).reshape(m1 * m2, Cin, Cout)
    wit = jnp.transpose(wi, (2, 3, 0, 1)).reshape(m1 * m2, Cin, Cout)
    top = jnp.concatenate([wrt, wit], axis=2)        # (Mc, Cin, 2Cout)
    bot = jnp.concatenate([-wit, wrt], axis=2)       # (Mc, Cin, 2Cout)
    return jnp.concatenate([top, bot], axis=1)       # (Mc, 2Cin, 2Cout)


def _pack_modes(x_ft_slice):
    """(B, m1, m2, C) complex -> (m1*m2, B, 2C) real (tiny truncated slab)."""
    B, m1, m2, C = x_ft_slice.shape
    a = jnp.transpose(x_ft_slice, (1, 2, 0, 3)).reshape(m1 * m2, B, C)
    return jnp.concatenate([a.real, a.imag], axis=-1)


def spectral_conv2d_nhwc(x_nhwc, w1_pair, w2_pair, modes1, modes2):
    B, H, W, C = x_nhwc.shape
    # TODO(synk): rfft2/irfft2 have no Pallas primitive; they stay in plain JAX
    # (run over axes (1, 2) so the activation layout never leaves NHWC).
    x_ft = jnp.fft.rfft2(x_nhwc, axes=(1, 2))        # (B, H, W//2+1, C) c64
    a_packed = jnp.concatenate([
        _pack_modes(x_ft[:, :modes1, :modes2, :]),
        _pack_modes(x_ft[:, H - modes1:, :modes2, :]),
    ], axis=0)                                       # (2*m1*m2, B, 2C)
    w_packed = jnp.concatenate([
        _pack_complex_weight(*w1_pair),
        _pack_complex_weight(*w2_pair),
    ], axis=0)                                       # (2*m1*m2, 2C, 2Cout)

    o = spectral_mode_mix(a_packed, w_packed)        # (2*m1*m2, B, 2Cout)

    Cout = w_packed.shape[2] // 2
    o_c = jax.lax.complex(o[..., :Cout], o[..., Cout:])   # (2*Mc, B, Cout) c64
    Mc = modes1 * modes2

    def unpack(block):                               # (Mc, B, Cout) -> NHWC slab
        return jnp.transpose(block.reshape(modes1, modes2, B, Cout),
                             (2, 0, 1, 3))

    o1, o2 = unpack(o_c[:Mc]), unpack(o_c[Mc:])
    Wf = W // 2 + 1
    out_ft = jnp.zeros((B, H, Wf, Cout), dtype=jnp.complex64)
    out_ft = out_ft.at[:, :modes1, :modes2, :].set(o1)
    out_ft = out_ft.at[:, H - modes1:, :modes2, :].set(o2)
    return jnp.fft.irfft2(out_ft, s=(H, W), axes=(1, 2))  # (B, H, W, Cout) f32


# --------------------------------------------------------------------------
# Net2d / SimpleBlock2d forward
# --------------------------------------------------------------------------

def init_params(key, modes, width):
    ks = jax.random.split(key, 32)
    it = iter(ks)

    def u(shape, scale):
        return scale * jax.random.uniform(next(it), shape, dtype=jnp.float32)

    p = {}
    p["fc0_w"] = u((3, width), 1.0 / 3)
    p["fc0_b"] = u((width,), 0.1)
    sc = 1.0 / (width * width)
    for l in range(4):
        p[f"c{l}_w1r"] = u((width, width, modes, modes), sc)
        p[f"c{l}_w1i"] = u((width, width, modes, modes), sc)
        p[f"c{l}_w2r"] = u((width, width, modes, modes), sc)
        p[f"c{l}_w2i"] = u((width, width, modes, modes), sc)
        p[f"w{l}_w"] = u((width, width), 1.0 / width)   # stored as (in, out)
        p[f"w{l}_b"] = u((width,), 0.1)
    p["fc1_w"] = u((width, 128), 1.0 / width)
    p["fc1_b"] = u((128,), 0.1)
    p["fc2_w"] = u((128, 1), 1.0 / 128)
    p["fc2_b"] = u((1,), 0.1)
    return p


def net2d_forward(params, x):
    # x: (B, S, S, 3) float32   (same layout as the torch module's input)
    B, H, W, Cin0 = x.shape
    width = params["fc0_w"].shape[1]
    modes = params["c0_w1r"].shape[2]
    M = B * H * W

    # fc0 lift: (B*H*W, 3) -> (B*H*W, width)
    h = fc0_lift(x.reshape(M, Cin0), params["fc0_w"], params["fc0_b"])

    for l in range(4):
        spec = spectral_conv2d_nhwc(
            h.reshape(B, H, W, width),
            (params[f"c{l}_w1r"], params[f"c{l}_w1i"]),
            (params[f"c{l}_w2r"], params[f"c{l}_w2i"]),
            modes, modes)                                  # (B, H, W, width)
        # fused: x = [relu]( spectral + x @ W_1x1 + b ); no relu on block 3.
        h = fourier_block_mix(h, spec.reshape(M, width),
                              params[f"w{l}_w"], params[f"w{l}_b"],
                              relu=(l < 3))

    # fused fc1 (ReLU) + fc2 head -> (M, 1)
    y = mlp_head(h, params["fc1_w"], params["fc1_b"],
                 params["fc2_w"], params["fc2_b"])
    # torch's .squeeze() drops the trailing channel dim (and batch if B==1);
    # use explicit channel indexing so the batch dim is never silently dropped.
    return y.reshape(B, H, W, 1)[..., 0]                   # (B, H, W)


if __name__ == "__main__":
    modes, width = 6, 32
    B, S = 2, 16

    key = jax.random.PRNGKey(0)
    pkey, xkey = jax.random.split(key)
    params = init_params(pkey, modes, width)
    x = jax.random.normal(xkey, (B, S, S, 3), dtype=jnp.float32)

    fwd = jax.jit(net2d_forward)
    y = fwd(params, x)
    y = jax.block_until_ready(y)
    assert y.shape == (B, S, S), y.shape
    assert bool(jnp.all(jnp.isfinite(y)))
    print("KERNEL_OK")
</pallas_src>

<mosaic_0001>
module attributes {stable_mosaic.version = 11 : i64} {
  func.func @_fc0_kernel(%arg0: i32, %arg1: memref<256x3xf32, #tpu.memory_space<vmem>>, %arg2: memref<3x32xf32, #tpu.memory_space<vmem>>, %arg3: memref<1x32xf32, #tpu.memory_space<vmem>>, %arg4: memref<256x32xf32, #tpu.memory_space<vmem>>) attributes {dimension_semantics = [#tpu.dimension_semantics<parallel>], iteration_bounds = array<i64: 2>, scalar_prefetch = 0 : i64, scratch_operands = 0 : i64, tpu.core_type = #tpu.core_type<tc>, window_params = [{transform_indices = @transform_0, window_bounds = array<i64: 256, 3>}, {pipeline_mode = #tpu.pipeline_mode<synchronous>, transform_indices = @transform_1, window_bounds = array<i64: 3, 32>}, {pipeline_mode = #tpu.pipeline_mode<synchronous>, transform_indices = @transform_2, window_bounds = array<i64: 1, 32>}, {transform_indices = @transform_3, window_bounds = array<i64: 256, 32>}]} {
    %c0 = arith.constant 0 : index
    %c0_0 = arith.constant 0 : index
    %0 = vector.load %arg1[%c0, %c0_0] : memref<256x3xf32, #tpu.memory_space<vmem>>, vector<256x3xf32>
    %c0_1 = arith.constant 0 : index
    %c0_2 = arith.constant 0 : index
    %1 = vector.load %arg2[%c0_1, %c0_2] : memref<3x32xf32, #tpu.memory_space<vmem>>, vector<3x32xf32>
    %2 = vector.extract_strided_slice %0 {offsets = [0, 0], sizes = [256, 1], strides = [1, 1]} : vector<256x3xf32> to vector<256x1xf32>
    %3 = vector.extract_strided_slice %1 {offsets = [0, 0], sizes = [1, 32], strides = [1, 1]} : vector<3x32xf32> to vector<1x32xf32>
    %4 = vector.broadcast %2 : vector<256x1xf32> to vector<256x32xf32>
    %5 = vector.broadcast %3 : vector<1x32xf32> to vector<256x32xf32>
    %6 = arith.mulf %4, %5 : vector<256x32xf32>
    %7 = vector.extract_strided_slice %0 {offsets = [0, 1], sizes = [256, 1], strides = [1, 1]} : vector<256x3xf32> to vector<256x1xf32>
    %8 = vector.extract_strided_slice %1 {offsets = [1, 0], sizes = [1, 32], strides = [1, 1]} : vector<3x32xf32> to vector<1x32xf32>
    %9 = vector.broadcast %7 : vector<256x1xf32> to vector<256x32xf32>
    %10 = vector.broadcast %8 : vector<1x32xf32> to vector<256x32xf32>
    %11 = arith.mulf %9, %10 : vector<256x32xf32>
    %12 = arith.addf %6, %11 : vector<256x32xf32>
    %13 = vector.extract_strided_slice %0 {offsets = [0, 2], sizes = [256, 1], strides = [1, 1]} : vector<256x3xf32> to vector<256x1xf32>
    %14 = vector.extract_strided_slice %1 {offsets = [2, 0], sizes = [1, 32], strides = [1, 1]} : vector<3x32xf32> to vector<1x32xf32>
    %15 = vector.broadcast %13 : vector<256x1xf32> to vector<256x32xf32>
    %16 = vector.broadcast %14 : vector<1x32xf32> to vector<256x32xf32>
    %17 = arith.mulf %15, %16 : vector<256x32xf32>
    %18 = arith.addf %12, %17 : vector<256x32xf32>
    %c0_3 = arith.constant 0 : index
    %c0_4 = arith.constant 0 : index
    %19 = vector.load %arg3[%c0_3, %c0_4] : memref<1x32xf32, #tpu.memory_space<vmem>>, vector<1x32xf32>
    %20 = vector.broadcast %19 : vector<1x32xf32> to vector<256x32xf32>
    %21 = arith.addf %18, %20 : vector<256x32xf32>
    %c0_5 = arith.constant 0 : index
    %c0_6 = arith.constant 0 : index
    %22 = vector.load %arg4[%c0_5, %c0_6] : memref<256x32xf32, #tpu.memory_space<vmem>>, vector<256x32xf32>
    tpu.vector_store %arg4[%c0_5, %c0_6], %21 {strides = array<i32>} : memref<256x32xf32, #tpu.memory_space<vmem>>, vector<256x32xf32>,
    return
  }
  func.func @transform_0(%arg0: i32) -> (i32, i32) {
    %c0_i32 = arith.constant 0 : i32
    %c0_i32_0 = arith.constant 0 : i32
    return %arg0, %c0_i32 : i32, i32
  }
  func.func @transform_1(%arg0: i32) -> (i32, i32) {
    %c0_i32 = arith.constant 0 : i32
    %c0_i32_0 = arith.constant 0 : i32
    %c0_i32_1 = arith.constant 0 : i32
    return %c0_i32, %c0_i32_0 : i32, i32
  }
  func.func @transform_2(%arg0: i32) -> (i32, i32) {
    %c0_i32 = arith.constant 0 : i32
    %c0_i32_0 = arith.constant 0 : i32
    %c0_i32_1 = arith.constant 0 : i32
    return %c0_i32, %c0_i32_0 : i32, i32
  }
  func.func @transform_3(%arg0: i32) -> (i32, i32) {
    %c0_i32 = arith.constant 0 : i32
    %c0_i32_0 = arith.constant 0 : i32
    return %arg0, %c0_i32 : i32, i32
  }
}

module attributes {stable_mosaic.version = 11 : i64} {
  func.func @_spectral_mix_kernel(%arg0: i32, %arg1: memref<36x2x64xf32, #tpu.memory_space<vmem>>, %arg2: memref<36x64x64xf32, #tpu.memory_space<vmem>>, %arg3: memref<36x2x64xf32, #tpu.memory_space<vmem>>) attributes {dimension_semantics = [#tpu.dimension_semantics<parallel>], iteration_bounds = array<i64: 2>, scalar_prefetch = 0 : i64, scratch_operands = 0 : i64, tpu.core_type = #tpu.core_type<tc>, window_params = [{transform_indices = @transform_0, window_bounds = array<i64: 36, 2, 64>}, {transform_indices = @transform_1, window_bounds = array<i64: 36, 64, 64>}, {transform_indices = @transform_2, window_bounds = array<i64: 36, 2, 64>}]} {
    %c0 = arith.constant 0 : index
    %c0_0 = arith.constant 0 : index
    %c0_1 = arith.constant 0 : index
    %0 = vector.load %arg1[%c0, %c0_0, %c0_1] : memref<36x2x64xf32, #tpu.memory_space<vmem>>, vector<36x2x64xf32>
    %c0_2 = arith.constant 0 : index
    %c0_3 = arith.constant 0 : index
    %c0_4 = arith.constant 0 : index
    %1 = vector.load %arg2[%c0_2, %c0_3, %c0_4] : memref<36x64x64xf32, #tpu.memory_space<vmem>>, vector<36x64x64xf32>
    "tpu.trace_start"() <{level = 10 : i32, message = "mbi,mio->mbo"}> : () -> ()
    %cst = arith.constant dense<0.000000e+00> : vector<36x2x64xf32>
    %2 = tpu.matmul %0, %1, %cst {dimension_numbers = #tpu.dot_dimension_numbers<[2], [1], [1], [2], [0, 0, 0, 1, 1, 2], [0], [0]>} : vector<36x2x64xf32>, vector<36x64x64xf32>, vector<36x2x64xf32> -> vector<36x2x64xf32>
    "tpu.trace_stop"() : () -> ()
    %c0_5 = arith.constant 0 : index
    %c0_6 = arith.constant 0 : index
    %c0_7 = arith.constant 0 : index
    %3 = vector.load %arg3[%c0_5, %c0_6, %c0_7] : memref<36x2x64xf32, #tpu.memory_space<vmem>>, vector<36x2x64xf32>
    tpu.vector_store %arg3[%c0_5, %c0_6, %c0_7], %2 {strides = array<i32>} : memref<36x2x64xf32, #tpu.memory_space<vmem>>, vector<36x2x64xf32>,
    return
  }
  func.func @transform_0(%arg0: i32) -> (i32, i32, i32) {
    %c0_i32 = arith.constant 0 : i32
    %c0_i32_0 = arith.constant 0 : i32
    %c0_i32_1 = arith.constant 0 : i32
    return %arg0, %c0_i32, %c0_i32_0 : i32, i32, i32
  }
  func.func @transform_1(%arg0: i32) -> (i32, i32, i32) {
    %c0_i32 = arith.constant 0 : i32
    %c0_i32_0 = arith.constant 0 : i32
    %c0_i32_1 = arith.constant 0 : i32
    return %arg0, %c0_i32, %c0_i32_0 : i32, i32, i32
  }
  func.func @transform_2(%arg0: i32) -> (i32, i32, i32) {
    %c0_i32 = arith.constant 0 : i32
    %c0_i32_0 = arith.constant 0 : i32
    %c0_i32_1 = arith.constant 0 : i32
    return %arg0, %c0_i32, %c0_i32_0 : i32, i32, i32
  }
}

module attributes {stable_mosaic.version = 11 : i64} {
  func.func @_residual_mix_kernel(%arg0: i32, %arg1: memref<256x32xf32, #tpu.memory_space<vmem>>, %arg2: memref<256x32xf32, #tpu.memory_space<vmem>>, %arg3: memref<32x32xf32, #tpu.memory_space<vmem>>, %arg4: memref<1x32xf32, #tpu.memory_space<vmem>>, %arg5: memref<256x32xf32, #tpu.memory_space<vmem>>) attributes {dimension_semantics = [#tpu.dimension_semantics<parallel>], iteration_bounds = array<i64: 2>, scalar_prefetch = 0 : i64, scratch_operands = 0 : i64, tpu.core_type = #tpu.core_type<tc>, window_params = [{transform_indices = @transform_0, window_bounds = array<i64: 256, 32>}, {transform_indices = @transform_1, window_bounds = array<i64: 256, 32>}, {pipeline_mode = #tpu.pipeline_mode<synchronous>, transform_indices = @transform_2, window_bounds = array<i64: 32, 32>}, {pipeline_mode = #tpu.pipeline_mode<synchronous>, transform_indices = @transform_3, window_bounds = array<i64: 1, 32>}, {transform_indices = @transform_4, window_bounds = array<i64: 256, 32>}]} {
    %c0 = arith.constant 0 : index
    %c0_0 = arith.constant 0 : index
    %0 = vector.load %arg1[%c0, %c0_0] : memref<256x32xf32, #tpu.memory_space<vmem>>, vector<256x32xf32>
    %1 = arith.truncf %0 : vector<256x32xf32> to vector<256x32xbf16>
    %c0_1 = arith.constant 0 : index
    %c0_2 = arith.constant 0 : index
    %2 = vector.load %arg3[%c0_1, %c0_2] : memref<32x32xf32, #tpu.memory_space<vmem>>, vector<32x32xf32>
    %3 = arith.truncf %2 : vector<32x32xf32> to vector<32x32xbf16>
    %cst = arith.constant dense<0.000000e+00> : vector<256x32xf32>
    %4 = tpu.matmul %1, %3, %cst {dimension_numbers = #tpu.dot_dimension_numbers<[1], [0], [0], [1], [0, 0, 1, 1], [], []>} : vector<256x32xbf16>, vector<32x32xbf16>, vector<256x32xf32> -> vector<256x32xf32>
    %c0_3 = arith.constant 0 : index
    %c0_4 = arith.constant 0 : index
    %5 = vector.load %arg4[%c0_3, %c0_4] : memref<1x32xf32, #tpu.memory_space<vmem>>, vector<1x32xf32>
    %6 = vector.broadcast %5 : vector<1x32xf32> to vector<256x32xf32>
    %7 = arith.addf %4, %6 : vector<256x32xf32>
    %c0_5 = arith.constant 0 : index
    %c0_6 = arith.constant 0 : index
    %8 = vector.load %arg2[%c0_5, %c0_6] : memref<256x32xf32, #tpu.memory_space<vmem>>, vector<256x32xf32>
    %9 = arith.addf %7, %8 : vector<256x32xf32>
    %cst_7 = arith.constant 0.000000e+00 : f32
    %10 = vector.broadcast %cst_7 : f32 to vector<256x32xf32>
    %11 = arith.maximumf %9, %10 : vector<256x32xf32>
    %c0_8 = arith.constant 0 : index
    %c0_9 = arith.constant 0 : index
    %12 = vector.load %arg5[%c0_8, %c0_9] : memref<256x32xf32, #tpu.memory_space<vmem>>, vector<256x32xf32>
    tpu.vector_store %arg5[%c0_8, %c0_9], %11 {strides = array<i32>} : memref<256x32xf32, #tpu.memory_space<vmem>>, vector<256x32xf32>,
    return
  }
  func.func @transform_0(%arg0: i32) -> (i32, i32) {
    %c0_i32 = arith.constant 0 : i32
    %c0_i32_0 = arith.constant 0 : i32
    return %arg0, %c0_i32 : i32, i32
  }
  func.func @transform_1(%arg0: i32) -> (i32, i32) {
    %c0_i32 = arith.constant 0 : i32
    %c0_i32_0 = arith.constant 0 : i32
    return %arg0, %c0_i32 : i32, i32
  }
  func.func @transform_2(%arg0: i32) -> (i32, i32) {
    %c0_i32 = arith.constant 0 : i32
    %c0_i32_0 = arith.constant 0 : i32
    %c0_i32_1 = arith.constant 0 : i32
    return %c0_i32, %c0_i32_0 : i32, i32
  }
  func.func @transform_3(%arg0: i32) -> (i32, i32) {
    %c0_i32 = arith.constant 0 : i32
    %c0_i32_0 = arith.constant 0 : i32
    %c0_i32_1 = arith.constant 0 : i32
    return %c0_i32, %c0_i32_0 : i32, i32
  }
  func.func @transform_4(%arg0: i32) -> (i32, i32) {
    %c0_i32 = arith.constant 0 : i32
    %c0_i32_0 = arith.constant 0 : i32
    return %arg0, %c0_i32 : i32, i32
  }
}

module attributes {stable_mosaic.version = 11 : i64} {
  func.func @_residual_mix_kernel(%arg0: i32, %arg1: memref<256x32xf32, #tpu.memory_space<vmem>>, %arg2: memref<256x32xf32, #tpu.memory_space<vmem>>, %arg3: memref<32x32xf32, #tpu.memory_space<vmem>>, %arg4: memref<1x32xf32, #tpu.memory_space<vmem>>, %arg5: memref<256x32xf32, #tpu.memory_space<vmem>>) attributes {dimension_semantics = [#tpu.dimension_semantics<parallel>], iteration_bounds = array<i64: 2>, scalar_prefetch = 0 : i64, scratch_operands = 0 : i64, tpu.core_type = #tpu.core_type<tc>, window_params = [{transform_indices = @transform_0, window_bounds = array<i64: 256, 32>}, {transform_indices = @transform_1, window_bounds = array<i64: 256, 32>}, {pipeline_mode = #tpu.pipeline_mode<synchronous>, transform_indices = @transform_2, window_bounds = array<i64: 32, 32>}, {pipeline_mode = #tpu.pipeline_mode<synchronous>, transform_indices = @transform_3, window_bounds = array<i64: 1, 32>}, {transform_indices = @transform_4, window_bounds = array<i64: 256, 32>}]} {
    %c0 = arith.constant 0 : index
    %c0_0 = arith.constant 0 : index
    %0 = vector.load %arg1[%c0, %c0_0] : memref<256x32xf32, #tpu.memory_space<vmem>>, vector<256x32xf32>
    %1 = arith.truncf %0 : vector<256x32xf32> to vector<256x32xbf16>
    %c0_1 = arith.constant 0 : index
    %c0_2 = arith.constant 0 : index
    %2 = vector.load %arg3[%c0_1, %c0_2] : memref<32x32xf32, #tpu.memory_space<vmem>>, vector<32x32xf32>
    %3 = arith.truncf %2 : vector<32x32xf32> to vector<32x32xbf16>
    %cst = arith.constant dense<0.000000e+00> : vector<256x32xf32>
    %4 = tpu.matmul %1, %3, %cst {dimension_numbers = #tpu.dot_dimension_numbers<[1], [0], [0], [1], [0, 0, 1, 1], [], []>} : vector<256x32xbf16>, vector<32x32xbf16>, vector<256x32xf32> -> vector<256x32xf32>
    %c0_3 = arith.constant 0 : index
    %c0_4 = arith.constant 0 : index
    %5 = vector.load %arg4[%c0_3, %c0_4] : memref<1x32xf32, #tpu.memory_space<vmem>>, vector<1x32xf32>
    %6 = vector.broadcast %5 : vector<1x32xf32> to vector<256x32xf32>
    %7 = arith.addf %4, %6 : vector<256x32xf32>
    %c0_5 = arith.constant 0 : index
    %c0_6 = arith.constant 0 : index
    %8 = vector.load %arg2[%c0_5, %c0_6] : memref<256x32xf32, #tpu.memory_space<vmem>>, vector<256x32xf32>
    %9 = arith.addf %7, %8 : vector<256x32xf32>
    %c0_7 = arith.constant 0 : index
    %c0_8 = arith.constant 0 : index
    %10 = vector.load %arg5[%c0_7, %c0_8] : memref<256x32xf32, #tpu.memory_space<vmem>>, vector<256x32xf32>
    tpu.vector_store %arg5[%c0_7, %c0_8], %9 {strides = array<i32>} : memref<256x32xf32, #tpu.memory_space<vmem>>, vector<256x32xf32>,
    return
  }
  func.func @transform_0(%arg0: i32) -> (i32, i32) {
    %c0_i32 = arith.constant 0 : i32
    %c0_i32_0 = arith.constant 0 : i32
    return %arg0, %c0_i32 : i32, i32
  }
  func.func @transform_1(%arg0: i32) -> (i32, i32) {
    %c0_i32 = arith.constant 0 : i32
    %c0_i32_0 = arith.constant 0 : i32
    return %arg0, %c0_i32 : i32, i32
  }
  func.func @transform_2(%arg0: i32) -> (i32, i32) {
    %c0_i32 = arith.constant 0 : i32
    %c0_i32_0 = arith.constant 0 : i32
    %c0_i32_1 = arith.constant 0 : i32
    return %c0_i32, %c0_i32_0 : i32, i32
  }
  func.func @transform_3(%arg0: i32) -> (i32, i32) {
    %c0_i32 = arith.constant 0 : i32
    %c0_i32_0 = arith.constant 0 : i32
    %c0_i32_1 = arith.constant 0 : i32
    return %c0_i32, %c0_i32_0 : i32, i32
  }
  func.func @transform_4(%arg0: i32) -> (i32, i32) {
    %c0_i32 = arith.constant 0 : i32
    %c0_i32_0 = arith.constant 0 : i32
    return %arg0, %c0_i32 : i32, i32
  }
}

module attributes {stable_mosaic.version = 11 : i64} {
  func.func @_mlp_head_kernel(%arg0: i32, %arg1: memref<256x32xf32, #tpu.memory_space<vmem>>, %arg2: memref<32x128xf32, #tpu.memory_space<vmem>>, %arg3: memref<1x128xf32, #tpu.memory_space<vmem>>, %arg4: memref<128x1xf32, #tpu.memory_space<vmem>>, %arg5: memref<1x1xf32, #tpu.memory_space<vmem>>, %arg6: memref<256x1xf32, #tpu.memory_space<vmem>>) attributes {dimension_semantics = [#tpu.dimension_semantics<parallel>], iteration_bounds = array<i64: 2>, scalar_prefetch = 0 : i64, scratch_operands = 0 : i64, tpu.core_type = #tpu.core_type<tc>, window_params = [{transform_indices = @transform_0, window_bounds = array<i64: 256, 32>}, {pipeline_mode = #tpu.pipeline_mode<synchronous>, transform_indices = @transform_1, window_bounds = array<i64: 32, 128>}, {pipeline_mode = #tpu.pipeline_mode<synchronous>, transform_indices = @transform_2, window_bounds = array<i64: 1, 128>}, {pipeline_mode = #tpu.pipeline_mode<synchronous>, transform_indices = @transform_3, window_bounds = array<i64: 128, 1>}, {pipeline_mode = #tpu.pipeline_mode<synchronous>, transform_indices = @transform_4, window_bounds = array<i64: 1, 1>}, {transform_indices = @transform_5, window_bounds = array<i64: 256, 1>}]} {
    %c0 = arith.constant 0 : index
    %c0_0 = arith.constant 0 : index
    %0 = vector.load %arg1[%c0, %c0_0] : memref<256x32xf32, #tpu.memory_space<vmem>>, vector<256x32xf32>
    %1 = arith.truncf %0 : vector<256x32xf32> to vector<256x32xbf16>
    %c0_1 = arith.constant 0 : index
    %c0_2 = arith.constant 0 : index
    %2 = vector.load %arg2[%c0_1, %c0_2] : memref<32x128xf32, #tpu.memory_space<vmem>>, vector<32x128xf32>
    %3 = arith.truncf %2 : vector<32x128xf32> to vector<32x128xbf16>
    %cst = arith.constant dense<0.000000e+00> : vector<256x128xf32>
    %4 = tpu.matmul %1, %3, %cst {dimension_numbers = #tpu.dot_dimension_numbers<[1], [0], [0], [1], [0, 0, 1, 1], [], []>} : vector<256x32xbf16>, vector<32x128xbf16>, vector<256x128xf32> -> vector<256x128xf32>
    %c0_3 = arith.constant 0 : index
    %c0_4 = arith.constant 0 : index
    %5 = vector.load %arg3[%c0_3, %c0_4] : memref<1x128xf32, #tpu.memory_space<vmem>>, vector<1x128xf32>
    %6 = vector.broadcast %5 : vector<1x128xf32> to vector<256x128xf32>
    %7 = arith.addf %4, %6 : vector<256x128xf32>
    %cst_5 = arith.constant 0.000000e+00 : f32
    %8 = vector.broadcast %cst_5 : f32 to vector<256x128xf32>
    %9 = arith.maximumf %7, %8 : vector<256x128xf32>
    %10 = arith.truncf %9 : vector<256x128xf32> to vector<256x128xbf16>
    %c0_6 = arith.constant 0 : index
    %c0_7 = arith.constant 0 : index
    %11 = vector.load %arg4[%c0_6, %c0_7] : memref<128x1xf32, #tpu.memory_space<vmem>>, vector<128x1xf32>
    %12 = arith.truncf %11 : vector<128x1xf32> to vector<128x1xbf16>
    %cst_8 = arith.constant dense<0.000000e+00> : vector<256x1xf32>
    %13 = tpu.matmul %10, %12, %cst_8 {dimension_numbers = #tpu.dot_dimension_numbers<[1], [0], [0], [1], [0, 0, 1, 1], [], []>} : vector<256x128xbf16>, vector<128x1xbf16>, vector<256x1xf32> -> vector<256x1xf32>
    %c0_9 = arith.constant 0 : index
    %c0_10 = arith.constant 0 : index
    %14 = vector.load %arg5[%c0_9, %c0_10] : memref<1x1xf32, #tpu.memory_space<vmem>>, vector<1x1xf32>
    %15 = vector.broadcast %14 : vector<1x1xf32> to vector<256x1xf32>
    %16 = arith.addf %13, %15 : vector<256x1xf32>
    %c0_11 = arith.constant 0 : index
    %c0_12 = arith.constant 0 : index
    %17 = vector.load %arg6[%c0_11, %c0_12] : memref<256x1xf32, #tpu.memory_space<vmem>>, vector<256x1xf32>
    tpu.vector_store %arg6[%c0_11, %c0_12], %16 {strides = array<i32>} : memref<256x1xf32, #tpu.memory_space<vmem>>, vector<256x1xf32>,
    return
  }
  func.func @transform_0(%arg0: i32) -> (i32, i32) {
    %c0_i32 = arith.constant 0 : i32
    %c0_i32_0 = arith.constant 0 : i32
    return %arg0, %c0_i32 : i32, i32
  }
  func.func @transform_1(%arg0: i32) -> (i32, i32) {
    %c0_i32 = arith.constant 0 : i32
    %c0_i32_0 = arith.constant 0 : i32
    %c0_i32_1 = arith.constant 0 : i32
    return %c0_i32, %c0_i32_0 : i32, i32
  }
  func.func @transform_2(%arg0: i32) -> (i32, i32) {
    %c0_i32 = arith.constant 0 : i32
    %c0_i32_0 = arith.constant 0 : i32
    %c0_i32_1 = arith.constant 0 : i32
    return %c0_i32, %c0_i32_0 : i32, i32
  }
  func.func @transform_3(%arg0: i32) -> (i32, i32) {
    %c0_i32 = arith.constant 0 : i32
    %c0_i32_0 = arith.constant 0 : i32
    %c0_i32_1 = arith.constant 0 : i32
    return %c0_i32, %c0_i32_0 : i32, i32
  }
  func.func @transform_4(%arg0: i32) -> (i32, i32) {
    %c0_i32 = arith.constant 0 : i32
    %c0_i32_0 = arith.constant 0 : i32
    %c0_i32_1 = arith.constant 0 : i32
    return %c0_i32, %c0_i32_0 : i32, i32
  }
  func.func @transform_5(%arg0: i32) -> (i32, i32) {
    %c0_i32 = arith.constant 0 : i32
    %c0_i32_0 = arith.constant 0 : i32
    return %arg0, %c0_i32 : i32, i32
  }
}

</mosaic_0001>

<llo_original>
// kernel: net2d_forward.10
$region0: #{net2d_forward.10}
  #allocation0 [shape = 'u32[]', space=smem, size = 0x4, offset = 0x4, fixed_abs, tag = 'smem constant byte address 0x4 - core index']
  #allocation1 [shape = 'u32[144,128]{1,0:T(1,128)}', space=vmem, size = 0x12000, scoped, tag = 'internal scratch']
  %s0 = inlined_call_operand.vmem [shape: f32[512,3], index: 0, kind: input, shape index: {}]
  %s1 = inlined_call_operand.hbm [shape: f32[3,32], index: 1, kind: input, shape index: {}]
  %s2 = inlined_call_operand.hbm [shape: f32[1,32], index: 2, kind: input, shape index: {}]
  %s3 = inlined_call_operand.vmem [shape: f32[512,32], index: 3, kind: output, shape index: {}]
  %s4 = sld [smem:[#allocation0]]
  $region53: #{net2d_forward.10} parent=0
    _
  %s6 = ssub.s32 1, %s4
  %s7 = scalar_select 0, %s6, %s4
  $region1: #{net2d_forward.10} parent=0
    #allocation2 [shape = 'u8[2048]{0}', space=vmem, size = 0x800, scoped, tag = 'input window, operand 1, single buffered']
    #allocation3 [shape = 's32[2]{0}', space=sflag, size = 0x8, scoped, tag = 'scoped memory for net2d_forward.10']
    #allocation4 [shape = 'u8[512]{0}', space=vmem, size = 0x400, scoped, tag = 'input window, operand 2, single buffered']
    #allocation5 [shape = 's32[1]{0}', space=sflag, size = 0x4, scoped, tag = 'scoped memory for net2d_forward.10']
    %8 = vsyncpa [#allocation3], 0
    %9 = vsyncpa [#allocation5], 0
    loop: start=0, step=1, limit=4
    $region2: #{net2d_forward.10} parent=1 // loop_pre_header
      _
    $region3: #{net2d_forward.10} parent=1 // loop_header
      %s11 = sphi 0, %s15
      %p12 = scmp.ge.s32.totalorder %s11, 4
      %s21 = sphi 0, %s23
      %s24 = sphi 0, %s21
      %s25 = sphi 0, %s24
      %s41 = sphi 0, %s25
      %s45 = sphi 0, %s45
      %s47 = sphi 0, %s45
      %s48 = sphi 0, %s47
      %s62 = sphi 0, %s48
      %s66 = sphi 0, %s66
      %s68 = sphi 0, %s66
      %s69 = sphi 0, %s68
      %s83 = sphi 0, %s69
      %s89 = sphi 0, %s91
      %s92 = sphi 0, %s89
      %s93 = sphi 0, %s92
      %s109 = sphi 0, %s93
    $region4: #{net2d_forward.10} parent=1 // loop_header_branch
      %14 = sbr.rel (%p12) target = $region8
    $region5: #{net2d_forward.10} parent=1 // loop_body
      %s16 = ssub.s32 %s11, 1
      %s17 = ssub.s32 %s11, 2
      %s18 = sadd.s32 %s11, 1
      %s19 = ssub.s32 %s11, %s18
      %p20 = scmp.eq.s32.totalorder %s19, 0
      %s22 = sadd.s32 %s21, 1
      %s23 = scalar_select %p20, %s21, %s22
      %p26 = pneg %p20
      %p27 = scmp.eq.s32.totalorder %s11, 1
      %p28 = por %p26, %p27
      %p29 = scmp.ne.s32.totalorder %s21, %s24
      %p30 = scmp.eq.s32.totalorder %s11, 0
      %p31 = por %p29, %p30
      %p32 = scmp.ne.s32.totalorder %s21, %s24
      %p33 = scmp.eq.s32.totalorder %s16, 1
      %p34 = por %p32, %p33
      %p35 = scmp.ne.s32.totalorder %s24, %s25
      %p36 = scmp.eq.s32.totalorder %s16, 0
      %p37 = por %p35, %p36
      %p38 = scmp.ne.s32.totalorder %s24, %s25
      %p39 = scmp.eq.s32.totalorder %s17, 1
      %p40 = por %p38, %p39
      %p42 = scmp.ne.s32.totalorder %s25, %s41
      %p43 = scmp.eq.s32.totalorder %s17, 0
      %p44 = por %p42, %p43
      %s46 = sadd.s32 %s45, 1
      %p49 = scmp.eq.s32.totalorder %s11, 1
      %p50 = scmp.ne.s32.totalorder %s45, %s47
      %p51 = scmp.eq.s32.totalorder %s11, 0
      %p52 = por %p50, %p51
      %p53 = scmp.ne.s32.totalorder %s45, %s47
      %p54 = scmp.eq.s32.totalorder %s16, 1
      %p55 = por %p53, %p54
      %p56 = scmp.ne.s32.totalorder %s47, %s48
      %p57 = scmp.eq.s32.totalorder %s16, 0
      %p58 = por %p56, %p57
      %p59 = scmp.ne.s32.totalorder %s47, %s48
      %p60 = scmp.eq.s32.totalorder %s17, 1
      %p61 = por %p59, %p60
      %p63 = scmp.ne.s32.totalorder %s48, %s62
      %p64 = scmp.eq.s32.totalorder %s17, 0
      %p65 = por %p63, %p64
      %s67 = sadd.s32 %s66, 1
      %p70 = scmp.eq.s32.totalorder %s11, 1
      %p71 = scmp.ne.s32.totalorder %s66, %s68
      %p72 = scmp.eq.s32.totalorder %s11, 0
      %p73 = por %p71, %p72
      %p74 = scmp.ne.s32.totalorder %s66, %s68
      %p75 = scmp.eq.s32.totalorder %s16, 1
      %p76 = por %p74, %p75
      %p77 = scmp.ne.s32.totalorder %s68, %s69
      %p78 = scmp.eq.s32.totalorder %s16, 0
      %p79 = por %p77, %p78
      %p80 = scmp.ne.s32.totalorder %s68, %s69
      %p81 = scmp.eq.s32.totalorder %s17, 1
      %p82 = por %p80, %p81
      %p84 = scmp.ne.s32.totalorder %s69, %s83
      %p85 = scmp.eq.s32.totalorder %s17, 0
      %p86 = por %p84, %p85
      %s87 = ssub.s32 %s11, %s18
      %p88 = scmp.eq.s32.totalorder %s87, 0
      %s90 = sadd.s32 %s89, 1
      %s91 = scalar_select %p88, %s89, %s90
      %p94 = pneg %p88
      %p95 = scmp.eq.s32.totalorder %s11, 1
      %p96 = por %p94, %p95
      %p97 = scmp.ne.s32.totalorder %s89, %s92
      %p98 = scmp.eq.s32.totalorder %s11, 0
      %p99 = por %p97, %p98
      %p100 = scmp.ne.s32.totalorder %s89, %s92
      %p101 = scmp.eq.s32.totalorder %s16, 1
      %p102 = por %p100, %p101
      %p103 = scmp.ne.s32.totalorder %s92, %s93
      %p104 = scmp.eq.s32.totalorder %s16, 0
      %p105 = por %p103, %p104
      %p106 = scmp.ne.s32.totalorder %s92, %s93
      %p107 = scmp.eq.s32.totalorder %s17, 1
      %p108 = por %p106, %p107
      %p110 = scmp.ne.s32.totalorder %s93, %s109
      %p111 = scmp.eq.s32.totalorder %s17, 0
      %p112 = por %p110, %p111
      %p113 = scmp.le.s32.totalorder 1, %s11
      %p114 = scmp.lt.s32.totalorder %s11, 3
      %p115 = pnand %p113, %p114
      %p116 = pneg %p115
      // Predicated region
      $region9: #{net2d_forward.10} parent=5 // pred_check
        _
      $region10: #{net2d_forward.10} parent=5 // pred_check_branch
        %118 = sbr.rel (%p115) target = $region12
      $region11: #{net2d_forward.10} parent=5 // pred_region
        %s119 = ssub.s32 %s11, 1
        // Predicated region
        $region13: #{net2d_forward.10} parent=11 // pred_check
          %p120 = pneg %p58
        $region14: #{net2d_forward.10} parent=11 // pred_check_branch
          %122 = sbr.rel (%p120) target = $region16
        $region15: #{net2d_forward.10} parent=11 // pred_region
          %s124 = ssub.s32 64, 64
          %125 = vsyncadd [#allocation3], %s124
          %s127 = sshll.u32 [#allocation2], 4
          %s128 = int_to_ptr.vmem [resolvable:$true] %s127
          %130 = dma.hbm_to_vmem [thread:$0]  %s1, 64, %s128, [#allocation3]
        $region16: #{net2d_forward.10} parent=11 // pred_fallthru
          _
        // Predicated region
        $region17: #{net2d_forward.10} parent=11 // pred_check
          %p131 = pneg %p79
        $region18: #{net2d_forward.10} parent=11 // pred_check_branch
          %133 = sbr.rel (%p131) target = $region20
        $region19: #{net2d_forward.10} parent=11 // pred_region
          %s135 = ssub.s32 16, 16
          %136 = vsyncadd [#allocation5], %s135
          %s138 = sshll.u32 [#allocation4], 4
          %s139 = int_to_ptr.vmem [resolvable:$true] %s138
          %141 = dma.hbm_to_vmem [thread:$0]  %s2, 16, %s139, [#allocation5]
        $region20: #{net2d_forward.10} parent=11 // pred_fallthru
          _
      $region12: #{net2d_forward.10} parent=5 // pred_fallthru
        _
      %p142 = scmp.lt.s32.totalorder %s11, 2
      // Predicated region
      $region21: #{net2d_forward.10} parent=5 // pred_check
        %p143 = pneg %p142
      $region22: #{net2d_forward.10} parent=5 // pred_check_branch
        %145 = sbr.rel (%p143) target = $region24
      $region23: #{net2d_forward.10} parent=5 // pred_region
        // Predicated region
        $region25: #{net2d_forward.10} parent=23 // pred_check
          %p146 = pneg %p31
        $region26: #{net2d_forward.10} parent=23 // pred_check_branch
          %148 = sbr.rel (%p146) target = $region28
        $region27: #{net2d_forward.10} parent=23 // pred_region
          %s149 = smul.u32 32, %s11
          %p150 = scmp.lt.s32.totalorder %s149, 63
          %s151 = scalar_select %p150, %s149, 63
          %s152 = smul.addr %s151, 8
          %s153 = scalar_lea.vmem %s0, %s152
          %s154 = smul.u32 32, %s11
        $region28: #{net2d_forward.10} parent=23 // pred_fallthru
          _
      $region24: #{net2d_forward.10} parent=5 // pred_fallthru
        _
      %p155 = scmp.le.s32.totalorder 1, %s11
      %p156 = scmp.lt.s32.totalorder %s11, 3
      %p157 = pnand %p155, %p156
      %p158 = pneg %p157
      // Predicated region
      $region29: #{net2d_forward.10} parent=5 // pred_check
        _
      $region30: #{net2d_forward.10} parent=5 // pred_check_branch
        %160 = sbr.rel (%p157) target = $region32
      $region31: #{net2d_forward.10} parent=5 // pred_region
        %s161 = ssub.s32 %s11, 1
        // Predicated region
        $region33: #{net2d_forward.10} parent=31 // pred_check
          %p162 = pneg %p58
        $region34: #{net2d_forward.10} parent=31 // pred_check_branch
          %164 = sbr.rel (%p162) target = $region36
        $region35: #{net2d_forward.10} parent=31 // pred_region
          %165 = dma.done [#allocation3], 64
        $region36: #{net2d_forward.10} parent=31 // pred_fallthru
          _
        // Predicated region
        $region37: #{net2d_forward.10} parent=31 // pred_check
          %p166 = pneg %p79
        $region38: #{net2d_forward.10} parent=31 // pred_check_branch
          %168 = sbr.rel (%p166) target = $region40
        $region39: #{net2d_forward.10} parent=31 // pred_region
          %169 = dma.done [#allocation5], 16
        $region40: #{net2d_forward.10} parent=31 // pred_fallthru
          _
        %s170 = smul.u32 32, %s16
        %p171 = scmp.lt.s32.totalorder %s170, 63
        %s172 = scalar_select %p171, %s170, 63
        %s173 = smul.addr %s172, 8
        %s174 = scalar_lea.vmem %s0, %s173
        %p175 = pneg %p37
        %p176 = pneg %p34
        %p177 = pneg %p58
        %p178 = pneg %p55
        %p179 = pneg %p79
        %p180 = pneg %p76
        %p181 = pneg %p105
        %p182 = pneg %p102
        %s183 = smul.u32 32, %s16
        %p184 = scmp.lt.s32.totalorder %s183, 63
        %s185 = scalar_select %p184, %s183, 63
        %s186 = smul.addr %s185, 8
        %s187 = scalar_lea.vmem %s3, %s186
        %s188 = smul.u32 32, %s16
        %p189 = scmp.lt.s32.totalorder %s188, 63
        %s190 = scalar_select %p189, %s188, 63
        %s191 = smul.addr %s190, 8
        %s192 = scalar_lea.vmem %s0, %s191
        %s193 = smul.u32 32, %s16
        %s194 = smul.u32 32, %s16
        %p195 = scmp.lt.s32.totalorder %s194, 63
        %s196 = scalar_select %p195, %s194, 63
        %s197 = smul.addr %s196, 8
        %s198 = scalar_lea.vmem %s3, %s197
        %s199 = smul.u32 32, %s16
        %v200 = vld [vmem:[%s192] sm:$0xff]
        %v201 = vld [vmem:[%s192 + $0x8] sm:$0xff]
        %v202 = vld [vmem:[%s192 + $0x10] sm:$0xff]
        %v203 = vld [vmem:[%s192 + $0x18] sm:$0xff]
        %v204 = vld [vmem:[%s192 + $0x20] sm:$0xff]
        %v205 = vld [vmem:[%s192 + $0x28] sm:$0xff]
        %v206 = vld [vmem:[%s192 + $0x30] sm:$0xff]
        %v207 = vld [vmem:[%s192 + $0x38] sm:$0xff]
        %v208 = vld [vmem:[%s192 + $0x40] sm:$0xff]
        %v209 = vld [vmem:[%s192 + $0x48] sm:$0xff]
        %v210 = vld [vmem:[%s192 + $0x50] sm:$0xff]
        %v211 = vld [vmem:[%s192 + $0x58] sm:$0xff]
        %v212 = vld [vmem:[%s192 + $0x60] sm:$0xff]
        %v213 = vld [vmem:[%s192 + $0x68] sm:$0xff]
        %v214 = vld [vmem:[%s192 + $0x70] sm:$0xff]
        %v215 = vld [vmem:[%s192 + $0x78] sm:$0xff]
        %v216 = vld [vmem:[%s192 + $0x80] sm:$0xff]
        %v217 = vld [vmem:[%s192 + $0x88] sm:$0xff]
        %v218 = vld [vmem:[%s192 + $0x90] sm:$0xff]
        %v219 = vld [vmem:[%s192 + $0x98] sm:$0xff]
        %v220 = vld [vmem:[%s192 + $0xa0] sm:$0xff]
        %v221 = vld [vmem:[%s192 + $0xa8] sm:$0xff]
        %v222 = vld [vmem:[%s192 + $0xb0] sm:$0xff]
        %v223 = vld [vmem:[%s192 + $0xb8] sm:$0xff]
        %v224 = vld [vmem:[%s192 + $0xc0] sm:$0xff]
        %v225 = vld [vmem:[%s192 + $0xc8] sm:$0xff]
        %v226 = vld [vmem:[%s192 + $0xd0] sm:$0xff]
        %v227 = vld [vmem:[%s192 + $0xd8] sm:$0xff]
        %v228 = vld [vmem:[%s192 + $0xe0] sm:$0xff]
        %v229 = vld [vmem:[%s192 + $0xe8] sm:$0xff]
        %v230 = vld [vmem:[%s192 + $0xf0] sm:$0xff]
        %v231 = vld [vmem:[%s192 + $0xf8] sm:$0xff]
        %v232 = vld [vmem:[#allocation2] sm:$0x7]
        %234 = vset.pattern.permute.xlu0 0
        %235 = vperm.xlu0 %234, %v200
        %v236 = vpop.permute.xlu0 %235
        %239 = vset.pattern.permute.xlu0 0
        %240 = vperm.xlu0 %239, %v201
        %v241 = vpop.permute.xlu0 %240
        %244 = vset.pattern.permute.xlu0 0
        %245 = vperm.xlu0 %244, %v202
        %v246 = vpop.permute.xlu0 %245
        %249 = vset.pattern.permute.xlu0 0
        %250 = vperm.xlu0 %249, %v203
        %v251 = vpop.permute.xlu0 %250
        %254 = vset.pattern.permute.xlu0 0
        %255 = vperm.xlu0 %254, %v204
        %v256 = vpop.permute.xlu0 %255
        %259 = vset.pattern.permute.xlu0 0
        %260 = vperm.xlu0 %259, %v205
        %v261 = vpop.permute.xlu0 %260
        %264 = vset.pattern.permute.xlu0 0
        %265 = vperm.xlu0 %264, %v206
        %v266 = vpop.permute.xlu0 %265
        %269 = vset.pattern.permute.xlu0 0
        %270 = vperm.xlu0 %269, %v207
        %v271 = vpop.permute.xlu0 %270
        %274 = vset.pattern.permute.xlu0 0
        %275 = vperm.xlu0 %274, %v208
        %v276 = vpop.permute.xlu0 %275
        %279 = vset.pattern.permute.xlu0 0
        %280 = vperm.xlu0 %279, %v209
        %v281 = vpop.permute.xlu0 %280
        %284 = vset.pattern.permute.xlu0 0
        %285 = vperm.xlu0 %284, %v210
        %v286 = vpop.permute.xlu0 %285
        %289 = vset.pattern.permute.xlu0 0
        %290 = vperm.xlu0 %289, %v211
        %v291 = vpop.permute.xlu0 %290
        %294 = vset.pattern.permute.xlu0 0
        %295 = vperm.xlu0 %294, %v212
        %v296 = vpop.permute.xlu0 %295
        %299 = vset.pattern.permute.xlu0 0
        %300 = vperm.xlu0 %299, %v213
        %v301 = vpop.permute.xlu0 %300
        %304 = vset.pattern.permute.xlu0 0
        %305 = vperm.xlu0 %304, %v214
        %v306 = vpop.permute.xlu0 %305
        %309 = vset.pattern.permute.xlu0 0
        %310 = vperm.xlu0 %309, %v215
        %v311 = vpop.permute.xlu0 %310
        %314 = vset.pattern.permute.xlu0 0
        %315 = vperm.xlu0 %314, %v216
        %v316 = vpop.permute.xlu0 %315
        %319 = vset.pattern.permute.xlu0 0
        %320 = vperm.xlu0 %319, %v217
        %v321 = vpop.permute.xlu0 %320
        %324 = vset.pattern.permute.xlu0 0
        %325 = vperm.xlu0 %324, %v218
        %v326 = vpop.permute.xlu0 %325
        %329 = vset.pattern.permute.xlu0 0
        %330 = vperm.xlu0 %329, %v219
        %v331 = vpop.permute.xlu0 %330
        %334 = vset.pattern.permute.xlu0 0
        %335 = vperm.xlu0 %334, %v220
        %v336 = vpop.permute.xlu0 %335
        %339 = vset.pattern.permute.xlu0 0
        %340 = vperm.xlu0 %339, %v221
        %v341 = vpop.permute.xlu0 %340
        %344 = vset.pattern.permute.xlu0 0
        %345 = vperm.xlu0 %344, %v222
        %v346 = vpop.permute.xlu0 %345
        %349 = vset.pattern.permute.xlu0 0
        %350 = vperm.xlu0 %349, %v223
        %v351 = vpop.permute.xlu0 %350
        %354 = vset.pattern.permute.xlu0 0
        %355 = vperm.xlu0 %354, %v224
        %v356 = vpop.permute.xlu0 %355
        %359 = vset.pattern.permute.xlu0 0
        %360 = vperm.xlu0 %359, %v225
        %v361 = vpop.permute.xlu0 %360
        %364 = vset.pattern.permute.xlu0 0
        %365 = vperm.xlu0 %364, %v226
        %v366 = vpop.permute.xlu0 %365
        %369 = vset.pattern.permute.xlu0 0
        %370 = vperm.xlu0 %369, %v227
        %v371 = vpop.permute.xlu0 %370
        %374 = vset.pattern.permute.xlu0 0
        %375 = vperm.xlu0 %374, %v228
        %v376 = vpop.permute.xlu0 %375
        %379 = vset.pattern.permute.xlu0 0
        %380 = vperm.xlu0 %379, %v229
        %v381 = vpop.permute.xlu0 %380
        %384 = vset.pattern.permute.xlu0 0
        %385 = vperm.xlu0 %384, %v230
        %v386 = vpop.permute.xlu0 %385
        %389 = vset.pattern.permute.xlu0 0
        %390 = vperm.xlu0 %389, %v231
        %v391 = vpop.permute.xlu0 %390
        %v393 = vlaneseq
        %v394 = vshrl.u32 %v393, 7
        %v395 = vsub.s32 0, %v394
        %v396 = vrot.slane %v232, %v395
        %v397 = vmul.f32 %v236, %v396
        %v398 = vmul.f32 %v241, %v396
        %v399 = vmul.f32 %v246, %v396
        %v400 = vmul.f32 %v251, %v396
        %v401 = vmul.f32 %v256, %v396
        %v402 = vmul.f32 %v261, %v396
        %v403 = vmul.f32 %v266, %v396
        %v404 = vmul.f32 %v271, %v396
        %v405 = vmul.f32 %v276, %v396
        %v406 = vmul.f32 %v281, %v396
        %v407 = vmul.f32 %v286, %v396
        %v408 = vmul.f32 %v291, %v396
        %v409 = vmul.f32 %v296, %v396
        %v410 = vmul.f32 %v301, %v396
        %v411 = vmul.f32 %v306, %v396
        %v412 = vmul.f32 %v311, %v396
        %v413 = vmul.f32 %v316, %v396
        %v414 = vmul.f32 %v321, %v396
        %v415 = vmul.f32 %v326, %v396
        %v416 = vmul.f32 %v331, %v396
        %v417 = vmul.f32 %v336, %v396
        %v418 = vmul.f32 %v341, %v396
        %v419 = vmul.f32 %v346, %v396
        %v420 = vmul.f32 %v351, %v396
        %v421 = vmul.f32 %v356, %v396
        %v422 = vmul.f32 %v361, %v396
        %v423 = vmul.f32 %v366, %v396
        %v424 = vmul.f32 %v371, %v396
        %v425 = vmul.f32 %v376, %v396
        %v426 = vmul.f32 %v381, %v396
        %v427 = vmul.f32 %v386, %v396
        %v428 = vmul.f32 %v391, %v396
        %429 = vset.pattern.permute.xlu0 1
        %430 = vperm.xlu0 %429, %v200
        %v431 = vpop.permute.xlu0 %430
        %433 = vset.pattern.permute.xlu0 1
        %434 = vperm.xlu0 %433, %v201
        %v435 = vpop.permute.xlu0 %434
        %437 = vset.pattern.permute.xlu0 1
        %438 = vperm.xlu0 %437, %v202
        %v439 = vpop.permute.xlu0 %438
        %441 = vset.pattern.permute.xlu0 1
        %442 = vperm.xlu0 %441, %v203
        %v443 = vpop.permute.xlu0 %442
        %445 = vset.pattern.permute.xlu0 1
        %446 = vperm.xlu0 %445, %v204
        %v447 = vpop.permute.xlu0 %446
        %449 = vset.pattern.permute.xlu0 1
        %450 = vperm.xlu0 %449, %v205
        %v451 = vpop.permute.xlu0 %450
        %453 = vset.pattern.permute.xlu0 1
        %454 = vperm.xlu0 %453, %v206
        %v455 = vpop.permute.xlu0 %454
        %457 = vset.pattern.permute.xlu0 1
        %458 = vperm.xlu0 %457, %v207
        %v459 = vpop.permute.xlu0 %458
        %461 = vset.pattern.permute.xlu0 1
        %462 = vperm.xlu0 %461, %v208
        %v463 = vpop.permute.xlu0 %462
        %465 = vset.pattern.permute.xlu0 1
        %466 = vperm.xlu0 %465, %v209
        %v467 = vpop.permute.xlu0 %466
        %469 = vset.pattern.permute.xlu0 1
        %470 = vperm.xlu0 %469, %v210
        %v471 = vpop.permute.xlu0 %470
        %473 = vset.pattern.permute.xlu0 1
        %474 = vperm.xlu0 %473, %v211
        %v475 = vpop.permute.xlu0 %474
        %477 = vset.pattern.permute.xlu0 1
        %478 = vperm.xlu0 %477, %v212
        %v479 = vpop.permute.xlu0 %478
        %481 = vset.pattern.permute.xlu0 1
        %482 = vperm.xlu0 %481, %v213
        %v483 = vpop.permute.xlu0 %482
        %485 = vset.pattern.permute.xlu0 1
        %486 = vperm.xlu0 %485, %v214
        %v487 = vpop.permute.xlu0 %486
        %489 = vset.pattern.permute.xlu0 1
        %490 = vperm.xlu0 %489, %v215
        %v491 = vpop.permute.xlu0 %490
        %493 = vset.pattern.permute.xlu0 1
        %494 = vperm.xlu0 %493, %v216
        %v495 = vpop.permute.xlu0 %494
        %497 = vset.pattern.permute.xlu0 1
        %498 = vperm.xlu0 %497, %v217
        %v499 = vpop.permute.xlu0 %498
        %501 = vset.pattern.permute.xlu0 1
        %502 = vperm.xlu0 %501, %v218
        %v503 = vpop.permute.xlu0 %502
        %505 = vset.pattern.permute.xlu0 1
        %506 = vperm.xlu0 %505, %v219
        %v507 = vpop.permute.xlu0 %506
        %509 = vset.pattern.permute.xlu0 1
        %510 = vperm.xlu0 %509, %v220
        %v511 = vpop.permute.xlu0 %510
        %513 = vset.pattern.permute.xlu0 1
        %514 = vperm.xlu0 %513, %v221
        %v515 = vpop.permute.xlu0 %514
        %517 = vset.pattern.permute.xlu0 1
        %518 = vperm.xlu0 %517, %v222
        %v519 = vpop.permute.xlu0 %518
        %521 = vset.pattern.permute.xlu0 1
        %522 = vperm.xlu0 %521, %v223
        %v523 = vpop.permute.xlu0 %522
        %525 = vset.pattern.permute.xlu0 1
        %526 = vperm.xlu0 %525, %v224
        %v527 = vpop.permute.xlu0 %526
        %529 = vset.pattern.permute.xlu0 1
        %530 = vperm.xlu0 %529, %v225
        %v531 = vpop.permute.xlu0 %530
        %533 = vset.pattern.permute.xlu0 1
        %534 = vperm.xlu0 %533, %v226
        %v535 = vpop.permute.xlu0 %534
        %537 = vset.pattern.permute.xlu0 1
        %538 = vperm.xlu0 %537, %v227
        %v539 = vpop.permute.xlu0 %538
        %541 = vset.pattern.permute.xlu0 1
        %542 = vperm.xlu0 %541, %v228
        %v543 = vpop.permute.xlu0 %542
        %545 = vset.pattern.permute.xlu0 1
        %546 = vperm.xlu0 %545, %v229
        %v547 = vpop.permute.xlu0 %546
        %549 = vset.pattern.permute.xlu0 1
        %550 = vperm.xlu0 %549, %v230
        %v551 = vpop.permute.xlu0 %550
        %553 = vset.pattern.permute.xlu0 1
        %554 = vperm.xlu0 %553, %v231
        %v555 = vpop.permute.xlu0 %554
        %v557 = vlaneseq
        %v558 = vshrl.u32 %v557, 7
        %v559 = vsub.s32 1, %v558
        %v560 = vrot.slane %v232, %v559
        %v561 = vmul.f32 %v431, %v560
        %v562 = vmul.f32 %v435, %v560
        %v563 = vmul.f32 %v439, %v560
        %v564 = vmul.f32 %v443, %v560
        %v565 = vmul.f32 %v447, %v560
        %v566 = vmul.f32 %v451, %v560
        %v567 = vmul.f32 %v455, %v560
        %v568 = vmul.f32 %v459, %v560
        %v569 = vmul.f32 %v463, %v560
        %v570 = vmul.f32 %v467, %v560
        %v571 = vmul.f32 %v471, %v560
        %v572 = vmul.f32 %v475, %v560
        %v573 = vmul.f32 %v479, %v560
        %v574 = vmul.f32 %v483, %v560
        %v575 = vmul.f32 %v487, %v560
        %v576 = vmul.f32 %v491, %v560
        %v577 = vmul.f32 %v495, %v560
        %v578 = vmul.f32 %v499, %v560
        %v579 = vmul.f32 %v503, %v560
        %v580 = vmul.f32 %v507, %v560
        %v581 = vmul.f32 %v511, %v560
        %v582 = vmul.f32 %v515, %v560
        %v583 = vmul.f32 %v519, %v560
        %v584 = vmul.f32 %v523, %v560
        %v585 = vmul.f32 %v527, %v560
        %v586 = vmul.f32 %v531, %v560
        %v587 = vmul.f32 %v535, %v560
        %v588 = vmul.f32 %v539, %v560
        %v589 = vmul.f32 %v543, %v560
        %v590 = vmul.f32 %v547, %v560
        %v591 = vmul.f32 %v551, %v560
        %v592 = vmul.f32 %v555, %v560
        %v593 = vadd.f32 %v397, %v561
        %v594 = vadd.f32 %v398, %v562
        %v595 = vadd.f32 %v399, %v563
        %v596 = vadd.f32 %v400, %v564
        %v597 = vadd.f32 %v401, %v565
        %v598 = vadd.f32 %v402, %v566
        %v599 = vadd.f32 %v403, %v567
        %v600 = vadd.f32 %v404, %v568
        %v601 = vadd.f32 %v405, %v569
        %v602 = vadd.f32 %v406, %v570
        %v603 = vadd.f32 %v407, %v571
        %v604 = vadd.f32 %v408, %v572
        %v605 = vadd.f32 %v409, %v573
        %v606 = vadd.f32 %v410, %v574
        %v607 = vadd.f32 %v411, %v575
        %v608 = vadd.f32 %v412, %v576
        %v609 = vadd.f32 %v413, %v577
        %v610 = vadd.f32 %v414, %v578
        %v611 = vadd.f32 %v415, %v579
        %v612 = vadd.f32 %v416, %v580
        %v613 = vadd.f32 %v417, %v581
        %v614 = vadd.f32 %v418, %v582
        %v615 = vadd.f32 %v419, %v583
        %v616 = vadd.f32 %v420, %v584
        %v617 = vadd.f32 %v421, %v585
        %v618 = vadd.f32 %v422, %v586
        %v619 = vadd.f32 %v423, %v587
        %v620 = vadd.f32 %v424, %v588
        %v621 = vadd.f32 %v425, %v589
        %v622 = vadd.f32 %v426, %v590
        %v623 = vadd.f32 %v427, %v591
        %v624 = vadd.f32 %v428, %v592
        %625 = vset.pattern.permute.xlu0 2
        %626 = vperm.xlu0 %625, %v200
        %v627 = vpop.permute.xlu0 %626
        %629 = vset.pattern.permute.xlu0 2
        %630 = vperm.xlu0 %629, %v201
        %v631 = vpop.permute.xlu0 %630
        %633 = vset.pattern.permute.xlu0 2
        %634 = vperm.xlu0 %633, %v202
        %v635 = vpop.permute.xlu0 %634
        %637 = vset.pattern.permute.xlu0 2
        %638 = vperm.xlu0 %637, %v203
        %v639 = vpop.permute.xlu0 %638
        %641 = vset.pattern.permute.xlu0 2
        %642 = vperm.xlu0 %641, %v204
        %v643 = vpop.permute.xlu0 %642
        %645 = vset.pattern.permute.xlu0 2
        %646 = vperm.xlu0 %645, %v205
        %v647 = vpop.permute.xlu0 %646
        %649 = vset.pattern.permute.xlu0 2
        %650 = vperm.xlu0 %649, %v206
        %v651 = vpop.permute.xlu0 %650
        %653 = vset.pattern.permute.xlu0 2
        %654 = vperm.xlu0 %653, %v207
        %v655 = vpop.permute.xlu0 %654
        %657 = vset.pattern.permute.xlu0 2
        %658 = vperm.xlu0 %657, %v208
        %v659 = vpop.permute.xlu0 %658
        %661 = vset.pattern.permute.xlu0 2
        %662 = vperm.xlu0 %661, %v209
        %v663 = vpop.permute.xlu0 %662
        %665 = vset.pattern.permute.xlu0 2
        %666 = vperm.xlu0 %665, %v210
        %v667 = vpop.permute.xlu0 %666
        %669 = vset.pattern.permute.xlu0 2
        %670 = vperm.xlu0 %669, %v211
        %v671 = vpop.permute.xlu0 %670
        %673 = vset.pattern.permute.xlu0 2
        %674 = vperm.xlu0 %673, %v212
        %v675 = vpop.permute.xlu0 %674
        %677 = vset.pattern.permute.xlu0 2
        %678 = vperm.xlu0 %677, %v213
        %v679 = vpop.permute.xlu0 %678
        %681 = vset.pattern.permute.xlu0 2
        %682 = vperm.xlu0 %681, %v214
        %v683 = vpop.permute.xlu0 %682
        %685 = vset.pattern.permute.xlu0 2
        %686 = vperm.xlu0 %685, %v215
        %v687 = vpop.permute.xlu0 %686
        %689 = vset.pattern.permute.xlu0 2
        %690 = vperm.xlu0 %689, %v216
        %v691 = vpop.permute.xlu0 %690
        %693 = vset.pattern.permute.xlu0 2
        %694 = vperm.xlu0 %693, %v217
        %v695 = vpop.permute.xlu0 %694
        %697 = vset.pattern.permute.xlu0 2
        %698 = vperm.xlu0 %697, %v218
        %v699 = vpop.permute.xlu0 %698
        %701 = vset.pattern.permute.xlu0 2
        %702 = vperm.xlu0 %701, %v219
        %v703 = vpop.permute.xlu0 %702
        %705 = vset.pattern.permute.xlu0 2
        %706 = vperm.xlu0 %705, %v220
        %v707 = vpop.permute.xlu0 %706
        %709 = vset.pattern.permute.xlu0 2
        %710 = vperm.xlu0 %709, %v221
        %v711 = vpop.permute.xlu0 %710
        %713 = vset.pattern.permute.xlu0 2
        %714 = vperm.xlu0 %713, %v222
        %v715 = vpop.permute.xlu0 %714
        %717 = vset.pattern.permute.xlu0 2
        %718 = vperm.xlu0 %717, %v223
        %v719 = vpop.permute.xlu0 %718
        %721 = vset.pattern.permute.xlu0 2
        %722 = vperm.xlu0 %721, %v224
        %v723 = vpop.permute.xlu0 %722
        %725 = vset.pattern.permute.xlu0 2
        %726 = vperm.xlu0 %725, %v225
        %v727 = vpop.permute.xlu0 %726
        %729 = vset.pattern.permute.xlu0 2
        %730 = vperm.xlu0 %729, %v226
        %v731 = vpop.permute.xlu0 %730
        %733 = vset.pattern.permute.xlu0 2
        %734 = vperm.xlu0 %733, %v227
        %v735 = vpop.permute.xlu0 %734
        %737 = vset.pattern.permute.xlu0 2
        %738 = vperm.xlu0 %737, %v228
        %v739 = vpop.permute.xlu0 %738
        %741 = vset.pattern.permute.xlu0 2
        %742 = vperm.xlu0 %741, %v229
        %v743 = vpop.permute.xlu0 %742
        %745 = vset.pattern.permute.xlu0 2
        %746 = vperm.xlu0 %745, %v230
        %v747 = vpop.permute.xlu0 %746
        %749 = vset.pattern.permute.xlu0 2
        %750 = vperm.xlu0 %749, %v231
        %v751 = vpop.permute.xlu0 %750
        %v753 = vlaneseq
        %v754 = vshrl.u32 %v753, 7
        %v755 = vsub.s32 2, %v754
        %v756 = vrot.slane %v232, %v755
        %v757 = vmul.f32 %v627, %v756
        %v758 = vmul.f32 %v631, %v756
        %v759 = vmul.f32 %v635, %v756
        %v760 = vmul.f32 %v639, %v756
        %v761 = vmul.f32 %v643, %v756
        %v762 = vmul.f32 %v647, %v756
        %v763 = vmul.f32 %v651, %v756
        %v764 = vmul.f32 %v655, %v756
        %v765 = vmul.f32 %v659, %v756
        %v766 = vmul.f32 %v663, %v756
        %v767 = vmul.f32 %v667, %v756
        %v768 = vmul.f32 %v671, %v756
        %v769 = vmul.f32 %v675, %v756
        %v770 = vmul.f32 %v679, %v756
        %v771 = vmul.f32 %v683, %v756
        %v772 = vmul.f32 %v687, %v756
        %v773 = vmul.f32 %v691, %v756
        %v774 = vmul.f32 %v695, %v756
        %v775 = vmul.f32 %v699, %v756
        %v776 = vmul.f32 %v703, %v756
        %v777 = vmul.f32 %v707, %v756
        %v778 = vmul.f32 %v711, %v756
        %v779 = vmul.f32 %v715, %v756
        %v780 = vmul.f32 %v719, %v756
        %v781 = vmul.f32 %v723, %v756
        %v782 = vmul.f32 %v727, %v756
        %v783 = vmul.f32 %v731, %v756
        %v784 = vmul.f32 %v735, %v756
        %v785 = vmul.f32 %v739, %v756
        %v786 = vmul.f32 %v743, %v756
        %v787 = vmul.f32 %v747, %v756
        %v788 = vmul.f32 %v751, %v756
        %v789 = vadd.f32 %v593, %v757
        %v790 = vadd.f32 %v594, %v758
        %v791 = vadd.f32 %v595, %v759
        %v792 = vadd.f32 %v596, %v760
        %v793 = vadd.f32 %v597, %v761
        %v794 = vadd.f32 %v598, %v762
        %v795 = vadd.f32 %v599, %v763
        %v796 = vadd.f32 %v600, %v764
        %v797 = vadd.f32 %v601, %v765
        %v798 = vadd.f32 %v602, %v766
        %v799 = vadd.f32 %v603, %v767
        %v800 = vadd.f32 %v604, %v768
        %v801 = vadd.f32 %v605, %v769
        %v802 = vadd.f32 %v606, %v770
        %v803 = vadd.f32 %v607, %v771
        %v804 = vadd.f32 %v608, %v772
        %v805 = vadd.f32 %v609, %v773
        %v806 = vadd.f32 %v610, %v774
        %v807 = vadd.f32 %v611, %v775
        %v808 = vadd.f32 %v612, %v776
        %v809 = vadd.f32 %v613, %v777
        %v810 = vadd.f32 %v614, %v778
        %v811 = vadd.f32 %v615, %v779
        %v812 = vadd.f32 %v616, %v780
        %v813 = vadd.f32 %v617, %v781
        %v814 = vadd.f32 %v618, %v782
        %v815 = vadd.f32 %v619, %v783
        %v816 = vadd.f32 %v620, %v784
        %v817 = vadd.f32 %v621, %v785
        %v818 = vadd.f32 %v622, %v786
        %v819 = vadd.f32 %v623, %v787
        %v820 = vadd.f32 %v624, %v788
        %v821 = vld [vmem:[#allocation4] sm:$0x1]
        %v823 = vlaneseq
        %v824 = vshrl.u32 %v823, 7
        %v825 = vsub.s32 0, %v824
        %v826 = vrot.slane %v821, %v825
        %v828 = vadd.f32 %v789, %v826
        %v829 = vadd.f32 %v790, %v826
        %v830 = vadd.f32 %v791, %v826
        %v831 = vadd.f32 %v792, %v826
        %v832 = vadd.f32 %v793, %v826
        %v833 = vadd.f32 %v794, %v826
        %v834 = vadd.f32 %v795, %v826
        %v835 = vadd.f32 %v796, %v826
        %v836 = vadd.f32 %v797, %v826
        %v837 = vadd.f32 %v798, %v826
        %v838 = vadd.f32 %v799, %v826
        %v839 = vadd.f32 %v800, %v826
        %v840 = vadd.f32 %v801, %v826
        %v841 = vadd.f32 %v802, %v826
        %v842 = vadd.f32 %v803, %v826
        %v843 = vadd.f32 %v804, %v826
        %v844 = vadd.f32 %v805, %v826
        %v845 = vadd.f32 %v806, %v826
        %v846 = vadd.f32 %v807, %v826
        %v847 = vadd.f32 %v808, %v826
        %v848 = vadd.f32 %v809, %v826
        %v849 = vadd.f32 %v810, %v826
        %v850 = vadd.f32 %v811, %v826
        %v851 = vadd.f32 %v812, %v826
        %v852 = vadd.f32 %v813, %v826
        %v853 = vadd.f32 %v814, %v826
        %v854 = vadd.f32 %v815, %v826
        %v855 = vadd.f32 %v816, %v826
        %v856 = vadd.f32 %v817, %v826
        %v857 = vadd.f32 %v818, %v826
        %v858 = vadd.f32 %v819, %v826
        %v859 = vadd.f32 %v820, %v826
        %vm860 = vcmask 261120
        %861 = vst.msk [vmem:[%s198] sm:$0xff] %vm860, %v828
        %862 = vst.msk [vmem:[%s198 + $0x8] sm:$0xff] %vm860, %v829
        %863 = vst.msk [vmem:[%s198 + $0x10] sm:$0xff] %vm860, %v830
        %864 = vst.msk [vmem:[%s198 + $0x18] sm:$0xff] %vm860, %v831
        %865 = vst.msk [vmem:[%s198 + $0x20] sm:$0xff] %vm860, %v832
        %866 = vst.msk [vmem:[%s198 + $0x28] sm:$0xff] %vm860, %v833
        %867 = vst.msk [vmem:[%s198 + $0x30] sm:$0xff] %vm860, %v834
        %868 = vst.msk [vmem:[%s198 + $0x38] sm:$0xff] %vm860, %v835
        %869 = vst.msk [vmem:[%s198 + $0x40] sm:$0xff] %vm860, %v836
        %870 = vst.msk [vmem:[%s198 + $0x48] sm:$0xff] %vm860, %v837
        %871 = vst.msk [vmem:[%s198 + $0x50] sm:$0xff] %vm860, %v838
        %872 = vst.msk [vmem:[%s198 + $0x58] sm:$0xff] %vm860, %v839
        %873 = vst.msk [vmem:[%s198 + $0x60] sm:$0xff] %vm860, %v840
        %874 = vst.msk [vmem:[%s198 + $0x68] sm:$0xff] %vm860, %v841
        %875 = vst.msk [vmem:[%s198 + $0x70] sm:$0xff] %vm860, %v842
        %876 = vst.msk [vmem:[%s198 + $0x78] sm:$0xff] %vm860, %v843
        %877 = vst.msk [vmem:[%s198 + $0x80] sm:$0xff] %vm860, %v844
        %878 = vst.msk [vmem:[%s198 + $0x88] sm:$0xff] %vm860, %v845
        %879 = vst.msk [vmem:[%s198 + $0x90] sm:$0xff] %vm860, %v846
        %880 = vst.msk [vmem:[%s198 + $0x98] sm:$0xff] %vm860, %v847
        %881 = vst.msk [vmem:[%s198 + $0xa0] sm:$0xff] %vm860, %v848
        %882 = vst.msk [vmem:[%s198 + $0xa8] sm:$0xff] %vm860, %v849
        %883 = vst.msk [vmem:[%s198 + $0xb0] sm:$0xff] %vm860, %v850
        %884 = vst.msk [vmem:[%s198 + $0xb8] sm:$0xff] %vm860, %v851
        %885 = vst.msk [vmem:[%s198 + $0xc0] sm:$0xff] %vm860, %v852
        %886 = vst.msk [vmem:[%s198 + $0xc8] sm:$0xff] %vm860, %v853
        %887 = vst.msk [vmem:[%s198 + $0xd0] sm:$0xff] %vm860, %v854
        %888 = vst.msk [vmem:[%s198 + $0xd8] sm:$0xff] %vm860, %v855
        %889 = vst.msk [vmem:[%s198 + $0xe0] sm:$0xff] %vm860, %v856
        %890 = vst.msk [vmem:[%s198 + $0xe8] sm:$0xff] %vm860, %v857
        %891 = vst.msk [vmem:[%s198 + $0xf0] sm:$0xff] %vm860, %v858
        %892 = vst.msk [vmem:[%s198 + $0xf8] sm:$0xff] %vm860, %v859
        %s893 = smul.u32 32, %s16
        %p894 = scmp.lt.s32.totalorder %s893, 63
        %s895 = scalar_select %p894, %s893, 63
        %s896 = smul.addr %s895, 8
        %s897 = scalar_lea.vmem %s3, %s896
        // Predicated region
        $region41: #{net2d_forward.10} parent=31 // pred_check
          %p898 = pneg %p102
        $region42: #{net2d_forward.10} parent=31 // pred_check_branch
          %900 = sbr.rel (%p898) target = $region44
        $region43: #{net2d_forward.10} parent=31 // pred_region
          %s901 = smul.u32 32, %s16
        $region44: #{net2d_forward.10} parent=31 // pred_fallthru
          _
      $region32: #{net2d_forward.10} parent=5 // pred_fallthru
        _
      %p902 = scmp.le.s32.totalorder 2, %s11
      // Predicated region
      $region45: #{net2d_forward.10} parent=5 // pred_check
        %p903 = pneg %p902
      $region46: #{net2d_forward.10} parent=5 // pred_check_branch
        %905 = sbr.rel (%p903) target = $region48
      $region47: #{net2d_forward.10} parent=5 // pred_region
        %s906 = ssub.s32 %s11, 2
        // Predicated region
        $region49: #{net2d_forward.10} parent=47 // pred_check
          %p907 = pneg %p108
        $region50: #{net2d_forward.10} parent=47 // pred_check_branch
          %909 = sbr.rel (%p907) target = $region52
        $region51: #{net2d_forward.10} parent=47 // pred_region
          %s910 = smul.u32 32, %s17
          %p911 = scmp.lt.s32.totalorder %s910, 63
          %s912 = scalar_select %p911, %s910, 63
          %s913 = smul.addr %s912, 8
          %s914 = scalar_lea.vmem %s3, %s913
        $region52: #{net2d_forward.10} parent=47 // pred_fallthru
          _
      $region48: #{net2d_forward.10} parent=5 // pred_fallthru
        _
    $region6: #{net2d_forward.10} parent=1 // loop_footer
      %s15 = sadd.s32 1, %s11
    $region7: #{net2d_forward.10} parent=1 // loop_footer_branch
      %10 = sbr.rel target = $region3
    $region8: #{net2d_forward.10} parent=1 // loop_exit
      _
    %915 = vsyncpa [#allocation3], 1
    %s916 = scalar_lea.sflag [#allocation3], 1
    %917 = vsyncpa %s916, 1
    %918 = vsyncpa [#allocation5], 1

// kernel: neg.8
$region0: #{neg.8}
  #allocation0 [shape = 's32[1]{0}', space=sflag, size = 0x4, scoped, tag = 'scoped memory for neg.8']
  %s0 = inlined_call_operand.vmem [shape: f32[36,32,32], index: 0, kind: input, shape index: {}]
  %s1 = inlined_call_operand.vmem [shape: f32[36,32,32], index: 1, kind: output, shape index: {}]
  %v2 = vld [vmem:[%s0] sm:$0xff]
  %3 = xla_tuple %v2
  %4 = xla_tuple %3
  %v5 = vxor.u32 %v2, 2147483648
  %6 = xla_tuple %v5
  %7 = vst [vmem:[%s1] sm:$0xff] %v5
  %s8 = scalar_lea.vmem %s0, 32
  %v9 = vld [vmem:[%s8] sm:$0xff]
  %10 = xla_tuple %v9
  %11 = xla_tuple %10
  %v12 = vxor.u32 %v9, 2147483648
  %13 = xla_tuple %v12
  %s14 = scalar_lea.vmem %s1, 32
  %15 = vst [vmem:[%s14] sm:$0xff] %v12
  %s16 = scalar_lea.vmem %s0, 64
  %v17 = vld [vmem:[%s16] sm:$0xff]
  %18 = xla_tuple %v17
  %19 = xla_tuple %18
  %v20 = vxor.u32 %v17, 2147483648
  %21 = xla_tuple %v20
  %s22 = scalar_lea.vmem %s1, 64
  %23 = vst [vmem:[%s22] sm:$0xff] %v20
  %s24 = scalar_lea.vmem %s0, 96
  %v25 = vld [vmem:[%s24] sm:$0xff]
  %26 = xla_tuple %v25
  %27 = xla_tuple %26
  %v28 = vxor.u32 %v25, 2147483648
  %29 = xla_tuple %v28
  %s30 = scalar_lea.vmem %s1, 96
  %31 = vst [vmem:[%s30] sm:$0xff] %v28
  %s32 = scalar_lea.vmem %s0, 128
  %v33 = vld [vmem:[%s32] sm:$0xff]
  %34 = xla_tuple %v33
  %35 = xla_tuple %34
  %v36 = vxor.u32 %v33, 2147483648
  %37 = xla_tuple %v36
  %s38 = scalar_lea.vmem %s1, 128
  %39 = vst [vmem:[%s38] sm:$0xff] %v36
  %s40 = scalar_lea.vmem %s0, 160
  %v41 = vld [vmem:[%s40] sm:$0xff]
  %42 = xla_tuple %v41
  %43 = xla_tuple %42
  %v44 = vxor.u32 %v41, 2147483648
  %45 = xla_tuple %v44
  %s46 = scalar_lea.vmem %s1, 160
  %47 = vst [vmem:[%s46] sm:$0xff] %v44
  %s48 = scalar_lea.vmem %s0, 192
  %v49 = vld [vmem:[%s48] sm:$0xff]
  %50 = xla_tuple %v49
  %51 = xla_tuple %50
  %v52 = vxor.u32 %v49, 2147483648
  %53 = xla_tuple %v52
  %s54 = scalar_lea.vmem %s1, 192
  %55 = vst [vmem:[%s54] sm:$0xff] %v52
  %s56 = scalar_lea.vmem %s0, 224
  %v57 = vld [vmem:[%s56] sm:$0xff]
  %58 = xla_tuple %v57
  %59 = xla_tuple %58
  %v60 = vxor.u32 %v57, 2147483648
  %61 = xla_tuple %v60
  %s62 = scalar_lea.vmem %s1, 224
  %63 = vst [vmem:[%s62] sm:$0xff] %v60
  %s64 = scalar_lea.vmem %s0, 256
  %v65 = vld [vmem:[%s64] sm:$0xff]
  %66 = xla_tuple %v65
  %67 = xla_tuple %66
  %v68 = vxor.u32 %v65, 2147483648
  %69 = xla_tuple %v68
  %s70 = scalar_lea.vmem %s1, 256
  %71 = vst [vmem:[%s70] sm:$0xff] %v68
  %s72 = scalar_lea.vmem %s0, 288
  %v73 = vld [vmem:[%s72] sm:$0xff]
  %74 = xla_tuple %v73
  %75 = xla_tuple %74
  %v76 = vxor.u32 %v73, 2147483648
  %77 = xla_tuple %v76
  %s78 = scalar_lea.vmem %s1, 288
  %79 = vst [vmem:[%s78] sm:$0xff] %v76
  %s80 = scalar_lea.vmem %s0, 320
  %v81 = vld [vmem:[%s80] sm:$0xff]
  %82 = xla_tuple %v81
  %83 = xla_tuple %82
  %v84 = vxor.u32 %v81, 2147483648
  %85 = xla_tuple %v84
  %s86 = scalar_lea.vmem %s1, 320
  %87 = vst [vmem:[%s86] sm:$0xff] %v84
  %s88 = scalar_lea.vmem %s0, 352
  %v89 = vld [vmem:[%s88] sm:$0xff]
  %90 = xla_tuple %v89
  %91 = xla_tuple %90
  %v92 = vxor.u32 %v89, 2147483648
  %93 = xla_tuple %v92
  %s94 = scalar_lea.vmem %s1, 352
  %95 = vst [vmem:[%s94] sm:$0xff] %v92
  %s96 = scalar_lea.vmem %s0, 384
  %v97 = vld [vmem:[%s96] sm:$0xff]
  %98 = xla_tuple %v97
  %99 = xla_tuple %98
  %v100 = vxor.u32 %v97, 2147483648
  %101 = xla_tuple %v100
  %s102 = scalar_lea.vmem %s1, 384
  %103 = vst [vmem:[%s102] sm:$0xff] %v100
  %s104 = scalar_lea.vmem %s0, 416
  %v105 = vld [vmem:[%s104] sm:$0xff]
  %106 = xla_tuple %v105
  %107 = xla_tuple %106
  %v108 = vxor.u32 %v105, 2147483648
  %109 = xla_tuple %v108
  %s110 = scalar_lea.vmem %s1, 416
  %111 = vst [vmem:[%s110] sm:$0xff] %v108
  %s112 = scalar_lea.vmem %s0, 448
  %v113 = vld [vmem:[%s112] sm:$0xff]
  %114 = xla_tuple %v113
  %115 = xla_tuple %114
  %v116 = vxor.u32 %v113, 2147483648
  %117 = xla_tuple %v116
  %s118 = scalar_lea.vmem %s1, 448
  %119 = vst [vmem:[%s118] sm:$0xff] %v116
  %s120 = scalar_lea.vmem %s0, 480
  %v121 = vld [vmem:[%s120] sm:$0xff]
  %122 = xla_tuple %v121
  %123 = xla_tuple %122
  %v124 = vxor.u32 %v121, 2147483648
  %125 = xla_tuple %v124
  %s126 = scalar_lea.vmem %s1, 480
  %127 = vst [vmem:[%s126] sm:$0xff] %v124
  %s128 = scalar_lea.vmem %s0, 512
  %v129 = vld [vmem:[%s128] sm:$0xff]
  %130 = xla_tuple %v129
  %131 = xla_tuple %130
  %v132 = vxor.u32 %v129, 2147483648
  %133 = xla_tuple %v132
  %s134 = scalar_lea.vmem %s1, 512
  %135 = vst [vmem:[%s134] sm:$0xff] %v132
  %s136 = scalar_lea.vmem %s0, 544
  %v137 = vld [vmem:[%s136] sm:$0xff]
  %138 = xla_tuple %v137
  %139 = xla_tuple %138
  %v140 = vxor.u32 %v137, 2147483648
  %141 = xla_tuple %v140
  %s142 = scalar_lea.vmem %s1, 544
  %143 = vst [vmem:[%s142] sm:$0xff] %v140
  %s144 = scalar_lea.vmem %s0, 576
  %v145 = vld [vmem:[%s144] sm:$0xff]
  %146 = xla_tuple %v145
  %147 = xla_tuple %146
  %v148 = vxor.u32 %v145, 2147483648
  %149 = xla_tuple %v148
  %s150 = scalar_lea.vmem %s1, 576
  %151 = vst [vmem:[%s150] sm:$0xff] %v148
  %s152 = scalar_lea.vmem %s0, 608
  %v153 = vld [vmem:[%s152] sm:$0xff]
  %154 = xla_tuple %v153
  %155 = xla_tuple %154
  %v156 = vxor.u32 %v153, 2147483648
  %157 = xla_tuple %v156
  %s158 = scalar_lea.vmem %s1, 608
  %159 = vst [vmem:[%s158] sm:$0xff] %v156
  %s160 = scalar_lea.vmem %s0, 640
  %v161 = vld [vmem:[%s160] sm:$0xff]
  %162 = xla_tuple %v161
  %163 = xla_tuple %162
  %v164 = vxor.u32 %v161, 2147483648
  %165 = xla_tuple %v164
  %s166 = scalar_lea.vmem %s1, 640
  %167 = vst [vmem:[%s166] sm:$0xff] %v164
  %s168 = scalar_lea.vmem %s0, 672
  %v169 = vld [vmem:[%s168] sm:$0xff]
  %170 = xla_tuple %v169
  %171 = xla_tuple %170
  %v172 = vxor.u32 %v169, 2147483648
  %173 = xla_tuple %v172
  %s174 = scalar_lea.vmem %s1, 672
  %175 = vst [vmem:[%s174] sm:$0xff] %v172
  %s176 = scalar_lea.vmem %s0, 704
  %v177 = vld [vmem:[%s176] sm:$0xff]
  %178 = xla_tuple %v177
  %179 = xla_tuple %178
  %v180 = vxor.u32 %v177, 2147483648
  %181 = xla_tuple %v180
  %s182 = scalar_lea.vmem %s1, 704
  %183 = vst [vmem:[%s182] sm:$0xff] %v180
  %s184 = scalar_lea.vmem %s0, 736
  %v185 = vld [vmem:[%s184] sm:$0xff]
  %186 = xla_tuple %v185
  %187 = xla_tuple %186
  %v188 = vxor.u32 %v185, 2147483648
  %189 = xla_tuple %v188
  %s190 = scalar_lea.vmem %s1, 736
  %191 = vst [vmem:[%s190] sm:$0xff] %v188
  %s192 = scalar_lea.vmem %s0, 768
  %v193 = vld [vmem:[%s192] sm:$0xff]
  %194 = xla_tuple %v193
  %195 = xla_tuple %194
  %v196 = vxor.u32 %v193, 2147483648
  %197 = xla_tuple %v196
  %s198 = scalar_lea.vmem %s1, 768
  %199 = vst [vmem:[%s198] sm:$0xff] %v196
  %s200 = scalar_lea.vmem %s0, 800
  %v201 = vld [vmem:[%s200] sm:$0xff]
  %202 = xla_tuple %v201
  %203 = xla_tuple %202
  %v204 = vxor.u32 %v201, 2147483648
  %205 = xla_tuple %v204
  %s206 = scalar_lea.vmem %s1, 800
  %207 = vst [vmem:[%s206] sm:$0xff] %v204
  %s208 = scalar_lea.vmem %s0, 832
  %v209 = vld [vmem:[%s208] sm:$0xff]
  %210 = xla_tuple %v209
  %211 = xla_tuple %210
  %v212 = vxor.u32 %v209, 2147483648
  %213 = xla_tuple %v212
  %s214 = scalar_lea.vmem %s1, 832
  %215 = vst [vmem:[%s214] sm:$0xff] %v212
  %s216 = scalar_lea.vmem %s0, 864
  %v217 = vld [vmem:[%s216] sm:$0xff]
  %218 = xla_tuple %v217
  %219 = xla_tuple %218
  %v220 = vxor.u32 %v217, 2147483648
  %221 = xla_tuple %v220
  %s222 = scalar_lea.vmem %s1, 864
  %223 = vst [vmem:[%s222] sm:$0xff] %v220
  %s224 = scalar_lea.vmem %s0, 896
  %v225 = vld [vmem:[%s224] sm:$0xff]
  %226 = xla_tuple %v225
  %227 = xla_tuple %226
  %v228 = vxor.u32 %v225, 2147483648
  %229 = xla_tuple %v228
  %s230 = scalar_lea.vmem %s1, 896
  %231 = vst [vmem:[%s230] sm:$0xff] %v228
  %s232 = scalar_lea.vmem %s0, 928
  %v233 = vld [vmem:[%s232] sm:$0xff]
  %234 = xla_tuple %v233
  %235 = xla_tuple %234
  %v236 = vxor.u32 %v233, 2147483648
  %237 = xla_tuple %v236
  %s238 = scalar_lea.vmem %s1, 928
  %239 = vst [vmem:[%s238] sm:$0xff] %v236
  %s240 = scalar_lea.vmem %s0, 960
  %v241 = vld [vmem:[%s240] sm:$0xff]
  %242 = xla_tuple %v241
  %243 = xla_tuple %242
  %v244 = vxor.u32 %v241, 2147483648
  %245 = xla_tuple %v244
  %s246 = scalar_lea.vmem %s1, 960
  %247 = vst [vmem:[%s246] sm:$0xff] %v244
  %s248 = scalar_lea.vmem %s0, 992
  %v249 = vld [vmem:[%s248] sm:$0xff]
  %250 = xla_tuple %v249
  %251 = xla_tuple %250
  %v252 = vxor.u32 %v249, 2147483648
  %253 = xla_tuple %v252
  %s254 = scalar_lea.vmem %s1, 992
  %255 = vst [vmem:[%s254] sm:$0xff] %v252
  %s256 = scalar_lea.vmem %s0, 1024
  %v257 = vld [vmem:[%s256] sm:$0xff]
  %258 = xla_tuple %v257
  %259 = xla_tuple %258
  %v260 = vxor.u32 %v257, 2147483648
  %261 = xla_tuple %v260
  %s262 = scalar_lea.vmem %s1, 1024
  %263 = vst [vmem:[%s262] sm:$0xff] %v260
  %s264 = scalar_lea.vmem %s0, 1056
  %v265 = vld [vmem:[%s264] sm:$0xff]
  %266 = xla_tuple %v265
  %267 = xla_tuple %266
  %v268 = vxor.u32 %v265, 2147483648
  %269 = xla_tuple %v268
  %s270 = scalar_lea.vmem %s1, 1056
  %271 = vst [vmem:[%s270] sm:$0xff] %v268
  %s272 = scalar_lea.vmem %s0, 1088
  %v273 = vld [vmem:[%s272] sm:$0xff]
  %274 = xla_tuple %v273
  %275 = xla_tuple %274
  %v276 = vxor.u32 %v273, 2147483648
  %277 = xla_tuple %v276
  %s278 = scalar_lea.vmem %s1, 1088
  %279 = vst [vmem:[%s278] sm:$0xff] %v276
  %s280 = scalar_lea.vmem %s0, 1120
  %v281 = vld [vmem:[%s280] sm:$0xff]
  %282 = xla_tuple %v281
  %283 = xla_tuple %282
  %v284 = vxor.u32 %v281, 2147483648
  %285 = xla_tuple %v284
  %s286 = scalar_lea.vmem %s1, 1120
  %287 = vst [vmem:[%s286] sm:$0xff] %v284
  %s288 = scalar_lea.vmem %s0, 8
  %v289 = vld [vmem:[%s288] sm:$0xff]
  %290 = xla_tuple %v289
  %291 = xla_tuple %290
  %v292 = vxor.u32 %v289, 2147483648
  %293 = xla_tuple %v292
  %s294 = scalar_lea.vmem %s1, 8
  %295 = vst [vmem:[%s294] sm:$0xff] %v292
  %s296 = scalar_lea.vmem %s0, 40
  %v297 = vld [vmem:[%s296] sm:$0xff]
  %298 = xla_tuple %v297
  %299 = xla_tuple %298
  %v300 = vxor.u32 %v297, 2147483648
  %301 = xla_tuple %v300
  %s302 = scalar_lea.vmem %s1, 40
  %303 = vst [vmem:[%s302] sm:$0xff] %v300
  %s304 = scalar_lea.vmem %s0, 72
  %v305 = vld [vmem:[%s304] sm:$0xff]
  %306 = xla_tuple %v305
  %307 = xla_tuple %306
  %v308 = vxor.u32 %v305, 2147483648
  %309 = xla_tuple %v308
  %s310 = scalar_lea.vmem %s1, 72
  %311 = vst [vmem:[%s310] sm:$0xff] %v308
  %s312 = scalar_lea.vmem %s0, 104
  %v313 = vld [vmem:[%s312] sm:$0xff]
  %314 = xla_tuple %v313
  %315 = xla_tuple %314
  %v316 = vxor.u32 %v313, 2147483648
  %317 = xla_tuple %v316
  %s318 = scalar_lea.vmem %s1, 104
  %319 = vst [vmem:[%s318] sm:$0xff] %v316
  %s320 = scalar_lea.vmem %s0, 136
  %v321 = vld [vmem:[%s320] sm:$0xff]
  %322 = xla_tuple %v321
  %323 = xla_tuple %322
  %v324 = vxor.u32 %v321, 2147483648
  %325 = xla_tuple %v324
  %s326 = scalar_lea.vmem %s1, 136
  %327 = vst [vmem:[%s326] sm:$0xff] %v324
  %s328 = scalar_lea.vmem %s0, 168
  %v329 = vld [vmem:[%s328] sm:$0xff]
  %330 = xla_tuple %v329
  %331 = xla_tuple %330
  %v332 = vxor.u32 %v329, 2147483648
  %333 = xla_tuple %v332
  %s334 = scalar_lea.vmem %s1, 168
  %335 = vst [vmem:[%s334] sm:$0xff] %v332
  %s336 = scalar_lea.vmem %s0, 200
  %v337 = vld [vmem:[%s336] sm:$0xff]
  %338 = xla_tuple %v337
  %339 = xla_tuple %338
  %v340 = vxor.u32 %v337, 2147483648
  %341 = xla_tuple %v340
  %s342 = scalar_lea.vmem %s1, 200
  %343 = vst [vmem:[%s342] sm:$0xff] %v340
  %s344 = scalar_lea.vmem %s0, 232
  %v345 = vld [vmem:[%s344] sm:$0xff]
  %346 = xla_tuple %v345
  %347 = xla_tuple %346
  %v348 = vxor.u32 %v345, 2147483648
  %349 = xla_tuple %v348
  %s350 = scalar_lea.vmem %s1, 232
  %351 = vst [vmem:[%s350] sm:$0xff] %v348
  %s352 = scalar_lea.vmem %s0, 264
  %v353 = vld [vmem:[%s352] sm:$0xff]
  %354 = xla_tuple %v353
  %355 = xla_tuple %354
  %v356 = vxor.u32 %v353, 2147483648
  %357 = xla_tuple %v356
  %s358 = scalar_lea.vmem %s1, 264
  %359 = vst [vmem:[%s358] sm:$0xff] %v356
  %s360 = scalar_lea.vmem %s0, 296
  %v361 = vld [vmem:[%s360] sm:$0xff]
  %362 = xla_tuple %v361
  %363 = xla_tuple %362
  %v364 = vxor.u32 %v361, 2147483648
  %365 = xla_tuple %v364
  %s366 = scalar_lea.vmem %s1, 296
  %367 = vst [vmem:[%s366] sm:$0xff] %v364
  %s368 = scalar_lea.vmem %s0, 328
  %v369 = vld [vmem:[%s368] sm:$0xff]
  %370 = xla_tuple %v369
  %371 = xla_tuple %370
  %v372 = vxor.u32 %v369, 2147483648
  %373 = xla_tuple %v372
  %s374 = scalar_lea.vmem %s1, 328
  %375 = vst [vmem:[%s374] sm:$0xff] %v372
  %s376 = scalar_lea.vmem %s0, 360
  %v377 = vld [vmem:[%s376] sm:$0xff]
  %378 = xla_tuple %v377
  %379 = xla_tuple %378
  %v380 = vxor.u32 %v377, 2147483648
  %381 = xla_tuple %v380
  %s382 = scalar_lea.vmem %s1, 360
  %383 = vst [vmem:[%s382] sm:$0xff] %v380
  %s384 = scalar_lea.vmem %s0, 392
  %v385 = vld [vmem:[%s384] sm:$0xff]
  %386 = xla_tuple %v385
  %387 = xla_tuple %386
  %v388 = vxor.u32 %v385, 2147483648
  %389 = xla_tuple %v388
  %s390 = scalar_lea.vmem %s1, 392
  %391 = vst [vmem:[%s390] sm:$0xff] %v388
  %s392 = scalar_lea.vmem %s0, 424
  %v393 = vld [vmem:[%s392] sm:$0xff]
  %394 = xla_tuple %v393
  %395 = xla_tuple %394
  %v396 = vxor.u32 %v393, 2147483648
  %397 = xla_tuple %v396
  %s398 = scalar_lea.vmem %s1, 424
  %399 = vst [vmem:[%s398] sm:$0xff] %v396
  %s400 = scalar_lea.vmem %s0, 456
  %v401 = vld [vmem:[%s400] sm:$0xff]
  %402 = xla_tuple %v401
  %403 = xla_tuple %402
  %v404 = vxor.u32 %v401, 2147483648
  %405 = xla_tuple %v404
  %s406 = scalar_lea.vmem %s1, 456
  %407 = vst [vmem:[%s406] sm:$0xff] %v404
  %s408 = scalar_lea.vmem %s0, 488
  %v409 = vld [vmem:[%s408] sm:$0xff]
  %410 = xla_tuple %v409
  %411 = xla_tuple %410
  %v412 = vxor.u32 %v409, 2147483648
  %413 = xla_tuple %v412
  %s414 = scalar_lea.vmem %s1, 488
  %415 = vst [vmem:[%s414] sm:$0xff] %v412
  %s416 = scalar_lea.vmem %s0, 520
  %v417 = vld [vmem:[%s416] sm:$0xff]
  %418 = xla_tuple %v417
  %419 = xla_tuple %418
  %v420 = vxor.u32 %v417, 2147483648
  %421 = xla_tuple %v420
  %s422 = scalar_lea.vmem %s1, 520
  %423 = vst [vmem:[%s422] sm:$0xff] %v420
  %s424 = scalar_lea.vmem %s0, 552
  %v425 = vld [vmem:[%s424] sm:$0xff]
  %426 = xla_tuple %v425
  %427 = xla_tuple %426
  %v428 = vxor.u32 %v425, 2147483648
  %429 = xla_tuple %v428
  %s430 = scalar_lea.vmem %s1, 552
  %431 = vst [vmem:[%s430] sm:$0xff] %v428
  %s432 = scalar_lea.vmem %s0, 584
  %v433 = vld [vmem:[%s432] sm:$0xff]
  %434 = xla_tuple %v433
  %435 = xla_tuple %434
  %v436 = vxor.u32 %v433, 2147483648
  %437 = xla_tuple %v436
  %s438 = scalar_lea.vmem %s1, 584
  %439 = vst [vmem:[%s438] sm:$0xff] %v436
  %s440 = scalar_lea.vmem %s0, 616
  %v441 = vld [vmem:[%s440] sm:$0xff]
  %442 = xla_tuple %v441
  %443 = xla_tuple %442
  %v444 = vxor.u32 %v441, 2147483648
  %445 = xla_tuple %v444
  %s446 = scalar_lea.vmem %s1, 616
  %447 = vst [vmem:[%s446] sm:$0xff] %v444
  %s448 = scalar_lea.vmem %s0, 648
  %v449 = vld [vmem:[%s448] sm:$0xff]
  %450 = xla_tuple %v449
  %451 = xla_tuple %450
  %v452 = vxor.u32 %v449, 2147483648
  %453 = xla_tuple %v452
  %s454 = scalar_lea.vmem %s1, 648
  %455 = vst [vmem:[%s454] sm:$0xff] %v452
  %s456 = scalar_lea.vmem %s0, 680
  %v457 = vld [vmem:[%s456] sm:$0xff]
  %458 = xla_tuple %v457
  %459 = xla_tuple %458
  %v460 = vxor.u32 %v457, 2147483648
  %461 = xla_tuple %v460
  %s462 = scalar_lea.vmem %s1, 680
  %463 = vst [vmem:[%s462] sm:$0xff] %v460
  %s464 = scalar_lea.vmem %s0, 712
  %v465 = vld [vmem:[%s464] sm:$0xff]
  %466 = xla_tuple %v465
  %467 = xla_tuple %466
  %v468 = vxor.u32 %v465, 2147483648
  %469 = xla_tuple %v468
  %s470 = scalar_lea.vmem %s1, 712
  %471 = vst [vmem:[%s470] sm:$0xff] %v468
  %s472 = scalar_lea.vmem %s0, 744
  %v473 = vld [vmem:[%s472] sm:$0xff]
  %474 = xla_tuple %v473
  %475 = xla_tuple %474
  %v476 = vxor.u32 %v473, 2147483648
  %477 = xla_tuple %v476
  %s478 = scalar_lea.vmem %s1, 744
  %479 = vst [vmem:[%s478] sm:$0xff] %v476
  %s480 = scalar_lea.vmem %s0, 776
  %v481 = vld [vmem:[%s480] sm:$0xff]
  %482 = xla_tuple %v481
  %483 = xla_tuple %482
  %v484 = vxor.u32 %v481, 2147483648
  %485 = xla_tuple %v484
  %s486 = scalar_lea.vmem %s1, 776
  %487 = vst [vmem:[%s486] sm:$0xff] %v484
  %s488 = scalar_lea.vmem %s0, 808
  %v489 = vld [vmem:[%s488] sm:$0xff]
  %490 = xla_tuple %v489
  %491 = xla_tuple %490
  %v492 = vxor.u32 %v489, 2147483648
  %493 = xla_tuple %v492
  %s494 = scalar_lea.vmem %s1, 808
  %495 = vst [vmem:[%s494] sm:$0xff] %v492
  %s496 = scalar_lea.vmem %s0, 840
  %v497 = vld [vmem:[%s496] sm:$0xff]
  %498 = xla_tuple %v497
  %499 = xla_tuple %498
  %v500 = vxor.u32 %v497, 2147483648
  %501 = xla_tuple %v500
  %s502 = scalar_lea.vmem %s1, 840
  %503 = vst [vmem:[%s502] sm:$0xff] %v500
  %s504 = scalar_lea.vmem %s0, 872
  %v505 = vld [vmem:[%s504] sm:$0xff]
  %506 = xla_tuple %v505
  %507 = xla_tuple %506
  %v508 = vxor.u32 %v505, 2147483648
  %509 = xla_tuple %v508
  %s510 = scalar_lea.vmem %s1, 872
  %511 = vst [vmem:[%s510] sm:$0xff] %v508
  %s512 = scalar_lea.vmem %s0, 904
  %v513 = vld [vmem:[%s512] sm:$0xff]
  %514 = xla_tuple %v513
  %515 = xla_tuple %514
  %v516 = vxor.u32 %v513, 2147483648
  %517 = xla_tuple %v516
  %s518 = scalar_lea.vmem %s1, 904
  %519 = vst [vmem:[%s518] sm:$0xff] %v516
  %s520 = scalar_lea.vmem %s0, 936
  %v521 = vld [vmem:[%s520] sm:$0xff]
  %522 = xla_tuple %v521
  %523 = xla_tuple %522
  %v524 = vxor.u32 %v521, 2147483648
  %525 = xla_tuple %v524
  %s526 = scalar_lea.vmem %s1, 936
  %527 = vst [vmem:[%s526] sm:$0xff] %v524
  %s528 = scalar_lea.vmem %s0, 968
  %v529 = vld [vmem:[%s528] sm:$0xff]
  %530 = xla_tuple %v529
  %531 = xla_tuple %530
  %v532 = vxor.u32 %v529, 2147483648
  %533 = xla_tuple %v532
  %s534 = scalar_lea.vmem %s1, 968
  %535 = vst [vmem:[%s534] sm:$0xff] %v532
  %s536 = scalar_lea.vmem %s0, 1000
  %v537 = vld [vmem:[%s536] sm:$0xff]
  %538 = xla_tuple %v537
  %539 = xla_tuple %538
  %v540 = vxor.u32 %v537, 2147483648
  %541 = xla_tuple %v540
  %s542 = scalar_lea.vmem %s1, 1000
  %543 = vst [vmem:[%s542] sm:$0xff] %v540
  %s544 = scalar_lea.vmem %s0, 1032
  %v545 = vld [vmem:[%s544] sm:$0xff]
  %546 = xla_tuple %v545
  %547 = xla_tuple %546
  %v548 = vxor.u32 %v545, 2147483648
  %549 = xla_tuple %v548
  %s550 = scalar_lea.vmem %s1, 1032
  %551 = vst [vmem:[%s550] sm:$0xff] %v548
  %s552 = scalar_lea.vmem %s0, 1064
  %v553 = vld [vmem:[%s552] sm:$0xff]
  %554 = xla_tuple %v553
  %555 = xla_tuple %554
  %v556 = vxor.u32 %v553, 2147483648
  %557 = xla_tuple %v556
  %s558 = scalar_lea.vmem %s1, 1064
  %559 = vst [vmem:[%s558] sm:$0xff] %v556
  %s560 = scalar_lea.vmem %s0, 1096
  %v561 = vld [vmem:[%s560] sm:$0xff]
  %562 = xla_tuple %v561
  %563 = xla_tuple %562
  %v564 = vxor.u32 %v561, 2147483648
  %565 = xla_tuple %v564
  %s566 = scalar_lea.vmem %s1, 1096
  %567 = vst [vmem:[%s566] sm:$0xff] %v564
  %s568 = scalar_lea.vmem %s0, 1128
  %v569 = vld [vmem:[%s568] sm:$0xff]
  %570 = xla_tuple %v569
  %571 = xla_tuple %570
  %v572 = vxor.u32 %v569, 2147483648
  %573 = xla_tuple %v572
  %s574 = scalar_lea.vmem %s1, 1128
  %575 = vst [vmem:[%s574] sm:$0xff] %v572
  %s576 = scalar_lea.vmem %s0, 16
  %v577 = vld [vmem:[%s576] sm:$0xff]
  %578 = xla_tuple %v577
  %579 = xla_tuple %578
  %v580 = vxor.u32 %v577, 2147483648
  %581 = xla_tuple %v580
  %s582 = scalar_lea.vmem %s1, 16
  %583 = vst [vmem:[%s582] sm:$0xff] %v580
  %s584 = scalar_lea.vmem %s0, 48
  %v585 = vld [vmem:[%s584] sm:$0xff]
  %586 = xla_tuple %v585
  %587 = xla_tuple %586
  %v588 = vxor.u32 %v585, 2147483648
  %589 = xla_tuple %v588
  %s590 = scalar_lea.vmem %s1, 48
  %591 = vst [vmem:[%s590] sm:$0xff] %v588
  %s592 = scalar_lea.vmem %s0, 80
  %v593 = vld [vmem:[%s592] sm:$0xff]
  %594 = xla_tuple %v593
  %595 = xla_tuple %594
  %v596 = vxor.u32 %v593, 2147483648
  %597 = xla_tuple %v596
  %s598 = scalar_lea.vmem %s1, 80
  %599 = vst [vmem:[%s598] sm:$0xff] %v596
  %s600 = scalar_lea.vmem %s0, 112
  %v601 = vld [vmem:[%s600] sm:$0xff]
  %602 = xla_tuple %v601
  %603 = xla_tuple %602
  %v604 = vxor.u32 %v601, 2147483648
  %605 = xla_tuple %v604
  %s606 = scalar_lea.vmem %s1, 112
  %607 = vst [vmem:[%s606] sm:$0xff] %v604
  %s608 = scalar_lea.vmem %s0, 144
  %v609 = vld [vmem:[%s608] sm:$0xff]
  %610 = xla_tuple %v609
  %611 = xla_tuple %610
  %v612 = vxor.u32 %v609, 2147483648
  %613 = xla_tuple %v612
  %s614 = scalar_lea.vmem %s1, 144
  %615 = vst [vmem:[%s614] sm:$0xff] %v612
  %s616 = scalar_lea.vmem %s0, 176
  %v617 = vld [vmem:[%s616] sm:$0xff]
  %618 = xla_tuple %v617
  %619 = xla_tuple %618
  %v620 = vxor.u32 %v617, 2147483648
  %621 = xla_tuple %v620
  %s622 = scalar_lea.vmem %s1, 176
  %623 = vst [vmem:[%s622] sm:$0xff] %v620
  %s624 = scalar_lea.vmem %s0, 208
  %v625 = vld [vmem:[%s624] sm:$0xff]
  %626 = xla_tuple %v625
  %627 = xla_tuple %626
  %v628 = vxor.u32 %v625, 2147483648
  %629 = xla_tuple %v628
  %s630 = scalar_lea.vmem %s1, 208
  %631 = vst [vmem:[%s630] sm:$0xff] %v628
  %s632 = scalar_lea.vmem %s0, 240
  %v633 = vld [vmem:[%s632] sm:$0xff]
  %634 = xla_tuple %v633
  %635 = xla_tuple %634
  %v636 = vxor.u32 %v633, 2147483648
  %637 = xla_tuple %v636
  %s638 = scalar_lea.vmem %s1, 240
  %639 = vst [vmem:[%s638] sm:$0xff] %v636
  %s640 = scalar_lea.vmem %s0, 272
  %v641 = vld [vmem:[%s640] sm:$0xff]
  %642 = xla_tuple %v641
  %643 = xla_tuple %642
  %v644 = vxor.u32 %v641, 2147483648
  %645 = xla_tuple %v644
  %s646 = scalar_lea.vmem %s1, 272
  %647 = vst [vmem:[%s646] sm:$0xff] %v644
  %s648 = scalar_lea.vmem %s0, 304
  %v649 = vld [vmem:[%s648] sm:$0xff]
  %650 = xla_tuple %v649
  %651 = xla_tuple %650
  %v652 = vxor.u32 %v649, 2147483648
  %653 = xla_tuple %v652
  %s654 = scalar_lea.vmem %s1, 304
  %655 = vst [vmem:[%s654] sm:$0xff] %v652
  %s656 = scalar_lea.vmem %s0, 336
  %v657 = vld [vmem:[%s656] sm:$0xff]
  %658 = xla_tuple %v657
  %659 = xla_tuple %658
  %v660 = vxor.u32 %v657, 2147483648
  %661 = xla_tuple %v660
  %s662 = scalar_lea.vmem %s1, 336
  %663 = vst [vmem:[%s662] sm:$0xff] %v660
  %s664 = scalar_lea.vmem %s0, 368
  %v665 = vld [vmem:[%s664] sm:$0xff]
  %666 = xla_tuple %v665
  %667 = xla_tuple %666
  %v668 = vxor.u32 %v665, 2147483648
  %669 = xla_tuple %v668
  %s670 = scalar_lea.vmem %s1, 368
  %671 = vst [vmem:[%s670] sm:$0xff] %v668
  %s672 = scalar_lea.vmem %s0, 400
  %v673 = vld [vmem:[%s672] sm:$0xff]
  %674 = xla_tuple %v673
  %675 = xla_tuple %674
  %v676 = vxor.u32 %v673, 2147483648
  %677 = xla_tuple %v676
  %s678 = scalar_lea.vmem %s1, 400
  %679 = vst [vmem:[%s678] sm:$0xff] %v676
  %s680 = scalar_lea.vmem %s0, 432
  %v681 = vld [vmem:[%s680] sm:$0xff]
  %682 = xla_tuple %v681
  %683 = xla_tuple %682
  %v684 = vxor.u32 %v681, 2147483648
  %685 = xla_tuple %v684
  %s686 = scalar_lea.vmem %s1, 432
  %687 = vst [vmem:[%s686] sm:$0xff] %v684
  %s688 = scalar_lea.vmem %s0, 464
  %v689 = vld [vmem:[%s688] sm:$0xff]
  %690 = xla_tuple %v689
  %691 = xla_tuple %690
  %v692 = vxor.u32 %v689, 2147483648
  %693 = xla_tuple %v692
  %s694 = scalar_lea.vmem %s1, 464
  %695 = vst [vmem:[%s694] sm:$0xff] %v692
  %s696 = scalar_lea.vmem %s0, 496
  %v697 = vld [vmem:[%s696] sm:$0xff]
  %698 = xla_tuple %v697
  %699 = xla_tuple %698
  %v700 = vxor.u32 %v697, 2147483648
  %701 = xla_tuple %v700
  %s702 = scalar_lea.vmem %s1, 496
  %703 = vst [vmem:[%s702] sm:$0xff] %v700
  %s704 = scalar_lea.vmem %s0, 528
  %v705 = vld [vmem:[%s704] sm:$0xff]
  %706 = xla_tuple %v705
  %707 = xla_tuple %706
  %v708 = vxor.u32 %v705, 2147483648
  %709 = xla_tuple %v708
  %s710 = scalar_lea.vmem %s1, 528
  %711 = vst [vmem:[%s710] sm:$0xff] %v708
  %s712 = scalar_lea.vmem %s0, 560
  %v713 = vld [vmem:[%s712] sm:$0xff]
  %714 = xla_tuple %v713
  %715 = xla_tuple %714
  %v716 = vxor.u32 %v713, 2147483648
  %717 = xla_tuple %v716
  %s718 = scalar_lea.vmem %s1, 560
  %719 = vst [vmem:[%s718] sm:$0xff] %v716
  %s720 = scalar_lea.vmem %s0, 592
  %v721 = vld [vmem:[%s720] sm:$0xff]
  %722 = xla_tuple %v721
  %723 = xla_tuple %722
  %v724 = vxor.u32 %v721, 2147483648
  %725 = xla_tuple %v724
  %s726 = scalar_lea.vmem %s1, 592
  %727 = vst [vmem:[%s726] sm:$0xff] %v724
  %s728 = scalar_lea.vmem %s0, 624
  %v729 = vld [vmem:[%s728] sm:$0xff]
  %730 = xla_tuple %v729
  %731 = xla_tuple %730
  %v732 = vxor.u32 %v729, 2147483648
  %733 = xla_tuple %v732
  %s734 = scalar_lea.vmem %s1, 624
  %735 = vst [vmem:[%s734] sm:$0xff] %v732
  %s736 = scalar_lea.vmem %s0, 656
  %v737 = vld [vmem:[%s736] sm:$0xff]
  %738 = xla_tuple %v737
  %739 = xla_tuple %738
  %v740 = vxor.u32 %v737, 2147483648
  %741 = xla_tuple %v740
  %s742 = scalar_lea.vmem %s1, 656
  %743 = vst [vmem:[%s742] sm:$0xff] %v740
  %s744 = scalar_lea.vmem %s0, 688
  %v745 = vld [vmem:[%s744] sm:$0xff]
  %746 = xla_tuple %v745
  %747 = xla_tuple %746
  %v748 = vxor.u32 %v745, 2147483648
  %749 = xla_tuple %v748
  %s750 = scalar_lea.vmem %s1, 688
  %751 = vst [vmem:[%s750] sm:$0xff] %v748
  %s752 = scalar_lea.vmem %s0, 720
  %v753 = vld [vmem:[%s752] sm:$0xff]
  %754 = xla_tuple %v753
  %755 = xla_tuple %754
  %v756 = vxor.u32 %v753, 2147483648
  %757 = xla_tuple %v756
  %s758 = scalar_lea.vmem %s1, 720
  %759 = vst [vmem:[%s758] sm:$0xff] %v756
  %s760 = scalar_lea.vmem %s0, 752
  %v761 = vld [vmem:[%s760] sm:$0xff]
  %762 = xla_tuple %v761
  %763 = xla_tuple %762
  %v764 = vxor.u32 %v761, 2147483648
  %765 = xla_tuple %v764
  %s766 = scalar_lea.vmem %s1, 752
  %767 = vst [vmem:[%s766] sm:$0xff] %v764
  %s768 = scalar_lea.vmem %s0, 784
  %v769 = vld [vmem:[%s768] sm:$0xff]
  %770 = xla_tuple %v769
  %771 = xla_tuple %770
  %v772 = vxor.u32 %v769, 2147483648
  %773 = xla_tuple %v772
  %s774 = scalar_lea.vmem %s1, 784
  %775 = vst [vmem:[%s774] sm:$0xff] %v772
  %s776 = scalar_lea.vmem %s0, 816
  %v777 = vld [vmem:[%s776] sm:$0xff]
  %778 = xla_tuple %v777
  %779 = xla_tuple %778
  %v780 = vxor.u32 %v777, 2147483648
  %781 = xla_tuple %v780
  %s782 = scalar_lea.vmem %s1, 816
  %783 = vst [vmem:[%s782] sm:$0xff] %v780
  %s784 = scalar_lea.vmem %s0, 848
  %v785 = vld [vmem:[%s784] sm:$0xff]
  %786 = xla_tuple %v785
  %787 = xla_tuple %786
  %v788 = vxor.u32 %v785, 2147483648
  %789 = xla_tuple %v788
  %s790 = scalar_lea.vmem %s1, 848
  %791 = vst [vmem:[%s790] sm:$0xff] %v788
  %s792 = scalar_lea.vmem %s0, 880
  %v793 = vld [vmem:[%s792] sm:$0xff]
  %794 = xla_tuple %v793
  %795 = xla_tuple %794
  %v796 = vxor.u32 %v793, 2147483648
  %797 = xla_tuple %v796
  %s798 = scalar_lea.vmem %s1, 880
  %799 = vst [vmem:[%s798] sm:$0xff] %v796
  %s800 = scalar_lea.vmem %s0, 912
  %v801 = vld [vmem:[%s800] sm:$0xff]
  %802 = xla_tuple %v801
  %803 = xla_tuple %802
  %v804 = vxor.u32 %v801, 2147483648
  %805 = xla_tuple %v804
  %s806 = scalar_lea.vmem %s1, 912
  %807 = vst [vmem:[%s806] sm:$0xff] %v804
  %s808 = scalar_lea.vmem %s0, 944
  %v809 = vld [vmem:[%s808] sm:$0xff]
  %810 = xla_tuple %v809
  %811 = xla_tuple %810
  %v812 = vxor.u32 %v809, 2147483648
  %813 = xla_tuple %v812
  %s814 = scalar_lea.vmem %s1, 944
  %815 = vst [vmem:[%s814] sm:$0xff] %v812
  %s816 = scalar_lea.vmem %s0, 976
  %v817 = vld [vmem:[%s816] sm:$0xff]
  %818 = xla_tuple %v817
  %819 = xla_tuple %818
  %v820 = vxor.u32 %v817, 2147483648
  %821 = xla_tuple %v820
  %s822 = scalar_lea.vmem %s1, 976
  %823 = vst [vmem:[%s822] sm:$0xff] %v820
  %s824 = scalar_lea.vmem %s0, 1008
  %v825 = vld [vmem:[%s824] sm:$0xff]
  %826 = xla_tuple %v825
  %827 = xla_tuple %826
  %v828 = vxor.u32 %v825, 2147483648
  %829 = xla_tuple %v828
  %s830 = scalar_lea.vmem %s1, 1008
  %831 = vst [vmem:[%s830] sm:$0xff] %v828
  %s832 = scalar_lea.vmem %s0, 1040
  %v833 = vld [vmem:[%s832] sm:$0xff]
  %834 = xla_tuple %v833
  %835 = xla_tuple %834
  %v836 = vxor.u32 %v833, 2147483648
  %837 = xla_tuple %v836
  %s838 = scalar_lea.vmem %s1, 1040
  %839 = vst [vmem:[%s838] sm:$0xff] %v836
  %s840 = scalar_lea.vmem %s0, 1072
  %v841 = vld [vmem:[%s840] sm:$0xff]
  %842 = xla_tuple %v841
  %843 = xla_tuple %842
  %v844 = vxor.u32 %v841, 2147483648
  %845 = xla_tuple %v844
  %s846 = scalar_lea.vmem %s1, 1072
  %847 = vst [vmem:[%s846] sm:$0xff] %v844
  %s848 = scalar_lea.vmem %s0, 1104
  %v849 = vld [vmem:[%s848] sm:$0xff]
  %850 = xla_tuple %v849
  %851 = xla_tuple %850
  %v852 = vxor.u32 %v849, 2147483648
  %853 = xla_tuple %v852
  %s854 = scalar_lea.vmem %s1, 1104
  %855 = vst [vmem:[%s854] sm:$0xff] %v852
  %s856 = scalar_lea.vmem %s0, 1136
  %v857 = vld [vmem:[%s856] sm:$0xff]
  %858 = xla_tuple %v857
  %859 = xla_tuple %858
  %v860 = vxor.u32 %v857, 2147483648
  %861 = xla_tuple %v860
  %s862 = scalar_lea.vmem %s1, 1136
  %863 = vst [vmem:[%s862] sm:$0xff] %v860
  %s864 = scalar_lea.vmem %s0, 24
  %v865 = vld [vmem:[%s864] sm:$0xff]
  %866 = xla_tuple %v865
  %867 = xla_tuple %866
  %v868 = vxor.u32 %v865, 2147483648
  %869 = xla_tuple %v868
  %s870 = scalar_lea.vmem %s1, 24
  %871 = vst [vmem:[%s870] sm:$0xff] %v868
  %s872 = scalar_lea.vmem %s0, 56
  %v873 = vld [vmem:[%s872] sm:$0xff]
  %874 = xla_tuple %v873
  %875 = xla_tuple %874
  %v876 = vxor.u32 %v873, 2147483648
  %877 = xla_tuple %v876
  %s878 = scalar_lea.vmem %s1, 56
  %879 = vst [vmem:[%s878] sm:$0xff] %v876
  %s880 = scalar_lea.vmem %s0, 88
  %v881 = vld [vmem:[%s880] sm:$0xff]
  %882 = xla_tuple %v881
  %883 = xla_tuple %882
  %v884 = vxor.u32 %v881, 2147483648
  %885 = xla_tuple %v884
  %s886 = scalar_lea.vmem %s1, 88
  %887 = vst [vmem:[%s886] sm:$0xff] %v884
  %s888 = scalar_lea.vmem %s0, 120
  %v889 = vld [vmem:[%s888] sm:$0xff]
  %890 = xla_tuple %v889
  %891 = xla_tuple %890
  %v892 = vxor.u32 %v889, 2147483648
  %893 = xla_tuple %v892
  %s894 = scalar_lea.vmem %s1, 120
  %895 = vst [vmem:[%s894] sm:$0xff] %v892
  %s896 = scalar_lea.vmem %s0, 152
  %v897 = vld [vmem:[%s896] sm:$0xff]
  %898 = xla_tuple %v897
  %899 = xla_tuple %898
  %v900 = vxor.u32 %v897, 2147483648
  %901 = xla_tuple %v900
  %s902 = scalar_lea.vmem %s1, 152
  %903 = vst [vmem:[%s902] sm:$0xff] %v900
  %s904 = scalar_lea.vmem %s0, 184
  %v905 = vld [vmem:[%s904] sm:$0xff]
  %906 = xla_tuple %v905
  %907 = xla_tuple %906
  %v908 = vxor.u32 %v905, 2147483648
  %909 = xla_tuple %v908
  %s910 = scalar_lea.vmem %s1, 184
  %911 = vst [vmem:[%s910] sm:$0xff] %v908
  %s912 = scalar_lea.vmem %s0, 216
  %v913 = vld [vmem:[%s912] sm:$0xff]
  %914 = xla_tuple %v913
  %915 = xla_tuple %914
  %v916 = vxor.u32 %v913, 2147483648
  %917 = xla_tuple %v916
  %s918 = scalar_lea.vmem %s1, 216
  %919 = vst [vmem:[%s918] sm:$0xff] %v916
  %s920 = scalar_lea.vmem %s0, 248
  %v921 = vld [vmem:[%s920] sm:$0xff]
  %922 = xla_tuple %v921
  %923 = xla_tuple %922
  %v924 = vxor.u32 %v921, 2147483648
  %925 = xla_tuple %v924
  %s926 = scalar_lea.vmem %s1, 248
  %927 = vst [vmem:[%s926] sm:$0xff] %v924
  %s928 = scalar_lea.vmem %s0, 280
  %v929 = vld [vmem:[%s928] sm:$0xff]
  %930 = xla_tuple %v929
  %931 = xla_tuple %930
  %v932 = vxor.u32 %v929, 2147483648
  %933 = xla_tuple %v932
  %s934 = scalar_lea.vmem %s1, 280
  %935 = vst [vmem:[%s934] sm:$0xff] %v932
  %s936 = scalar_lea.vmem %s0, 312
  %v937 = vld [vmem:[%s936] sm:$0xff]
  %938 = xla_tuple %v937
  %939 = xla_tuple %938
  %v940 = vxor.u32 %v937, 2147483648
  %941 = xla_tuple %v940
  %s942 = scalar_lea.vmem %s1, 312
  %943 = vst [vmem:[%s942] sm:$0xff] %v940
  %s944 = scalar_lea.vmem %s0, 344
  %v945 = vld [vmem:[%s944] sm:$0xff]
  %946 = xla_tuple %v945
  %947 = xla_tuple %946
  %v948 = vxor.u32 %v945, 2147483648
  %949 = xla_tuple %v948
  %s950 = scalar_lea.vmem %s1, 344
  %951 = vst [vmem:[%s950] sm:$0xff] %v948
  %s952 = scalar_lea.vmem %s0, 376
  %v953 = vld [vmem:[%s952] sm:$0xff]
  %954 = xla_tuple %v953
  %955 = xla_tuple %954
  %v956 = vxor.u32 %v953, 2147483648
  %957 = xla_tuple %v956
  %s958 = scalar_lea.vmem %s1, 376
  %959 = vst [vmem:[%s958] sm:$0xff] %v956
  %s960 = scalar_lea.vmem %s0, 408
  %v961 = vld [vmem:[%s960] sm:$0xff]
  %962 = xla_tuple %v961
  %963 = xla_tuple %962
  %v964 = vxor.u32 %v961, 2147483648
  %965 = xla_tuple %v964
  %s966 = scalar_lea.vmem %s1, 408
  %967 = vst [vmem:[%s966] sm:$0xff] %v964
  %s968 = scalar_lea.vmem %s0, 440
  %v969 = vld [vmem:[%s968] sm:$0xff]
  %970 = xla_tuple %v969
  %971 = xla_tuple %970
  %v972 = vxor.u32 %v969, 2147483648
  %973 = xla_tuple %v972
  %s974 = scalar_lea.vmem %s1, 440
  %975 = vst [vmem:[%s974] sm:$0xff] %v972
  %s976 = scalar_lea.vmem %s0, 472
  %v977 = vld [vmem:[%s976] sm:$0xff]
  %978 = xla_tuple %v977
  %979 = xla_tuple %978
  %v980 = vxor.u32 %v977, 2147483648
  %981 = xla_tuple %v980
  %s982 = scalar_lea.vmem %s1, 472
  %983 = vst [vmem:[%s982] sm:$0xff] %v980
  %s984 = scalar_lea.vmem %s0, 504
  %v985 = vld [vmem:[%s984] sm:$0xff]
  %986 = xla_tuple %v985
  %987 = xla_tuple %986
  %v988 = vxor.u32 %v985, 2147483648
  %989 = xla_tuple %v988
  %s990 = scalar_lea.vmem %s1, 504
  %991 = vst [vmem:[%s990] sm:$0xff] %v988
  %s992 = scalar_lea.vmem %s0, 536
  %v993 = vld [vmem:[%s992] sm:$0xff]
  %994 = xla_tuple %v993
  %995 = xla_tuple %994
  %v996 = vxor.u32 %v993, 2147483648
  %997 = xla_tuple %v996
  %s998 = scalar_lea.vmem %s1, 536
  %999 = vst [vmem:[%s998] sm:$0xff] %v996
  %s1000 = scalar_lea.vmem %s0, 568
  %v1001 = vld [vmem:[%s1000] sm:$0xff]
  %1002 = xla_tuple %v1001
  %1003 = xla_tuple %1002
  %v1004 = vxor.u32 %v1001, 2147483648
  %1005 = xla_tuple %v1004
  %s1006 = scalar_lea.vmem %s1, 568
  %1007 = vst [vmem:[%s1006] sm:$0xff] %v1004
  %s1008 = scalar_lea.vmem %s0, 600
  %v1009 = vld [vmem:[%s1008] sm:$0xff]
  %1010 = xla_tuple %v1009
  %1011 = xla_tuple %1010
  %v1012 = vxor.u32 %v1009, 2147483648
  %1013 = xla_tuple %v1012
  %s1014 = scalar_lea.vmem %s1, 600
  %1015 = vst [vmem:[%s1014] sm:$0xff] %v1012
  %s1016 = scalar_lea.vmem %s0, 632
  %v1017 = vld [vmem:[%s1016] sm:$0xff]
  %1018 = xla_tuple %v1017
  %1019 = xla_tuple %1018
  %v1020 = vxor.u32 %v1017, 2147483648
  %1021 = xla_tuple %v1020
  %s1022 = scalar_lea.vmem %s1, 632
  %1023 = vst [vmem:[%s1022] sm:$0xff] %v1020
  %s1024 = scalar_lea.vmem %s0, 664
  %v1025 = vld [vmem:[%s1024] sm:$0xff]
  %1026 = xla_tuple %v1025
  %1027 = xla_tuple %1026
  %v1028 = vxor.u32 %v1025, 2147483648
  %1029 = xla_tuple %v1028
  %s1030 = scalar_lea.vmem %s1, 664
  %1031 = vst [vmem:[%s1030] sm:$0xff] %v1028
  %s1032 = scalar_lea.vmem %s0, 696
  %v1033 = vld [vmem:[%s1032] sm:$0xff]
  %1034 = xla_tuple %v1033
  %1035 = xla_tuple %1034
  %v1036 = vxor.u32 %v1033, 2147483648
  %1037 = xla_tuple %v1036
  %s1038 = scalar_lea.vmem %s1, 696
  %1039 = vst [vmem:[%s1038] sm:$0xff] %v1036
  %s1040 = scalar_lea.vmem %s0, 728
  %v1041 = vld [vmem:[%s1040] sm:$0xff]
  %1042 = xla_tuple %v1041
  %1043 = xla_tuple %1042
  %v1044 = vxor.u32 %v1041, 2147483648
  %1045 = xla_tuple %v1044
  %s1046 = scalar_lea.vmem %s1, 728
  %1047 = vst [vmem:[%s1046] sm:$0xff] %v1044
  %s1048 = scalar_lea.vmem %s0, 760
  %v1049 = vld [vmem:[%s1048] sm:$0xff]
  %1050 = xla_tuple %v1049
  %1051 = xla_tuple %1050
  %v1052 = vxor.u32 %v1049, 2147483648
  %1053 = xla_tuple %v1052
  %s1054 = scalar_lea.vmem %s1, 760
  %1055 = vst [vmem:[%s1054] sm:$0xff] %v1052
  %s1056 = scalar_lea.vmem %s0, 792
  %v1057 = vld [vmem:[%s1056] sm:$0xff]
  %1058 = xla_tuple %v1057
  %1059 = xla_tuple %1058
  %v1060 = vxor.u32 %v1057, 2147483648
  %1061 = xla_tuple %v1060
  %s1062 = scalar_lea.vmem %s1, 792
  %1063 = vst [vmem:[%s1062] sm:$0xff] %v1060
  %s1064 = scalar_lea.vmem %s0, 824
  %v1065 = vld [vmem:[%s1064] sm:$0xff]
  %1066 = xla_tuple %v1065
  %1067 = xla_tuple %1066
  %v1068 = vxor.u32 %v1065, 2147483648
  %1069 = xla_tuple %v1068
  %s1070 = scalar_lea.vmem %s1, 824
  %1071 = vst [vmem:[%s1070] sm:$0xff] %v1068
  %s1072 = scalar_lea.vmem %s0, 856
  %v1073 = vld [vmem:[%s1072] sm:$0xff]
  %1074 = xla_tuple %v1073
  %1075 = xla_tuple %1074
  %v1076 = vxor.u32 %v1073, 2147483648
  %1077 = xla_tuple %v1076
  %s1078 = scalar_lea.vmem %s1, 856
  %1079 = vst [vmem:[%s1078] sm:$0xff] %v1076
  %s1080 = scalar_lea.vmem %s0, 888
  %v1081 = vld [vmem:[%s1080] sm:$0xff]
  %1082 = xla_tuple %v1081
  %1083 = xla_tuple %1082
  %v1084 = vxor.u32 %v1081, 2147483648
  %1085 = xla_tuple %v1084
  %s1086 = scalar_lea.vmem %s1, 888
  %1087 = vst [vmem:[%s1086] sm:$0xff] %v1084
  %s1088 = scalar_lea.vmem %s0, 920
  %v1089 = vld [vmem:[%s1088] sm:$0xff]
  %1090 = xla_tuple %v1089
  %1091 = xla_tuple %1090
  %v1092 = vxor.u32 %v1089, 2147483648
  %1093 = xla_tuple %v1092
  %s1094 = scalar_lea.vmem %s1, 920
  %1095 = vst [vmem:[%s1094] sm:$0xff] %v1092
  %s1096 = scalar_lea.vmem %s0, 952
  %v1097 = vld [vmem:[%s1096] sm:$0xff]
  %1098 = xla_tuple %v1097
  %1099 = xla_tuple %1098
  %v1100 = vxor.u32 %v1097, 2147483648
  %1101 = xla_tuple %v1100
  %s1102 = scalar_lea.vmem %s1, 952
  %1103 = vst [vmem:[%s1102] sm:$0xff] %v1100
  %s1104 = scalar_lea.vmem %s0, 984
  %v1105 = vld [vmem:[%s1104] sm:$0xff]
  %1106 = xla_tuple %v1105
  %1107 = xla_tuple %1106
  %v1108 = vxor.u32 %v1105, 2147483648
  %1109 = xla_tuple %v1108
  %s1110 = scalar_lea.vmem %s1, 984
  %1111 = vst [vmem:[%s1110] sm:$0xff] %v1108
  %s1112 = scalar_lea.vmem %s0, 1016
  %v1113 = vld [vmem:[%s1112] sm:$0xff]
  %1114 = xla_tuple %v1113
  %1115 = xla_tuple %1114
  %v1116 = vxor.u32 %v1113, 2147483648
  %1117 = xla_tuple %v1116
  %s1118 = scalar_lea.vmem %s1, 1016
  %1119 = vst [vmem:[%s1118] sm:$0xff] %v1116
  %s1120 = scalar_lea.vmem %s0, 1048
  %v1121 = vld [vmem:[%s1120] sm:$0xff]
  %1122 = xla_tuple %v1121
  %1123 = xla_tuple %1122
  %v1124 = vxor.u32 %v1121, 2147483648
  %1125 = xla_tuple %v1124
  %s1126 = scalar_lea.vmem %s1, 1048
  %1127 = vst [vmem:[%s1126] sm:$0xff] %v1124
  %s1128 = scalar_lea.vmem %s0, 1080
  %v1129 = vld [vmem:[%s1128] sm:$0xff]
  %1130 = xla_tuple %v1129
  %1131 = xla_tuple %1130
  %v1132 = vxor.u32 %v1129, 2147483648
  %1133 = xla_tuple %v1132
  %s1134 = scalar_lea.vmem %s1, 1080
  %1135 = vst [vmem:[%s1134] sm:$0xff] %v1132
  %s1136 = scalar_lea.vmem %s0, 1112
  %v1137 = vld [vmem:[%s1136] sm:$0xff]
  %1138 = xla_tuple %v1137
  %1139 = xla_tuple %1138
  %v1140 = vxor.u32 %v1137, 2147483648
  %1141 = xla_tuple %v1140
  %s1142 = scalar_lea.vmem %s1, 1112
  %1143 = vst [vmem:[%s1142] sm:$0xff] %v1140
  %s1144 = scalar_lea.vmem %s0, 1144
  %v1145 = vld [vmem:[%s1144] sm:$0xff]
  %1146 = xla_tuple %v1145
  %1147 = xla_tuple %1146
  %v1148 = vxor.u32 %v1145, 2147483648
  %1149 = xla_tuple %v1148
  %s1150 = scalar_lea.vmem %s1, 1144
  %1151 = vst [vmem:[%s1150] sm:$0xff] %v1148

// kernel: net2d_forward.11
$region0: #{net2d_forward.11}
  #allocation0 [shape = 'u32[]', space=smem, size = 0x4, offset = 0x4, fixed_abs, tag = 'smem constant byte address 0x4 - core index']
  #allocation1 [shape = 'u32[144,128]{1,0:T(1,128)}', space=vmem, size = 0x12000, scoped, tag = 'internal scratch']
  %s0 = inlined_call_operand.vmem [shape: f32[72,2,64], index: 0, kind: input, shape index: {}]
  %s1 = inlined_call_operand.vmem [shape: f32[72,64,64], index: 1, kind: input, shape index: {}]
  %s2 = inlined_call_operand.vmem [shape: f32[72,2,64], index: 2, kind: output, shape index: {}]
  %s3 = sld [smem:[#allocation0]]
  $region41: #{net2d_forward.11} parent=0
    _
  %s5 = ssub.s32 1, %s3
  %s6 = scalar_select 0, %s5, %s3
  loop: start=0, step=1, limit=4
  $region2: #{net2d_forward.11} parent=0 // loop_pre_header
    _
  $region3: #{net2d_forward.11} parent=0 // loop_header
    %s8 = sphi 0, %s12
    %p9 = scmp.ge.s32.totalorder %s8, 4
    %s18 = sphi 0, %s20
    %s21 = sphi 0, %s18
    %s22 = sphi 0, %s21
    %s38 = sphi 0, %s22
    %s44 = sphi 0, %s46
    %s47 = sphi 0, %s44
    %s48 = sphi 0, %s47
    %s64 = sphi 0, %s48
    %s70 = sphi 0, %s72
    %s73 = sphi 0, %s70
    %s74 = sphi 0, %s73
    %s90 = sphi 0, %s74
  $region4: #{net2d_forward.11} parent=0 // loop_header_branch
    %11 = sbr.rel (%p9) target = $region8
  $region5: #{net2d_forward.11} parent=0 // loop_body
    %s13 = ssub.s32 %s8, 1
    %s14 = ssub.s32 %s8, 2
    %s15 = sadd.s32 %s8, 1
    %s16 = ssub.s32 %s8, %s15
    %p17 = scmp.eq.s32.totalorder %s16, 0
    %s19 = sadd.s32 %s18, 1
    %s20 = scalar_select %p17, %s18, %s19
    %p23 = pneg %p17
    %p24 = scmp.eq.s32.totalorder %s8, 1
    %p25 = por %p23, %p24
    %p26 = scmp.ne.s32.totalorder %s18, %s21
    %p27 = scmp.eq.s32.totalorder %s8, 0
    %p28 = por %p26, %p27
    %p29 = scmp.ne.s32.totalorder %s18, %s21
    %p30 = scmp.eq.s32.totalorder %s13, 1
    %p31 = por %p29, %p30
    %p32 = scmp.ne.s32.totalorder %s21, %s22
    %p33 = scmp.eq.s32.totalorder %s13, 0
    %p34 = por %p32, %p33
    %p35 = scmp.ne.s32.totalorder %s21, %s22
    %p36 = scmp.eq.s32.totalorder %s14, 1
    %p37 = por %p35, %p36
    %p39 = scmp.ne.s32.totalorder %s22, %s38
    %p40 = scmp.eq.s32.totalorder %s14, 0
    %p41 = por %p39, %p40
    %s42 = ssub.s32 %s8, %s15
    %p43 = scmp.eq.s32.totalorder %s42, 0
    %s45 = sadd.s32 %s44, 1
    %s46 = scalar_select %p43, %s44, %s45
    %p49 = pneg %p43
    %p50 = scmp.eq.s32.totalorder %s8, 1
    %p51 = por %p49, %p50
    %p52 = scmp.ne.s32.totalorder %s44, %s47
    %p53 = scmp.eq.s32.totalorder %s8, 0
    %p54 = por %p52, %p53
    %p55 = scmp.ne.s32.totalorder %s44, %s47
    %p56 = scmp.eq.s32.totalorder %s13, 1
    %p57 = por %p55, %p56
    %p58 = scmp.ne.s32.totalorder %s47, %s48
    %p59 = scmp.eq.s32.totalorder %s13, 0
    %p60 = por %p58, %p59
    %p61 = scmp.ne.s32.totalorder %s47, %s48
    %p62 = scmp.eq.s32.totalorder %s14, 1
    %p63 = por %p61, %p62
    %p65 = scmp.ne.s32.totalorder %s48, %s64
    %p66 = scmp.eq.s32.totalorder %s14, 0
    %p67 = por %p65, %p66
    %s68 = ssub.s32 %s8, %s15
    %p69 = scmp.eq.s32.totalorder %s68, 0
    %s71 = sadd.s32 %s70, 1
    %s72 = scalar_select %p69, %s70, %s71
    %p75 = pneg %p69
    %p76 = scmp.eq.s32.totalorder %s8, 1
    %p77 = por %p75, %p76
    %p78 = scmp.ne.s32.totalorder %s70, %s73
    %p79 = scmp.eq.s32.totalorder %s8, 0
    %p80 = por %p78, %p79
    %p81 = scmp.ne.s32.totalorder %s70, %s73
    %p82 = scmp.eq.s32.totalorder %s13, 1
    %p83 = por %p81, %p82
    %p84 = scmp.ne.s32.totalorder %s73, %s74
    %p85 = scmp.eq.s32.totalorder %s13, 0
    %p86 = por %p84, %p85
    %p87 = scmp.ne.s32.totalorder %s73, %s74
    %p88 = scmp.eq.s32.totalorder %s14, 1
    %p89 = por %p87, %p88
    %p91 = scmp.ne.s32.totalorder %s74, %s90
    %p92 = scmp.eq.s32.totalorder %s14, 0
    %p93 = por %p91, %p92
    %p94 = scmp.le.s32.totalorder 1, %s8
    %p95 = scmp.lt.s32.totalorder %s8, 3
    %p96 = pnand %p94, %p95
    %p97 = pneg %p96
    // Predicated region
    $region9: #{net2d_forward.11} parent=5 // pred_check
      _
    $region10: #{net2d_forward.11} parent=5 // pred_check_branch
      %99 = sbr.rel (%p96) target = $region12
    $region11: #{net2d_forward.11} parent=5 // pred_region
      %s100 = ssub.s32 %s8, 1
    $region12: #{net2d_forward.11} parent=5 // pred_fallthru
      _
    %p101 = scmp.lt.s32.totalorder %s8, 2
    // Predicated region
    $region13: #{net2d_forward.11} parent=5 // pred_check
      %p102 = pneg %p101
    $region14: #{net2d_forward.11} parent=5 // pred_check_branch
      %104 = sbr.rel (%p102) target = $region16
    $region15: #{net2d_forward.11} parent=5 // pred_region
      // Predicated region
      $region17: #{net2d_forward.11} parent=15 // pred_check
        %p105 = pneg %p28
      $region18: #{net2d_forward.11} parent=15 // pred_check_branch
        %107 = sbr.rel (%p105) target = $region20
      $region19: #{net2d_forward.11} parent=15 // pred_region
        %s108 = smul.u32 36, %s8
        %p109 = scmp.lt.s32.totalorder %s108, 71
        %s110 = scalar_select %p109, %s108, 71
        %s111 = smul.addr %s110, 2
        %s112 = scalar_lea.vmem %s0, %s111
        %s113 = smul.u32 36, %s8
      $region20: #{net2d_forward.11} parent=15 // pred_fallthru
        _
      // Predicated region
      $region21: #{net2d_forward.11} parent=15 // pred_check
        %p114 = pneg %p54
      $region22: #{net2d_forward.11} parent=15 // pred_check_branch
        %116 = sbr.rel (%p114) target = $region24
      $region23: #{net2d_forward.11} parent=15 // pred_region
        %s117 = smul.u32 36, %s8
        %p118 = scmp.lt.s32.totalorder %s117, 71
        %s119 = scalar_select %p118, %s117, 71
        %s120 = smul.addr %s119, 8
        %s121 = smul.addr %s120, 8
        %s122 = scalar_lea.vmem %s1, %s121
        %s123 = smul.u32 36, %s8
      $region24: #{net2d_forward.11} parent=15 // pred_fallthru
        _
    $region16: #{net2d_forward.11} parent=5 // pred_fallthru
      _
    %p124 = scmp.le.s32.totalorder 1, %s8
    %p125 = scmp.lt.s32.totalorder %s8, 3
    %p126 = pnand %p124, %p125
    %p127 = pneg %p126
    // Predicated region
    $region25: #{net2d_forward.11} parent=5 // pred_check
      _
    $region26: #{net2d_forward.11} parent=5 // pred_check_branch
      %129 = sbr.rel (%p126) target = $region28
    $region27: #{net2d_forward.11} parent=5 // pred_region
      %s130 = ssub.s32 %s8, 1
      %s131 = smul.u32 36, %s13
      %p132 = scmp.lt.s32.totalorder %s131, 71
      %s133 = scalar_select %p132, %s131, 71
      %s134 = smul.addr %s133, 2
      %s135 = scalar_lea.vmem %s0, %s134
      %p136 = pneg %p34
      %p137 = pneg %p31
      %s138 = smul.u32 36, %s13
      %p139 = scmp.lt.s32.totalorder %s138, 71
      %s140 = scalar_select %p139, %s138, 71
      %s141 = smul.addr %s140, 8
      %s142 = smul.addr %s141, 8
      %s143 = scalar_lea.vmem %s1, %s142
      %p144 = pneg %p60
      %p145 = pneg %p57
      %p146 = pneg %p86
      %p147 = pneg %p83
      %s148 = smul.u32 36, %s13
      %p149 = scmp.lt.s32.totalorder %s148, 71
      %s150 = scalar_select %p149, %s148, 71
      %s151 = smul.addr %s150, 2
      %s152 = scalar_lea.vmem %s2, %s151
      %s153 = smul.u32 36, %s13
      %p154 = scmp.lt.s32.totalorder %s153, 71
      %s155 = scalar_select %p154, %s153, 71
      %s156 = smul.addr %s155, 2
      %s157 = scalar_lea.vmem %s0, %s156
      %s158 = smul.u32 36, %s13
      %s159 = smul.u32 36, %s13
      %p160 = scmp.lt.s32.totalorder %s159, 71
      %s161 = scalar_select %p160, %s159, 71
      %s162 = smul.addr %s161, 8
      %s163 = smul.addr %s162, 8
      %s164 = scalar_lea.vmem %s1, %s163
      %s165 = smul.u32 36, %s13
      %s166 = smul.u32 36, %s13
      %p167 = scmp.lt.s32.totalorder %s166, 71
      %s168 = scalar_select %p167, %s166, 71
      %s169 = smul.addr %s168, 2
      %s170 = scalar_lea.vmem %s2, %s169
      %s171 = smul.u32 36, %s13
      %v172 = vld [vmem:[%s157] sm:$0x3]
      %v173 = vld [vmem:[%s157 + $0x2] sm:$0x3]
      %v174 = vld [vmem:[%s157 + $0x4] sm:$0x3]
      %v175 = vld [vmem:[%s157 + $0x6] sm:$0x3]
      %v176 = vld [vmem:[%s157 + $0x8] sm:$0x3]
      %v177 = vld [vmem:[%s157 + $0xa] sm:$0x3]
      %v178 = vld [vmem:[%s157 + $0xc] sm:$0x3]
      %v179 = vld [vmem:[%s157 + $0xe] sm:$0x3]
      %v180 = vld [vmem:[%s157 + $0x10] sm:$0x3]
      %v181 = vld [vmem:[%s157 + $0x12] sm:$0x3]
      %v182 = vld [vmem:[%s157 + $0x14] sm:$0x3]
      %v183 = vld [vmem:[%s157 + $0x16] sm:$0x3]
      %v184 = vld [vmem:[%s157 + $0x18] sm:$0x3]
      %v185 = vld [vmem:[%s157 + $0x1a] sm:$0x3]
      %v186 = vld [vmem:[%s157 + $0x1c] sm:$0x3]
      %v187 = vld [vmem:[%s157 + $0x1e] sm:$0x3]
      %v188 = vld [vmem:[%s157 + $0x20] sm:$0x3]
      %v189 = vld [vmem:[%s157 + $0x22] sm:$0x3]
      %v190 = vld [vmem:[%s157 + $0x24] sm:$0x3]
      %v191 = vld [vmem:[%s157 + $0x26] sm:$0x3]
      %v192 = vld [vmem:[%s157 + $0x28] sm:$0x3]
      %v193 = vld [vmem:[%s157 + $0x2a] sm:$0x3]
      %v194 = vld [vmem:[%s157 + $0x2c] sm:$0x3]
      %v195 = vld [vmem:[%s157 + $0x2e] sm:$0x3]
      %v196 = vld [vmem:[%s157 + $0x30] sm:$0x3]
      %v197 = vld [vmem:[%s157 + $0x32] sm:$0x3]
      %v198 = vld [vmem:[%s157 + $0x34] sm:$0x3]
      %v199 = vld [vmem:[%s157 + $0x36] sm:$0x3]
      %v200 = vld [vmem:[%s157 + $0x38] sm:$0x3]
      %v201 = vld [vmem:[%s157 + $0x3a] sm:$0x3]
      %v202 = vld [vmem:[%s157 + $0x3c] sm:$0x3]
      %v203 = vld [vmem:[%s157 + $0x3e] sm:$0x3]
      %v204 = vld [vmem:[%s157 + $0x40] sm:$0x3]
      %v205 = vld [vmem:[%s157 + $0x42] sm:$0x3]
      %v206 = vld [vmem:[%s157 + $0x44] sm:$0x3]
      %v207 = vld [vmem:[%s157 + $0x46] sm:$0x3]
      %v208 = vld [vmem:[%s164] sm:$0xff]
      %v209 = vld [vmem:[%s164 + $0x8] sm:$0xff]
      %v210 = vld [vmem:[%s164 + $0x10] sm:$0xff]
      %v211 = vld [vmem:[%s164 + $0x18] sm:$0xff]
      %v212 = vld [vmem:[%s164 + $0x20] sm:$0xff]
      %v213 = vld [vmem:[%s164 + $0x28] sm:$0xff]
      %v214 = vld [vmem:[%s164 + $0x30] sm:$0xff]
      %v215 = vld [vmem:[%s164 + $0x38] sm:$0xff]
      %v216 = vld [vmem:[%s164 + $0x40] sm:$0xff]
      %v217 = vld [vmem:[%s164 + $0x48] sm:$0xff]
      %v218 = vld [vmem:[%s164 + $0x50] sm:$0xff]
      %v219 = vld [vmem:[%s164 + $0x58] sm:$0xff]
      %v220 = vld [vmem:[%s164 + $0x60] sm:$0xff]
      %v221 = vld [vmem:[%s164 + $0x68] sm:$0xff]
      %v222 = vld [vmem:[%s164 + $0x70] sm:$0xff]
      %v223 = vld [vmem:[%s164 + $0x78] sm:$0xff]
      %v224 = vld [vmem:[%s164 + $0x80] sm:$0xff]
      %v225 = vld [vmem:[%s164 + $0x88] sm:$0xff]
      %v226 = vld [vmem:[%s164 + $0x90] sm:$0xff]
      %v227 = vld [vmem:[%s164 + $0x98] sm:$0xff]
      %v228 = vld [vmem:[%s164 + $0xa0] sm:$0xff]
      %v229 = vld [vmem:[%s164 + $0xa8] sm:$0xff]
      %v230 = vld [vmem:[%s164 + $0xb0] sm:$0xff]
      %v231 = vld [vmem:[%s164 + $0xb8] sm:$0xff]
      %v232 = vld [vmem:[%s164 + $0xc0] sm:$0xff]
      %v233 = vld [vmem:[%s164 + $0xc8] sm:$0xff]
      %v234 = vld [vmem:[%s164 + $0xd0] sm:$0xff]
      %v235 = vld [vmem:[%s164 + $0xd8] sm:$0xff]
      %v236 = vld [vmem:[%s164 + $0xe0] sm:$0xff]
      %v237 = vld [vmem:[%s164 + $0xe8] sm:$0xff]
      %v238 = vld [vmem:[%s164 + $0xf0] sm:$0xff]
      %v239 = vld [vmem:[%s164 + $0xf8] sm:$0xff]
      %v240 = vld [vmem:[%s164 + $0x100] sm:$0xff]
      %v241 = vld [vmem:[%s164 + $0x108] sm:$0xff]
      %v242 = vld [vmem:[%s164 + $0x110] sm:$0xff]
      %v243 = vld [vmem:[%s164 + $0x118] sm:$0xff]
      %v244 = vld [vmem:[%s164 + $0x120] sm:$0xff]
      %v245 = vld [vmem:[%s164 + $0x128] sm:$0xff]
      %v246 = vld [vmem:[%s164 + $0x130] sm:$0xff]
      %v247 = vld [vmem:[%s164 + $0x138] sm:$0xff]
      %v248 = vld [vmem:[%s164 + $0x140] sm:$0xff]
      %v249 = vld [vmem:[%s164 + $0x148] sm:$0xff]
      %v250 = vld [vmem:[%s164 + $0x150] sm:$0xff]
      %v251 = vld [vmem:[%s164 + $0x158] sm:$0xff]
      %v252 = vld [vmem:[%s164 + $0x160] sm:$0xff]
      %v253 = vld [vmem:[%s164 + $0x168] sm:$0xff]
      %v254 = vld [vmem:[%s164 + $0x170] sm:$0xff]
      %v255 = vld [vmem:[%s164 + $0x178] sm:$0xff]
      %v256 = vld [vmem:[%s164 + $0x180] sm:$0xff]
      %v257 = vld [vmem:[%s164 + $0x188] sm:$0xff]
      %v258 = vld [vmem:[%s164 + $0x190] sm:$0xff]
      %v259 = vld [vmem:[%s164 + $0x198] sm:$0xff]
      %v260 = vld [vmem:[%s164 + $0x1a0] sm:$0xff]
      %v261 = vld [vmem:[%s164 + $0x1a8] sm:$0xff]
      %v262 = vld [vmem:[%s164 + $0x1b0] sm:$0xff]
      %v263 = vld [vmem:[%s164 + $0x1b8] sm:$0xff]
      %v264 = vld [vmem:[%s164 + $0x1c0] sm:$0xff]
      %v265 = vld [vmem:[%s164 + $0x1c8] sm:$0xff]
      %v266 = vld [vmem:[%s164 + $0x1d0] sm:$0xff]
      %v267 = vld [vmem:[%s164 + $0x1d8] sm:$0xff]
      %v268 = vld [vmem:[%s164 + $0x1e0] sm:$0xff]
      %v269 = vld [vmem:[%s164 + $0x1e8] sm:$0xff]
      %v270 = vld [vmem:[%s164 + $0x1f0] sm:$0xff]
      %v271 = vld [vmem:[%s164 + $0x1f8] sm:$0xff]
      %v272 = vld [vmem:[%s164 + $0x200] sm:$0xff]
      %v273 = vld [vmem:[%s164 + $0x208] sm:$0xff]
      %v274 = vld [vmem:[%s164 + $0x210] sm:$0xff]
      %v275 = vld [vmem:[%s164 + $0x218] sm:$0xff]
      %v276 = vld [vmem:[%s164 + $0x220] sm:$0xff]
      %v277 = vld [vmem:[%s164 + $0x228] sm:$0xff]
      %v278 = vld [vmem:[%s164 + $0x230] sm:$0xff]
      %v279 = vld [vmem:[%s164 + $0x238] sm:$0xff]
      %v280 = vld [vmem:[%s164 + $0x240] sm:$0xff]
      %v281 = vld [vmem:[%s164 + $0x248] sm:$0xff]
      %v282 = vld [vmem:[%s164 + $0x250] sm:$0xff]
      %v283 = vld [vmem:[%s164 + $0x258] sm:$0xff]
      %v284 = vld [vmem:[%s164 + $0x260] sm:$0xff]
      %v285 = vld [vmem:[%s164 + $0x268] sm:$0xff]
      %v286 = vld [vmem:[%s164 + $0x270] sm:$0xff]
      %v287 = vld [vmem:[%s164 + $0x278] sm:$0xff]
      %v288 = vld [vmem:[%s164 + $0x280] sm:$0xff]
      %v289 = vld [vmem:[%s164 + $0x288] sm:$0xff]
      %v290 = vld [vmem:[%s164 + $0x290] sm:$0xff]
      %v291 = vld [vmem:[%s164 + $0x298] sm:$0xff]
      %v292 = vld [vmem:[%s164 + $0x2a0] sm:$0xff]
      %v293 = vld [vmem:[%s164 + $0x2a8] sm:$0xff]
      %v294 = vld [vmem:[%s164 + $0x2b0] sm:$0xff]
      %v295 = vld [vmem:[%s164 + $0x2b8] sm:$0xff]
      %v296 = vld [vmem:[%s164 + $0x2c0] sm:$0xff]
      %v297 = vld [vmem:[%s164 + $0x2c8] sm:$0xff]
      %v298 = vld [vmem:[%s164 + $0x2d0] sm:$0xff]
      %v299 = vld [vmem:[%s164 + $0x2d8] sm:$0xff]
      %v300 = vld [vmem:[%s164 + $0x2e0] sm:$0xff]
      %v301 = vld [vmem:[%s164 + $0x2e8] sm:$0xff]
      %v302 = vld [vmem:[%s164 + $0x2f0] sm:$0xff]
      %v303 = vld [vmem:[%s164 + $0x2f8] sm:$0xff]
      %v304 = vld [vmem:[%s164 + $0x300] sm:$0xff]
      %v305 = vld [vmem:[%s164 + $0x308] sm:$0xff]
      %v306 = vld [vmem:[%s164 + $0x310] sm:$0xff]
      %v307 = vld [vmem:[%s164 + $0x318] sm:$0xff]
      %v308 = vld [vmem:[%s164 + $0x320] sm:$0xff]
      %v309 = vld [vmem:[%s164 + $0x328] sm:$0xff]
      %v310 = vld [vmem:[%s164 + $0x330] sm:$0xff]
      %v311 = vld [vmem:[%s164 + $0x338] sm:$0xff]
      %v312 = vld [vmem:[%s164 + $0x340] sm:$0xff]
      %v313 = vld [vmem:[%s164 + $0x348] sm:$0xff]
      %v314 = vld [vmem:[%s164 + $0x350] sm:$0xff]
      %v315 = vld [vmem:[%s164 + $0x358] sm:$0xff]
      %v316 = vld [vmem:[%s164 + $0x360] sm:$0xff]
      %v317 = vld [vmem:[%s164 + $0x368] sm:$0xff]
      %v318 = vld [vmem:[%s164 + $0x370] sm:$0xff]
      %v319 = vld [vmem:[%s164 + $0x378] sm:$0xff]
      %v320 = vld [vmem:[%s164 + $0x380] sm:$0xff]
      %v321 = vld [vmem:[%s164 + $0x388] sm:$0xff]
      %v322 = vld [vmem:[%s164 + $0x390] sm:$0xff]
      %v323 = vld [vmem:[%s164 + $0x398] sm:$0xff]
      %v324 = vld [vmem:[%s164 + $0x3a0] sm:$0xff]
      %v325 = vld [vmem:[%s164 + $0x3a8] sm:$0xff]
      %v326 = vld [vmem:[%s164 + $0x3b0] sm:$0xff]
      %v327 = vld [vmem:[%s164 + $0x3b8] sm:$0xff]
      %v328 = vld [vmem:[%s164 + $0x3c0] sm:$0xff]
      %v329 = vld [vmem:[%s164 + $0x3c8] sm:$0xff]
      %v330 = vld [vmem:[%s164 + $0x3d0] sm:$0xff]
      %v331 = vld [vmem:[%s164 + $0x3d8] sm:$0xff]
      %v332 = vld [vmem:[%s164 + $0x3e0] sm:$0xff]
      %v333 = vld [vmem:[%s164 + $0x3e8] sm:$0xff]
      %v334 = vld [vmem:[%s164 + $0x3f0] sm:$0xff]
      %v335 = vld [vmem:[%s164 + $0x3f8] sm:$0xff]
      %v336 = vld [vmem:[%s164 + $0x400] sm:$0xff]
      %v337 = vld [vmem:[%s164 + $0x408] sm:$0xff]
      %v338 = vld [vmem:[%s164 + $0x410] sm:$0xff]
      %v339 = vld [vmem:[%s164 + $0x418] sm:$0xff]
      %v340 = vld [vmem:[%s164 + $0x420] sm:$0xff]
      %v341 = vld [vmem:[%s164 + $0x428] sm:$0xff]
      %v342 = vld [vmem:[%s164 + $0x430] sm:$0xff]
      %v343 = vld [vmem:[%s164 + $0x438] sm:$0xff]
      %v344 = vld [vmem:[%s164 + $0x440] sm:$0xff]
      %v345 = vld [vmem:[%s164 + $0x448] sm:$0xff]
      %v346 = vld [vmem:[%s164 + $0x450] sm:$0xff]
      %v347 = vld [vmem:[%s164 + $0x458] sm:$0xff]
      %v348 = vld [vmem:[%s164 + $0x460] sm:$0xff]
      %v349 = vld [vmem:[%s164 + $0x468] sm:$0xff]
      %v350 = vld [vmem:[%s164 + $0x470] sm:$0xff]
      %v351 = vld [vmem:[%s164 + $0x478] sm:$0xff]
      %v352 = vld [vmem:[%s164 + $0x480] sm:$0xff]
      %v353 = vld [vmem:[%s164 + $0x488] sm:$0xff]
      %v354 = vld [vmem:[%s164 + $0x490] sm:$0xff]
      %v355 = vld [vmem:[%s164 + $0x498] sm:$0xff]
      %v356 = vld [vmem:[%s164 + $0x4a0] sm:$0xff]
      %v357 = vld [vmem:[%s164 + $0x4a8] sm:$0xff]
      %v358 = vld [vmem:[%s164 + $0x4b0] sm:$0xff]
      %v359 = vld [vmem:[%s164 + $0x4b8] sm:$0xff]
      %v360 = vld [vmem:[%s164 + $0x4c0] sm:$0xff]
      %v361 = vld [vmem:[%s164 + $0x4c8] sm:$0xff]
      %v362 = vld [vmem:[%s164 + $0x4d0] sm:$0xff]
      %v363 = vld [vmem:[%s164 + $0x4d8] sm:$0xff]
      %v364 = vld [vmem:[%s164 + $0x4e0] sm:$0xff]
      %v365 = vld [vmem:[%s164 + $0x4e8] sm:$0xff]
      %v366 = vld [vmem:[%s164 + $0x4f0] sm:$0xff]
      %v367 = vld [vmem:[%s164 + $0x4f8] sm:$0xff]
      %v368 = vld [vmem:[%s164 + $0x500] sm:$0xff]
      %v369 = vld [vmem:[%s164 + $0x508] sm:$0xff]
      %v370 = vld [vmem:[%s164 + $0x510] sm:$0xff]
      %v371 = vld [vmem:[%s164 + $0x518] sm:$0xff]
      %v372 = vld [vmem:[%s164 + $0x520] sm:$0xff]
      %v373 = vld [vmem:[%s164 + $0x528] sm:$0xff]
      %v374 = vld [vmem:[%s164 + $0x530] sm:$0xff]
      %v375 = vld [vmem:[%s164 + $0x538] sm:$0xff]
      %v376 = vld [vmem:[%s164 + $0x540] sm:$0xff]
      %v377 = vld [vmem:[%s164 + $0x548] sm:$0xff]
      %v378 = vld [vmem:[%s164 + $0x550] sm:$0xff]
      %v379 = vld [vmem:[%s164 + $0x558] sm:$0xff]
      %v380 = vld [vmem:[%s164 + $0x560] sm:$0xff]
      %v381 = vld [vmem:[%s164 + $0x568] sm:$0xff]
      %v382 = vld [vmem:[%s164 + $0x570] sm:$0xff]
      %v383 = vld [vmem:[%s164 + $0x578] sm:$0xff]
      %v384 = vld [vmem:[%s164 + $0x580] sm:$0xff]
      %v385 = vld [vmem:[%s164 + $0x588] sm:$0xff]
      %v386 = vld [vmem:[%s164 + $0x590] sm:$0xff]
      %v387 = vld [vmem:[%s164 + $0x598] sm:$0xff]
      %v388 = vld [vmem:[%s164 + $0x5a0] sm:$0xff]
      %v389 = vld [vmem:[%s164 + $0x5a8] sm:$0xff]
      %v390 = vld [vmem:[%s164 + $0x5b0] sm:$0xff]
      %v391 = vld [vmem:[%s164 + $0x5b8] sm:$0xff]
      %v392 = vld [vmem:[%s164 + $0x5c0] sm:$0xff]
      %v393 = vld [vmem:[%s164 + $0x5c8] sm:$0xff]
      %v394 = vld [vmem:[%s164 + $0x5d0] sm:$0xff]
      %v395 = vld [vmem:[%s164 + $0x5d8] sm:$0xff]
      %v396 = vld [vmem:[%s164 + $0x5e0] sm:$0xff]
      %v397 = vld [vmem:[%s164 + $0x5e8] sm:$0xff]
      %v398 = vld [vmem:[%s164 + $0x5f0] sm:$0xff]
      %v399 = vld [vmem:[%s164 + $0x5f8] sm:$0xff]
      %v400 = vld [vmem:[%s164 + $0x600] sm:$0xff]
      %v401 = vld [vmem:[%s164 + $0x608] sm:$0xff]
      %v402 = vld [vmem:[%s164 + $0x610] sm:$0xff]
      %v403 = vld [vmem:[%s164 + $0x618] sm:$0xff]
      %v404 = vld [vmem:[%s164 + $0x620] sm:$0xff]
      %v405 = vld [vmem:[%s164 + $0x628] sm:$0xff]
      %v406 = vld [vmem:[%s164 + $0x630] sm:$0xff]
      %v407 = vld [vmem:[%s164 + $0x638] sm:$0xff]
      %v408 = vld [vmem:[%s164 + $0x640] sm:$0xff]
      %v409 = vld [vmem:[%s164 + $0x648] sm:$0xff]
      %v410 = vld [vmem:[%s164 + $0x650] sm:$0xff]
      %v411 = vld [vmem:[%s164 + $0x658] sm:$0xff]
      %v412 = vld [vmem:[%s164 + $0x660] sm:$0xff]
      %v413 = vld [vmem:[%s164 + $0x668] sm:$0xff]
      %v414 = vld [vmem:[%s164 + $0x670] sm:$0xff]
      %v415 = vld [vmem:[%s164 + $0x678] sm:$0xff]
      %v416 = vld [vmem:[%s164 + $0x680] sm:$0xff]
      %v417 = vld [vmem:[%s164 + $0x688] sm:$0xff]
      %v418 = vld [vmem:[%s164 + $0x690] sm:$0xff]
      %v419 = vld [vmem:[%s164 + $0x698] sm:$0xff]
      %v420 = vld [vmem:[%s164 + $0x6a0] sm:$0xff]
      %v421 = vld [vmem:[%s164 + $0x6a8] sm:$0xff]
      %v422 = vld [vmem:[%s164 + $0x6b0] sm:$0xff]
      %v423 = vld [vmem:[%s164 + $0x6b8] sm:$0xff]
      %v424 = vld [vmem:[%s164 + $0x6c0] sm:$0xff]
      %v425 = vld [vmem:[%s164 + $0x6c8] sm:$0xff]
      %v426 = vld [vmem:[%s164 + $0x6d0] sm:$0xff]
      %v427 = vld [vmem:[%s164 + $0x6d8] sm:$0xff]
      %v428 = vld [vmem:[%s164 + $0x6e0] sm:$0xff]
      %v429 = vld [vmem:[%s164 + $0x6e8] sm:$0xff]
      %v430 = vld [vmem:[%s164 + $0x6f0] sm:$0xff]
      %v431 = vld [vmem:[%s164 + $0x6f8] sm:$0xff]
      %v432 = vld [vmem:[%s164 + $0x700] sm:$0xff]
      %v433 = vld [vmem:[%s164 + $0x708] sm:$0xff]
      %v434 = vld [vmem:[%s164 + $0x710] sm:$0xff]
      %v435 = vld [vmem:[%s164 + $0x718] sm:$0xff]
      %v436 = vld [vmem:[%s164 + $0x720] sm:$0xff]
      %v437 = vld [vmem:[%s164 + $0x728] sm:$0xff]
      %v438 = vld [vmem:[%s164 + $0x730] sm:$0xff]
      %v439 = vld [vmem:[%s164 + $0x738] sm:$0xff]
      %v440 = vld [vmem:[%s164 + $0x740] sm:$0xff]
      %v441 = vld [vmem:[%s164 + $0x748] sm:$0xff]
      %v442 = vld [vmem:[%s164 + $0x750] sm:$0xff]
      %v443 = vld [vmem:[%s164 + $0x758] sm:$0xff]
      %v444 = vld [vmem:[%s164 + $0x760] sm:$0xff]
      %v445 = vld [vmem:[%s164 + $0x768] sm:$0xff]
      %v446 = vld [vmem:[%s164 + $0x770] sm:$0xff]
      %v447 = vld [vmem:[%s164 + $0x778] sm:$0xff]
      %v448 = vld [vmem:[%s164 + $0x780] sm:$0xff]
      %v449 = vld [vmem:[%s164 + $0x788] sm:$0xff]
      %v450 = vld [vmem:[%s164 + $0x790] sm:$0xff]
      %v451 = vld [vmem:[%s164 + $0x798] sm:$0xff]
      %v452 = vld [vmem:[%s164 + $0x7a0] sm:$0xff]
      %v453 = vld [vmem:[%s164 + $0x7a8] sm:$0xff]
      %v454 = vld [vmem:[%s164 + $0x7b0] sm:$0xff]
      %v455 = vld [vmem:[%s164 + $0x7b8] sm:$0xff]
      %v456 = vld [vmem:[%s164 + $0x7c0] sm:$0xff]
      %v457 = vld [vmem:[%s164 + $0x7c8] sm:$0xff]
      %v458 = vld [vmem:[%s164 + $0x7d0] sm:$0xff]
      %v459 = vld [vmem:[%s164 + $0x7d8] sm:$0xff]
      %v460 = vld [vmem:[%s164 + $0x7e0] sm:$0xff]
      %v461 = vld [vmem:[%s164 + $0x7e8] sm:$0xff]
      %v462 = vld [vmem:[%s164 + $0x7f0] sm:$0xff]
      %v463 = vld [vmem:[%s164 + $0x7f8] sm:$0xff]
      %v464 = vld [vmem:[%s164 + $0x800] sm:$0xff]
      %v465 = vld [vmem:[%s164 + $0x808] sm:$0xff]
      %v466 = vld [vmem:[%s164 + $0x810] sm:$0xff]
      %v467 = vld [vmem:[%s164 + $0x818] sm:$0xff]
      %v468 = vld [vmem:[%s164 + $0x820] sm:$0xff]
      %v469 = vld [vmem:[%s164 + $0x828] sm:$0xff]
      %v470 = vld [vmem:[%s164 + $0x830] sm:$0xff]
      %v471 = vld [vmem:[%s164 + $0x838] sm:$0xff]
      %v472 = vld [vmem:[%s164 + $0x840] sm:$0xff]
      %v473 = vld [vmem:[%s164 + $0x848] sm:$0xff]
      %v474 = vld [vmem:[%s164 + $0x850] sm:$0xff]
      %v475 = vld [vmem:[%s164 + $0x858] sm:$0xff]
      %v476 = vld [vmem:[%s164 + $0x860] sm:$0xff]
      %v477 = vld [vmem:[%s164 + $0x868] sm:$0xff]
      %v478 = vld [vmem:[%s164 + $0x870] sm:$0xff]
      %v479 = vld [vmem:[%s164 + $0x878] sm:$0xff]
      %v480 = vld [vmem:[%s164 + $0x880] sm:$0xff]
      %v481 = vld [vmem:[%s164 + $0x888] sm:$0xff]
      %v482 = vld [vmem:[%s164 + $0x890] sm:$0xff]
      %v483 = vld [vmem:[%s164 + $0x898] sm:$0xff]
      %v484 = vld [vmem:[%s164 + $0x8a0] sm:$0xff]
      %v485 = vld [vmem:[%s164 + $0x8a8] sm:$0xff]
      %v486 = vld [vmem:[%s164 + $0x8b0] sm:$0xff]
      %v487 = vld [vmem:[%s164 + $0x8b8] sm:$0xff]
      %v488 = vld [vmem:[%s164 + $0x8c0] sm:$0xff]
      %v489 = vld [vmem:[%s164 + $0x8c8] sm:$0xff]
      %v490 = vld [vmem:[%s164 + $0x8d0] sm:$0xff]
      %v491 = vld [vmem:[%s164 + $0x8d8] sm:$0xff]
      %v492 = vld [vmem:[%s164 + $0x8e0] sm:$0xff]
      %v493 = vld [vmem:[%s164 + $0x8e8] sm:$0xff]
      %v494 = vld [vmem:[%s164 + $0x8f0] sm:$0xff]
      %v495 = vld [vmem:[%s164 + $0x8f8] sm:$0xff]
      %vm496 = vcmask 523264
      %v498 = vsel %vm496, %v172, 0
      %500 = vmatprep.subr.mxu0 0.0
      %501 = vmatpush1.msra.mxu0 %v208
      %502 = vmatprep.subr.mxu0 0.0
      %503 = vmatpush1.msra.mxu0 %v209
      %504 = vmatprep.subr.mxu0 0.0
      %505 = vmatpush1.msra.mxu0 %v210
      %506 = vmatprep.subr.mxu0 0.0
      %507 = vmatpush1.msra.mxu0 %v211
      %508 = vmatprep.subr.mxu0 0.0
      %509 = vmatpush1.msra.mxu0 %v212
      %510 = vmatprep.subr.mxu0 0.0
      %511 = vmatpush1.msra.mxu0 %v213
      %512 = vmatprep.subr.mxu0 0.0
      %513 = vmatpush1.msra.mxu0 %v214
      %514 = vmatprep.subr.mxu0 0.0
      %515 = vmatpush1.msra.mxu0 %v215
      %516 = vmatprep.subr.mxu0 0.0
      %517 = vmatpush1.msra.mxu0 0.0
      %518 = vmatprep.subr.mxu0 0.0
      %519 = vmatpush1.msra.mxu0 0.0
      %520 = vmatprep.subr.mxu0 0.0
      %521 = vmatpush1.msra.mxu0 0.0
      %522 = vmatprep.subr.mxu0 0.0
      %523 = vmatpush1.msra.mxu0 0.0
      %524 = vmatprep.subr.mxu0 0.0
      %525 = vmatpush1.msra.mxu0 0.0
      %526 = vmatprep.subr.mxu0 0.0
      %527 = vmatpush1.msra.mxu0 0.0
      %528 = vmatprep.subr.mxu0 0.0
      %529 = vmatpush1.msra.mxu0 0.0
      %530 = vmatprep.subr.mxu0 0.0
      %531 = vmatpush1.msra.mxu0 0.0
      %532 = vmatprep.subr.mxu0 0.0
      %533 = vmatpush1.msra.mxu0 0.0
      %534 = vmatprep.subr.mxu0 0.0
      %535 = vmatpush1.msra.mxu0 0.0
      %536 = vmatprep.subr.mxu0 0.0
      %537 = vmatpush1.msra.mxu0 0.0
      %538 = vmatprep.subr.mxu0 0.0
      %539 = vmatpush1.msra.mxu0 0.0
      %540 = vmatprep.subr.mxu0 0.0
      %541 = vmatpush1.msra.mxu0 0.0
      %542 = vmatprep.subr.mxu0 0.0
      %543 = vmatpush1.msra.mxu0 0.0
      %544 = vmatprep.subr.mxu0 0.0
      %545 = vmatpush1.msra.mxu0 0.0
      %546 = vmatprep.subr.mxu0 0.0
      %547 = vmatpush1.msra.mxu0 0.0
      %548 = vmatprep.subr.mxu0 0.0
      %549 = vmatpush1.msra.mxu0 0.0
      %550 = vmatprep.subr.mxu0 0.0
      %551 = vmatpush1.msra.mxu0 0.0
      %552 = vmatprep.subr.mxu0 0.0
      %553 = vmatpush1.msra.mxu0 0.0
      %554 = vmatprep.subr.mxu0 0.0
      %555 = vmatpush1.msra.mxu0 0.0
      %556 = vmatprep.subr.mxu0 0.0
      %557 = vmatpush1.msra.mxu0 0.0
      %558 = vmatprep.subr.mxu0 0.0
      %559 = vmatpush1.msra.mxu0 0.0
      %560 = vmatprep.subr.mxu0 0.0
      %561 = vmatpush1.msra.mxu0 0.0
      %562 = vmatprep.subr.mxu0 0.0
      %563 = vmatpush1.msra.mxu0 0.0
      %564 = vmatprep.mubr.f32.mxu0 0.0
      %565 = vmatmul.mubr.f32.gmra.mrb[0].mxu0 %v498
      %v566 = vpop.f32.mrb[0].mxu0
      %v567 = vadd.f32 0.0, %v566
      %v568 = vpop.f32.mrb[0].mxu0
      %569 = vdwg.mxu0
      %v571 = vsel %vm496, %v173, 0
      %573 = vmatprep.subr.mxu0 0.0
      %574 = vmatpush1.msra.mxu0 %v216
      %575 = vmatprep.subr.mxu0 0.0
      %576 = vmatpush1.msra.mxu0 %v217
      %577 = vmatprep.subr.mxu0 0.0
      %578 = vmatpush1.msra.mxu0 %v218
      %579 = vmatprep.subr.mxu0 0.0
      %580 = vmatpush1.msra.mxu0 %v219
      %581 = vmatprep.subr.mxu0 0.0
      %582 = vmatpush1.msra.mxu0 %v220
      %583 = vmatprep.subr.mxu0 0.0
      %584 = vmatpush1.msra.mxu0 %v221
      %585 = vmatprep.subr.mxu0 0.0
      %586 = vmatpush1.msra.mxu0 %v222
      %587 = vmatprep.subr.mxu0 0.0
      %588 = vmatpush1.msra.mxu0 %v223
      %589 = vmatprep.subr.mxu0 0.0
      %590 = vmatpush1.msra.mxu0 0.0
      %591 = vmatprep.subr.mxu0 0.0
      %592 = vmatpush1.msra.mxu0 0.0
      %593 = vmatprep.subr.mxu0 0.0
      %594 = vmatpush1.msra.mxu0 0.0
      %595 = vmatprep.subr.mxu0 0.0
      %596 = vmatpush1.msra.mxu0 0.0
      %597 = vmatprep.subr.mxu0 0.0
      %598 = vmatpush1.msra.mxu0 0.0
      %599 = vmatprep.subr.mxu0 0.0
      %600 = vmatpush1.msra.mxu0 0.0
      %601 = vmatprep.subr.mxu0 0.0
      %602 = vmatpush1.msra.mxu0 0.0
      %603 = vmatprep.subr.mxu0 0.0
      %604 = vmatpush1.msra.mxu0 0.0
      %605 = vmatprep.subr.mxu0 0.0
      %606 = vmatpush1.msra.mxu0 0.0
      %607 = vmatprep.subr.mxu0 0.0
      %608 = vmatpush1.msra.mxu0 0.0
      %609 = vmatprep.subr.mxu0 0.0
      %610 = vmatpush1.msra.mxu0 0.0
      %611 = vmatprep.subr.mxu0 0.0
      %612 = vmatpush1.msra.mxu0 0.0
      %613 = vmatprep.subr.mxu0 0.0
      %614 = vmatpush1.msra.mxu0 0.0
      %615 = vmatprep.subr.mxu0 0.0
      %616 = vmatpush1.msra.mxu0 0.0
      %617 = vmatprep.subr.mxu0 0.0
      %618 = vmatpush1.msra.mxu0 0.0
      %619 = vmatprep.subr.mxu0 0.0
      %620 = vmatpush1.msra.mxu0 0.0
      %621 = vmatprep.subr.mxu0 0.0
      %622 = vmatpush1.msra.mxu0 0.0
      %623 = vmatprep.subr.mxu0 0.0
      %624 = vmatpush1.msra.mxu0 0.0
      %625 = vmatprep.subr.mxu0 0.0
      %626 = vmatpush1.msra.mxu0 0.0
      %627 = vmatprep.subr.mxu0 0.0
      %628 = vmatpush1.msra.mxu0 0.0
      %629 = vmatprep.subr.mxu0 0.0
      %630 = vmatpush1.msra.mxu0 0.0
      %631 = vmatprep.subr.mxu0 0.0
      %632 = vmatpush1.msra.mxu0 0.0
      %633 = vmatprep.subr.mxu0 0.0
      %634 = vmatpush1.msra.mxu0 0.0
      %635 = vmatprep.subr.mxu0 0.0
      %636 = vmatpush1.msra.mxu0 0.0
      %637 = vmatprep.mubr.f32.mxu0 0.0
      %638 = vmatmul.mubr.f32.gmra.mrb[0].mxu0 %v571
      %v639 = vpop.f32.mrb[0].mxu0
      %v640 = vadd.f32 0.0, %v639
      %v641 = vpop.f32.mrb[0].mxu0
      %642 = vdwg.mxu0
      %v644 = vsel %vm496, %v174, 0
      %646 = vmatprep.subr.mxu0 0.0
      %647 = vmatpush1.msra.mxu0 %v224
      %648 = vmatprep.subr.mxu0 0.0
      %649 = vmatpush1.msra.mxu0 %v225
      %650 = vmatprep.subr.mxu0 0.0
      %651 = vmatpush1.msra.mxu0 %v226
      %652 = vmatprep.subr.mxu0 0.0
      %653 = vmatpush1.msra.mxu0 %v227
      %654 = vmatprep.subr.mxu0 0.0
      %655 = vmatpush1.msra.mxu0 %v228
      %656 = vmatprep.subr.mxu0 0.0
      %657 = vmatpush1.msra.mxu0 %v229
      %658 = vmatprep.subr.mxu0 0.0
      %659 = vmatpush1.msra.mxu0 %v230
      %660 = vmatprep.subr.mxu0 0.0
      %661 = vmatpush1.msra.mxu0 %v231
      %662 = vmatprep.subr.mxu0 0.0
      %663 = vmatpush1.msra.mxu0 0.0
      %664 = vmatprep.subr.mxu0 0.0
      %665 = vmatpush1.msra.mxu0 0.0
      %666 = vmatprep.subr.mxu0 0.0
      %667 = vmatpush1.msra.mxu0 0.0
      %668 = vmatprep.subr.mxu0 0.0
      %669 = vmatpush1.msra.mxu0 0.0
      %670 = vmatprep.subr.mxu0 0.0
      %671 = vmatpush1.msra.mxu0 0.0
      %672 = vmatprep.subr.mxu0 0.0
      %673 = vmatpush1.msra.mxu0 0.0
      %674 = vmatprep.subr.mxu0 0.0
      %675 = vmatpush1.msra.mxu0 0.0
      %676 = vmatprep.subr.mxu0 0.0
      %677 = vmatpush1.msra.mxu0 0.0
      %678 = vmatprep.subr.mxu0 0.0
      %679 = vmatpush1.msra.mxu0 0.0
      %680 = vmatprep.subr.mxu0 0.0
      %681 = vmatpush1.msra.mxu0 0.0
      %682 = vmatprep.subr.mxu0 0.0
      %683 = vmatpush1.msra.mxu0 0.0
      %684 = vmatprep.subr.mxu0 0.0
      %685 = vmatpush1.msra.mxu0 0.0
      %686 = vmatprep.subr.mxu0 0.0
      %687 = vmatpush1.msra.mxu0 0.0
      %688 = vmatprep.subr.mxu0 0.0
      %689 = vmatpush1.msra.mxu0 0.0
      %690 = vmatprep.subr.mxu0 0.0
      %691 = vmatpush1.msra.mxu0 0.0
      %692 = vmatprep.subr.mxu0 0.0
      %693 = vmatpush1.msra.mxu0 0.0
      %694 = vmatprep.subr.mxu0 0.0
      %695 = vmatpush1.msra.mxu0 0.0
      %696 = vmatprep.subr.mxu0 0.0
      %697 = vmatpush1.msra.mxu0 0.0
      %698 = vmatprep.subr.mxu0 0.0
      %699 = vmatpush1.msra.mxu0 0.0
      %700 = vmatprep.subr.mxu0 0.0
      %701 = vmatpush1.msra.mxu0 0.0
      %702 = vmatprep.subr.mxu0 0.0
      %703 = vmatpush1.msra.mxu0 0.0
      %704 = vmatprep.subr.mxu0 0.0
      %705 = vmatpush1.msra.mxu0 0.0
      %706 = vmatprep.subr.mxu0 0.0
      %707 = vmatpush1.msra.mxu0 0.0
      %708 = vmatprep.subr.mxu0 0.0
      %709 = vmatpush1.msra.mxu0 0.0
      %710 = vmatprep.mubr.f32.mxu0 0.0
      %711 = vmatmul.mubr.f32.gmra.mrb[0].mxu0 %v644
      %v712 = vpop.f32.mrb[0].mxu0
      %v713 = vadd.f32 0.0, %v712
      %v714 = vpop.f32.mrb[0].mxu0
      %715 = vdwg.mxu0
      %v717 = vsel %vm496, %v175, 0
      %719 = vmatprep.subr.mxu0 0.0
      %720 = vmatpush1.msra.mxu0 %v232
      %721 = vmatprep.subr.mxu0 0.0
      %722 = vmatpush1.msra.mxu0 %v233
      %723 = vmatprep.subr.mxu0 0.0
      %724 = vmatpush1.msra.mxu0 %v234
      %725 = vmatprep.subr.mxu0 0.0
      %726 = vmatpush1.msra.mxu0 %v235
      %727 = vmatprep.subr.mxu0 0.0
      %728 = vmatpush1.msra.mxu0 %v236
      %729 = vmatprep.subr.mxu0 0.0
      %730 = vmatpush1.msra.mxu0 %v237
      %731 = vmatprep.subr.mxu0 0.0
      %732 = vmatpush1.msra.mxu0 %v238
      %733 = vmatprep.subr.mxu0 0.0
      %734 = vmatpush1.msra.mxu0 %v239
      %735 = vmatprep.subr.mxu0 0.0
      %736 = vmatpush1.msra.mxu0 0.0
      %737 = vmatprep.subr.mxu0 0.0
      %738 = vmatpush1.msra.mxu0 0.0
      %739 = vmatprep.subr.mxu0 0.0
      %740 = vmatpush1.msra.mxu0 0.0
      %741 = vmatprep.subr.mxu0 0.0
      %742 = vmatpush1.msra.mxu0 0.0
      %743 = vmatprep.subr.mxu0 0.0
      %744 = vmatpush1.msra.mxu0 0.0
      %745 = vmatprep.subr.mxu0 0.0
      %746 = vmatpush1.msra.mxu0 0.0
      %747 = vmatprep.subr.mxu0 0.0
      %748 = vmatpush1.msra.mxu0 0.0
      %749 = vmatprep.subr.mxu0 0.0
      %750 = vmatpush1.msra.mxu0 0.0
      %751 = vmatprep.subr.mxu0 0.0
      %752 = vmatpush1.msra.mxu0 0.0
      %753 = vmatprep.subr.mxu0 0.0
      %754 = vmatpush1.msra.mxu0 0.0
      %755 = vmatprep.subr.mxu0 0.0
      %756 = vmatpush1.msra.mxu0 0.0
      %757 = vmatprep.subr.mxu0 0.0
      %758 = vmatpush1.msra.mxu0 0.0
      %759 = vmatprep.subr.mxu0 0.0
      %760 = vmatpush1.msra.mxu0 0.0
      %761 = vmatprep.subr.mxu0 0.0
      %762 = vmatpush1.msra.mxu0 0.0
      %763 = vmatprep.subr.mxu0 0.0
      %764 = vmatpush1.msra.mxu0 0.0
      %765 = vmatprep.subr.mxu0 0.0
      %766 = vmatpush1.msra.mxu0 0.0
      %767 = vmatprep.subr.mxu0 0.0
      %768 = vmatpush1.msra.mxu0 0.0
      %769 = vmatprep.subr.mxu0 0.0
      %770 = vmatpush1.msra.mxu0 0.0
      %771 = vmatprep.subr.mxu0 0.0
      %772 = vmatpush1.msra.mxu0 0.0
      %773 = vmatprep.subr.mxu0 0.0
      %774 = vmatpush1.msra.mxu0 0.0
      %775 = vmatprep.subr.mxu0 0.0
      %776 = vmatpush1.msra.mxu0 0.0
      %777 = vmatprep.subr.mxu0 0.0
      %778 = vmatpush1.msra.mxu0 0.0
      %779 = vmatprep.subr.mxu0 0.0
      %780 = vmatpush1.msra.mxu0 0.0
      %781 = vmatprep.subr.mxu0 0.0
      %782 = vmatpush1.msra.mxu0 0.0
      %783 = vmatprep.mubr.f32.mxu0 0.0
      %784 = vmatmul.mubr.f32.gmra.mrb[0].mxu0 %v717
      %v785 = vpop.f32.mrb[0].mxu0
      %v786 = vadd.f32 0.0, %v785
      %v787 = vpop.f32.mrb[0].mxu0
      %788 = vdwg.mxu0
      %v790 = vsel %vm496, %v176, 0
      %792 = vmatprep.subr.mxu0 0.0
      %793 = vmatpush1.msra.mxu0 %v240
      %794 = vmatprep.subr.mxu0 0.0
      %795 = vmatpush1.msra.mxu0 %v241
      %796 = vmatprep.subr.mxu0 0.0
      %797 = vmatpush1.msra.mxu0 %v242
      %798 = vmatprep.subr.mxu0 0.0
      %799 = vmatpush1.msra.mxu0 %v243
      %800 = vmatprep.subr.mxu0 0.0
      %801 = vmatpush1.msra.mxu0 %v244
      %802 = vmatprep.subr.mxu0 0.0
      %803 = vmatpush1.msra.mxu0 %v245
      %804 = vmatprep.subr.mxu0 0.0
      %805 = vmatpush1.msra.mxu0 %v246
      %806 = vmatprep.subr.mxu0 0.0
      %807 = vmatpush1.msra.mxu0 %v247
      %808 = vmatprep.subr.mxu0 0.0
      %809 = vmatpush1.msra.mxu0 0.0
      %810 = vmatprep.subr.mxu0 0.0
      %811 = vmatpush1.msra.mxu0 0.0
      %812 = vmatprep.subr.mxu0 0.0
      %813 = vmatpush1.msra.mxu0 0.0
      %814 = vmatprep.subr.mxu0 0.0
      %815 = vmatpush1.msra.mxu0 0.0
      %816 = vmatprep.subr.mxu0 0.0
      %817 = vmatpush1.msra.mxu0 0.0
      %818 = vmatprep.subr.mxu0 0.0
      %819 = vmatpush1.msra.mxu0 0.0
      %820 = vmatprep.subr.mxu0 0.0
      %821 = vmatpush1.msra.mxu0 0.0
      %822 = vmatprep.subr.mxu0 0.0
      %823 = vmatpush1.msra.mxu0 0.0
      %824 = vmatprep.subr.mxu0 0.0
      %825 = vmatpush1.msra.mxu0 0.0
      %826 = vmatprep.subr.mxu0 0.0
      %827 = vmatpush1.msra.mxu0 0.0
      %828 = vmatprep.subr.mxu0 0.0
      %829 = vmatpush1.msra.mxu0 0.0
      %830 = vmatprep.subr.mxu0 0.0
      %831 = vmatpush1.msra.mxu0 0.0
      %832 = vmatprep.subr.mxu0 0.0
      %833 = vmatpush1.msra.mxu0 0.0
      %834 = vmatprep.subr.mxu0 0.0
      %835 = vmatpush1.msra.mxu0 0.0
      %836 = vmatprep.subr.mxu0 0.0
      %837 = vmatpush1.msra.mxu0 0.0
      %838 = vmatprep.subr.mxu0 0.0
      %839 = vmatpush1.msra.mxu0 0.0
      %840 = vmatprep.subr.mxu0 0.0
      %841 = vmatpush1.msra.mxu0 0.0
      %842 = vmatprep.subr.mxu0 0.0
      %843 = vmatpush1.msra.mxu0 0.0
      %844 = vmatprep.subr.mxu0 0.0
      %845 = vmatpush1.msra.mxu0 0.0
      %846 = vmatprep.subr.mxu0 0.0
      %847 = vmatpush1.msra.mxu0 0.0
      %848 = vmatprep.subr.mxu0 0.0
      %849 = vmatpush1.msra.mxu0 0.0
      %850 = vmatprep.subr.mxu0 0.0
      %851 = vmatpush1.msra.mxu0 0.0
      %852 = vmatprep.subr.mxu0 0.0
      %853 = vmatpush1.msra.mxu0 0.0
      %854 = vmatprep.subr.mxu0 0.0
      %855 = vmatpush1.msra.mxu0 0.0
      %856 = vmatprep.mubr.f32.mxu0 0.0
      %857 = vmatmul.mubr.f32.gmra.mrb[0].mxu0 %v790
      %v858 = vpop.f32.mrb[0].mxu0
      %v859 = vadd.f32 0.0, %v858
      %v860 = vpop.f32.mrb[0].mxu0
      %861 = vdwg.mxu0
      %v863 = vsel %vm496, %v177, 0
      %865 = vmatprep.subr.mxu0 0.0
      %866 = vmatpush1.msra.mxu0 %v248
      %867 = vmatprep.subr.mxu0 0.0
      %868 = vmatpush1.msra.mxu0 %v249
      %869 = vmatprep.subr.mxu0 0.0
      %870 = vmatpush1.msra.mxu0 %v250
      %871 = vmatprep.subr.mxu0 0.0
      %872 = vmatpush1.msra.mxu0 %v251
      %873 = vmatprep.subr.mxu0 0.0
      %874 = vmatpush1.msra.mxu0 %v252
      %875 = vmatprep.subr.mxu0 0.0
      %876 = vmatpush1.msra.mxu0 %v253
      %877 = vmatprep.subr.mxu0 0.0
      %878 = vmatpush1.msra.mxu0 %v254
      %879 = vmatprep.subr.mxu0 0.0
      %880 = vmatpush1.msra.mxu0 %v255
      %881 = vmatprep.subr.mxu0 0.0
      %882 = vmatpush1.msra.mxu0 0.0
      %883 = vmatprep.subr.mxu0 0.0
      %884 = vmatpush1.msra.mxu0 0.0
      %885 = vmatprep.subr.mxu0 0.0
      %886 = vmatpush1.msra.mxu0 0.0
      %887 = vmatprep.subr.mxu0 0.0
      %888 = vmatpush1.msra.mxu0 0.0
      %889 = vmatprep.subr.mxu0 0.0
      %890 = vmatpush1.msra.mxu0 0.0
      %891 = vmatprep.subr.mxu0 0.0
      %892 = vmatpush1.msra.mxu0 0.0
      %893 = vmatprep.subr.mxu0 0.0
      %894 = vmatpush1.msra.mxu0 0.0
      %895 = vmatprep.subr.mxu0 0.0
      %896 = vmatpush1.msra.mxu0 0.0
      %897 = vmatprep.subr.mxu0 0.0
      %898 = vmatpush1.msra.mxu0 0.0
      %899 = vmatprep.subr.mxu0 0.0
      %900 = vmatpush1.msra.mxu0 0.0
      %901 = vmatprep.subr.mxu0 0.0
      %902 = vmatpush1.msra.mxu0 0.0
      %903 = vmatprep.subr.mxu0 0.0
      %904 = vmatpush1.msra.mxu0 0.0
      %905 = vmatprep.subr.mxu0 0.0
      %906 = vmatpush1.msra.mxu0 0.0
      %907 = vmatprep.subr.mxu0 0.0
      %908 = vmatpush1.msra.mxu0 0.0
      %909 = vmatprep.subr.mxu0 0.0
      %910 = vmatpush1.msra.mxu0 0.0
      %911 = vmatprep.subr.mxu0 0.0
      %912 = vmatpush1.msra.mxu0 0.0
      %913 = vmatprep.subr.mxu0 0.0
      %914 = vmatpush1.msra.mxu0 0.0
      %915 = vmatprep.subr.mxu0 0.0
      %916 = vmatpush1.msra.mxu0 0.0
      %917 = vmatprep.subr.mxu0 0.0
      %918 = vmatpush1.msra.mxu0 0.0
      %919 = vmatprep.subr.mxu0 0.0
      %920 = vmatpush1.msra.mxu0 0.0
      %921 = vmatprep.subr.mxu0 0.0
      %922 = vmatpush1.msra.mxu0 0.0
      %923 = vmatprep.subr.mxu0 0.0
      %924 = vmatpush1.msra.mxu0 0.0
      %925 = vmatprep.subr.mxu0 0.0
      %926 = vmatpush1.msra.mxu0 0.0
      %927 = vmatprep.subr.mxu0 0.0
      %928 = vmatpush1.msra.mxu0 0.0
      %929 = vmatprep.mubr.f32.mxu0 0.0
      %930 = vmatmul.mubr.f32.gmra.mrb[0].mxu0 %v863
      %v931 = vpop.f32.mrb[0].mxu0
      %v932 = vadd.f32 0.0, %v931
      %v933 = vpop.f32.mrb[0].mxu0
      %934 = vdwg.mxu0
      %v936 = vsel %vm496, %v178, 0
      %938 = vmatprep.subr.mxu0 0.0
      %939 = vmatpush1.msra.mxu0 %v256
      %940 = vmatprep.subr.mxu0 0.0
      %941 = vmatpush1.msra.mxu0 %v257
      %942 = vmatprep.subr.mxu0 0.0
      %943 = vmatpush1.msra.mxu0 %v258
      %944 = vmatprep.subr.mxu0 0.0
      %945 = vmatpush1.msra.mxu0 %v259
      %946 = vmatprep.subr.mxu0 0.0
      %947 = vmatpush1.msra.mxu0 %v260
      %948 = vmatprep.subr.mxu0 0.0
      %949 = vmatpush1.msra.mxu0 %v261
      %950 = vmatprep.subr.mxu0 0.0
      %951 = vmatpush1.msra.mxu0 %v262
      %952 = vmatprep.subr.mxu0 0.0
      %953 = vmatpush1.msra.mxu0 %v263
      %954 = vmatprep.subr.mxu0 0.0
      %955 = vmatpush1.msra.mxu0 0.0
      %956 = vmatprep.subr.mxu0 0.0
      %957 = vmatpush1.msra.mxu0 0.0
      %958 = vmatprep.subr.mxu0 0.0
      %959 = vmatpush1.msra.mxu0 0.0
      %960 = vmatprep.subr.mxu0 0.0
      %961 = vmatpush1.msra.mxu0 0.0
      %962 = vmatprep.subr.mxu0 0.0
      %963 = vmatpush1.msra.mxu0 0.0
      %964 = vmatprep.subr.mxu0 0.0
      %965 = vmatpush1.msra.mxu0 0.0
      %966 = vmatprep.subr.mxu0 0.0
      %967 = vmatpush1.msra.mxu0 0.0
      %968 = vmatprep.subr.mxu0 0.0
      %969 = vmatpush1.msra.mxu0 0.0
      %970 = vmatprep.subr.mxu0 0.0
      %971 = vmatpush1.msra.mxu0 0.0
      %972 = vmatprep.subr.mxu0 0.0
      %973 = vmatpush1.msra.mxu0 0.0
      %974 = vmatprep.subr.mxu0 0.0
      %975 = vmatpush1.msra.mxu0 0.0
      %976 = vmatprep.subr.mxu0 0.0
      %977 = vmatpush1.msra.mxu0 0.0
      %978 = vmatprep.subr.mxu0 0.0
      %979 = vmatpush1.msra.mxu0 0.0
      %980 = vmatprep.subr.mxu0 0.0
      %981 = vmatpush1.msra.mxu0 0.0
      %982 = vmatprep.subr.mxu0 0.0
      %983 = vmatpush1.msra.mxu0 0.0
      %984 = vmatprep.subr.mxu0 0.0
      %985 = vmatpush1.msra.mxu0 0.0
      %986 = vmatprep.subr.mxu0 0.0
      %987 = vmatpush1.msra.mxu0 0.0
      %988 = vmatprep.subr.mxu0 0.0
      %989 = vmatpush1.msra.mxu0 0.0
      %990 = vmatprep.subr.mxu0 0.0
      %991 = vmatpush1.msra.mxu0 0.0
      %992 = vmatprep.subr.mxu0 0.0
      %993 = vmatpush1.msra.mxu0 0.0
      %994 = vmatprep.subr.mxu0 0.0
      %995 = vmatpush1.msra.mxu0 0.0
      %996 = vmatprep.subr.mxu0 0.0
      %997 = vmatpush1.msra.mxu0 0.0
      %998 = vmatprep.subr.mxu0 0.0
      %999 = vmatpush1.msra.mxu0 0.0
      %1000 = vmatprep.subr.mxu0 0.0
      %1001 = vmatpush1.msra.mxu0 0.0
      %1002 = vmatprep.mubr.f32.mxu0 0.0
      %1003 = vmatmul.mubr.f32.gmra.mrb[0].mxu0 %v936
      %v1004 = vpop.f32.mrb[0].mxu0
      %v1005 = vadd.f32 0.0, %v1004
      %v1006 = vpop.f32.mrb[0].mxu0
      %1007 = vdwg.mxu0
      %v1009 = vsel %vm496, %v179, 0
      %1011 = vmatprep.subr.mxu0 0.0
      %1012 = vmatpush1.msra.mxu0 %v264
      %1013 = vmatprep.subr.mxu0 0.0
      %1014 = vmatpush1.msra.mxu0 %v265
      %1015 = vmatprep.subr.mxu0 0.0
      %1016 = vmatpush1.msra.mxu0 %v266
      %1017 = vmatprep.subr.mxu0 0.0
      %1018 = vmatpush1.msra.mxu0 %v267
      %1019 = vmatprep.subr.mxu0 0.0
      %1020 = vmatpush1.msra.mxu0 %v268
      %1021 = vmatprep.subr.mxu0 0.0
      %1022 = vmatpush1.msra.mxu0 %v269
      %1023 = vmatprep.subr.mxu0 0.0
      %1024 = vmatpush1.msra.mxu0 %v270
      %1025 = vmatprep.subr.mxu0 0.0
      %1026 = vmatpush1.msra.mxu0 %v271
      %1027 = vmatprep.subr.mxu0 0.0
      %1028 = vmatpush1.msra.mxu0 0.0
      %1029 = vmatprep.subr.mxu0 0.0
      %1030 = vmatpush1.msra.mxu0 0.0
      %1031 = vmatprep.subr.mxu0 0.0
      %1032 = vmatpush1.msra.mxu0 0.0
      %1033 = vmatprep.subr.mxu0 0.0
      %1034 = vmatpush1.msra.mxu0 0.0
      %1035 = vmatprep.subr.mxu0 0.0
      %1036 = vmatpush1.msra.mxu0 0.0
      %1037 = vmatprep.subr.mxu0 0.0
      %1038 = vmatpush1.msra.mxu0 0.0
      %1039 = vmatprep.subr.mxu0 0.0
      %1040 = vmatpush1.msra.mxu0 0.0
      %1041 = vmatprep.subr.mxu0 0.0
      %1042 = vmatpush1.msra.mxu0 0.0
      %1043 = vmatprep.subr.mxu0 0.0
      %1044 = vmatpush1.msra.mxu0 0.0
      %1045 = vmatprep.subr.mxu0 0.0
      %1046 = vmatpush1.msra.mxu0 0.0
      %1047 = vmatprep.subr.mxu0 0.0
      %1048 = vmatpush1.msra.mxu0 0.0
      %1049 = vmatprep.subr.mxu0 0.0
      %1050 = vmatpush1.msra.mxu0 0.0
      %1051 = vmatprep.subr.mxu0 0.0
      %1052 = vmatpush1.msra.mxu0 0.0
      %1053 = vmatprep.subr.mxu0 0.0
      %1054 = vmatpush1.msra.mxu0 0.0
      %1055 = vmatprep.subr.mxu0 0.0
      %1056 = vmatpush1.msra.mxu0 0.0
      %1057 = vmatprep.subr.mxu0 0.0
      %1058 = vmatpush1.msra.mxu0 0.0
      %1059 = vmatprep.subr.mxu0 0.0
      %1060 = vmatpush1.msra.mxu0 0.0
      %1061 = vmatprep.subr.mxu0 0.0
      %1062 = vmatpush1.msra.mxu0 0.0
      %1063 = vmatprep.subr.mxu0 0.0
      %1064 = vmatpush1.msra.mxu0 0.0
      %1065 = vmatprep.subr.mxu0 0.0
      %1066 = vmatpush1.msra.mxu0 0.0
      %1067 = vmatprep.subr.mxu0 0.0
      %1068 = vmatpush1.msra.mxu0 0.0
      %1069 = vmatprep.subr.mxu0 0.0
      %1070 = vmatpush1.msra.mxu0 0.0
      %1071 = vmatprep.subr.mxu0 0.0
      %1072 = vmatpush1.msra.mxu0 0.0
      %1073 = vmatprep.subr.mxu0 0.0
      %1074 = vmatpush1.msra.mxu0 0.0
      %1075 = vmatprep.mubr.f32.mxu0 0.0
      %1076 = vmatmul.mubr.f32.gmra.mrb[0].mxu0 %v1009
      %v1077 = vpop.f32.mrb[0].mxu0
      %v1078 = vadd.f32 0.0, %v1077
      %v1079 = vpop.f32.mrb[0].mxu0
      %1080 = vdwg.mxu0
      %v1082 = vsel %vm496, %v180, 0
      %1084 = vmatprep.subr.mxu0 0.0
      %1085 = vmatpush1.msra.mxu0 %v272
      %1086 = vmatprep.subr.mxu0 0.0
      %1087 = vmatpush1.msra.mxu0 %v273
      %1088 = vmatprep.subr.mxu0 0.0
      %1089 = vmatpush1.msra.mxu0 %v274
      %1090 = vmatprep.subr.mxu0 0.0
      %1091 = vmatpush1.msra.mxu0 %v275
      %1092 = vmatprep.subr.mxu0 0.0
      %1093 = vmatpush1.msra.mxu0 %v276
      %1094 = vmatprep.subr.mxu0 0.0
      %1095 = vmatpush1.msra.mxu0 %v277
      %1096 = vmatprep.subr.mxu0 0.0
      %1097 = vmatpush1.msra.mxu0 %v278
      %1098 = vmatprep.subr.mxu0 0.0
      %1099 = vmatpush1.msra.mxu0 %v279
      %1100 = vmatprep.subr.mxu0 0.0
      %1101 = vmatpush1.msra.mxu0 0.0
      %1102 = vmatprep.subr.mxu0 0.0
      %1103 = vmatpush1.msra.mxu0 0.0
      %1104 = vmatprep.subr.mxu0 0.0
      %1105 = vmatpush1.msra.mxu0 0.0
      %1106 = vmatprep.subr.mxu0 0.0
      %1107 = vmatpush1.msra.mxu0 0.0
      %1108 = vmatprep.subr.mxu0 0.0
      %1109 = vmatpush1.msra.mxu0 0.0
      %1110 = vmatprep.subr.mxu0 0.0
      %1111 = vmatpush1.msra.mxu0 0.0
      %1112 = vmatprep.subr.mxu0 0.0
      %1113 = vmatpush1.msra.mxu0 0.0
      %1114 = vmatprep.subr.mxu0 0.0
      %1115 = vmatpush1.msra.mxu0 0.0
      %1116 = vmatprep.subr.mxu0 0.0
      %1117 = vmatpush1.msra.mxu0 0.0
      %1118 = vmatprep.subr.mxu0 0.0
      %1119 = vmatpush1.msra.mxu0 0.0
      %1120 = vmatprep.subr.mxu0 0.0
      %1121 = vmatpush1.msra.mxu0 0.0
      %1122 = vmatprep.subr.mxu0 0.0
      %1123 = vmatpush1.msra.mxu0 0.0
      %1124 = vmatprep.subr.mxu0 0.0
      %1125 = vmatpush1.msra.mxu0 0.0
      %1126 = vmatprep.subr.mxu0 0.0
      %1127 = vmatpush1.msra.mxu0 0.0
      %1128 = vmatprep.subr.mxu0 0.0
      %1129 = vmatpush1.msra.mxu0 0.0
      %1130 = vmatprep.subr.mxu0 0.0
      %1131 = vmatpush1.msra.mxu0 0.0
      %1132 = vmatprep.subr.mxu0 0.0
      %1133 = vmatpush1.msra.mxu0 0.0
      %1134 = vmatprep.subr.mxu0 0.0
      %1135 = vmatpush1.msra.mxu0 0.0
      %1136 = vmatprep.subr.mxu0 0.0
      %1137 = vmatpush1.msra.mxu0 0.0
      %1138 = vmatprep.subr.mxu0 0.0
      %1139 = vmatpush1.msra.mxu0 0.0
      %1140 = vmatprep.subr.mxu0 0.0
      %1141 = vmatpush1.msra.mxu0 0.0
      %1142 = vmatprep.subr.mxu0 0.0
      %1143 = vmatpush1.msra.mxu0 0.0
      %1144 = vmatprep.subr.mxu0 0.0
      %1145 = vmatpush1.msra.mxu0 0.0
      %1146 = vmatprep.subr.mxu0 0.0
      %1147 = vmatpush1.msra.mxu0 0.0
      %1148 = vmatprep.mubr.f32.mxu0 0.0
      %1149 = vmatmul.mubr.f32.gmra.mrb[0].mxu0 %v1082
      %v1150 = vpop.f32.mrb[0].mxu0
      %v1151 = vadd.f32 0.0, %v1150
      %v1152 = vpop.f32.mrb[0].mxu0
      %1153 = vdwg.mxu0
      %v1155 = vsel %vm496, %v181, 0
      %1157 = vmatprep.subr.mxu0 0.0
      %1158 = vmatpush1.msra.mxu0 %v280
      %1159 = vmatprep.subr.mxu0 0.0
      %1160 = vmatpush1.msra.mxu0 %v281
      %1161 = vmatprep.subr.mxu0 0.0
      %1162 = vmatpush1.msra.mxu0 %v282
      %1163 = vmatprep.subr.mxu0 0.0
      %1164 = vmatpush1.msra.mxu0 %v283
      %1165 = vmatprep.subr.mxu0 0.0
      %1166 = vmatpush1.msra.mxu0 %v284
      %1167 = vmatprep.subr.mxu0 0.0
      %1168 = vmatpush1.msra.mxu0 %v285
      %1169 = vmatprep.subr.mxu0 0.0
      %1170 = vmatpush1.msra.mxu0 %v286
      %1171 = vmatprep.subr.mxu0 0.0
      %1172 = vmatpush1.msra.mxu0 %v287
      %1173 = vmatprep.subr.mxu0 0.0
      %1174 = vmatpush1.msra.mxu0 0.0
      %1175 = vmatprep.subr.mxu0 0.0
      %1176 = vmatpush1.msra.mxu0 0.0
      %1177 = vmatprep.subr.mxu0 0.0
      %1178 = vmatpush1.msra.mxu0 0.0
      %1179 = vmatprep.subr.mxu0 0.0
      %1180 = vmatpush1.msra.mxu0 0.0
      %1181 = vmatprep.subr.mxu0 0.0
      %1182 = vmatpush1.msra.mxu0 0.0
      %1183 = vmatprep.subr.mxu0 0.0
      %1184 = vmatpush1.msra.mxu0 0.0
      %1185 = vmatprep.subr.mxu0 0.0
      %1186 = vmatpush1.msra.mxu0 0.0
      %1187 = vmatprep.subr.mxu0 0.0
      %1188 = vmatpush1.msra.mxu0 0.0
      %1189 = vmatprep.subr.mxu0 0.0
      %1190 = vmatpush1.msra.mxu0 0.0
      %1191 = vmatprep.subr.mxu0 0.0
      %1192 = vmatpush1.msra.mxu0 0.0
      %1193 = vmatprep.subr.mxu0 0.0
      %1194 = vmatpush1.msra.mxu0 0.0
      %1195 = vmatprep.subr.mxu0 0.0
      %1196 = vmatpush1.msra.mxu0 0.0
      %1197 = vmatprep.subr.mxu0 0.0
      %1198 = vmatpush1.msra.mxu0 0.0
      %1199 = vmatprep.subr.mxu0 0.0
      %1200 = vmatpush1.msra.mxu0 0.0
      %1201 = vmatprep.subr.mxu0 0.0
      %1202 = vmatpush1.msra.mxu0 0.0
      %1203 = vmatprep.subr.mxu0 0.0
      %1204 = vmatpush1.msra.mxu0 0.0
      %1205 = vmatprep.subr.mxu0 0.0
      %1206 = vmatpush1.msra.mxu0 0.0
      %1207 = vmatprep.subr.mxu0 0.0
      %1208 = vmatpush1.msra.mxu0 0.0
      %1209 = vmatprep.subr.mxu0 0.0
      %1210 = vmatpush1.msra.mxu0 0.0
      %1211 = vmatprep.subr.mxu0 0.0
      %1212 = vmatpush1.msra.mxu0 0.0
      %1213 = vmatprep.subr.mxu0 0.0
      %1214 = vmatpush1.msra.mxu0 0.0
      %1215 = vmatprep.subr.mxu0 0.0
      %1216 = vmatpush1.msra.mxu0 0.0
      %1217 = vmatprep.subr.mxu0 0.0
      %1218 = vmatpush1.msra.mxu0 0.0
      %1219 = vmatprep.subr.mxu0 0.0
      %1220 = vmatpush1.msra.mxu0 0.0
      %1221 = vmatprep.mubr.f32.mxu0 0.0
      %1222 = vmatmul.mubr.f32.gmra.mrb[0].mxu0 %v1155
      %v1223 = vpop.f32.mrb[0].mxu0
      %v1224 = vadd.f32 0.0, %v1223
      %v1225 = vpop.f32.mrb[0].mxu0
      %1226 = vdwg.mxu0
      %v1228 = vsel %vm496, %v182, 0
      %1230 = vmatprep.subr.mxu0 0.0
      %1231 = vmatpush1.msra.mxu0 %v288
      %1232 = vmatprep.subr.mxu0 0.0
      %1233 = vmatpush1.msra.mxu0 %v289
      %1234 = vmatprep.subr.mxu0 0.0
      %1235 = vmatpush1.msra.mxu0 %v290
      %1236 = vmatprep.subr.mxu0 0.0
      %1237 = vmatpush1.msra.mxu0 %v291
      %1238 = vmatprep.subr.mxu0 0.0
      %1239 = vmatpush1.msra.mxu0 %v292
      %1240 = vmatprep.subr.mxu0 0.0
      %1241 = vmatpush1.msra.mxu0 %v293
      %1242 = vmatprep.subr.mxu0 0.0
      %1243 = vmatpush1.msra.mxu0 %v294
      %1244 = vmatprep.subr.mxu0 0.0
      %1245 = vmatpush1.msra.mxu0 %v295
      %1246 = vmatprep.subr.mxu0 0.0
      %1247 = vmatpush1.msra.mxu0 0.0
      %1248 = vmatprep.subr.mxu0 0.0
      %1249 = vmatpush1.msra.mxu0 0.0
      %1250 = vmatprep.subr.mxu0 0.0
      %1251 = vmatpush1.msra.mxu0 0.0
      %1252 = vmatprep.subr.mxu0 0.0
      %1253 = vmatpush1.msra.mxu0 0.0
      %1254 = vmatprep.subr.mxu0 0.0
      %1255 = vmatpush1.msra.mxu0 0.0
      %1256 = vmatprep.subr.mxu0 0.0
      %1257 = vmatpush1.msra.mxu0 0.0
      %1258 = vmatprep.subr.mxu0 0.0
      %1259 = vmatpush1.msra.mxu0 0.0
      %1260 = vmatprep.subr.mxu0 0.0
      %1261 = vmatpush1.msra.mxu0 0.0
      %1262 = vmatprep.subr.mxu0 0.0
      %1263 = vmatpush1.msra.mxu0 0.0
      %1264 = vmatprep.subr.mxu0 0.0
      %1265 = vmatpush1.msra.mxu0 0.0
      %1266 = vmatprep.subr.mxu0 0.0
      %1267 = vmatpush1.msra.mxu0 0.0
      %1268 = vmatprep.subr.mxu0 0.0
      %1269 = vmatpush1.msra.mxu0 0.0
      %1270 = vmatprep.subr.mxu0 0.0
      %1271 = vmatpush1.msra.mxu0 0.0
      %1272 = vmatprep.subr.mxu0 0.0
      %1273 = vmatpush1.msra.mxu0 0.0
      %1274 = vmatprep.subr.mxu0 0.0
      %1275 = vmatpush1.msra.mxu0 0.0
      %1276 = vmatprep.subr.mxu0 0.0
      %1277 = vmatpush1.msra.mxu0 0.0
      %1278 = vmatprep.subr.mxu0 0.0
      %1279 = vmatpush1.msra.mxu0 0.0
      %1280 = vmatprep.subr.mxu0 0.0
      %1281 = vmatpush1.msra.mxu0 0.0
      %1282 = vmatprep.subr.mxu0 0.0
      %1283 = vmatpush1.msra.mxu0 0.0
      %1284 = vmatprep.subr.mxu0 0.0
      %1285 = vmatpush1.msra.mxu0 0.0
      %1286 = vmatprep.subr.mxu0 0.0
      %1287 = vmatpush1.msra.mxu0 0.0
      %1288 = vmatprep.subr.mxu0 0.0
      %1289 = vmatpush1.msra.mxu0 0.0
      %1290 = vmatprep.subr.mxu0 0.0
      %1291 = vmatpush1.msra.mxu0 0.0
      %1292 = vmatprep.subr.mxu0 0.0
      %1293 = vmatpush1.msra.mxu0 0.0
      %1294 = vmatprep.mubr.f32.mxu0 0.0
      %1295 = vmatmul.mubr.f32.gmra.mrb[0].mxu0 %v1228
      %v1296 = vpop.f32.mrb[0].mxu0
      %v1297 = vadd.f32 0.0, %v1296
      %v1298 = vpop.f32.mrb[0].mxu0
      %1299 = vdwg.mxu0
      %v1301 = vsel %vm496, %v183, 0
      %1303 = vmatprep.subr.mxu0 0.0
      %1304 = vmatpush1.msra.mxu0 %v296
      %1305 = vmatprep.subr.mxu0 0.0
      %1306 = vmatpush1.msra.mxu0 %v297
      %1307 = vmatprep.subr.mxu0 0.0
      %1308 = vmatpush1.msra.mxu0 %v298
      %1309 = vmatprep.subr.mxu0 0.0
      %1310 = vmatpush1.msra.mxu0 %v299
      %1311 = vmatprep.subr.mxu0 0.0
      %1312 = vmatpush1.msra.mxu0 %v300
      %1313 = vmatprep.subr.mxu0 0.0
      %1314 = vmatpush1.msra.mxu0 %v301
      %1315 = vmatprep.subr.mxu0 0.0
      %1316 = vmatpush1.msra.mxu0 %v302
      %1317 = vmatprep.subr.mxu0 0.0
      %1318 = vmatpush1.msra.mxu0 %v303
      %1319 = vmatprep.subr.mxu0 0.0
      %1320 = vmatpush1.msra.mxu0 0.0
      %1321 = vmatprep.subr.mxu0 0.0
      %1322 = vmatpush1.msra.mxu0 0.0
      %1323 = vmatprep.subr.mxu0 0.0
      %1324 = vmatpush1.msra.mxu0 0.0
      %1325 = vmatprep.subr.mxu0 0.0
      %1326 = vmatpush1.msra.mxu0 0.0
      %1327 = vmatprep.subr.mxu0 0.0
      %1328 = vmatpush1.msra.mxu0 0.0
      %1329 = vmatprep.subr.mxu0 0.0
      %1330 = vmatpush1.msra.mxu0 0.0
      %1331 = vmatprep.subr.mxu0 0.0
      %1332 = vmatpush1.msra.mxu0 0.0
      %1333 = vmatprep.subr.mxu0 0.0
      %1334 = vmatpush1.msra.mxu0 0.0
      %1335 = vmatprep.subr.mxu0 0.0
      %1336 = vmatpush1.msra.mxu0 0.0
      %1337 = vmatprep.subr.mxu0 0.0
      %1338 = vmatpush1.msra.mxu0 0.0
      %1339 = vmatprep.subr.mxu0 0.0
      %1340 = vmatpush1.msra.mxu0 0.0
      %1341 = vmatprep.subr.mxu0 0.0
      %1342 = vmatpush1.msra.mxu0 0.0
      %1343 = vmatprep.subr.mxu0 0.0
      %1344 = vmatpush1.msra.mxu0 0.0
      %1345 = vmatprep.subr.mxu0 0.0
      %1346 = vmatpush1.msra.mxu0 0.0
      %1347 = vmatprep.subr.mxu0 0.0
      %1348 = vmatpush1.msra.mxu0 0.0
      %1349 = vmatprep.subr.mxu0 0.0
      %1350 = vmatpush1.msra.mxu0 0.0
      %1351 = vmatprep.subr.mxu0 0.0
      %1352 = vmatpush1.msra.mxu0 0.0
      %1353 = vmatprep.subr.mxu0 0.0
      %1354 = vmatpush1.msra.mxu0 0.0
      %1355 = vmatprep.subr.mxu0 0.0
      %1356 = vmatpush1.msra.mxu0 0.0
      %1357 = vmatprep.subr.mxu0 0.0
      %1358 = vmatpush1.msra.mxu0 0.0
      %1359 = vmatprep.subr.mxu0 0.0
      %1360 = vmatpush1.msra.mxu0 0.0
      %1361 = vmatprep.subr.mxu0 0.0
      %1362 = vmatpush1.msra.mxu0 0.0
      %1363 = vmatprep.subr.mxu0 0.0
      %1364 = vmatpush1.msra.mxu0 0.0
      %1365 = vmatprep.subr.mxu0 0.0
      %1366 = vmatpush1.msra.mxu0 0.0
      %1367 = vmatprep.mubr.f32.mxu0 0.0
      %1368 = vmatmul.mubr.f32.gmra.mrb[0].mxu0 %v1301
      %v1369 = vpop.f32.mrb[0].mxu0
      %v1370 = vadd.f32 0.0, %v1369
      %v1371 = vpop.f32.mrb[0].mxu0
      %1372 = vdwg.mxu0
      %v1374 = vsel %vm496, %v184, 0
      %1376 = vmatprep.subr.mxu0 0.0
      %1377 = vmatpush1.msra.mxu0 %v304
      %1378 = vmatprep.subr.mxu0 0.0
      %1379 = vmatpush1.msra.mxu0 %v305
      %1380 = vmatprep.subr.mxu0 0.0
      %1381 = vmatpush1.msra.mxu0 %v306
      %1382 = vmatprep.subr.mxu0 0.0
      %1383 = vmatpush1.msra.mxu0 %v307
      %1384 = vmatprep.subr.mxu0 0.0
      %1385 = vmatpush1.msra.mxu0 %v308
      %1386 = vmatprep.subr.mxu0 0.0
      %1387 = vmatpush1.msra.mxu0 %v309
      %1388 = vmatprep.subr.mxu0 0.0
      %1389 = vmatpush1.msra.mxu0 %v310
      %1390 = vmatprep.subr.mxu0 0.0
      %1391 = vmatpush1.msra.mxu0 %v311
      %1392 = vmatprep.subr.mxu0 0.0
      %1393 = vmatpush1.msra.mxu0 0.0
      %1394 = vmatprep.subr.mxu0 0.0
      %1395 = vmatpush1.msra.mxu0 0.0
      %1396 = vmatprep.subr.mxu0 0.0
      %1397 = vmatpush1.msra.mxu0 0.0
      %1398 = vmatprep.subr.mxu0 0.0
      %1399 = vmatpush1.msra.mxu0 0.0
      %1400 = vmatprep.subr.mxu0 0.0
      %1401 = vmatpush1.msra.mxu0 0.0
      %1402 = vmatprep.subr.mxu0 0.0
      %1403 = vmatpush1.msra.mxu0 0.0
      %1404 = vmatprep.subr.mxu0 0.0
      %1405 = vmatpush1.msra.mxu0 0.0
      %1406 = vmatprep.subr.mxu0 0.0
      %1407 = vmatpush1.msra.mxu0 0.0
      %1408 = vmatprep.subr.mxu0 0.0
      %1409 = vmatpush1.msra.mxu0 0.0
      %1410 = vmatprep.subr.mxu0 0.0
      %1411 = vmatpush1.msra.mxu0 0.0
      %1412 = vmatprep.subr.mxu0 0.0
      %1413 = vmatpush1.msra.mxu0 0.0
      %1414 = vmatprep.subr.mxu0 0.0
      %1415 = vmatpush1.msra.mxu0 0.0
      %1416 = vmatprep.subr.mxu0 0.0
      %1417 = vmatpush1.msra.mxu0 0.0
      %1418 = vmatprep.subr.mxu0 0.0
      %1419 = vmatpush1.msra.mxu0 0.0
      %1420 = vmatprep.subr.mxu0 0.0
      %1421 = vmatpush1.msra.mxu0 0.0
      %1422 = vmatprep.subr.mxu0 0.0
      %1423 = vmatpush1.msra.mxu0 0.0
      %1424 = vmatprep.subr.mxu0 0.0
      %1425 = vmatpush1.msra.mxu0 0.0
      %1426 = vmatprep.subr.mxu0 0.0
      %1427 = vmatpush1.msra.mxu0 0.0
      %1428 = vmatprep.subr.mxu0 0.0
      %1429 = vmatpush1.msra.mxu0 0.0
      %1430 = vmatprep.subr.mxu0 0.0
      %1431 = vmatpush1.msra.mxu0 0.0
      %1432 = vmatprep.subr.mxu0 0.0
      %1433 = vmatpush1.msra.mxu0 0.0
      %1434 = vmatprep.subr.mxu0 0.0
      %1435 = vmatpush1.msra.mxu0 0.0
      %1436 = vmatprep.subr.mxu0 0.0
      %1437 = vmatpush1.msra.mxu0 0.0
      %1438 = vmatprep.subr.mxu0 0.0
      %1439 = vmatpush1.msra.mxu0 0.0
      %1440 = vmatprep.mubr.f32.mxu0 0.0
      %1441 = vmatmul.mubr.f32.gmra.mrb[0].mxu0 %v1374
      %v1442 = vpop.f32.mrb[0].mxu0
      %v1443 = vadd.f32 0.0, %v1442
      %v1444 = vpop.f32.mrb[0].mxu0
      %1445 = vdwg.mxu0
      %v1447 = vsel %vm496, %v185, 0
      %1449 = vmatprep.subr.mxu0 0.0
      %1450 = vmatpush1.msra.mxu0 %v312
      %1451 = vmatprep.subr.mxu0 0.0
      %1452 = vmatpush1.msra.mxu0 %v313
      %1453 = vmatprep.subr.mxu0 0.0
      %1454 = vmatpush1.msra.mxu0 %v314
      %1455 = vmatprep.subr.mxu0 0.0
      %1456 = vmatpush1.msra.mxu0 %v315
      %1457 = vmatprep.subr.mxu0 0.0
      %1458 = vmatpush1.msra.mxu0 %v316
      %1459 = vmatprep.subr.mxu0 0.0
      %1460 = vmatpush1.msra.mxu0 %v317
      %1461 = vmatprep.subr.mxu0 0.0
      %1462 = vmatpush1.msra.mxu0 %v318
      %1463 = vmatprep.subr.mxu0 0.0
      %1464 = vmatpush1.msra.mxu0 %v319
      %1465 = vmatprep.subr.mxu0 0.0
      %1466 = vmatpush1.msra.mxu0 0.0
      %1467 = vmatprep.subr.mxu0 0.0
      %1468 = vmatpush1.msra.mxu0 0.0
      %1469 = vmatprep.subr.mxu0 0.0
      %1470 = vmatpush1.msra.mxu0 0.0
      %1471 = vmatprep.subr.mxu0 0.0
      %1472 = vmatpush1.msra.mxu0 0.0
      %1473 = vmatprep.subr.mxu0 0.0
      %1474 = vmatpush1.msra.mxu0 0.0
      %1475 = vmatprep.subr.mxu0 0.0
      %1476 = vmatpush1.msra.mxu0 0.0
      %1477 = vmatprep.subr.mxu0 0.0
      %1478 = vmatpush1.msra.mxu0 0.0
      %1479 = vmatprep.subr.mxu0 0.0
      %1480 = vmatpush1.msra.mxu0 0.0
      %1481 = vmatprep.subr.mxu0 0.0
      %1482 = vmatpush1.msra.mxu0 0.0
      %1483 = vmatprep.subr.mxu0 0.0
      %1484 = vmatpush1.msra.mxu0 0.0
      %1485 = vmatprep.subr.mxu0 0.0
      %1486 = vmatpush1.msra.mxu0 0.0
      %1487 = vmatprep.subr.mxu0 0.0
      %1488 = vmatpush1.msra.mxu0 0.0
      %1489 = vmatprep.subr.mxu0 0.0
      %1490 = vmatpush1.msra.mxu0 0.0
      %1491 = vmatprep.subr.mxu0 0.0
      %1492 = vmatpush1.msra.mxu0 0.0
      %1493 = vmatprep.subr.mxu0 0.0
      %1494 = vmatpush1.msra.mxu0 0.0
      %1495 = vmatprep.subr.mxu0 0.0
      %1496 = vmatpush1.msra.mxu0 0.0
      %1497 = vmatprep.subr.mxu0 0.0
      %1498 = vmatpush1.msra.mxu0 0.0
      %1499 = vmatprep.subr.mxu0 0.0
      %1500 = vmatpush1.msra.mxu0 0.0
      %1501 = vmatprep.subr.mxu0 0.0
      %1502 = vmatpush1.msra.mxu0 0.0
      %1503 = vmatprep.subr.mxu0 0.0
      %1504 = vmatpush1.msra.mxu0 0.0
      %1505 = vmatprep.subr.mxu0 0.0
      %1506 = vmatpush1.msra.mxu0 0.0
      %1507 = vmatprep.subr.mxu0 0.0
      %1508 = vmatpush1.msra.mxu0 0.0
      %1509 = vmatprep.subr.mxu0 0.0
      %1510 = vmatpush1.msra.mxu0 0.0
      %1511 = vmatprep.subr.mxu0 0.0
      %1512 = vmatpush1.msra.mxu0 0.0
      %1513 = vmatprep.mubr.f32.mxu0 0.0
      %1514 = vmatmul.mubr.f32.gmra.mrb[0].mxu0 %v1447
      %v1515 = vpop.f32.mrb[0].mxu0
      %v1516 = vadd.f32 0.0, %v1515
      %v1517 = vpop.f32.mrb[0].mxu0
      %1518 = vdwg.mxu0
      %v1520 = vsel %vm496, %v186, 0
      %1522 = vmatprep.subr.mxu0 0.0
      %1523 = vmatpush1.msra.mxu0 %v320
      %1524 = vmatprep.subr.mxu0 0.0
      %1525 = vmatpush1.msra.mxu0 %v321
      %1526 = vmatprep.subr.mxu0 0.0
      %1527 = vmatpush1.msra.mxu0 %v322
      %1528 = vmatprep.subr.mxu0 0.0
      %1529 = vmatpush1.msra.mxu0 %v323
      %1530 = vmatprep.subr.mxu0 0.0
      %1531 = vmatpush1.msra.mxu0 %v324
      %1532 = vmatprep.subr.mxu0 0.0
      %1533 = vmatpush1.msra.mxu0 %v325
      %1534 = vmatprep.subr.mxu0 0.0
      %1535 = vmatpush1.msra.mxu0 %v326
      %1536 = vmatprep.subr.mxu0 0.0
      %1537 = vmatpush1.msra.mxu0 %v327
      %1538 = vmatprep.subr.mxu0 0.0
      %1539 = vmatpush1.msra.mxu0 0.0
      %1540 = vmatprep.subr.mxu0 0.0
      %1541 = vmatpush1.msra.mxu0 0.0
      %1542 = vmatprep.subr.mxu0 0.0
      %1543 = vmatpush1.msra.mxu0 0.0
      %1544 = vmatprep.subr.mxu0 0.0
      %1545 = vmatpush1.msra.mxu0 0.0
      %1546 = vmatprep.subr.mxu0 0.0
      %1547 = vmatpush1.msra.mxu0 0.0
      %1548 = vmatprep.subr.mxu0 0.0
      %1549 = vmatpush1.msra.mxu0 0.0
      %1550 = vmatprep.subr.mxu0 0.0
      %1551 = vmatpush1.msra.mxu0 0.0
      %1552 = vmatprep.subr.mxu0 0.0
      %1553 = vmatpush1.msra.mxu0 0.0
      %1554 = vmatprep.subr.mxu0 0.0
      %1555 = vmatpush1.msra.mxu0 0.0
      %1556 = vmatprep.subr.mxu0 0.0
      %1557 = vmatpush1.msra.mxu0 0.0
      %1558 = vmatprep.subr.mxu0 0.0
      %1559 = vmatpush1.msra.mxu0 0.0
      %1560 = vmatprep.subr.mxu0 0.0
      %1561 = vmatpush1.msra.mxu0 0.0
      %1562 = vmatprep.subr.mxu0 0.0
      %1563 = vmatpush1.msra.mxu0 0.0
      %1564 = vmatprep.subr.mxu0 0.0
      %1565 = vmatpush1.msra.mxu0 0.0
      %1566 = vmatprep.subr.mxu0 0.0
      %1567 = vmatpush1.msra.mxu0 0.0
      %1568 = vmatprep.subr.mxu0 0.0
      %1569 = vmatpush1.msra.mxu0 0.0
      %1570 = vmatprep.subr.mxu0 0.0
      %1571 = vmatpush1.msra.mxu0 0.0
      %1572 = vmatprep.subr.mxu0 0.0
      %1573 = vmatpush1.msra.mxu0 0.0
      %1574 = vmatprep.subr.mxu0 0.0
      %1575 = vmatpush1.msra.mxu0 0.0
      %1576 = vmatprep.subr.mxu0 0.0
      %1577 = vmatpush1.msra.mxu0 0.0
      %1578 = vmatprep.subr.mxu0 0.0
      %1579 = vmatpush1.msra.mxu0 0.0
      %1580 = vmatprep.subr.mxu0 0.0
      %1581 = vmatpush1.msra.mxu0 0.0
      %1582 = vmatprep.subr.mxu0 0.0
      %1583 = vmatpush1.msra.mxu0 0.0
      %1584 = vmatprep.subr.mxu0 0.0
      %1585 = vmatpush1.msra.mxu0 0.0
      %1586 = vmatprep.mubr.f32.mxu0 0.0
      %1587 = vmatmul.mubr.f32.gmra.mrb[0].mxu0 %v1520
      %v1588 = vpop.f32.mrb[0].mxu0
      %v1589 = vadd.f32 0.0, %v1588
      %v1590 = vpop.f32.mrb[0].mxu0
      %1591 = vdwg.mxu0
      %v1593 = vsel %vm496, %v187, 0
      %1595 = vmatprep.subr.mxu0 0.0
      %1596 = vmatpush1.msra.mxu0 %v328
      %1597 = vmatprep.subr.mxu0 0.0
      %1598 = vmatpush1.msra.mxu0 %v329
      %1599 = vmatprep.subr.mxu0 0.0
      %1600 = vmatpush1.msra.mxu0 %v330
      %1601 = vmatprep.subr.mxu0 0.0
      %1602 = vmatpush1.msra.mxu0 %v331
      %1603 = vmatprep.subr.mxu0 0.0
      %1604 = vmatpush1.msra.mxu0 %v332
      %1605 = vmatprep.subr.mxu0 0.0
      %1606 = vmatpush1.msra.mxu0 %v333
      %1607 = vmatprep.subr.mxu0 0.0
      %1608 = vmatpush1.msra.mxu0 %v334
      %1609 = vmatprep.subr.mxu0 0.0
      %1610 = vmatpush1.msra.mxu0 %v335
      %1611 = vmatprep.subr.mxu0 0.0
      %1612 = vmatpush1.msra.mxu0 0.0
      %1613 = vmatprep.subr.mxu0 0.0
      %1614 = vmatpush1.msra.mxu0 0.0
      %1615 = vmatprep.subr.mxu0 0.0
      %1616 = vmatpush1.msra.mxu0 0.0
      %1617 = vmatprep.subr.mxu0 0.0
      %1618 = vmatpush1.msra.mxu0 0.0
      %1619 = vmatprep.subr.mxu0 0.0
      %1620 = vmatpush1.msra.mxu0 0.0
      %1621 = vmatprep.subr.mxu0 0.0
      %1622 = vmatpush1.msra.mxu0 0.0
      %1623 = vmatprep.subr.mxu0 0.0
      %1624 = vmatpush1.msra.mxu0 0.0
      %1625 = vmatprep.subr.mxu0 0.0
      %1626 = vmatpush1.msra.mxu0 0.0
      %1627 = vmatprep.subr.mxu0 0.0
      %1628 = vmatpush1.msra.mxu0 0.0
      %1629 = vmatprep.subr.mxu0 0.0
      %1630 = vmatpush1.msra.mxu0 0.0
      %1631 = vmatprep.subr.mxu0 0.0
      %1632 = vmatpush1.msra.mxu0 0.0
      %1633 = vmatprep.subr.mxu0 0.0
      %1634 = vmatpush1.msra.mxu0 0.0
      %1635 = vmatprep.subr.mxu0 0.0
      %1636 = vmatpush1.msra.mxu0 0.0
      %1637 = vmatprep.subr.mxu0 0.0
      %1638 = vmatpush1.msra.mxu0 0.0
      %1639 = vmatprep.subr.mxu0 0.0
      %1640 = vmatpush1.msra.mxu0 0.0
      %1641 = vmatprep.subr.mxu0 0.0
      %1642 = vmatpush1.msra.mxu0 0.0
      %1643 = vmatprep.subr.mxu0 0.0
      %1644 = vmatpush1.msra.mxu0 0.0
      %1645 = vmatprep.subr.mxu0 0.0
      %1646 = vmatpush1.msra.mxu0 0.0
      %1647 = vmatprep.subr.mxu0 0.0
      %1648 = vmatpush1.msra.mxu0 0.0
      %1649 = vmatprep.subr.mxu0 0.0
      %1650 = vmatpush1.msra.mxu0 0.0
      %1651 = vmatprep.subr.mxu0 0.0
      %1652 = vmatpush1.msra.mxu0 0.0
      %1653 = vmatprep.subr.mxu0 0.0
      %1654 = vmatpush1.msra.mxu0 0.0
      %1655 = vmatprep.subr.mxu0 0.0
      %1656 = vmatpush1.msra.mxu0 0.0
      %1657 = vmatprep.subr.mxu0 0.0
      %1658 = vmatpush1.msra.mxu0 0.0
      %1659 = vmatprep.mubr.f32.mxu0 0.0
      %1660 = vmatmul.mubr.f32.gmra.mrb[0].mxu0 %v1593
      %v1661 = vpop.f32.mrb[0].mxu0
      %v1662 = vadd.f32 0.0, %v1661
      %v1663 = vpop.f32.mrb[0].mxu0
      %1664 = vdwg.mxu0
      %v1666 = vsel %vm496, %v188, 0
      %1668 = vmatprep.subr.mxu0 0.0
      %1669 = vmatpush1.msra.mxu0 %v336
      %1670 = vmatprep.subr.mxu0 0.0
      %1671 = vmatpush1.msra.mxu0 %v337
      %1672 = vmatprep.subr.mxu0 0.0
      %1673 = vmatpush1.msra.mxu0 %v338
      %1674 = vmatprep.subr.mxu0 0.0
      %1675 = vmatpush1.msra.mxu0 %v339
      %1676 = vmatprep.subr.mxu0 0.0
      %1677 = vmatpush1.msra.mxu0 %v340
      %1678 = vmatprep.subr.mxu0 0.0
      %1679 = vmatpush1.msra.mxu0 %v341
      %1680 = vmatprep.subr.mxu0 0.0
      %1681 = vmatpush1.msra.mxu0 %v342
      %1682 = vmatprep.subr.mxu0 0.0
      %1683 = vmatpush1.msra.mxu0 %v343
      %1684 = vmatprep.subr.mxu0 0.0
      %1685 = vmatpush1.msra.mxu0 0.0
      %1686 = vmatprep.subr.mxu0 0.0
      %1687 = vmatpush1.msra.mxu0 0.0
      %1688 = vmatprep.subr.mxu0 0.0
      %1689 = vmatpush1.msra.mxu0 0.0
      %1690 = vmatprep.subr.mxu0 0.0
      %1691 = vmatpush1.msra.mxu0 0.0
      %1692 = vmatprep.subr.mxu0 0.0
      %1693 = vmatpush1.msra.mxu0 0.0
      %1694 = vmatprep.subr.mxu0 0.0
      %1695 = vmatpush1.msra.mxu0 0.0
      %1696 = vmatprep.subr.mxu0 0.0
      %1697 = vmatpush1.msra.mxu0 0.0
      %1698 = vmatprep.subr.mxu0 0.0
      %1699 = vmatpush1.msra.mxu0 0.0
      %1700 = vmatprep.subr.mxu0 0.0
      %1701 = vmatpush1.msra.mxu0 0.0
      %1702 = vmatprep.subr.mxu0 0.0
      %1703 = vmatpush1.msra.mxu0 0.0
      %1704 = vmatprep.subr.mxu0 0.0
      %1705 = vmatpush1.msra.mxu0 0.0
      %1706 = vmatprep.subr.mxu0 0.0
      %1707 = vmatpush1.msra.mxu0 0.0
      %1708 = vmatprep.subr.mxu0 0.0
      %1709 = vmatpush1.msra.mxu0 0.0
      %1710 = vmatprep.subr.mxu0 0.0
      %1711 = vmatpush1.msra.mxu0 0.0
      %1712 = vmatprep.subr.mxu0 0.0
      %1713 = vmatpush1.msra.mxu0 0.0
      %1714 = vmatprep.subr.mxu0 0.0
      %1715 = vmatpush1.msra.mxu0 0.0
      %1716 = vmatprep.subr.mxu0 0.0
      %1717 = vmatpush1.msra.mxu0 0.0
      %1718 = vmatprep.subr.mxu0 0.0
      %1719 = vmatpush1.msra.mxu0 0.0
      %1720 = vmatprep.subr.mxu0 0.0
      %1721 = vmatpush1.msra.mxu0 0.0
      %1722 = vmatprep.subr.mxu0 0.0
      %1723 = vmatpush1.msra.mxu0 0.0
      %1724 = vmatprep.subr.mxu0 0.0
      %1725 = vmatpush1.msra.mxu0 0.0
      %1726 = vmatprep.subr.mxu0 0.0
      %1727 = vmatpush1.msra.mxu0 0.0
      %1728 = vmatprep.subr.mxu0 0.0
      %1729 = vmatpush1.msra.mxu0 0.0
      %1730 = vmatprep.subr.mxu0 0.0
      %1731 = vmatpush1.msra.mxu0 0.0
      %1732 = vmatprep.mubr.f32.mxu0 0.0
      %1733 = vmatmul.mubr.f32.gmra.mrb[0].mxu0 %v1666
      %v1734 = vpop.f32.mrb[0].mxu0
      %v1735 = vadd.f32 0.0, %v1734
      %v1736 = vpop.f32.mrb[0].mxu0
      %1737 = vdwg.mxu0
      %v1739 = vsel %vm496, %v189, 0
      %1741 = vmatprep.subr.mxu0 0.0
      %1742 = vmatpush1.msra.mxu0 %v344
      %1743 = vmatprep.subr.mxu0 0.0
      %1744 = vmatpush1.msra.mxu0 %v345
      %1745 = vmatprep.subr.mxu0 0.0
      %1746 = vmatpush1.msra.mxu0 %v346
      %1747 = vmatprep.subr.mxu0 0.0
      %1748 = vmatpush1.msra.mxu0 %v347
      %1749 = vmatprep.subr.mxu0 0.0
      %1750 = vmatpush1.msra.mxu0 %v348
      %1751 = vmatprep.subr.mxu0 0.0
      %1752 = vmatpush1.msra.mxu0 %v349
      %1753 = vmatprep.subr.mxu0 0.0
      %1754 = vmatpush1.msra.mxu0 %v350
      %1755 = vmatprep.subr.mxu0 0.0
      %1756 = vmatpush1.msra.mxu0 %v351
      %1757 = vmatprep.subr.mxu0 0.0
      %1758 = vmatpush1.msra.mxu0 0.0
      %1759 = vmatprep.subr.mxu0 0.0
      %1760 = vmatpush1.msra.mxu0 0.0
      %1761 = vmatprep.subr.mxu0 0.0
      %1762 = vmatpush1.msra.mxu0 0.0
      %1763 = vmatprep.subr.mxu0 0.0
      %1764 = vmatpush1.msra.mxu0 0.0
      %1765 = vmatprep.subr.mxu0 0.0
      %1766 = vmatpush1.msra.mxu0 0.0
      %1767 = vmatprep.subr.mxu0 0.0
      %1768 = vmatpush1.msra.mxu0 0.0
      %1769 = vmatprep.subr.mxu0 0.0
      %1770 = vmatpush1.msra.mxu0 0.0
      %1771 = vmatprep.subr.mxu0 0.0
      %1772 = vmatpush1.msra.mxu0 0.0
      %1773 = vmatprep.subr.mxu0 0.0
      %1774 = vmatpush1.msra.mxu0 0.0
      %1775 = vmatprep.subr.mxu0 0.0
      %1776 = vmatpush1.msra.mxu0 0.0
      %1777 = vmatprep.subr.mxu0 0.0
      %1778 = vmatpush1.msra.mxu0 0.0
      %1779 = vmatprep.subr.mxu0 0.0
      %1780 = vmatpush1.msra.mxu0 0.0
      %1781 = vmatprep.subr.mxu0 0.0
      %1782 = vmatpush1.msra.mxu0 0.0
      %1783 = vmatprep.subr.mxu0 0.0
      %1784 = vmatpush1.msra.mxu0 0.0
      %1785 = vmatprep.subr.mxu0 0.0
      %1786 = vmatpush1.msra.mxu0 0.0
      %1787 = vmatprep.subr.mxu0 0.0
      %1788 = vmatpush1.msra.mxu0 0.0
      %1789 = vmatprep.subr.mxu0 0.0
      %1790 = vmatpush1.msra.mxu0 0.0
      %1791 = vmatprep.subr.mxu0 0.0
      %1792 = vmatpush1.msra.mxu0 0.0
      %1793 = vmatprep.subr.mxu0 0.0
      %1794 = vmatpush1.msra.mxu0 0.0
      %1795 = vmatprep.subr.mxu0 0.0
      %1796 = vmatpush1.msra.mxu0 0.0
      %1797 = vmatprep.subr.mxu0 0.0
      %1798 = vmatpush1.msra.mxu0 0.0
      %1799 = vmatprep.subr.mxu0 0.0
      %1800 = vmatpush1.msra.mxu0 0.0
      %1801 = vmatprep.subr.mxu0 0.0
      %1802 = vmatpush1.msra.mxu0 0.0
      %1803 = vmatprep.subr.mxu0 0.0
      %1804 = vmatpush1.msra.mxu0 0.0
      %1805 = vmatprep.mubr.f32.mxu0 0.0
      %1806 = vmatmul.mubr.f32.gmra.mrb[0].mxu0 %v1739
      %v1807 = vpop.f32.mrb[0].mxu0
      %v1808 = vadd.f32 0.0, %v1807
      %v1809 = vpop.f32.mrb[0].mxu0
      %1810 = vdwg.mxu0
      %v1812 = vsel %vm496, %v190, 0
      %1814 = vmatprep.subr.mxu0 0.0
      %1815 = vmatpush1.msra.mxu0 %v352
      %1816 = vmatprep.subr.mxu0 0.0
      %1817 = vmatpush1.msra.mxu0 %v353
      %1818 = vmatprep.subr.mxu0 0.0
      %1819 = vmatpush1.msra.mxu0 %v354
      %1820 = vmatprep.subr.mxu0 0.0
      %1821 = vmatpush1.msra.mxu0 %v355
      %1822 = vmatprep.subr.mxu0 0.0
      %1823 = vmatpush1.msra.mxu0 %v356
      %1824 = vmatprep.subr.mxu0 0.0
      %1825 = vmatpush1.msra.mxu0 %v357
      %1826 = vmatprep.subr.mxu0 0.0
      %1827 = vmatpush1.msra.mxu0 %v358
      %1828 = vmatprep.subr.mxu0 0.0
      %1829 = vmatpush1.msra.mxu0 %v359
      %1830 = vmatprep.subr.mxu0 0.0
      %1831 = vmatpush1.msra.mxu0 0.0
      %1832 = vmatprep.subr.mxu0 0.0
      %1833 = vmatpush1.msra.mxu0 0.0
      %1834 = vmatprep.subr.mxu0 0.0
      %1835 = vmatpush1.msra.mxu0 0.0
      %1836 = vmatprep.subr.mxu0 0.0
      %1837 = vmatpush1.msra.mxu0 0.0
      %1838 = vmatprep.subr.mxu0 0.0
      %1839 = vmatpush1.msra.mxu0 0.0
      %1840 = vmatprep.subr.mxu0 0.0
      %1841 = vmatpush1.msra.mxu0 0.0
      %1842 = vmatprep.subr.mxu0 0.0
      %1843 = vmatpush1.msra.mxu0 0.0
      %1844 = vmatprep.subr.mxu0 0.0
      %1845 = vmatpush1.msra.mxu0 0.0
      %1846 = vmatprep.subr.mxu0 0.0
      %1847 = vmatpush1.msra.mxu0 0.0
      %1848 = vmatprep.subr.mxu0 0.0
      %1849 = vmatpush1.msra.mxu0 0.0
      %1850 = vmatprep.subr.mxu0 0.0
      %1851 = vmatpush1.msra.mxu0 0.0
      %1852 = vmatprep.subr.mxu0 0.0
      %1853 = vmatpush1.msra.mxu0 0.0
      %1854 = vmatprep.subr.mxu0 0.0
      %1855 = vmatpush1.msra.mxu0 0.0
      %1856 = vmatprep.subr.mxu0 0.0
      %1857 = vmatpush1.msra.mxu0 0.0
      %1858 = vmatprep.subr.mxu0 0.0
      %1859 = vmatpush1.msra.mxu0 0.0
      %1860 = vmatprep.subr.mxu0 0.0
      %1861 = vmatpush1.msra.mxu0 0.0
      %1862 = vmatprep.subr.mxu0 0.0
      %1863 = vmatpush1.msra.mxu0 0.0
      %1864 = vmatprep.subr.mxu0 0.0
      %1865 = vmatpush1.msra.mxu0 0.0
      %1866 = vmatprep.subr.mxu0 0.0
      %1867 = vmatpush1.msra.mxu0 0.0
      %1868 = vmatprep.subr.mxu0 0.0
      %1869 = vmatpush1.msra.mxu0 0.0
      %1870 = vmatprep.subr.mxu0 0.0
      %1871 = vmatpush1.msra.mxu0 0.0
      %1872 = vmatprep.subr.mxu0 0.0
      %1873 = vmatpush1.msra.mxu0 0.0
      %1874 = vmatprep.subr.mxu0 0.0
      %1875 = vmatpush1.msra.mxu0 0.0
      %1876 = vmatprep.subr.mxu0 0.0
      %1877 = vmatpush1.msra.mxu0 0.0
      %1878 = vmatprep.mubr.f32.mxu0 0.0
      %1879 = vmatmul.mubr.f32.gmra.mrb[0].mxu0 %v1812
      %v1880 = vpop.f32.mrb[0].mxu0
      %v1881 = vadd.f32 0.0, %v1880
      %v1882 = vpop.f32.mrb[0].mxu0
      %1883 = vdwg.mxu0
      %v1885 = vsel %vm496, %v191, 0
      %1887 = vmatprep.subr.mxu0 0.0
      %1888 = vmatpush1.msra.mxu0 %v360
      %1889 = vmatprep.subr.mxu0 0.0
      %1890 = vmatpush1.msra.mxu0 %v361
      %1891 = vmatprep.subr.mxu0 0.0
      %1892 = vmatpush1.msra.mxu0 %v362
      %1893 = vmatprep.subr.mxu0 0.0
      %1894 = vmatpush1.msra.mxu0 %v363
      %1895 = vmatprep.subr.mxu0 0.0
      %1896 = vmatpush1.msra.mxu0 %v364
      %1897 = vmatprep.subr.mxu0 0.0
      %1898 = vmatpush1.msra.mxu0 %v365
      %1899 = vmatprep.subr.mxu0 0.0
      %1900 = vmatpush1.msra.mxu0 %v366
      %1901 = vmatprep.subr.mxu0 0.0
      %1902 = vmatpush1.msra.mxu0 %v367
      %1903 = vmatprep.subr.mxu0 0.0
      %1904 = vmatpush1.msra.mxu0 0.0
      %1905 = vmatprep.subr.mxu0 0.0
      %1906 = vmatpush1.msra.mxu0 0.0
      %1907 = vmatprep.subr.mxu0 0.0
      %1908 = vmatpush1.msra.mxu0 0.0
      %1909 = vmatprep.subr.mxu0 0.0
      %1910 = vmatpush1.msra.mxu0 0.0
      %1911 = vmatprep.subr.mxu0 0.0
      %1912 = vmatpush1.msra.mxu0 0.0
      %1913 = vmatprep.subr.mxu0 0.0
      %1914 = vmatpush1.msra.mxu0 0.0
      %1915 = vmatprep.subr.mxu0 0.0
      %1916 = vmatpush1.msra.mxu0 0.0
      %1917 = vmatprep.subr.mxu0 0.0
      %1918 = vmatpush1.msra.mxu0 0.0
      %1919 = vmatprep.subr.mxu0 0.0
      %1920 = vmatpush1.msra.mxu0 0.0
      %1921 = vmatprep.subr.mxu0 0.0
      %1922 = vmatpush1.msra.mxu0 0.0
      %1923 = vmatprep.subr.mxu0 0.0
      %1924 = vmatpush1.msra.mxu0 0.0
      %1925 = vmatprep.subr.mxu0 0.0
      %1926 = vmatpush1.msra.mxu0 0.0
      %1927 = vmatprep.subr.mxu0 0.0
      %1928 = vmatpush1.msra.mxu0 0.0
      %1929 = vmatprep.subr.mxu0 0.0
      %1930 = vmatpush1.msra.mxu0 0.0
      %1931 = vmatprep.subr.mxu0 0.0
      %1932 = vmatpush1.msra.mxu0 0.0
      %1933 = vmatprep.subr.mxu0 0.0
      %1934 = vmatpush1.msra.mxu0 0.0
      %1935 = vmatprep.subr.mxu0 0.0
      %1936 = vmatpush1.msra.mxu0 0.0
      %1937 = vmatprep.subr.mxu0 0.0
      %1938 = vmatpush1.msra.mxu0 0.0
      %1939 = vmatprep.subr.mxu0 0.0
      %1940 = vmatpush1.msra.mxu0 0.0
      %1941 = vmatprep.subr.mxu0 0.0
      %1942 = vmatpush1.msra.mxu0 0.0
      %1943 = vmatprep.subr.mxu0 0.0
      %1944 = vmatpush1.msra.mxu0 0.0
      %1945 = vmatprep.subr.mxu0 0.0
      %1946 = vmatpush1.msra.mxu0 0.0
      %1947 = vmatprep.subr.mxu0 0.0
      %1948 = vmatpush1.msra.mxu0 0.0
      %1949 = vmatprep.subr.mxu0 0.0
      %1950 = vmatpush1.msra.mxu0 0.0
      %1951 = vmatprep.mubr.f32.mxu0 0.0
      %1952 = vmatmul.mubr.f32.gmra.mrb[0].mxu0 %v1885
      %v1953 = vpop.f32.mrb[0].mxu0
      %v1954 = vadd.f32 0.0, %v1953
      %v1955 = vpop.f32.mrb[0].mxu0
      %1956 = vdwg.mxu0
      %v1958 = vsel %vm496, %v192, 0
      %1960 = vmatprep.subr.mxu0 0.0
      %1961 = vmatpush1.msra.mxu0 %v368
      %1962 = vmatprep.subr.mxu0 0.0
      %1963 = vmatpush1.msra.mxu0 %v369
      %1964 = vmatprep.subr.mxu0 0.0
      %1965 = vmatpush1.msra.mxu0 %v370
      %1966 = vmatprep.subr.mxu0 0.0
      %1967 = vmatpush1.msra.mxu0 %v371
      %1968 = vmatprep.subr.mxu0 0.0
      %1969 = vmatpush1.msra.mxu0 %v372
      %1970 = vmatprep.subr.mxu0 0.0
      %1971 = vmatpush1.msra.mxu0 %v373
      %1972 = vmatprep.subr.mxu0 0.0
      %1973 = vmatpush1.msra.mxu0 %v374
      %1974 = vmatprep.subr.mxu0 0.0
      %1975 = vmatpush1.msra.mxu0 %v375
      %1976 = vmatprep.subr.mxu0 0.0
      %1977 = vmatpush1.msra.mxu0 0.0
      %1978 = vmatprep.subr.mxu0 0.0
      %1979 = vmatpush1.msra.mxu0 0.0
      %1980 = vmatprep.subr.mxu0 0.0
      %1981 = vmatpush1.msra.mxu0 0.0
      %1982 = vmatprep.subr.mxu0 0.0
      %1983 = vmatpush1.msra.mxu0 0.0
      %1984 = vmatprep.subr.mxu0 0.0
      %1985 = vmatpush1.msra.mxu0 0.0
      %1986 = vmatprep.subr.mxu0 0.0
      %1987 = vmatpush1.msra.mxu0 0.0
      %1988 = vmatprep.subr.mxu0 0.0
      %1989 = vmatpush1.msra.mxu0 0.0
      %1990 = vmatprep.subr.mxu0 0.0
      %1991 = vmatpush1.msra.mxu0 0.0
      %1992 = vmatprep.subr.mxu0 0.0
      %1993 = vmatpush1.msra.mxu0 0.0
      %1994 = vmatprep.subr.mxu0 0.0
      %1995 = vmatpush1.msra.mxu0 0.0
      %1996 = vmatprep.subr.mxu0 0.0
      %1997 = vmatpush1.msra.mxu0 0.0
      %1998 = vmatprep.subr.mxu0 0.0
      %1999 = vmatpush1.msra.mxu0 0.0
      %2000 = vmatprep.subr.mxu0 0.0
      %2001 = vmatpush1.msra.mxu0 0.0
      %2002 = vmatprep.subr.mxu0 0.0
      %2003 = vmatpush1.msra.mxu0 0.0
      %2004 = vmatprep.subr.mxu0 0.0
      %2005 = vmatpush1.msra.mxu0 0.0
      %2006 = vmatprep.subr.mxu0 0.0
      %2007 = vmatpush1.msra.mxu0 0.0
      %2008 = vmatprep.subr.mxu0 0.0
      %2009 = vmatpush1.msra.mxu0 0.0
      %2010 = vmatprep.subr.mxu0 0.0
      %2011 = vmatpush1.msra.mxu0 0.0
      %2012 = vmatprep.subr.mxu0 0.0
      %2013 = vmatpush1.msra.mxu0 0.0
      %2014 = vmatprep.subr.mxu0 0.0
      %2015 = vmatpush1.msra.mxu0 0.0
      %2016 = vmatprep.subr.mxu0 0.0
      %2017 = vmatpush1.msra.mxu0 0.0
      %2018 = vmatprep.subr.mxu0 0.0
      %2019 = vmatpush1.msra.mxu0 0.0
      %2020 = vmatprep.subr.mxu0 0.0
      %2021 = vmatpush1.msra.mxu0 0.0
      %2022 = vmatprep.subr.mxu0 0.0
      %2023 = vmatpush1.msra.mxu0 0.0
      %2024 = vmatprep.mubr.f32.mxu0 0.0
      %2025 = vmatmul.mubr.f32.gmra.mrb[0].mxu0 %v1958
      %v2026 = vpop.f32.mrb[0].mxu0
      %v2027 = vadd.f32 0.0, %v2026
      %v2028 = vpop.f32.mrb[0].mxu0
      %2029 = vdwg.mxu0
      %v2031 = vsel %vm496, %v193, 0
      %2033 = vmatprep.subr.mxu0 0.0
      %2034 = vmatpush1.msra.mxu0 %v376
      %2035 = vmatprep.subr.mxu0 0.0
      %2036 = vmatpush1.msra.mxu0 %v377
      %2037 = vmatprep.subr.mxu0 0.0
      %2038 = vmatpush1.msra.mxu0 %v378
      %2039 = vmatprep.subr.mxu0 0.0
      %2040 = vmatpush1.msra.mxu0 %v379
      %2041 = vmatprep.subr.mxu0 0.0
      %2042 = vmatpush1.msra.mxu0 %v380
      %2043 = vmatprep.subr.mxu0 0.0
      %2044 = vmatpush1.msra.mxu0 %v381
      %2045 = vmatprep.subr.mxu0 0.0
      %2046 = vmatpush1.msra.mxu0 %v382
      %2047 = vmatprep.subr.mxu0 0.0
      %2048 = vmatpush1.msra.mxu0 %v383
      %2049 = vmatprep.subr.mxu0 0.0
      %2050 = vmatpush1.msra.mxu0 0.0
      %2051 = vmatprep.subr.mxu0 0.0
      %2052 = vmatpush1.msra.mxu0 0.0
      %2053 = vmatprep.subr.mxu0 0.0
      %2054 = vmatpush1.msra.mxu0 0.0
      %2055 = vmatprep.subr.mxu0 0.0
      %2056 = vmatpush1.msra.mxu0 0.0
      %2057 = vmatprep.subr.mxu0 0.0
      %2058 = vmatpush1.msra.mxu0 0.0
      %2059 = vmatprep.subr.mxu0 0.0
      %2060 = vmatpush1.msra.mxu0 0.0
      %2061 = vmatprep.subr.mxu0 0.0
      %2062 = vmatpush1.msra.mxu0 0.0
      %2063 = vmatprep.subr.mxu0 0.0
      %2064 = vmatpush1.msra.mxu0 0.0
      %2065 = vmatprep.subr.mxu0 0.0
      %2066 = vmatpush1.msra.mxu0 0.0
      %2067 = vmatprep.subr.mxu0 0.0
      %2068 = vmatpush1.msra.mxu0 0.0
      %2069 = vmatprep.subr.mxu0 0.0
      %2070 = vmatpush1.msra.mxu0 0.0
      %2071 = vmatprep.subr.mxu0 0.0
      %2072 = vmatpush1.msra.mxu0 0.0
      %2073 = vmatprep.subr.mxu0 0.0
      %2074 = vmatpush1.msra.mxu0 0.0
      %2075 = vmatprep.subr.mxu0 0.0
      %2076 = vmatpush1.msra.mxu0 0.0
      %2077 = vmatprep.subr.mxu0 0.0
      %2078 = vmatpush1.msra.mxu0 0.0
      %2079 = vmatprep.subr.mxu0 0.0
      %2080 = vmatpush1.msra.mxu0 0.0
      %2081 = vmatprep.subr.mxu0 0.0
      %2082 = vmatpush1.msra.mxu0 0.0
      %2083 = vmatprep.subr.mxu0 0.0
      %2084 = vmatpush1.msra.mxu0 0.0
      %2085 = vmatprep.subr.mxu0 0.0
      %2086 = vmatpush1.msra.mxu0 0.0
      %2087 = vmatprep.subr.mxu0 0.0
      %2088 = vmatpush1.msra.mxu0 0.0
      %2089 = vmatprep.subr.mxu0 0.0
      %2090 = vmatpush1.msra.mxu0 0.0
      %2091 = vmatprep.subr.mxu0 0.0
      %2092 = vmatpush1.msra.mxu0 0.0
      %2093 = vmatprep.subr.mxu0 0.0
      %2094 = vmatpush1.msra.mxu0 0.0
      %2095 = vmatprep.subr.mxu0 0.0
      %2096 = vmatpush1.msra.mxu0 0.0
      %2097 = vmatprep.mubr.f32.mxu0 0.0
      %2098 = vmatmul.mubr.f32.gmra.mrb[0].mxu0 %v2031
      %v2099 = vpop.f32.mrb[0].mxu0
      %v2100 = vadd.f32 0.0, %v2099
      %v2101 = vpop.f32.mrb[0].mxu0
      %2102 = vdwg.mxu0
      %v2104 = vsel %vm496, %v194, 0
      %2106 = vmatprep.subr.mxu0 0.0
      %2107 = vmatpush1.msra.mxu0 %v384
      %2108 = vmatprep.subr.mxu0 0.0
      %2109 = vmatpush1.msra.mxu0 %v385
      %2110 = vmatprep.subr.mxu0 0.0
      %2111 = vmatpush1.msra.mxu0 %v386
      %2112 = vmatprep.subr.mxu0 0.0
      %2113 = vmatpush1.msra.mxu0 %v387
      %2114 = vmatprep.subr.mxu0 0.0
      %2115 = vmatpush1.msra.mxu0 %v388
      %2116 = vmatprep.subr.mxu0 0.0
      %2117 = vmatpush1.msra.mxu0 %v389
      %2118 = vmatprep.subr.mxu0 0.0
      %2119 = vmatpush1.msra.mxu0 %v390
      %2120 = vmatprep.subr.mxu0 0.0
      %2121 = vmatpush1.msra.mxu0 %v391
      %2122 = vmatprep.subr.mxu0 0.0
      %2123 = vmatpush1.msra.mxu0 0.0
      %2124 = vmatprep.subr.mxu0 0.0
      %2125 = vmatpush1.msra.mxu0 0.0
      %2126 = vmatprep.subr.mxu0 0.0
      %2127 = vmatpush1.msra.mxu0 0.0
      %2128 = vmatprep.subr.mxu0 0.0
      %2129 = vmatpush1.msra.mxu0 0.0
      %2130 = vmatprep.subr.mxu0 0.0
      %2131 = vmatpush1.msra.mxu0 0.0
      %2132 = vmatprep.subr.mxu0 0.0
      %2133 = vmatpush1.msra.mxu0 0.0
      %2134 = vmatprep.subr.mxu0 0.0
      %2135 = vmatpush1.msra.mxu0 0.0
      %2136 = vmatprep.subr.mxu0 0.0
      %2137 = vmatpush1.msra.mxu0 0.0
      %2138 = vmatprep.subr.mxu0 0.0
      %2139 = vmatpush1.msra.mxu0 0.0
      %2140 = vmatprep.subr.mxu0 0.0
      %2141 = vmatpush1.msra.mxu0 0.0
      %2142 = vmatprep.subr.mxu0 0.0
      %2143 = vmatpush1.msra.mxu0 0.0
      %2144 = vmatprep.subr.mxu0 0.0
      %2145 = vmatpush1.msra.mxu0 0.0
      %2146 = vmatprep.subr.mxu0 0.0
      %2147 = vmatpush1.msra.mxu0 0.0
      %2148 = vmatprep.subr.mxu0 0.0
      %2149 = vmatpush1.msra.mxu0 0.0
      %2150 = vmatprep.subr.mxu0 0.0
      %2151 = vmatpush1.msra.mxu0 0.0
      %2152 = vmatprep.subr.mxu0 0.0
      %2153 = vmatpush1.msra.mxu0 0.0
      %2154 = vmatprep.subr.mxu0 0.0
      %2155 = vmatpush1.msra.mxu0 0.0
      %2156 = vmatprep.subr.mxu0 0.0
      %2157 = vmatpush1.msra.mxu0 0.0
      %2158 = vmatprep.subr.mxu0 0.0
      %2159 = vmatpush1.msra.mxu0 0.0
      %2160 = vmatprep.subr.mxu0 0.0
      %2161 = vmatpush1.msra.mxu0 0.0
      %2162 = vmatprep.subr.mxu0 0.0
      %2163 = vmatpush1.msra.mxu0 0.0
      %2164 = vmatprep.subr.mxu0 0.0
      %2165 = vmatpush1.msra.mxu0 0.0
      %2166 = vmatprep.subr.mxu0 0.0
      %2167 = vmatpush1.msra.mxu0 0.0
      %2168 = vmatprep.subr.mxu0 0.0
      %2169 = vmatpush1.msra.mxu0 0.0
      %2170 = vmatprep.mubr.f32.mxu0 0.0
      %2171 = vmatmul.mubr.f32.gmra.mrb[0].mxu0 %v2104
      %v2172 = vpop.f32.mrb[0].mxu0
      %v2173 = vadd.f32 0.0, %v2172
      %v2174 = vpop.f32.mrb[0].mxu0
      %2175 = vdwg.mxu0
      %v2177 = vsel %vm496, %v195, 0
      %2179 = vmatprep.subr.mxu0 0.0
      %2180 = vmatpush1.msra.mxu0 %v392
      %2181 = vmatprep.subr.mxu0 0.0
      %2182 = vmatpush1.msra.mxu0 %v393
      %2183 = vmatprep.subr.mxu0 0.0
      %2184 = vmatpush1.msra.mxu0 %v394
      %2185 = vmatprep.subr.mxu0 0.0
      %2186 = vmatpush1.msra.mxu0 %v395
      %2187 = vmatprep.subr.mxu0 0.0
      %2188 = vmatpush1.msra.mxu0 %v396
      %2189 = vmatprep.subr.mxu0 0.0
      %2190 = vmatpush1.msra.mxu0 %v397
      %2191 = vmatprep.subr.mxu0 0.0
      %2192 = vmatpush1.msra.mxu0 %v398
      %2193 = vmatprep.subr.mxu0 0.0
      %2194 = vmatpush1.msra.mxu0 %v399
      %2195 = vmatprep.subr.mxu0 0.0
      %2196 = vmatpush1.msra.mxu0 0.0
      %2197 = vmatprep.subr.mxu0 0.0
      %2198 = vmatpush1.msra.mxu0 0.0
      %2199 = vmatprep.subr.mxu0 0.0
      %2200 = vmatpush1.msra.mxu0 0.0
      %2201 = vmatprep.subr.mxu0 0.0
      %2202 = vmatpush1.msra.mxu0 0.0
      %2203 = vmatprep.subr.mxu0 0.0
      %2204 = vmatpush1.msra.mxu0 0.0
      %2205 = vmatprep.subr.mxu0 0.0
      %2206 = vmatpush1.msra.mxu0 0.0
      %2207 = vmatprep.subr.mxu0 0.0
      %2208 = vmatpush1.msra.mxu0 0.0
      %2209 = vmatprep.subr.mxu0 0.0
      %2210 = vmatpush1.msra.mxu0 0.0
      %2211 = vmatprep.subr.mxu0 0.0
      %2212 = vmatpush1.msra.mxu0 0.0
      %2213 = vmatprep.subr.mxu0 0.0
      %2214 = vmatpush1.msra.mxu0 0.0
      %2215 = vmatprep.subr.mxu0 0.0
      %2216 = vmatpush1.msra.mxu0 0.0
      %2217 = vmatprep.subr.mxu0 0.0
      %2218 = vmatpush1.msra.mxu0 0.0
      %2219 = vmatprep.subr.mxu0 0.0
      %2220 = vmatpush1.msra.mxu0 0.0
      %2221 = vmatprep.subr.mxu0 0.0
      %2222 = vmatpush1.msra.mxu0 0.0
      %2223 = vmatprep.subr.mxu0 0.0
      %2224 = vmatpush1.msra.mxu0 0.0
      %2225 = vmatprep.subr.mxu0 0.0
      %2226 = vmatpush1.msra.mxu0 0.0
      %2227 = vmatprep.subr.mxu0 0.0
      %2228 = vmatpush1.msra.mxu0 0.0
      %2229 = vmatprep.subr.mxu0 0.0
      %2230 = vmatpush1.msra.mxu0 0.0
      %2231 = vmatprep.subr.mxu0 0.0
      %2232 = vmatpush1.msra.mxu0 0.0
      %2233 = vmatprep.subr.mxu0 0.0
      %2234 = vmatpush1.msra.mxu0 0.0
      %2235 = vmatprep.subr.mxu0 0.0
      %2236 = vmatpush1.msra.mxu0 0.0
      %2237 = vmatprep.subr.mxu0 0.0
      %2238 = vmatpush1.msra.mxu0 0.0
      %2239 = vmatprep.subr.mxu0 0.0
      %2240 = vmatpush1.msra.mxu0 0.0
      %2241 = vmatprep.subr.mxu0 0.0
      %2242 = vmatpush1.msra.mxu0 0.0
      %2243 = vmatprep.mubr.f32.mxu0 0.0
      %2244 = vmatmul.mubr.f32.gmra.mrb[0].mxu0 %v2177
      %v2245 = vpop.f32.mrb[0].mxu0
      %v2246 = vadd.f32 0.0, %v2245
      %v2247 = vpop.f32.mrb[0].mxu0
      %2248 = vdwg.mxu0
      %v2250 = vsel %vm496, %v196, 0
      %2252 = vmatprep.subr.mxu0 0.0
      %2253 = vmatpush1.msra.mxu0 %v400
      %2254 = vmatprep.subr.mxu0 0.0
      %2255 = vmatpush1.msra.mxu0 %v401
      %2256 = vmatprep.subr.mxu0 0.0
      %2257 = vmatpush1.msra.mxu0 %v402
      %2258 = vmatprep.subr.mxu0 0.0
      %2259 = vmatpush1.msra.mxu0 %v403
      %2260 = vmatprep.subr.mxu0 0.0
      %2261 = vmatpush1.msra.mxu0 %v404
      %2262 = vmatprep.subr.mxu0 0.0
      %2263 = vmatpush1.msra.mxu0 %v405
      %2264 = vmatprep.subr.mxu0 0.0
      %2265 = vmatpush1.msra.mxu0 %v406
      %2266 = vmatprep.subr.mxu0 0.0
      %2267 = vmatpush1.msra.mxu0 %v407
      %2268 = vmatprep.subr.mxu0 0.0
      %2269 = vmatpush1.msra.mxu0 0.0
      %2270 = vmatprep.subr.mxu0 0.0
      %2271 = vmatpush1.msra.mxu0 0.0
      %2272 = vmatprep.subr.mxu0 0.0
      %2273 = vmatpush1.msra.mxu0 0.0
      %2274 = vmatprep.subr.mxu0 0.0
      %2275 = vmatpush1.msra.mxu0 0.0
      %2276 = vmatprep.subr.mxu0 0.0
      %2277 = vmatpush1.msra.mxu0 0.0
      %2278 = vmatprep.subr.mxu0 0.0
      %2279 = vmatpush1.msra.mxu0 0.0
      %2280 = vmatprep.subr.mxu0 0.0
      %2281 = vmatpush1.msra.mxu0 0.0
      %2282 = vmatprep.subr.mxu0 0.0
      %2283 = vmatpush1.msra.mxu0 0.0
      %2284 = vmatprep.subr.mxu0 0.0
      %2285 = vmatpush1.msra.mxu0 0.0
      %2286 = vmatprep.subr.mxu0 0.0
      %2287 = vmatpush1.msra.mxu0 0.0
      %2288 = vmatprep.subr.mxu0 0.0
      %2289 = vmatpush1.msra.mxu0 0.0
      %2290 = vmatprep.subr.mxu0 0.0
      %2291 = vmatpush1.msra.mxu0 0.0
      %2292 = vmatprep.subr.mxu0 0.0
      %2293 = vmatpush1.msra.mxu0 0.0
      %2294 = vmatprep.subr.mxu0 0.0
      %2295 = vmatpush1.msra.mxu0 0.0
      %2296 = vmatprep.subr.mxu0 0.0
      %2297 = vmatpush1.msra.mxu0 0.0
      %2298 = vmatprep.subr.mxu0 0.0
      %2299 = vmatpush1.msra.mxu0 0.0
      %2300 = vmatprep.subr.mxu0 0.0
      %2301 = vmatpush1.msra.mxu0 0.0
      %2302 = vmatprep.subr.mxu0 0.0
      %2303 = vmatpush1.msra.mxu0 0.0
      %2304 = vmatprep.subr.mxu0 0.0
      %2305 = vmatpush1.msra.mxu0 0.0
      %2306 = vmatprep.subr.mxu0 0.0
      %2307 = vmatpush1.msra.mxu0 0.0
      %2308 = vmatprep.subr.mxu0 0.0
      %2309 = vmatpush1.msra.mxu0 0.0
      %2310 = vmatprep.subr.mxu0 0.0
      %2311 = vmatpush1.msra.mxu0 0.0
      %2312 = vmatprep.subr.mxu0 0.0
      %2313 = vmatpush1.msra.mxu0 0.0
      %2314 = vmatprep.subr.mxu0 0.0
      %2315 = vmatpush1.msra.mxu0 0.0
      %2316 = vmatprep.mubr.f32.mxu0 0.0
      %2317 = vmatmul.mubr.f32.gmra.mrb[0].mxu0 %v2250
      %v2318 = vpop.f32.mrb[0].mxu0
      %v2319 = vadd.f32 0.0, %v2318
      %v2320 = vpop.f32.mrb[0].mxu0
      %2321 = vdwg.mxu0
      %v2323 = vsel %vm496, %v197, 0
      %2325 = vmatprep.subr.mxu0 0.0
      %2326 = vmatpush1.msra.mxu0 %v408
      %2327 = vmatprep.subr.mxu0 0.0
      %2328 = vmatpush1.msra.mxu0 %v409
      %2329 = vmatprep.subr.mxu0 0.0
      %2330 = vmatpush1.msra.mxu0 %v410
      %2331 = vmatprep.subr.mxu0 0.0
      %2332 = vmatpush1.msra.mxu0 %v411
      %2333 = vmatprep.subr.mxu0 0.0
      %2334 = vmatpush1.msra.mxu0 %v412
      %2335 = vmatprep.subr.mxu0 0.0
      %2336 = vmatpush1.msra.mxu0 %v413
      %2337 = vmatprep.subr.mxu0 0.0
      %2338 = vmatpush1.msra.mxu0 %v414
      %2339 = vmatprep.subr.mxu0 0.0
      %2340 = vmatpush1.msra.mxu0 %v415
      %2341 = vmatprep.subr.mxu0 0.0
      %2342 = vmatpush1.msra.mxu0 0.0
      %2343 = vmatprep.subr.mxu0 0.0
      %2344 = vmatpush1.msra.mxu0 0.0
      %2345 = vmatprep.subr.mxu0 0.0
      %2346 = vmatpush1.msra.mxu0 0.0
      %2347 = vmatprep.subr.mxu0 0.0
      %2348 = vmatpush1.msra.mxu0 0.0
      %2349 = vmatprep.subr.mxu0 0.0
      %2350 = vmatpush1.msra.mxu0 0.0
      %2351 = vmatprep.subr.mxu0 0.0
      %2352 = vmatpush1.msra.mxu0 0.0
      %2353 = vmatprep.subr.mxu0 0.0
      %2354 = vmatpush1.msra.mxu0 0.0
      %2355 = vmatprep.subr.mxu0 0.0
      %2356 = vmatpush1.msra.mxu0 0.0
      %2357 = vmatprep.subr.mxu0 0.0
      %2358 = vmatpush1.msra.mxu0 0.0
      %2359 = vmatprep.subr.mxu0 0.0
      %2360 = vmatpush1.msra.mxu0 0.0
      %2361 = vmatprep.subr.mxu0 0.0
      %2362 = vmatpush1.msra.mxu0 0.0
      %2363 = vmatprep.subr.mxu0 0.0
      %2364 = vmatpush1.msra.mxu0 0.0
      %2365 = vmatprep.subr.mxu0 0.0
      %2366 = vmatpush1.msra.mxu0 0.0
      %2367 = vmatprep.subr.mxu0 0.0
      %2368 = vmatpush1.msra.mxu0 0.0
      %2369 = vmatprep.subr.mxu0 0.0
      %2370 = vmatpush1.msra.mxu0 0.0
      %2371 = vmatprep.subr.mxu0 0.0
      %2372 = vmatpush1.msra.mxu0 0.0
      %2373 = vmatprep.subr.mxu0 0.0
      %2374 = vmatpush1.msra.mxu0 0.0
      %2375 = vmatprep.subr.mxu0 0.0
      %2376 = vmatpush1.msra.mxu0 0.0
      %2377 = vmatprep.subr.mxu0 0.0
      %2378 = vmatpush1.msra.mxu0 0.0
      %2379 = vmatprep.subr.mxu0 0.0
      %2380 = vmatpush1.msra.mxu0 0.0
      %2381 = vmatprep.subr.mxu0 0.0
      %2382 = vmatpush1.msra.mxu0 0.0
      %2383 = vmatprep.subr.mxu0 0.0
      %2384 = vmatpush1.msra.mxu0 0.0
      %2385 = vmatprep.subr.mxu0 0.0
      %2386 = vmatpush1.msra.mxu0 0.0
      %2387 = vmatprep.subr.mxu0 0.0
      %2388 = vmatpush1.msra.mxu0 0.0
      %2389 = vmatprep.mubr.f32.mxu0 0.0
      %2390 = vmatmul.mubr.f32.gmra.mrb[0].mxu0 %v2323
      %v2391 = vpop.f32.mrb[0].mxu0
      %v2392 = vadd.f32 0.0, %v2391
      %v2393 = vpop.f32.mrb[0].mxu0
      %2394 = vdwg.mxu0
      %v2396 = vsel %vm496, %v198, 0
      %2398 = vmatprep.subr.mxu0 0.0
      %2399 = vmatpush1.msra.mxu0 %v416
      %2400 = vmatprep.subr.mxu0 0.0
      %2401 = vmatpush1.msra.mxu0 %v417
      %2402 = vmatprep.subr.mxu0 0.0
      %2403 = vmatpush1.msra.mxu0 %v418
      %2404 = vmatprep.subr.mxu0 0.0
      %2405 = vmatpush1.msra.mxu0 %v419
      %2406 = vmatprep.subr.mxu0 0.0
      %2407 = vmatpush1.msra.mxu0 %v420
      %2408 = vmatprep.subr.mxu0 0.0
      %2409 = vmatpush1.msra.mxu0 %v421
      %2410 = vmatprep.subr.mxu0 0.0
      %2411 = vmatpush1.msra.mxu0 %v422
      %2412 = vmatprep.subr.mxu0 0.0
      %2413 = vmatpush1.msra.mxu0 %v423
      %2414 = vmatprep.subr.mxu0 0.0
      %2415 = vmatpush1.msra.mxu0 0.0
      %2416 = vmatprep.subr.mxu0 0.0
      %2417 = vmatpush1.msra.mxu0 0.0
      %2418 = vmatprep.subr.mxu0 0.0
      %2419 = vmatpush1.msra.mxu0 0.0
      %2420 = vmatprep.subr.mxu0 0.0
      %2421 = vmatpush1.msra.mxu0 0.0
      %2422 = vmatprep.subr.mxu0 0.0
      %2423 = vmatpush1.msra.mxu0 0.0
      %2424 = vmatprep.subr.mxu0 0.0
      %2425 = vmatpush1.msra.mxu0 0.0
      %2426 = vmatprep.subr.mxu0 0.0
      %2427 = vmatpush1.msra.mxu0 0.0
      %2428 = vmatprep.subr.mxu0 0.0
      %2429 = vmatpush1.msra.mxu0 0.0
      %2430 = vmatprep.subr.mxu0 0.0
      %2431 = vmatpush1.msra.mxu0 0.0
      %2432 = vmatprep.subr.mxu0 0.0
      %2433 = vmatpush1.msra.mxu0 0.0
      %2434 = vmatprep.subr.mxu0 0.0
      %2435 = vmatpush1.msra.mxu0 0.0
      %2436 = vmatprep.subr.mxu0 0.0
      %2437 = vmatpush1.msra.mxu0 0.0
      %2438 = vmatprep.subr.mxu0 0.0
      %2439 = vmatpush1.msra.mxu0 0.0
      %2440 = vmatprep.subr.mxu0 0.0
      %2441 = vmatpush1.msra.mxu0 0.0
      %2442 = vmatprep.subr.mxu0 0.0
      %2443 = vmatpush1.msra.mxu0 0.0
      %2444 = vmatprep.subr.mxu0 0.0
      %2445 = vmatpush1.msra.mxu0 0.0
      %2446 = vmatprep.subr.mxu0 0.0
      %2447 = vmatpush1.msra.mxu0 0.0
      %2448 = vmatprep.subr.mxu0 0.0
      %2449 = vmatpush1.msra.mxu0 0.0
      %2450 = vmatprep.subr.mxu0 0.0
      %2451 = vmatpush1.msra.mxu0 0.0
      %2452 = vmatprep.subr.mxu0 0.0
      %2453 = vmatpush1.msra.mxu0 0.0
      %2454 = vmatprep.subr.mxu0 0.0
      %2455 = vmatpush1.msra.mxu0 0.0
      %2456 = vmatprep.subr.mxu0 0.0
      %2457 = vmatpush1.msra.mxu0 0.0
      %2458 = vmatprep.subr.mxu0 0.0
      %2459 = vmatpush1.msra.mxu0 0.0
      %2460 = vmatprep.subr.mxu0 0.0
      %2461 = vmatpush1.msra.mxu0 0.0
      %2462 = vmatprep.mubr.f32.mxu0 0.0
      %2463 = vmatmul.mubr.f32.gmra.mrb[0].mxu0 %v2396
      %v2464 = vpop.f32.mrb[0].mxu0
      %v2465 = vadd.f32 0.0, %v2464
      %v2466 = vpop.f32.mrb[0].mxu0
      %2467 = vdwg.mxu0
      %v2469 = vsel %vm496, %v199, 0
      %2471 = vmatprep.subr.mxu0 0.0
      %2472 = vmatpush1.msra.mxu0 %v424
      %2473 = vmatprep.subr.mxu0 0.0
      %2474 = vmatpush1.msra.mxu0 %v425
      %2475 = vmatprep.subr.mxu0 0.0
      %2476 = vmatpush1.msra.mxu0 %v426
      %2477 = vmatprep.subr.mxu0 0.0
      %2478 = vmatpush1.msra.mxu0 %v427
      %2479 = vmatprep.subr.mxu0 0.0
      %2480 = vmatpush1.msra.mxu0 %v428
      %2481 = vmatprep.subr.mxu0 0.0
      %2482 = vmatpush1.msra.mxu0 %v429
      %2483 = vmatprep.subr.mxu0 0.0
      %2484 = vmatpush1.msra.mxu0 %v430
      %2485 = vmatprep.subr.mxu0 0.0
      %2486 = vmatpush1.msra.mxu0 %v431
      %2487 = vmatprep.subr.mxu0 0.0
      %2488 = vmatpush1.msra.mxu0 0.0
      %2489 = vmatprep.subr.mxu0 0.0
      %2490 = vmatpush1.msra.mxu0 0.0
      %2491 = vmatprep.subr.mxu0 0.0
      %2492 = vmatpush1.msra.mxu0 0.0
      %2493 = vmatprep.subr.mxu0 0.0
      %2494 = vmatpush1.msra.mxu0 0.0
      %2495 = vmatprep.subr.mxu0 0.0
      %2496 = vmatpush1.msra.mxu0 0.0
      %2497 = vmatprep.subr.mxu0 0.0
      %2498 = vmatpush1.msra.mxu0 0.0
      %2499 = vmatprep.subr.mxu0 0.0
      %2500 = vmatpush1.msra.mxu0 0.0
      %2501 = vmatprep.subr.mxu0 0.0
      %2502 = vmatpush1.msra.mxu0 0.0
      %2503 = vmatprep.subr.mxu0 0.0
      %2504 = vmatpush1.msra.mxu0 0.0
      %2505 = vmatprep.subr.mxu0 0.0
      %2506 = vmatpush1.msra.mxu0 0.0
      %2507 = vmatprep.subr.mxu0 0.0
      %2508 = vmatpush1.msra.mxu0 0.0
      %2509 = vmatprep.subr.mxu0 0.0
      %2510 = vmatpush1.msra.mxu0 0.0
      %2511 = vmatprep.subr.mxu0 0.0
      %2512 = vmatpush1.msra.mxu0 0.0
      %2513 = vmatprep.subr.mxu0 0.0
      %2514 = vmatpush1.msra.mxu0 0.0
      %2515 = vmatprep.subr.mxu0 0.0
      %2516 = vmatpush1.msra.mxu0 0.0
      %2517 = vmatprep.subr.mxu0 0.0
      %2518 = vmatpush1.msra.mxu0 0.0
      %2519 = vmatprep.subr.mxu0 0.0
      %2520 = vmatpush1.msra.mxu0 0.0
      %2521 = vmatprep.subr.mxu0 0.0
      %2522 = vmatpush1.msra.mxu0 0.0
      %2523 = vmatprep.subr.mxu0 0.0
      %2524 = vmatpush1.msra.mxu0 0.0
      %2525 = vmatprep.subr.mxu0 0.0
      %2526 = vmatpush1.msra.mxu0 0.0
      %2527 = vmatprep.subr.mxu0 0.0
      %2528 = vmatpush1.msra.mxu0 0.0
      %2529 = vmatprep.subr.mxu0 0.0
      %2530 = vmatpush1.msra.mxu0 0.0
      %2531 = vmatprep.subr.mxu0 0.0
      %2532 = vmatpush1.msra.mxu0 0.0
      %2533 = vmatprep.subr.mxu0 0.0
      %2534 = vmatpush1.msra.mxu0 0.0
      %2535 = vmatprep.mubr.f32.mxu0 0.0
      %2536 = vmatmul.mubr.f32.gmra.mrb[0].mxu0 %v2469
      %v2537 = vpop.f32.mrb[0].mxu0
      %v2538 = vadd.f32 0.0, %v2537
      %v2539 = vpop.f32.mrb[0].mxu0
      %2540 = vdwg.mxu0
      %v2542 = vsel %vm496, %v200, 0
      %2544 = vmatprep.subr.mxu0 0.0
      %2545 = vmatpush1.msra.mxu0 %v432
      %2546 = vmatprep.subr.mxu0 0.0
      %2547 = vmatpush1.msra.mxu0 %v433
      %2548 = vmatprep.subr.mxu0 0.0
      %2549 = vmatpush1.msra.mxu0 %v434
      %2550 = vmatprep.subr.mxu0 0.0
      %2551 = vmatpush1.msra.mxu0 %v435
      %2552 = vmatprep.subr.mxu0 0.0
      %2553 = vmatpush1.msra.mxu0 %v436
      %2554 = vmatprep.subr.mxu0 0.0
      %2555 = vmatpush1.msra.mxu0 %v437
      %2556 = vmatprep.subr.mxu0 0.0
      %2557 = vmatpush1.msra.mxu0 %v438
      %2558 = vmatprep.subr.mxu0 0.0
      %2559 = vmatpush1.msra.mxu0 %v439
      %2560 = vmatprep.subr.mxu0 0.0
      %2561 = vmatpush1.msra.mxu0 0.0
      %2562 = vmatprep.subr.mxu0 0.0
      %2563 = vmatpush1.msra.mxu0 0.0
      %2564 = vmatprep.subr.mxu0 0.0
      %2565 = vmatpush1.msra.mxu0 0.0
      %2566 = vmatprep.subr.mxu0 0.0
      %2567 = vmatpush1.msra.mxu0 0.0
      %2568 = vmatprep.subr.mxu0 0.0
      %2569 = vmatpush1.msra.mxu0 0.0
      %2570 = vmatprep.subr.mxu0 0.0
      %2571 = vmatpush1.msra.mxu0 0.0
      %2572 = vmatprep.subr.mxu0 0.0
      %2573 = vmatpush1.msra.mxu0 0.0
      %2574 = vmatprep.subr.mxu0 0.0
      %2575 = vmatpush1.msra.mxu0 0.0
      %2576 = vmatprep.subr.mxu0 0.0
      %2577 = vmatpush1.msra.mxu0 0.0
      %2578 = vmatprep.subr.mxu0 0.0
      %2579 = vmatpush1.msra.mxu0 0.0
      %2580 = vmatprep.subr.mxu0 0.0
      %2581 = vmatpush1.msra.mxu0 0.0
      %2582 = vmatprep.subr.mxu0 0.0
      %2583 = vmatpush1.msra.mxu0 0.0
      %2584 = vmatprep.subr.mxu0 0.0
      %2585 = vmatpush1.msra.mxu0 0.0
      %2586 = vmatprep.subr.mxu0 0.0
      %2587 = vmatpush1.msra.mxu0 0.0
      %2588 = vmatprep.subr.mxu0 0.0
      %2589 = vmatpush1.msra.mxu0 0.0
      %2590 = vmatprep.subr.mxu0 0.0
      %2591 = vmatpush1.msra.mxu0 0.0
      %2592 = vmatprep.subr.mxu0 0.0
      %2593 = vmatpush1.msra.mxu0 0.0
      %2594 = vmatprep.subr.mxu0 0.0
      %2595 = vmatpush1.msra.mxu0 0.0
      %2596 = vmatprep.subr.mxu0 0.0
      %2597 = vmatpush1.msra.mxu0 0.0
      %2598 = vmatprep.subr.mxu0 0.0
      %2599 = vmatpush1.msra.mxu0 0.0
      %2600 = vmatprep.subr.mxu0 0.0
      %2601 = vmatpush1.msra.mxu0 0.0
      %2602 = vmatprep.subr.mxu0 0.0
      %2603 = vmatpush1.msra.mxu0 0.0
      %2604 = vmatprep.subr.mxu0 0.0
      %2605 = vmatpush1.msra.mxu0 0.0
      %2606 = vmatprep.subr.mxu0 0.0
      %2607 = vmatpush1.msra.mxu0 0.0
      %2608 = vmatprep.mubr.f32.mxu0 0.0
      %2609 = vmatmul.mubr.f32.gmra.mrb[0].mxu0 %v2542
      %v2610 = vpop.f32.mrb[0].mxu0
      %v2611 = vadd.f32 0.0, %v2610
      %v2612 = vpop.f32.mrb[0].mxu0
      %2613 = vdwg.mxu0
      %v2615 = vsel %vm496, %v201, 0
      %2617 = vmatprep.subr.mxu0 0.0
      %2618 = vmatpush1.msra.mxu0 %v440
      %2619 = vmatprep.subr.mxu0 0.0
      %2620 = vmatpush1.msra.mxu0 %v441
      %2621 = vmatprep.subr.mxu0 0.0
      %2622 = vmatpush1.msra.mxu0 %v442
      %2623 = vmatprep.subr.mxu0 0.0
      %2624 = vmatpush1.msra.mxu0 %v443
      %2625 = vmatprep.subr.mxu0 0.0
      %2626 = vmatpush1.msra.mxu0 %v444
      %2627 = vmatprep.subr.mxu0 0.0
      %2628 = vmatpush1.msra.mxu0 %v445
      %2629 = vmatprep.subr.mxu0 0.0
      %2630 = vmatpush1.msra.mxu0 %v446
      %2631 = vmatprep.subr.mxu0 0.0
      %2632 = vmatpush1.msra.mxu0 %v447
      %2633 = vmatprep.subr.mxu0 0.0
      %2634 = vmatpush1.msra.mxu0 0.0
      %2635 = vmatprep.subr.mxu0 0.0
      %2636 = vmatpush1.msra.mxu0 0.0
      %2637 = vmatprep.subr.mxu0 0.0
      %2638 = vmatpush1.msra.mxu0 0.0
      %2639 = vmatprep.subr.mxu0 0.0
      %2640 = vmatpush1.msra.mxu0 0.0
      %2641 = vmatprep.subr.mxu0 0.0
      %2642 = vmatpush1.msra.mxu0 0.0
      %2643 = vmatprep.subr.mxu0 0.0
      %2644 = vmatpush1.msra.mxu0 0.0
      %2645 = vmatprep.subr.mxu0 0.0
      %2646 = vmatpush1.msra.mxu0 0.0
      %2647 = vmatprep.subr.mxu0 0.0
      %2648 = vmatpush1.msra.mxu0 0.0
      %2649 = vmatprep.subr.mxu0 0.0
      %2650 = vmatpush1.msra.mxu0 0.0
      %2651 = vmatprep.subr.mxu0 0.0
      %2652 = vmatpush1.msra.mxu0 0.0
      %2653 = vmatprep.subr.mxu0 0.0
      %2654 = vmatpush1.msra.mxu0 0.0
      %2655 = vmatprep.subr.mxu0 0.0
      %2656 = vmatpush1.msra.mxu0 0.0
      %2657 = vmatprep.subr.mxu0 0.0
      %2658 = vmatpush1.msra.mxu0 0.0
      %2659 = vmatprep.subr.mxu0 0.0
      %2660 = vmatpush1.msra.mxu0 0.0
      %2661 = vmatprep.subr.mxu0 0.0
      %2662 = vmatpush1.msra.mxu0 0.0
      %2663 = vmatprep.subr.mxu0 0.0
      %2664 = vmatpush1.msra.mxu0 0.0
      %2665 = vmatprep.subr.mxu0 0.0
      %2666 = vmatpush1.msra.mxu0 0.0
      %2667 = vmatprep.subr.mxu0 0.0
      %2668 = vmatpush1.msra.mxu0 0.0
      %2669 = vmatprep.subr.mxu0 0.0
      %2670 = vmatpush1.msra.mxu0 0.0
      %2671 = vmatprep.subr.mxu0 0.0
      %2672 = vmatpush1.msra.mxu0 0.0
      %2673 = vmatprep.subr.mxu0 0.0
      %2674 = vmatpush1.msra.mxu0 0.0
      %2675 = vmatprep.subr.mxu0 0.0
      %2676 = vmatpush1.msra.mxu0 0.0
      %2677 = vmatprep.subr.mxu0 0.0
      %2678 = vmatpush1.msra.mxu0 0.0
      %2679 = vmatprep.subr.mxu0 0.0
      %2680 = vmatpush1.msra.mxu0 0.0
      %2681 = vmatprep.mubr.f32.mxu0 0.0
      %2682 = vmatmul.mubr.f32.gmra.mrb[0].mxu0 %v2615
      %v2683 = vpop.f32.mrb[0].mxu0
      %v2684 = vadd.f32 0.0, %v2683
      %v2685 = vpop.f32.mrb[0].mxu0
      %2686 = vdwg.mxu0
      %v2688 = vsel %vm496, %v202, 0
      %2690 = vmatprep.subr.mxu0 0.0
      %2691 = vmatpush1.msra.mxu0 %v448
      %2692 = vmatprep.subr.mxu0 0.0
      %2693 = vmatpush1.msra.mxu0 %v449
      %2694 = vmatprep.subr.mxu0 0.0
      %2695 = vmatpush1.msra.mxu0 %v450
      %2696 = vmatprep.subr.mxu0 0.0
      %2697 = vmatpush1.msra.mxu0 %v451
      %2698 = vmatprep.subr.mxu0 0.0
      %2699 = vmatpush1.msra.mxu0 %v452
      %2700 = vmatprep.subr.mxu0 0.0
      %2701 = vmatpush1.msra.mxu0 %v453
      %2702 = vmatprep.subr.mxu0 0.0
      %2703 = vmatpush1.msra.mxu0 %v454
      %2704 = vmatprep.subr.mxu0 0.0
      %2705 = vmatpush1.msra.mxu0 %v455
      %2706 = vmatprep.subr.mxu0 0.0
      %2707 = vmatpush1.msra.mxu0 0.0
      %2708 = vmatprep.subr.mxu0 0.0
      %2709 = vmatpush1.msra.mxu0 0.0
      %2710 = vmatprep.subr.mxu0 0.0
      %2711 = vmatpush1.msra.mxu0 0.0
      %2712 = vmatprep.subr.mxu0 0.0
      %2713 = vmatpush1.msra.mxu0 0.0
      %2714 = vmatprep.subr.mxu0 0.0
      %2715 = vmatpush1.msra.mxu0 0.0
      %2716 = vmatprep.subr.mxu0 0.0
      %2717 = vmatpush1.msra.mxu0 0.0
      %2718 = vmatprep.subr.mxu0 0.0
      %2719 = vmatpush1.msra.mxu0 0.0
      %2720 = vmatprep.subr.mxu0 0.0
      %2721 = vmatpush1.msra.mxu0 0.0
      %2722 = vmatprep.subr.mxu0 0.0
      %2723 = vmatpush1.msra.mxu0 0.0
      %2724 = vmatprep.subr.mxu0 0.0
      %2725 = vmatpush1.msra.mxu0 0.0
      %2726 = vmatprep.subr.mxu0 0.0
      %2727 = vmatpush1.msra.mxu0 0.0
      %2728 = vmatprep.subr.mxu0 0.0
      %2729 = vmatpush1.msra.mxu0 0.0
      %2730 = vmatprep.subr.mxu0 0.0
      %2731 = vmatpush1.msra.mxu0 0.0
      %2732 = vmatprep.subr.mxu0 0.0
      %2733 = vmatpush1.msra.mxu0 0.0
      %2734 = vmatprep.subr.mxu0 0.0
      %2735 = vmatpush1.msra.mxu0 0.0
      %2736 = vmatprep.subr.mxu0 0.0
      %2737 = vmatpush1.msra.mxu0 0.0
      %2738 = vmatprep.subr.mxu0 0.0
      %2739 = vmatpush1.msra.mxu0 0.0
      %2740 = vmatprep.subr.mxu0 0.0
      %2741 = vmatpush1.msra.mxu0 0.0
      %2742 = vmatprep.subr.mxu0 0.0
      %2743 = vmatpush1.msra.mxu0 0.0
      %2744 = vmatprep.subr.mxu0 0.0
      %2745 = vmatpush1.msra.mxu0 0.0
      %2746 = vmatprep.subr.mxu0 0.0
      %2747 = vmatpush1.msra.mxu0 0.0
      %2748 = vmatprep.subr.mxu0 0.0
      %2749 = vmatpush1.msra.mxu0 0.0
      %2750 = vmatprep.subr.mxu0 0.0
      %2751 = vmatpush1.msra.mxu0 0.0
      %2752 = vmatprep.subr.mxu0 0.0
      %2753 = vmatpush1.msra.mxu0 0.0
      %2754 = vmatprep.mubr.f32.mxu0 0.0
      %2755 = vmatmul.mubr.f32.gmra.mrb[0].mxu0 %v2688
      %v2756 = vpop.f32.mrb[0].mxu0
      %v2757 = vadd.f32 0.0, %v2756
      %v2758 = vpop.f32.mrb[0].mxu0
      %2759 = vdwg.mxu0
      %v2761 = vsel %vm496, %v203, 0
      %2763 = vmatprep.subr.mxu0 0.0
      %2764 = vmatpush1.msra.mxu0 %v456
      %2765 = vmatprep.subr.mxu0 0.0
      %2766 = vmatpush1.msra.mxu0 %v457
      %2767 = vmatprep.subr.mxu0 0.0
      %2768 = vmatpush1.msra.mxu0 %v458
      %2769 = vmatprep.subr.mxu0 0.0
      %2770 = vmatpush1.msra.mxu0 %v459
      %2771 = vmatprep.subr.mxu0 0.0
      %2772 = vmatpush1.msra.mxu0 %v460
      %2773 = vmatprep.subr.mxu0 0.0
      %2774 = vmatpush1.msra.mxu0 %v461
      %2775 = vmatprep.subr.mxu0 0.0
      %2776 = vmatpush1.msra.mxu0 %v462
      %2777 = vmatprep.subr.mxu0 0.0
      %2778 = vmatpush1.msra.mxu0 %v463
      %2779 = vmatprep.subr.mxu0 0.0
      %2780 = vmatpush1.msra.mxu0 0.0
      %2781 = vmatprep.subr.mxu0 0.0
      %2782 = vmatpush1.msra.mxu0 0.0
      %2783 = vmatprep.subr.mxu0 0.0
      %2784 = vmatpush1.msra.mxu0 0.0
      %2785 = vmatprep.subr.mxu0 0.0
      %2786 = vmatpush1.msra.mxu0 0.0
      %2787 = vmatprep.subr.mxu0 0.0
      %2788 = vmatpush1.msra.mxu0 0.0
      %2789 = vmatprep.subr.mxu0 0.0
      %2790 = vmatpush1.msra.mxu0 0.0
      %2791 = vmatprep.subr.mxu0 0.0
      %2792 = vmatpush1.msra.mxu0 0.0
      %2793 = vmatprep.subr.mxu0 0.0
      %2794 = vmatpush1.msra.mxu0 0.0
      %2795 = vmatprep.subr.mxu0 0.0
      %2796 = vmatpush1.msra.mxu0 0.0
      %2797 = vmatprep.subr.mxu0 0.0
      %2798 = vmatpush1.msra.mxu0 0.0
      %2799 = vmatprep.subr.mxu0 0.0
      %2800 = vmatpush1.msra.mxu0 0.0
      %2801 = vmatprep.subr.mxu0 0.0
      %2802 = vmatpush1.msra.mxu0 0.0
      %2803 = vmatprep.subr.mxu0 0.0
      %2804 = vmatpush1.msra.mxu0 0.0
      %2805 = vmatprep.subr.mxu0 0.0
      %2806 = vmatpush1.msra.mxu0 0.0
      %2807 = vmatprep.subr.mxu0 0.0
      %2808 = vmatpush1.msra.mxu0 0.0
      %2809 = vmatprep.subr.mxu0 0.0
      %2810 = vmatpush1.msra.mxu0 0.0
      %2811 = vmatprep.subr.mxu0 0.0
      %2812 = vmatpush1.msra.mxu0 0.0
      %2813 = vmatprep.subr.mxu0 0.0
      %2814 = vmatpush1.msra.mxu0 0.0
      %2815 = vmatprep.subr.mxu0 0.0
      %2816 = vmatpush1.msra.mxu0 0.0
      %2817 = vmatprep.subr.mxu0 0.0
      %2818 = vmatpush1.msra.mxu0 0.0
      %2819 = vmatprep.subr.mxu0 0.0
      %2820 = vmatpush1.msra.mxu0 0.0
      %2821 = vmatprep.subr.mxu0 0.0
      %2822 = vmatpush1.msra.mxu0 0.0
      %2823 = vmatprep.subr.mxu0 0.0
      %2824 = vmatpush1.msra.mxu0 0.0
      %2825 = vmatprep.subr.mxu0 0.0
      %2826 = vmatpush1.msra.mxu0 0.0
      %2827 = vmatprep.mubr.f32.mxu0 0.0
      %2828 = vmatmul.mubr.f32.gmra.mrb[0].mxu0 %v2761
      %v2829 = vpop.f32.mrb[0].mxu0
      %v2830 = vadd.f32 0.0, %v2829
      %v2831 = vpop.f32.mrb[0].mxu0
      %2832 = vdwg.mxu0
      %v2834 = vsel %vm496, %v204, 0
      %2836 = vmatprep.subr.mxu0 0.0
      %2837 = vmatpush1.msra.mxu0 %v464
      %2838 = vmatprep.subr.mxu0 0.0
      %2839 = vmatpush1.msra.mxu0 %v465
      %2840 = vmatprep.subr.mxu0 0.0
      %2841 = vmatpush1.msra.mxu0 %v466
      %2842 = vmatprep.subr.mxu0 0.0
      %2843 = vmatpush1.msra.mxu0 %v467
      %2844 = vmatprep.subr.mxu0 0.0
      %2845 = vmatpush1.msra.mxu0 %v468
      %2846 = vmatprep.subr.mxu0 0.0
      %2847 = vmatpush1.msra.mxu0 %v469
      %2848 = vmatprep.subr.mxu0 0.0
      %2849 = vmatpush1.msra.mxu0 %v470
      %2850 = vmatprep.subr.mxu0 0.0
      %2851 = vmatpush1.msra.mxu0 %v471
      %2852 = vmatprep.subr.mxu0 0.0
      %2853 = vmatpush1.msra.mxu0 0.0
      %2854 = vmatprep.subr.mxu0 0.0
      %2855 = vmatpush1.msra.mxu0 0.0
      %2856 = vmatprep.subr.mxu0 0.0
      %2857 = vmatpush1.msra.mxu0 0.0
      %2858 = vmatprep.subr.mxu0 0.0
      %2859 = vmatpush1.msra.mxu0 0.0
      %2860 = vmatprep.subr.mxu0 0.0
      %2861 = vmatpush1.msra.mxu0 0.0
      %2862 = vmatprep.subr.mxu0 0.0
      %2863 = vmatpush1.msra.mxu0 0.0
      %2864 = vmatprep.subr.mxu0 0.0
      %2865 = vmatpush1.msra.mxu0 0.0
      %2866 = vmatprep.subr.mxu0 0.0
      %2867 = vmatpush1.msra.mxu0 0.0
      %2868 = vmatprep.subr.mxu0 0.0
      %2869 = vmatpush1.msra.mxu0 0.0
      %2870 = vmatprep.subr.mxu0 0.0
      %2871 = vmatpush1.msra.mxu0 0.0
      %2872 = vmatprep.subr.mxu0 0.0
      %2873 = vmatpush1.msra.mxu0 0.0
      %2874 = vmatprep.subr.mxu0 0.0
      %2875 = vmatpush1.msra.mxu0 0.0
      %2876 = vmatprep.subr.mxu0 0.0
      %2877 = vmatpush1.msra.mxu0 0.0
      %2878 = vmatprep.subr.mxu0 0.0
      %2879 = vmatpush1.msra.mxu0 0.0
      %2880 = vmatprep.subr.mxu0 0.0
      %2881 = vmatpush1.msra.mxu0 0.0
      %2882 = vmatprep.subr.mxu0 0.0
      %2883 = vmatpush1.msra.mxu0 0.0
      %2884 = vmatprep.subr.mxu0 0.0
      %2885 = vmatpush1.msra.mxu0 0.0
      %2886 = vmatprep.subr.mxu0 0.0
      %2887 = vmatpush1.msra.mxu0 0.0
      %2888 = vmatprep.subr.mxu0 0.0
      %2889 = vmatpush1.msra.mxu0 0.0
      %2890 = vmatprep.subr.mxu0 0.0
      %2891 = vmatpush1.msra.mxu0 0.0
      %2892 = vmatprep.subr.mxu0 0.0
      %2893 = vmatpush1.msra.mxu0 0.0
      %2894 = vmatprep.subr.mxu0 0.0
      %2895 = vmatpush1.msra.mxu0 0.0
      %2896 = vmatprep.subr.mxu0 0.0
      %2897 = vmatpush1.msra.mxu0 0.0
      %2898 = vmatprep.subr.mxu0 0.0
      %2899 = vmatpush1.msra.mxu0 0.0
      %2900 = vmatprep.mubr.f32.mxu0 0.0
      %2901 = vmatmul.mubr.f32.gmra.mrb[0].mxu0 %v2834
      %v2902 = vpop.f32.mrb[0].mxu0
      %v2903 = vadd.f32 0.0, %v2902
      %v2904 = vpop.f32.mrb[0].mxu0
      %2905 = vdwg.mxu0
      %v2907 = vsel %vm496, %v205, 0
      %2909 = vmatprep.subr.mxu0 0.0
      %2910 = vmatpush1.msra.mxu0 %v472
      %2911 = vmatprep.subr.mxu0 0.0
      %2912 = vmatpush1.msra.mxu0 %v473
      %2913 = vmatprep.subr.mxu0 0.0
      %2914 = vmatpush1.msra.mxu0 %v474
      %2915 = vmatprep.subr.mxu0 0.0
      %2916 = vmatpush1.msra.mxu0 %v475
      %2917 = vmatprep.subr.mxu0 0.0
      %2918 = vmatpush1.msra.mxu0 %v476
      %2919 = vmatprep.subr.mxu0 0.0
      %2920 = vmatpush1.msra.mxu0 %v477
      %2921 = vmatprep.subr.mxu0 0.0
      %2922 = vmatpush1.msra.mxu0 %v478
      %2923 = vmatprep.subr.mxu0 0.0
      %2924 = vmatpush1.msra.mxu0 %v479
      %2925 = vmatprep.subr.mxu0 0.0
      %2926 = vmatpush1.msra.mxu0 0.0
      %2927 = vmatprep.subr.mxu0 0.0
      %2928 = vmatpush1.msra.mxu0 0.0
      %2929 = vmatprep.subr.mxu0 0.0
      %2930 = vmatpush1.msra.mxu0 0.0
      %2931 = vmatprep.subr.mxu0 0.0
      %2932 = vmatpush1.msra.mxu0 0.0
      %2933 = vmatprep.subr.mxu0 0.0
      %2934 = vmatpush1.msra.mxu0 0.0
      %2935 = vmatprep.subr.mxu0 0.0
      %2936 = vmatpush1.msra.mxu0 0.0
      %2937 = vmatprep.subr.mxu0 0.0
      %2938 = vmatpush1.msra.mxu0 0.0
      %2939 = vmatprep.subr.mxu0 0.0
      %2940 = vmatpush1.msra.mxu0 0.0
      %2941 = vmatprep.subr.mxu0 0.0
      %2942 = vmatpush1.msra.mxu0 0.0
      %2943 = vmatprep.subr.mxu0 0.0
      %2944 = vmatpush1.msra.mxu0 0.0
      %2945 = vmatprep.subr.mxu0 0.0
      %2946 = vmatpush1.msra.mxu0 0.0
      %2947 = vmatprep.subr.mxu0 0.0
      %2948 = vmatpush1.msra.mxu0 0.0
      %2949 = vmatprep.subr.mxu0 0.0
      %2950 = vmatpush1.msra.mxu0 0.0
      %2951 = vmatprep.subr.mxu0 0.0
      %2952 = vmatpush1.msra.mxu0 0.0
      %2953 = vmatprep.subr.mxu0 0.0
      %2954 = vmatpush1.msra.mxu0 0.0
      %2955 = vmatprep.subr.mxu0 0.0
      %2956 = vmatpush1.msra.mxu0 0.0
      %2957 = vmatprep.subr.mxu0 0.0
      %2958 = vmatpush1.msra.mxu0 0.0
      %2959 = vmatprep.subr.mxu0 0.0
      %2960 = vmatpush1.msra.mxu0 0.0
      %2961 = vmatprep.subr.mxu0 0.0
      %2962 = vmatpush1.msra.mxu0 0.0
      %2963 = vmatprep.subr.mxu0 0.0
      %2964 = vmatpush1.msra.mxu0 0.0
      %2965 = vmatprep.subr.mxu0 0.0
      %2966 = vmatpush1.msra.mxu0 0.0
      %2967 = vmatprep.subr.mxu0 0.0
      %2968 = vmatpush1.msra.mxu0 0.0
      %2969 = vmatprep.subr.mxu0 0.0
      %2970 = vmatpush1.msra.mxu0 0.0
      %2971 = vmatprep.subr.mxu0 0.0
      %2972 = vmatpush1.msra.mxu0 0.0
      %2973 = vmatprep.mubr.f32.mxu0 0.0
      %2974 = vmatmul.mubr.f32.gmra.mrb[0].mxu0 %v2907
      %v2975 = vpop.f32.mrb[0].mxu0
      %v2976 = vadd.f32 0.0, %v2975
      %v2977 = vpop.f32.mrb[0].mxu0
      %2978 = vdwg.mxu0
      %v2980 = vsel %vm496, %v206, 0
      %2982 = vmatprep.subr.mxu0 0.0
      %2983 = vmatpush1.msra.mxu0 %v480
      %2984 = vmatprep.subr.mxu0 0.0
      %2985 = vmatpush1.msra.mxu0 %v481
      %2986 = vmatprep.subr.mxu0 0.0
      %2987 = vmatpush1.msra.mxu0 %v482
      %2988 = vmatprep.subr.mxu0 0.0
      %2989 = vmatpush1.msra.mxu0 %v483
      %2990 = vmatprep.subr.mxu0 0.0
      %2991 = vmatpush1.msra.mxu0 %v484
      %2992 = vmatprep.subr.mxu0 0.0
      %2993 = vmatpush1.msra.mxu0 %v485
      %2994 = vmatprep.subr.mxu0 0.0
      %2995 = vmatpush1.msra.mxu0 %v486
      %2996 = vmatprep.subr.mxu0 0.0
      %2997 = vmatpush1.msra.mxu0 %v487
      %2998 = vmatprep.subr.mxu0 0.0
      %2999 = vmatpush1.msra.mxu0 0.0
      %3000 = vmatprep.subr.mxu0 0.0
      %3001 = vmatpush1.msra.mxu0 0.0
      %3002 = vmatprep.subr.mxu0 0.0
      %3003 = vmatpush1.msra.mxu0 0.0
      %3004 = vmatprep.subr.mxu0 0.0
      %3005 = vmatpush1.msra.mxu0 0.0
      %3006 = vmatprep.subr.mxu0 0.0
      %3007 = vmatpush1.msra.mxu0 0.0
      %3008 = vmatprep.subr.mxu0 0.0
      %3009 = vmatpush1.msra.mxu0 0.0
      %3010 = vmatprep.subr.mxu0 0.0
      %3011 = vmatpush1.msra.mxu0 0.0
      %3012 = vmatprep.subr.mxu0 0.0
      %3013 = vmatpush1.msra.mxu0 0.0
      %3014 = vmatprep.subr.mxu0 0.0
      %3015 = vmatpush1.msra.mxu0 0.0
      %3016 = vmatprep.subr.mxu0 0.0
      %3017 = vmatpush1.msra.mxu0 0.0
      %3018 = vmatprep.subr.mxu0 0.0
      %3019 = vmatpush1.msra.mxu0 0.0
      %3020 = vmatprep.subr.mxu0 0.0
      %3021 = vmatpush1.msra.mxu0 0.0
      %3022 = vmatprep.subr.mxu0 0.0
      %3023 = vmatpush1.msra.mxu0 0.0
      %3024 = vmatprep.subr.mxu0 0.0
      %3025 = vmatpush1.msra.mxu0 0.0
      %3026 = vmatprep.subr.mxu0 0.0
      %3027 = vmatpush1.msra.mxu0 0.0
      %3028 = vmatprep.subr.mxu0 0.0
      %3029 = vmatpush1.msra.mxu0 0.0
      %3030 = vmatprep.subr.mxu0 0.0
      %3031 = vmatpush1.msra.mxu0 0.0
      %3032 = vmatprep.subr.mxu0 0.0
      %3033 = vmatpush1.msra.mxu0 0.0
      %3034 = vmatprep.subr.mxu0 0.0
      %3035 = vmatpush1.msra.mxu0 0.0
      %3036 = vmatprep.subr.mxu0 0.0
      %3037 = vmatpush1.msra.mxu0 0.0
      %3038 = vmatprep.subr.mxu0 0.0
      %3039 = vmatpush1.msra.mxu0 0.0
      %3040 = vmatprep.subr.mxu0 0.0
      %3041 = vmatpush1.msra.mxu0 0.0
      %3042 = vmatprep.subr.mxu0 0.0
      %3043 = vmatpush1.msra.mxu0 0.0
      %3044 = vmatprep.subr.mxu0 0.0
      %3045 = vmatpush1.msra.mxu0 0.0
      %3046 = vmatprep.mubr.f32.mxu0 0.0
      %3047 = vmatmul.mubr.f32.gmra.mrb[0].mxu0 %v2980
      %v3048 = vpop.f32.mrb[0].mxu0
      %v3049 = vadd.f32 0.0, %v3048
      %v3050 = vpop.f32.mrb[0].mxu0
      %3051 = vdwg.mxu0
      %v3053 = vsel %vm496, %v207, 0
      %3055 = vmatprep.subr.mxu0 0.0
      %3056 = vmatpush1.msra.mxu0 %v488
      %3057 = vmatprep.subr.mxu0 0.0
      %3058 = vmatpush1.msra.mxu0 %v489
      %3059 = vmatprep.subr.mxu0 0.0
      %3060 = vmatpush1.msra.mxu0 %v490
      %3061 = vmatprep.subr.mxu0 0.0
      %3062 = vmatpush1.msra.mxu0 %v491
      %3063 = vmatprep.subr.mxu0 0.0
      %3064 = vmatpush1.msra.mxu0 %v492
      %3065 = vmatprep.subr.mxu0 0.0
      %3066 = vmatpush1.msra.mxu0 %v493
      %3067 = vmatprep.subr.mxu0 0.0
      %3068 = vmatpush1.msra.mxu0 %v494
      %3069 = vmatprep.subr.mxu0 0.0
      %3070 = vmatpush1.msra.mxu0 %v495
      %3071 = vmatprep.subr.mxu0 0.0
      %3072 = vmatpush1.msra.mxu0 0.0
      %3073 = vmatprep.subr.mxu0 0.0
      %3074 = vmatpush1.msra.mxu0 0.0
      %3075 = vmatprep.subr.mxu0 0.0
      %3076 = vmatpush1.msra.mxu0 0.0
      %3077 = vmatprep.subr.mxu0 0.0
      %3078 = vmatpush1.msra.mxu0 0.0
      %3079 = vmatprep.subr.mxu0 0.0
      %3080 = vmatpush1.msra.mxu0 0.0
      %3081 = vmatprep.subr.mxu0 0.0
      %3082 = vmatpush1.msra.mxu0 0.0
      %3083 = vmatprep.subr.mxu0 0.0
      %3084 = vmatpush1.msra.mxu0 0.0
      %3085 = vmatprep.subr.mxu0 0.0
      %3086 = vmatpush1.msra.mxu0 0.0
      %3087 = vmatprep.subr.mxu0 0.0
      %3088 = vmatpush1.msra.mxu0 0.0
      %3089 = vmatprep.subr.mxu0 0.0
      %3090 = vmatpush1.msra.mxu0 0.0
      %3091 = vmatprep.subr.mxu0 0.0
      %3092 = vmatpush1.msra.mxu0 0.0
      %3093 = vmatprep.subr.mxu0 0.0
      %3094 = vmatpush1.msra.mxu0 0.0
      %3095 = vmatprep.subr.mxu0 0.0
      %3096 = vmatpush1.msra.mxu0 0.0
      %3097 = vmatprep.subr.mxu0 0.0
      %3098 = vmatpush1.msra.mxu0 0.0
      %3099 = vmatprep.subr.mxu0 0.0
      %3100 = vmatpush1.msra.mxu0 0.0
      %3101 = vmatprep.subr.mxu0 0.0
      %3102 = vmatpush1.msra.mxu0 0.0
      %3103 = vmatprep.subr.mxu0 0.0
      %3104 = vmatpush1.msra.mxu0 0.0
      %3105 = vmatprep.subr.mxu0 0.0
      %3106 = vmatpush1.msra.mxu0 0.0
      %3107 = vmatprep.subr.mxu0 0.0
      %3108 = vmatpush1.msra.mxu0 0.0
      %3109 = vmatprep.subr.mxu0 0.0
      %3110 = vmatpush1.msra.mxu0 0.0
      %3111 = vmatprep.subr.mxu0 0.0
      %3112 = vmatpush1.msra.mxu0 0.0
      %3113 = vmatprep.subr.mxu0 0.0
      %3114 = vmatpush1.msra.mxu0 0.0
      %3115 = vmatprep.subr.mxu0 0.0
      %3116 = vmatpush1.msra.mxu0 0.0
      %3117 = vmatprep.subr.mxu0 0.0
      %3118 = vmatpush1.msra.mxu0 0.0
      %3119 = vmatprep.mubr.f32.mxu0 0.0
      %3120 = vmatmul.mubr.f32.gmra.mrb[0].mxu0 %v3053
      %v3121 = vpop.f32.mrb[0].mxu0
      %v3122 = vadd.f32 0.0, %v3121
      %v3123 = vpop.f32.mrb[0].mxu0
      %3124 = vdwg.mxu0
      %vm3125 = vcmask 517120
      %3126 = vst.msk [vmem:[%s170] sm:$0x3] %vm3125, %v567
      %3127 = vst.msk [vmem:[%s170 + $0x2] sm:$0x3] %vm3125, %v640
      %3128 = vst.msk [vmem:[%s170 + $0x4] sm:$0x3] %vm3125, %v713
      %3129 = vst.msk [vmem:[%s170 + $0x6] sm:$0x3] %vm3125, %v786
      %3130 = vst.msk [vmem:[%s170 + $0x8] sm:$0x3] %vm3125, %v859
      %3131 = vst.msk [vmem:[%s170 + $0xa] sm:$0x3] %vm3125, %v932
      %3132 = vst.msk [vmem:[%s170 + $0xc] sm:$0x3] %vm3125, %v1005
      %3133 = vst.msk [vmem:[%s170 + $0xe] sm:$0x3] %vm3125, %v1078
      %3134 = vst.msk [vmem:[%s170 + $0x10] sm:$0x3] %vm3125, %v1151
      %3135 = vst.msk [vmem:[%s170 + $0x12] sm:$0x3] %vm3125, %v1224
      %3136 = vst.msk [vmem:[%s170 + $0x14] sm:$0x3] %vm3125, %v1297
      %3137 = vst.msk [vmem:[%s170 + $0x16] sm:$0x3] %vm3125, %v1370
      %3138 = vst.msk [vmem:[%s170 + $0x18] sm:$0x3] %vm3125, %v1443
      %3139 = vst.msk [vmem:[%s170 + $0x1a] sm:$0x3] %vm3125, %v1516
      %3140 = vst.msk [vmem:[%s170 + $0x1c] sm:$0x3] %vm3125, %v1589
      %3141 = vst.msk [vmem:[%s170 + $0x1e] sm:$0x3] %vm3125, %v1662
      %3142 = vst.msk [vmem:[%s170 + $0x20] sm:$0x3] %vm3125, %v1735
      %3143 = vst.msk [vmem:[%s170 + $0x22] sm:$0x3] %vm3125, %v1808
      %3144 = vst.msk [vmem:[%s170 + $0x24] sm:$0x3] %vm3125, %v1881
      %3145 = vst.msk [vmem:[%s170 + $0x26] sm:$0x3] %vm3125, %v1954
      %3146 = vst.msk [vmem:[%s170 + $0x28] sm:$0x3] %vm3125, %v2027
      %3147 = vst.msk [vmem:[%s170 + $0x2a] sm:$0x3] %vm3125, %v2100
      %3148 = vst.msk [vmem:[%s170 + $0x2c] sm:$0x3] %vm3125, %v2173
      %3149 = vst.msk [vmem:[%s170 + $0x2e] sm:$0x3] %vm3125, %v2246
      %3150 = vst.msk [vmem:[%s170 + $0x30] sm:$0x3] %vm3125, %v2319
      %3151 = vst.msk [vmem:[%s170 + $0x32] sm:$0x3] %vm3125, %v2392
      %3152 = vst.msk [vmem:[%s170 + $0x34] sm:$0x3] %vm3125, %v2465
      %3153 = vst.msk [vmem:[%s170 + $0x36] sm:$0x3] %vm3125, %v2538
      %3154 = vst.msk [vmem:[%s170 + $0x38] sm:$0x3] %vm3125, %v2611
      %3155 = vst.msk [vmem:[%s170 + $0x3a] sm:$0x3] %vm3125, %v2684
      %3156 = vst.msk [vmem:[%s170 + $0x3c] sm:$0x3] %vm3125, %v2757
      %3157 = vst.msk [vmem:[%s170 + $0x3e] sm:$0x3] %vm3125, %v2830
      %3158 = vst.msk [vmem:[%s170 + $0x40] sm:$0x3] %vm3125, %v2903
      %3159 = vst.msk [vmem:[%s170 + $0x42] sm:$0x3] %vm3125, %v2976
      %3160 = vst.msk [vmem:[%s170 + $0x44] sm:$0x3] %vm3125, %v3049
      %3161 = vst.msk [vmem:[%s170 + $0x46] sm:$0x3] %vm3125, %v3122
      %s3162 = smul.u32 36, %s13
      %p3163 = scmp.lt.s32.totalorder %s3162, 71
      %s3164 = scalar_select %p3163, %s3162, 71
      %s3165 = smul.addr %s3164, 2
      %s3166 = scalar_lea.vmem %s2, %s3165
      // Predicated region
      $region29: #{net2d_forward.11} parent=27 // pred_check
        %p3167 = pneg %p83
      $region30: #{net2d_forward.11} parent=27 // pred_check_branch
        %3169 = sbr.rel (%p3167) target = $region32
      $region31: #{net2d_forward.11} parent=27 // pred_region
        %s3170 = smul.u32 36, %s13
      $region32: #{net2d_forward.11} parent=27 // pred_fallthru
        _
    $region28: #{net2d_forward.11} parent=5 // pred_fallthru
      _
    %p3171 = scmp.le.s32.totalorder 2, %s8
    // Predicated region
    $region33: #{net2d_forward.11} parent=5 // pred_check
      %p3172 = pneg %p3171
    $region34: #{net2d_forward.11} parent=5 // pred_check_branch
      %3174 = sbr.rel (%p3172) target = $region36
    $region35: #{net2d_forward.11} parent=5 // pred_region
      %s3175 = ssub.s32 %s8, 2
      // Predicated region
      $region37: #{net2d_forward.11} parent=35 // pred_check
        %p3176 = pneg %p89
      $region38: #{net2d_forward.11} parent=35 // pred_check_branch
        %3178 = sbr.rel (%p3176) target = $region40
      $region39: #{net2d_forward.11} parent=35 // pred_region
        %s3179 = smul.u32 36, %s14
        %p3180 = scmp.lt.s32.totalorder %s3179, 71
        %s3181 = scalar_select %p3180, %s3179, 71
        %s3182 = smul.addr %s3181, 2
        %s3183 = scalar_lea.vmem %s2, %s3182
      $region40: #{net2d_forward.11} parent=35 // pred_fallthru
        _
    $region36: #{net2d_forward.11} parent=5 // pred_fallthru
      _
  $region6: #{net2d_forward.11} parent=0 // loop_footer
    %s12 = sadd.s32 1, %s8
  $region7: #{net2d_forward.11} parent=0 // loop_footer_branch
    %7 = sbr.rel target = $region3
  $region8: #{net2d_forward.11} parent=0 // loop_exit
    _

// kernel: reverse.8
$region0: #{reverse.8}
  #allocation0 [shape = 's32[1]{0}', space=sflag, size = 0x4, scoped, tag = 'scoped memory for reverse.8']
  %s0 = inlined_call_operand.vmem [shape: f32[2,32,16,7], index: 0, kind: input, shape index: {}]
  %s1 = inlined_call_operand.vmem [shape: f32[2,32,16,7], index: 1, kind: output, shape index: {}]
  %s2 = scalar_lea.vmem %s0, 96
  %v3 = vld [vmem:[%s2] sm:$0xff]
  %4 = vst [vmem:[%s1] sm:$0xff] %v3
  %s5 = scalar_lea.vmem %s0, 208
  %v6 = vld [vmem:[%s5] sm:$0xff]
  %s7 = scalar_lea.vmem %s1, 112
  %8 = vst [vmem:[%s7] sm:$0xff] %v6
  %s9 = scalar_lea.vmem %s0, 80
  %v10 = vld [vmem:[%s9] sm:$0xff]
  %s11 = scalar_lea.vmem %s1, 16
  %12 = vst [vmem:[%s11] sm:$0xff] %v10
  %s13 = scalar_lea.vmem %s0, 192
  %v14 = vld [vmem:[%s13] sm:$0xff]
  %s15 = scalar_lea.vmem %s1, 128
  %16 = vst [vmem:[%s15] sm:$0xff] %v14
  %s17 = scalar_lea.vmem %s0, 64
  %v18 = vld [vmem:[%s17] sm:$0xff]
  %s19 = scalar_lea.vmem %s1, 32
  %20 = vst [vmem:[%s19] sm:$0xff] %v18
  %s21 = scalar_lea.vmem %s0, 176
  %v22 = vld [vmem:[%s21] sm:$0xff]
  %s23 = scalar_lea.vmem %s1, 144
  %24 = vst [vmem:[%s23] sm:$0xff] %v22
  %s25 = scalar_lea.vmem %s0, 48
  %v26 = vld [vmem:[%s25] sm:$0xff]
  %s27 = scalar_lea.vmem %s1, 48
  %28 = vst [vmem:[%s27] sm:$0xff] %v26
  %s29 = scalar_lea.vmem %s0, 160
  %v30 = vld [vmem:[%s29] sm:$0xff]
  %s31 = scalar_lea.vmem %s1, 160
  %32 = vst [vmem:[%s31] sm:$0xff] %v30
  %s33 = scalar_lea.vmem %s0, 32
  %v34 = vld [vmem:[%s33] sm:$0xff]
  %s35 = scalar_lea.vmem %s1, 64
  %36 = vst [vmem:[%s35] sm:$0xff] %v34
  %s37 = scalar_lea.vmem %s0, 144
  %v38 = vld [vmem:[%s37] sm:$0xff]
  %s39 = scalar_lea.vmem %s1, 176
  %40 = vst [vmem:[%s39] sm:$0xff] %v38
  %s41 = scalar_lea.vmem %s0, 16
  %v42 = vld [vmem:[%s41] sm:$0xff]
  %s43 = scalar_lea.vmem %s1, 80
  %44 = vst [vmem:[%s43] sm:$0xff] %v42
  %s45 = scalar_lea.vmem %s0, 128
  %v46 = vld [vmem:[%s45] sm:$0xff]
  %s47 = scalar_lea.vmem %s1, 192
  %48 = vst [vmem:[%s47] sm:$0xff] %v46
  %v49 = vld [vmem:[%s0] sm:$0xff]
  %s50 = scalar_lea.vmem %s1, 96
  %51 = vst [vmem:[%s50] sm:$0xff] %v49
  %s52 = scalar_lea.vmem %s0, 112
  %v53 = vld [vmem:[%s52] sm:$0xff]
  %s54 = scalar_lea.vmem %s1, 208
  %55 = vst [vmem:[%s54] sm:$0xff] %v53
  %s56 = scalar_lea.vmem %s0, 104
  %v57 = vld [vmem:[%s56] sm:$0xff]
  %s58 = scalar_lea.vmem %s1, 8
  %59 = vst [vmem:[%s58] sm:$0xff] %v57
  %s60 = scalar_lea.vmem %s0, 216
  %v61 = vld [vmem:[%s60] sm:$0xff]
  %s62 = scalar_lea.vmem %s1, 120
  %63 = vst [vmem:[%s62] sm:$0xff] %v61
  %s64 = scalar_lea.vmem %s0, 88
  %v65 = vld [vmem:[%s64] sm:$0xff]
  %s66 = scalar_lea.vmem %s1, 24
  %67 = vst [vmem:[%s66] sm:$0xff] %v65
  %s68 = scalar_lea.vmem %s0, 200
  %v69 = vld [vmem:[%s68] sm:$0xff]
  %s70 = scalar_lea.vmem %s1, 136
  %71 = vst [vmem:[%s70] sm:$0xff] %v69
  %s72 = scalar_lea.vmem %s0, 72
  %v73 = vld [vmem:[%s72] sm:$0xff]
  %s74 = scalar_lea.vmem %s1, 40
  %75 = vst [vmem:[%s74] sm:$0xff] %v73
  %s76 = scalar_lea.vmem %s0, 184
  %v77 = vld [vmem:[%s76] sm:$0xff]
  %s78 = scalar_lea.vmem %s1, 152
  %79 = vst [vmem:[%s78] sm:$0xff] %v77
  %s80 = scalar_lea.vmem %s0, 56
  %v81 = vld [vmem:[%s80] sm:$0xff]
  %s82 = scalar_lea.vmem %s1, 56
  %83 = vst [vmem:[%s82] sm:$0xff] %v81
  %s84 = scalar_lea.vmem %s0, 168
  %v85 = vld [vmem:[%s84] sm:$0xff]
  %s86 = scalar_lea.vmem %s1, 168
  %87 = vst [vmem:[%s86] sm:$0xff] %v85
  %s88 = scalar_lea.vmem %s0, 40
  %v89 = vld [vmem:[%s88] sm:$0xff]
  %s90 = scalar_lea.vmem %s1, 72
  %91 = vst [vmem:[%s90] sm:$0xff] %v89
  %s92 = scalar_lea.vmem %s0, 152
  %v93 = vld [vmem:[%s92] sm:$0xff]
  %s94 = scalar_lea.vmem %s1, 184
  %95 = vst [vmem:[%s94] sm:$0xff] %v93
  %s96 = scalar_lea.vmem %s0, 24
  %v97 = vld [vmem:[%s96] sm:$0xff]
  %s98 = scalar_lea.vmem %s1, 88
  %99 = vst [vmem:[%s98] sm:$0xff] %v97
  %s100 = scalar_lea.vmem %s0, 136
  %v101 = vld [vmem:[%s100] sm:$0xff]
  %s102 = scalar_lea.vmem %s1, 200
  %103 = vst [vmem:[%s102] sm:$0xff] %v101
  %s104 = scalar_lea.vmem %s0, 8
  %v105 = vld [vmem:[%s104] sm:$0xff]
  %s106 = scalar_lea.vmem %s1, 104
  %107 = vst [vmem:[%s106] sm:$0xff] %v105
  %s108 = scalar_lea.vmem %s0, 120
  %v109 = vld [vmem:[%s108] sm:$0xff]
  %s110 = scalar_lea.vmem %s1, 216
  %111 = vst [vmem:[%s110] sm:$0xff] %v109

// kernel: net2d_forward.12
$region0: #{net2d_forward.12}
  #allocation0 [shape = 'u32[]', space=smem, size = 0x4, offset = 0x4, fixed_abs, tag = 'smem constant byte address 0x4 - core index']
  #allocation1 [shape = 'u32[144,128]{1,0:T(1,128)}', space=vmem, size = 0x12000, scoped, tag = 'internal scratch']
  %s0 = inlined_call_operand.vmem [shape: f32[512,32], index: 0, kind: input, shape index: {}]
  %s1 = inlined_call_operand.vmem [shape: f32[512,32], index: 1, kind: input, shape index: {}]
  %s2 = inlined_call_operand.vmem [shape: f32[32,32], index: 2, kind: input, shape index: {}]
  %s3 = inlined_call_operand.vmem [shape: f32[1,32], index: 3, kind: input, shape index: {}]
  %s4 = inlined_call_operand.vmem [shape: f32[512,32], index: 4, kind: output, shape index: {}]
  %s5 = sld [smem:[#allocation0]]
  $region49: #{net2d_forward.12} parent=0
    _
  %s7 = ssub.s32 1, %s5
  %s8 = scalar_select 0, %s7, %s5
  loop: start=0, step=1, limit=4
  $region2: #{net2d_forward.12} parent=0 // loop_pre_header
    _
  $region3: #{net2d_forward.12} parent=0 // loop_header
    %s10 = sphi 0, %s14
    %p11 = scmp.ge.s32.totalorder %s10, 4
    %s20 = sphi 0, %s22
    %s23 = sphi 0, %s20
    %s24 = sphi 0, %s23
    %s40 = sphi 0, %s24
    %s46 = sphi 0, %s48
    %s49 = sphi 0, %s46
    %s50 = sphi 0, %s49
    %s66 = sphi 0, %s50
    %s70 = sphi 0, %s70
    %s72 = sphi 0, %s70
    %s73 = sphi 0, %s72
    %s87 = sphi 0, %s73
    %s91 = sphi 0, %s91
    %s93 = sphi 0, %s91
    %s94 = sphi 0, %s93
    %s108 = sphi 0, %s94
    %s114 = sphi 0, %s116
    %s117 = sphi 0, %s114
    %s118 = sphi 0, %s117
    %s134 = sphi 0, %s118
  $region4: #{net2d_forward.12} parent=0 // loop_header_branch
    %13 = sbr.rel (%p11) target = $region8
  $region5: #{net2d_forward.12} parent=0 // loop_body
    %s15 = ssub.s32 %s10, 1
    %s16 = ssub.s32 %s10, 2
    %s17 = sadd.s32 %s10, 1
    %s18 = ssub.s32 %s10, %s17
    %p19 = scmp.eq.s32.totalorder %s18, 0
    %s21 = sadd.s32 %s20, 1
    %s22 = scalar_select %p19, %s20, %s21
    %p25 = pneg %p19
    %p26 = scmp.eq.s32.totalorder %s10, 1
    %p27 = por %p25, %p26
    %p28 = scmp.ne.s32.totalorder %s20, %s23
    %p29 = scmp.eq.s32.totalorder %s10, 0
    %p30 = por %p28, %p29
    %p31 = scmp.ne.s32.totalorder %s20, %s23
    %p32 = scmp.eq.s32.totalorder %s15, 1
    %p33 = por %p31, %p32
    %p34 = scmp.ne.s32.totalorder %s23, %s24
    %p35 = scmp.eq.s32.totalorder %s15, 0
    %p36 = por %p34, %p35
    %p37 = scmp.ne.s32.totalorder %s23, %s24
    %p38 = scmp.eq.s32.totalorder %s16, 1
    %p39 = por %p37, %p38
    %p41 = scmp.ne.s32.totalorder %s24, %s40
    %p42 = scmp.eq.s32.totalorder %s16, 0
    %p43 = por %p41, %p42
    %s44 = ssub.s32 %s10, %s17
    %p45 = scmp.eq.s32.totalorder %s44, 0
    %s47 = sadd.s32 %s46, 1
    %s48 = scalar_select %p45, %s46, %s47
    %p51 = pneg %p45
    %p52 = scmp.eq.s32.totalorder %s10, 1
    %p53 = por %p51, %p52
    %p54 = scmp.ne.s32.totalorder %s46, %s49
    %p55 = scmp.eq.s32.totalorder %s10, 0
    %p56 = por %p54, %p55
    %p57 = scmp.ne.s32.totalorder %s46, %s49
    %p58 = scmp.eq.s32.totalorder %s15, 1
    %p59 = por %p57, %p58
    %p60 = scmp.ne.s32.totalorder %s49, %s50
    %p61 = scmp.eq.s32.totalorder %s15, 0
    %p62 = por %p60, %p61
    %p63 = scmp.ne.s32.totalorder %s49, %s50
    %p64 = scmp.eq.s32.totalorder %s16, 1
    %p65 = por %p63, %p64
    %p67 = scmp.ne.s32.totalorder %s50, %s66
    %p68 = scmp.eq.s32.totalorder %s16, 0
    %p69 = por %p67, %p68
    %s71 = sadd.s32 %s70, 1
    %p74 = scmp.eq.s32.totalorder %s10, 1
    %p75 = scmp.ne.s32.totalorder %s70, %s72
    %p76 = scmp.eq.s32.totalorder %s10, 0
    %p77 = por %p75, %p76
    %p78 = scmp.ne.s32.totalorder %s70, %s72
    %p79 = scmp.eq.s32.totalorder %s15, 1
    %p80 = por %p78, %p79
    %p81 = scmp.ne.s32.totalorder %s72, %s73
    %p82 = scmp.eq.s32.totalorder %s15, 0
    %p83 = por %p81, %p82
    %p84 = scmp.ne.s32.totalorder %s72, %s73
    %p85 = scmp.eq.s32.totalorder %s16, 1
    %p86 = por %p84, %p85
    %p88 = scmp.ne.s32.totalorder %s73, %s87
    %p89 = scmp.eq.s32.totalorder %s16, 0
    %p90 = por %p88, %p89
    %s92 = sadd.s32 %s91, 1
    %p95 = scmp.eq.s32.totalorder %s10, 1
    %p96 = scmp.ne.s32.totalorder %s91, %s93
    %p97 = scmp.eq.s32.totalorder %s10, 0
    %p98 = por %p96, %p97
    %p99 = scmp.ne.s32.totalorder %s91, %s93
    %p100 = scmp.eq.s32.totalorder %s15, 1
    %p101 = por %p99, %p100
    %p102 = scmp.ne.s32.totalorder %s93, %s94
    %p103 = scmp.eq.s32.totalorder %s15, 0
    %p104 = por %p102, %p103
    %p105 = scmp.ne.s32.totalorder %s93, %s94
    %p106 = scmp.eq.s32.totalorder %s16, 1
    %p107 = por %p105, %p106
    %p109 = scmp.ne.s32.totalorder %s94, %s108
    %p110 = scmp.eq.s32.totalorder %s16, 0
    %p111 = por %p109, %p110
    %s112 = ssub.s32 %s10, %s17
    %p113 = scmp.eq.s32.totalorder %s112, 0
    %s115 = sadd.s32 %s114, 1
    %s116 = scalar_select %p113, %s114, %s115
    %p119 = pneg %p113
    %p120 = scmp.eq.s32.totalorder %s10, 1
    %p121 = por %p119, %p120
    %p122 = scmp.ne.s32.totalorder %s114, %s117
    %p123 = scmp.eq.s32.totalorder %s10, 0
    %p124 = por %p122, %p123
    %p125 = scmp.ne.s32.totalorder %s114, %s117
    %p126 = scmp.eq.s32.totalorder %s15, 1
    %p127 = por %p125, %p126
    %p128 = scmp.ne.s32.totalorder %s117, %s118
    %p129 = scmp.eq.s32.totalorder %s15, 0
    %p130 = por %p128, %p129
    %p131 = scmp.ne.s32.totalorder %s117, %s118
    %p132 = scmp.eq.s32.totalorder %s16, 1
    %p133 = por %p131, %p132
    %p135 = scmp.ne.s32.totalorder %s118, %s134
    %p136 = scmp.eq.s32.totalorder %s16, 0
    %p137 = por %p135, %p136
    %p138 = scmp.le.s32.totalorder 1, %s10
    %p139 = scmp.lt.s32.totalorder %s10, 3
    %p140 = pnand %p138, %p139
    %p141 = pneg %p140
    // Predicated region
    $region9: #{net2d_forward.12} parent=5 // pred_check
      _
    $region10: #{net2d_forward.12} parent=5 // pred_check_branch
      %143 = sbr.rel (%p140) target = $region12
    $region11: #{net2d_forward.12} parent=5 // pred_region
      %s144 = ssub.s32 %s10, 1
      // Predicated region
      $region13: #{net2d_forward.12} parent=11 // pred_check
        %p145 = pneg %p83
      $region14: #{net2d_forward.12} parent=11 // pred_check_branch
        %147 = sbr.rel (%p145) target = $region16
      $region15: #{net2d_forward.12} parent=11 // pred_region
        _
      $region16: #{net2d_forward.12} parent=11 // pred_fallthru
        _
      // Predicated region
      $region17: #{net2d_forward.12} parent=11 // pred_check
        %p148 = pneg %p104
      $region18: #{net2d_forward.12} parent=11 // pred_check_branch
        %150 = sbr.rel (%p148) target = $region20
      $region19: #{net2d_forward.12} parent=11 // pred_region
        _
      $region20: #{net2d_forward.12} parent=11 // pred_fallthru
        _
    $region12: #{net2d_forward.12} parent=5 // pred_fallthru
      _
    %p151 = scmp.lt.s32.totalorder %s10, 2
    // Predicated region
    $region21: #{net2d_forward.12} parent=5 // pred_check
      %p152 = pneg %p151
    $region22: #{net2d_forward.12} parent=5 // pred_check_branch
      %154 = sbr.rel (%p152) target = $region24
    $region23: #{net2d_forward.12} parent=5 // pred_region
      // Predicated region
      $region25: #{net2d_forward.12} parent=23 // pred_check
        %p155 = pneg %p30
      $region26: #{net2d_forward.12} parent=23 // pred_check_branch
        %157 = sbr.rel (%p155) target = $region28
      $region27: #{net2d_forward.12} parent=23 // pred_region
        %s158 = smul.u32 32, %s10
        %p159 = scmp.lt.s32.totalorder %s158, 63
        %s160 = scalar_select %p159, %s158, 63
        %s161 = smul.addr %s160, 8
        %s162 = scalar_lea.vmem %s0, %s161
        %s163 = smul.u32 32, %s10
      $region28: #{net2d_forward.12} parent=23 // pred_fallthru
        _
      // Predicated region
      $region29: #{net2d_forward.12} parent=23 // pred_check
        %p164 = pneg %p56
      $region30: #{net2d_forward.12} parent=23 // pred_check_branch
        %166 = sbr.rel (%p164) target = $region32
      $region31: #{net2d_forward.12} parent=23 // pred_region
        %s167 = smul.u32 32, %s10
        %p168 = scmp.lt.s32.totalorder %s167, 63
        %s169 = scalar_select %p168, %s167, 63
        %s170 = smul.addr %s169, 8
        %s171 = scalar_lea.vmem %s1, %s170
        %s172 = smul.u32 32, %s10
      $region32: #{net2d_forward.12} parent=23 // pred_fallthru
        _
    $region24: #{net2d_forward.12} parent=5 // pred_fallthru
      _
    %p173 = scmp.le.s32.totalorder 1, %s10
    %p174 = scmp.lt.s32.totalorder %s10, 3
    %p175 = pnand %p173, %p174
    %p176 = pneg %p175
    // Predicated region
    $region33: #{net2d_forward.12} parent=5 // pred_check
      _
    $region34: #{net2d_forward.12} parent=5 // pred_check_branch
      %178 = sbr.rel (%p175) target = $region36
    $region35: #{net2d_forward.12} parent=5 // pred_region
      %s179 = ssub.s32 %s10, 1
      %s180 = smul.u32 32, %s15
      %p181 = scmp.lt.s32.totalorder %s180, 63
      %s182 = scalar_select %p181, %s180, 63
      %s183 = smul.addr %s182, 8
      %s184 = scalar_lea.vmem %s0, %s183
      %p185 = pneg %p36
      %p186 = pneg %p33
      %s187 = smul.u32 32, %s15
      %p188 = scmp.lt.s32.totalorder %s187, 63
      %s189 = scalar_select %p188, %s187, 63
      %s190 = smul.addr %s189, 8
      %s191 = scalar_lea.vmem %s1, %s190
      %p192 = pneg %p62
      %p193 = pneg %p59
      %p194 = pneg %p83
      %p195 = pneg %p80
      %p196 = pneg %p104
      %p197 = pneg %p101
      %p198 = pneg %p130
      %p199 = pneg %p127
      %s200 = smul.u32 32, %s15
      %p201 = scmp.lt.s32.totalorder %s200, 63
      %s202 = scalar_select %p201, %s200, 63
      %s203 = smul.addr %s202, 8
      %s204 = scalar_lea.vmem %s4, %s203
      %s205 = smul.u32 32, %s15
      %p206 = scmp.lt.s32.totalorder %s205, 63
      %s207 = scalar_select %p206, %s205, 63
      %s208 = smul.addr %s207, 8
      %s209 = scalar_lea.vmem %s0, %s208
      %s210 = smul.u32 32, %s15
      %s211 = smul.u32 32, %s15
      %p212 = scmp.lt.s32.totalorder %s211, 63
      %s213 = scalar_select %p212, %s211, 63
      %s214 = smul.addr %s213, 8
      %s215 = scalar_lea.vmem %s1, %s214
      %s216 = smul.u32 32, %s15
      %s217 = smul.u32 32, %s15
      %p218 = scmp.lt.s32.totalorder %s217, 63
      %s219 = scalar_select %p218, %s217, 63
      %s220 = smul.addr %s219, 8
      %s221 = scalar_lea.vmem %s4, %s220
      %s222 = smul.u32 32, %s15
      %v224 = vld [vmem:[%s209] sm:$0xff]
      %v225 = vld [vmem:[%s209 + $0x8] sm:$0xff]
      %v226 = vld [vmem:[%s209 + $0x10] sm:$0xff]
      %v227 = vld [vmem:[%s209 + $0x18] sm:$0xff]
      %v228 = vld [vmem:[%s209 + $0x20] sm:$0xff]
      %v229 = vld [vmem:[%s209 + $0x28] sm:$0xff]
      %v230 = vld [vmem:[%s209 + $0x30] sm:$0xff]
      %v231 = vld [vmem:[%s209 + $0x38] sm:$0xff]
      %v232 = vld [vmem:[%s209 + $0x40] sm:$0xff]
      %v233 = vld [vmem:[%s209 + $0x48] sm:$0xff]
      %v234 = vld [vmem:[%s209 + $0x50] sm:$0xff]
      %v235 = vld [vmem:[%s209 + $0x58] sm:$0xff]
      %v236 = vld [vmem:[%s209 + $0x60] sm:$0xff]
      %v237 = vld [vmem:[%s209 + $0x68] sm:$0xff]
      %v238 = vld [vmem:[%s209 + $0x70] sm:$0xff]
      %v239 = vld [vmem:[%s209 + $0x78] sm:$0xff]
      %v240 = vld [vmem:[%s209 + $0x80] sm:$0xff]
      %v241 = vld [vmem:[%s209 + $0x88] sm:$0xff]
      %v242 = vld [vmem:[%s209 + $0x90] sm:$0xff]
      %v243 = vld [vmem:[%s209 + $0x98] sm:$0xff]
      %v244 = vld [vmem:[%s209 + $0xa0] sm:$0xff]
      %v245 = vld [vmem:[%s209 + $0xa8] sm:$0xff]
      %v246 = vld [vmem:[%s209 + $0xb0] sm:$0xff]
      %v247 = vld [vmem:[%s209 + $0xb8] sm:$0xff]
      %v248 = vld [vmem:[%s209 + $0xc0] sm:$0xff]
      %v249 = vld [vmem:[%s209 + $0xc8] sm:$0xff]
      %v250 = vld [vmem:[%s209 + $0xd0] sm:$0xff]
      %v251 = vld [vmem:[%s209 + $0xd8] sm:$0xff]
      %v252 = vld [vmem:[%s209 + $0xe0] sm:$0xff]
      %v253 = vld [vmem:[%s209 + $0xe8] sm:$0xff]
      %v254 = vld [vmem:[%s209 + $0xf0] sm:$0xff]
      %v255 = vld [vmem:[%s209 + $0xf8] sm:$0xff]
      %v256 = vpack.c.bf16 %v225, %v224
      %v257 = vpack.c.bf16 %v227, %v226
      %v258 = vpack.c.bf16 %v229, %v228
      %v259 = vpack.c.bf16 %v231, %v230
      %v260 = vpack.c.bf16 %v233, %v232
      %v261 = vpack.c.bf16 %v235, %v234
      %v262 = vpack.c.bf16 %v237, %v236
      %v263 = vpack.c.bf16 %v239, %v238
      %v264 = vpack.c.bf16 %v241, %v240
      %v265 = vpack.c.bf16 %v243, %v242
      %v266 = vpack.c.bf16 %v245, %v244
      %v267 = vpack.c.bf16 %v247, %v246
      %v268 = vpack.c.bf16 %v249, %v248
      %v269 = vpack.c.bf16 %v251, %v250
      %v270 = vpack.c.bf16 %v253, %v252
      %v271 = vpack.c.bf16 %v255, %v254
      %v272 = vld [vmem:[%s2] sm:$0xff]
      %v273 = vld [vmem:[%s2 + $0x8] sm:$0xff]
      %v274 = vld [vmem:[%s2 + $0x10] sm:$0xff]
      %v275 = vld [vmem:[%s2 + $0x18] sm:$0xff]
      %v276 = vpack.c.bf16 %v273, %v272
      %v277 = vpack.c.bf16 %v275, %v274
      %v278 = vld [vmem:[%s3] sm:$0x1]
      %v280 = vlaneseq
      %v281 = vshrl.u32 %v280, 7
      %v282 = vsub.s32 0, %v281
      %v283 = vrot.slane %v278, %v282
      %vm285 = vcmask 261120
      %v287 = vsel %vm285, %v256, 0
      %v290 = vsel %vm285, %v257, 0
      %v293 = vsel %vm285, %v258, 0
      %v296 = vsel %vm285, %v259, 0
      %v299 = vsel %vm285, %v260, 0
      %v302 = vsel %vm285, %v261, 0
      %v305 = vsel %vm285, %v262, 0
      %v308 = vsel %vm285, %v263, 0
      %v311 = vsel %vm285, %v264, 0
      %v314 = vsel %vm285, %v265, 0
      %v317 = vsel %vm285, %v266, 0
      %v320 = vsel %vm285, %v267, 0
      %v323 = vsel %vm285, %v268, 0
      %v326 = vsel %vm285, %v269, 0
      %v329 = vsel %vm285, %v270, 0
      %v332 = vsel %vm285, %v271, 0
      %334 = vmatprep.subr.bf16.mxu0 0
      %335 = vmatpush1.bf16.msra.mxu0 %v276
      %336 = vmatprep.subr.bf16.mxu0 0
      %337 = vmatpush1.bf16.msra.mxu0 %v277
      %338 = vmatprep.subr.bf16.mxu0 0
      %339 = vmatpush1.bf16.msra.mxu0 0
      %340 = vmatprep.subr.bf16.mxu0 0
      %341 = vmatpush1.bf16.msra.mxu0 0
      %342 = vmatprep.subr.bf16.mxu0 0
      %343 = vmatpush1.bf16.msra.mxu0 0
      %344 = vmatprep.subr.bf16.mxu0 0
      %345 = vmatpush1.bf16.msra.mxu0 0
      %346 = vmatprep.subr.bf16.mxu0 0
      %347 = vmatpush1.bf16.msra.mxu0 0
      %348 = vmatprep.subr.bf16.mxu0 0
      %349 = vmatpush1.bf16.msra.mxu0 0
      %350 = vmatprep.subr.bf16.mxu0 0
      %351 = vmatpush1.bf16.msra.mxu0 0
      %352 = vmatprep.subr.bf16.mxu0 0
      %353 = vmatpush1.bf16.msra.mxu0 0
      %354 = vmatprep.subr.bf16.mxu0 0
      %355 = vmatpush1.bf16.msra.mxu0 0
      %356 = vmatprep.subr.bf16.mxu0 0
      %357 = vmatpush1.bf16.msra.mxu0 0
      %358 = vmatprep.subr.bf16.mxu0 0
      %359 = vmatpush1.bf16.msra.mxu0 0
      %360 = vmatprep.subr.bf16.mxu0 0
      %361 = vmatpush1.bf16.msra.mxu0 0
      %362 = vmatprep.subr.bf16.mxu0 0
      %363 = vmatpush1.bf16.msra.mxu0 0
      %364 = vmatprep.subr.bf16.mxu0 0
      %365 = vmatpush1.bf16.msra.mxu0 0
      %366 = vmatprep.mubr.bf16.mxu0 0
      %367 = vmatmul.mubr.bf16.gmra.mrb[0].mxu0 %v287
      %v368 = vpop.f32.mrb[0].mxu0
      %v369 = vadd.f32 %v283, %v368
      %v370 = vpop.f32.mrb[0].mxu0
      %v371 = vpop.f32.mrb[0].mxu0
      %v372 = vadd.f32 %v283, %v371
      %v373 = vpop.f32.mrb[0].mxu0
      %374 = vmatprep.mubr.bf16.mxu0 0
      %375 = vmatmul.mubr.bf16.gmra.mrb[0].mxu0 %v290
      %v376 = vpop.f32.mrb[0].mxu0
      %v377 = vadd.f32 %v283, %v376
      %v378 = vpop.f32.mrb[0].mxu0
      %v379 = vpop.f32.mrb[0].mxu0
      %v380 = vadd.f32 %v283, %v379
      %v381 = vpop.f32.mrb[0].mxu0
      %382 = vmatprep.mubr.bf16.mxu0 0
      %383 = vmatmul.mubr.bf16.gmra.mrb[0].mxu0 %v293
      %v384 = vpop.f32.mrb[0].mxu0
      %v385 = vadd.f32 %v283, %v384
      %v386 = vpop.f32.mrb[0].mxu0
      %v387 = vpop.f32.mrb[0].mxu0
      %v388 = vadd.f32 %v283, %v387
      %v389 = vpop.f32.mrb[0].mxu0
      %390 = vmatprep.mubr.bf16.mxu0 0
      %391 = vmatmul.mubr.bf16.gmra.mrb[0].mxu0 %v296
      %v392 = vpop.f32.mrb[0].mxu0
      %v393 = vadd.f32 %v283, %v392
      %v394 = vpop.f32.mrb[0].mxu0
      %v395 = vpop.f32.mrb[0].mxu0
      %v396 = vadd.f32 %v283, %v395
      %v397 = vpop.f32.mrb[0].mxu0
      %398 = vmatprep.mubr.bf16.mxu0 0
      %399 = vmatmul.mubr.bf16.gmra.mrb[0].mxu0 %v299
      %v400 = vpop.f32.mrb[0].mxu0
      %v401 = vadd.f32 %v283, %v400
      %v402 = vpop.f32.mrb[0].mxu0
      %v403 = vpop.f32.mrb[0].mxu0
      %v404 = vadd.f32 %v283, %v403
      %v405 = vpop.f32.mrb[0].mxu0
      %406 = vmatprep.mubr.bf16.mxu0 0
      %407 = vmatmul.mubr.bf16.gmra.mrb[0].mxu0 %v302
      %v408 = vpop.f32.mrb[0].mxu0
      %v409 = vadd.f32 %v283, %v408
      %v410 = vpop.f32.mrb[0].mxu0
      %v411 = vpop.f32.mrb[0].mxu0
      %v412 = vadd.f32 %v283, %v411
      %v413 = vpop.f32.mrb[0].mxu0
      %414 = vmatprep.mubr.bf16.mxu0 0
      %415 = vmatmul.mubr.bf16.gmra.mrb[0].mxu0 %v305
      %v416 = vpop.f32.mrb[0].mxu0
      %v417 = vadd.f32 %v283, %v416
      %v418 = vpop.f32.mrb[0].mxu0
      %v419 = vpop.f32.mrb[0].mxu0
      %v420 = vadd.f32 %v283, %v419
      %v421 = vpop.f32.mrb[0].mxu0
      %422 = vmatprep.mubr.bf16.mxu0 0
      %423 = vmatmul.mubr.bf16.gmra.mrb[0].mxu0 %v308
      %v424 = vpop.f32.mrb[0].mxu0
      %v425 = vadd.f32 %v283, %v424
      %v426 = vpop.f32.mrb[0].mxu0
      %v427 = vpop.f32.mrb[0].mxu0
      %v428 = vadd.f32 %v283, %v427
      %v429 = vpop.f32.mrb[0].mxu0
      %430 = vmatprep.mubr.bf16.mxu0 0
      %431 = vmatmul.mubr.bf16.gmra.mrb[0].mxu0 %v311
      %v432 = vpop.f32.mrb[0].mxu0
      %v433 = vadd.f32 %v283, %v432
      %v434 = vpop.f32.mrb[0].mxu0
      %v435 = vpop.f32.mrb[0].mxu0
      %v436 = vadd.f32 %v283, %v435
      %v437 = vpop.f32.mrb[0].mxu0
      %438 = vmatprep.mubr.bf16.mxu0 0
      %439 = vmatmul.mubr.bf16.gmra.mrb[0].mxu0 %v314
      %v440 = vpop.f32.mrb[0].mxu0
      %v441 = vadd.f32 %v283, %v440
      %v442 = vpop.f32.mrb[0].mxu0
      %v443 = vpop.f32.mrb[0].mxu0
      %v444 = vadd.f32 %v283, %v443
      %v445 = vpop.f32.mrb[0].mxu0
      %446 = vmatprep.mubr.bf16.mxu0 0
      %447 = vmatmul.mubr.bf16.gmra.mrb[0].mxu0 %v317
      %v448 = vpop.f32.mrb[0].mxu0
      %v449 = vadd.f32 %v283, %v448
      %v450 = vpop.f32.mrb[0].mxu0
      %v451 = vpop.f32.mrb[0].mxu0
      %v452 = vadd.f32 %v283, %v451
      %v453 = vpop.f32.mrb[0].mxu0
      %454 = vmatprep.mubr.bf16.mxu0 0
      %455 = vmatmul.mubr.bf16.gmra.mrb[0].mxu0 %v320
      %v456 = vpop.f32.mrb[0].mxu0
      %v457 = vadd.f32 %v283, %v456
      %v458 = vpop.f32.mrb[0].mxu0
      %v459 = vpop.f32.mrb[0].mxu0
      %v460 = vadd.f32 %v283, %v459
      %v461 = vpop.f32.mrb[0].mxu0
      %462 = vmatprep.mubr.bf16.mxu0 0
      %463 = vmatmul.mubr.bf16.gmra.mrb[0].mxu0 %v323
      %v464 = vpop.f32.mrb[0].mxu0
      %v465 = vadd.f32 %v283, %v464
      %v466 = vpop.f32.mrb[0].mxu0
      %v467 = vpop.f32.mrb[0].mxu0
      %v468 = vadd.f32 %v283, %v467
      %v469 = vpop.f32.mrb[0].mxu0
      %470 = vmatprep.mubr.bf16.mxu0 0
      %471 = vmatmul.mubr.bf16.gmra.mrb[0].mxu0 %v326
      %v472 = vpop.f32.mrb[0].mxu0
      %v473 = vadd.f32 %v283, %v472
      %v474 = vpop.f32.mrb[0].mxu0
      %v475 = vpop.f32.mrb[0].mxu0
      %v476 = vadd.f32 %v283, %v475
      %v477 = vpop.f32.mrb[0].mxu0
      %478 = vmatprep.mubr.bf16.mxu0 0
      %479 = vmatmul.mubr.bf16.gmra.mrb[0].mxu0 %v329
      %v480 = vpop.f32.mrb[0].mxu0
      %v481 = vadd.f32 %v283, %v480
      %v482 = vpop.f32.mrb[0].mxu0
      %v483 = vpop.f32.mrb[0].mxu0
      %v484 = vadd.f32 %v283, %v483
      %v485 = vpop.f32.mrb[0].mxu0
      %486 = vmatprep.mubr.bf16.mxu0 0
      %487 = vmatmul.mubr.bf16.gmra.mrb[0].mxu0 %v332
      %v488 = vpop.f32.mrb[0].mxu0
      %v489 = vadd.f32 %v283, %v488
      %v490 = vpop.f32.mrb[0].mxu0
      %v491 = vpop.f32.mrb[0].mxu0
      %v492 = vadd.f32 %v283, %v491
      %v493 = vpop.f32.mrb[0].mxu0
      %494 = vdwg.mxu0
      %v495 = vld [vmem:[%s215] sm:$0xff]
      %v496 = vld [vmem:[%s215 + $0x8] sm:$0xff]
      %v497 = vld [vmem:[%s215 + $0x10] sm:$0xff]
      %v498 = vld [vmem:[%s215 + $0x18] sm:$0xff]
      %v499 = vld [vmem:[%s215 + $0x20] sm:$0xff]
      %v500 = vld [vmem:[%s215 + $0x28] sm:$0xff]
      %v501 = vld [vmem:[%s215 + $0x30] sm:$0xff]
      %v502 = vld [vmem:[%s215 + $0x38] sm:$0xff]
      %v503 = vld [vmem:[%s215 + $0x40] sm:$0xff]
      %v504 = vld [vmem:[%s215 + $0x48] sm:$0xff]
      %v505 = vld [vmem:[%s215 + $0x50] sm:$0xff]
      %v506 = vld [vmem:[%s215 + $0x58] sm:$0xff]
      %v507 = vld [vmem:[%s215 + $0x60] sm:$0xff]
      %v508 = vld [vmem:[%s215 + $0x68] sm:$0xff]
      %v509 = vld [vmem:[%s215 + $0x70] sm:$0xff]
      %v510 = vld [vmem:[%s215 + $0x78] sm:$0xff]
      %v511 = vld [vmem:[%s215 + $0x80] sm:$0xff]
      %v512 = vld [vmem:[%s215 + $0x88] sm:$0xff]
      %v513 = vld [vmem:[%s215 + $0x90] sm:$0xff]
      %v514 = vld [vmem:[%s215 + $0x98] sm:$0xff]
      %v515 = vld [vmem:[%s215 + $0xa0] sm:$0xff]
      %v516 = vld [vmem:[%s215 + $0xa8] sm:$0xff]
      %v517 = vld [vmem:[%s215 + $0xb0] sm:$0xff]
      %v518 = vld [vmem:[%s215 + $0xb8] sm:$0xff]
      %v519 = vld [vmem:[%s215 + $0xc0] sm:$0xff]
      %v520 = vld [vmem:[%s215 + $0xc8] sm:$0xff]
      %v521 = vld [vmem:[%s215 + $0xd0] sm:$0xff]
      %v522 = vld [vmem:[%s215 + $0xd8] sm:$0xff]
      %v523 = vld [vmem:[%s215 + $0xe0] sm:$0xff]
      %v524 = vld [vmem:[%s215 + $0xe8] sm:$0xff]
      %v525 = vld [vmem:[%s215 + $0xf0] sm:$0xff]
      %v526 = vld [vmem:[%s215 + $0xf8] sm:$0xff]
      %v527 = vadd.f32 %v369, %v495
      %v528 = vadd.f32 %v372, %v496
      %v529 = vadd.f32 %v377, %v497
      %v530 = vadd.f32 %v380, %v498
      %v531 = vadd.f32 %v385, %v499
      %v532 = vadd.f32 %v388, %v500
      %v533 = vadd.f32 %v393, %v501
      %v534 = vadd.f32 %v396, %v502
      %v535 = vadd.f32 %v401, %v503
      %v536 = vadd.f32 %v404, %v504
      %v537 = vadd.f32 %v409, %v505
      %v538 = vadd.f32 %v412, %v506
      %v539 = vadd.f32 %v417, %v507
      %v540 = vadd.f32 %v420, %v508
      %v541 = vadd.f32 %v425, %v509
      %v542 = vadd.f32 %v428, %v510
      %v543 = vadd.f32 %v433, %v511
      %v544 = vadd.f32 %v436, %v512
      %v545 = vadd.f32 %v441, %v513
      %v546 = vadd.f32 %v444, %v514
      %v547 = vadd.f32 %v449, %v515
      %v548 = vadd.f32 %v452, %v516
      %v549 = vadd.f32 %v457, %v517
      %v550 = vadd.f32 %v460, %v518
      %v551 = vadd.f32 %v465, %v519
      %v552 = vadd.f32 %v468, %v520
      %v553 = vadd.f32 %v473, %v521
      %v554 = vadd.f32 %v476, %v522
      %v555 = vadd.f32 %v481, %v523
      %v556 = vadd.f32 %v484, %v524
      %v557 = vadd.f32 %v489, %v525
      %v558 = vadd.f32 %v492, %v526
      %v559 = vmax.f32 %v527, 0.0
      %v560 = vmax.f32 %v528, 0.0
      %v561 = vmax.f32 %v529, 0.0
      %v562 = vmax.f32 %v530, 0.0
      %v563 = vmax.f32 %v531, 0.0
      %v564 = vmax.f32 %v532, 0.0
      %v565 = vmax.f32 %v533, 0.0
      %v566 = vmax.f32 %v534, 0.0
      %v567 = vmax.f32 %v535, 0.0
      %v568 = vmax.f32 %v536, 0.0
      %v569 = vmax.f32 %v537, 0.0
      %v570 = vmax.f32 %v538, 0.0
      %v571 = vmax.f32 %v539, 0.0
      %v572 = vmax.f32 %v540, 0.0
      %v573 = vmax.f32 %v541, 0.0
      %v574 = vmax.f32 %v542, 0.0
      %v575 = vmax.f32 %v543, 0.0
      %v576 = vmax.f32 %v544, 0.0
      %v577 = vmax.f32 %v545, 0.0
      %v578 = vmax.f32 %v546, 0.0
      %v579 = vmax.f32 %v547, 0.0
      %v580 = vmax.f32 %v548, 0.0
      %v581 = vmax.f32 %v549, 0.0
      %v582 = vmax.f32 %v550, 0.0
      %v583 = vmax.f32 %v551, 0.0
      %v584 = vmax.f32 %v552, 0.0
      %v585 = vmax.f32 %v553, 0.0
      %v586 = vmax.f32 %v554, 0.0
      %v587 = vmax.f32 %v555, 0.0
      %v588 = vmax.f32 %v556, 0.0
      %v589 = vmax.f32 %v557, 0.0
      %v590 = vmax.f32 %v558, 0.0
      %591 = vst.msk [vmem:[%s221] sm:$0xff] %vm285, %v559
      %592 = vst.msk [vmem:[%s221 + $0x8] sm:$0xff] %vm285, %v560
      %593 = vst.msk [vmem:[%s221 + $0x10] sm:$0xff] %vm285, %v561
      %594 = vst.msk [vmem:[%s221 + $0x18] sm:$0xff] %vm285, %v562
      %595 = vst.msk [vmem:[%s221 + $0x20] sm:$0xff] %vm285, %v563
      %596 = vst.msk [vmem:[%s221 + $0x28] sm:$0xff] %vm285, %v564
      %597 = vst.msk [vmem:[%s221 + $0x30] sm:$0xff] %vm285, %v565
      %598 = vst.msk [vmem:[%s221 + $0x38] sm:$0xff] %vm285, %v566
      %599 = vst.msk [vmem:[%s221 + $0x40] sm:$0xff] %vm285, %v567
      %600 = vst.msk [vmem:[%s221 + $0x48] sm:$0xff] %vm285, %v568
      %601 = vst.msk [vmem:[%s221 + $0x50] sm:$0xff] %vm285, %v569
      %602 = vst.msk [vmem:[%s221 + $0x58] sm:$0xff] %vm285, %v570
      %603 = vst.msk [vmem:[%s221 + $0x60] sm:$0xff] %vm285, %v571
      %604 = vst.msk [vmem:[%s221 + $0x68] sm:$0xff] %vm285, %v572
      %605 = vst.msk [vmem:[%s221 + $0x70] sm:$0xff] %vm285, %v573
      %606 = vst.msk [vmem:[%s221 + $0x78] sm:$0xff] %vm285, %v574
      %607 = vst.msk [vmem:[%s221 + $0x80] sm:$0xff] %vm285, %v575
      %608 = vst.msk [vmem:[%s221 + $0x88] sm:$0xff] %vm285, %v576
      %609 = vst.msk [vmem:[%s221 + $0x90] sm:$0xff] %vm285, %v577
      %610 = vst.msk [vmem:[%s221 + $0x98] sm:$0xff] %vm285, %v578
      %611 = vst.msk [vmem:[%s221 + $0xa0] sm:$0xff] %vm285, %v579
      %612 = vst.msk [vmem:[%s221 + $0xa8] sm:$0xff] %vm285, %v580
      %613 = vst.msk [vmem:[%s221 + $0xb0] sm:$0xff] %vm285, %v581
      %614 = vst.msk [vmem:[%s221 + $0xb8] sm:$0xff] %vm285, %v582
      %615 = vst.msk [vmem:[%s221 + $0xc0] sm:$0xff] %vm285, %v583
      %616 = vst.msk [vmem:[%s221 + $0xc8] sm:$0xff] %vm285, %v584
      %617 = vst.msk [vmem:[%s221 + $0xd0] sm:$0xff] %vm285, %v585
      %618 = vst.msk [vmem:[%s221 + $0xd8] sm:$0xff] %vm285, %v586
      %619 = vst.msk [vmem:[%s221 + $0xe0] sm:$0xff] %vm285, %v587
      %620 = vst.msk [vmem:[%s221 + $0xe8] sm:$0xff] %vm285, %v588
      %621 = vst.msk [vmem:[%s221 + $0xf0] sm:$0xff] %vm285, %v589
      %622 = vst.msk [vmem:[%s221 + $0xf8] sm:$0xff] %vm285, %v590
      %s623 = smul.u32 32, %s15
      %p624 = scmp.lt.s32.totalorder %s623, 63
      %s625 = scalar_select %p624, %s623, 63
      %s626 = smul.addr %s625, 8
      %s627 = scalar_lea.vmem %s4, %s626
      // Predicated region
      $region37: #{net2d_forward.12} parent=35 // pred_check
        %p628 = pneg %p127
      $region38: #{net2d_forward.12} parent=35 // pred_check_branch
        %630 = sbr.rel (%p628) target = $region40
      $region39: #{net2d_forward.12} parent=35 // pred_region
        %s631 = smul.u32 32, %s15
      $region40: #{net2d_forward.12} parent=35 // pred_fallthru
        _
    $region36: #{net2d_forward.12} parent=5 // pred_fallthru
      _
    %p632 = scmp.le.s32.totalorder 2, %s10
    // Predicated region
    $region41: #{net2d_forward.12} parent=5 // pred_check
      %p633 = pneg %p632
    $region42: #{net2d_forward.12} parent=5 // pred_check_branch
      %635 = sbr.rel (%p633) target = $region44
    $region43: #{net2d_forward.12} parent=5 // pred_region
      %s636 = ssub.s32 %s10, 2
      // Predicated region
      $region45: #{net2d_forward.12} parent=43 // pred_check
        %p637 = pneg %p133
      $region46: #{net2d_forward.12} parent=43 // pred_check_branch
        %639 = sbr.rel (%p637) target = $region48
      $region47: #{net2d_forward.12} parent=43 // pred_region
        %s640 = smul.u32 32, %s16
        %p641 = scmp.lt.s32.totalorder %s640, 63
        %s642 = scalar_select %p641, %s640, 63
        %s643 = smul.addr %s642, 8
        %s644 = scalar_lea.vmem %s4, %s643
      $region48: #{net2d_forward.12} parent=43 // pred_fallthru
        _
    $region44: #{net2d_forward.12} parent=5 // pred_fallthru
      _
  $region6: #{net2d_forward.12} parent=0 // loop_footer
    %s14 = sadd.s32 1, %s10
  $region7: #{net2d_forward.12} parent=0 // loop_footer_branch
    %9 = sbr.rel target = $region3
  $region8: #{net2d_forward.12} parent=0 // loop_exit
    _

// kernel: net2d_forward.18
$region0: #{net2d_forward.18}
  #allocation0 [shape = 'u32[]', space=smem, size = 0x4, offset = 0x4, fixed_abs, tag = 'smem constant byte address 0x4 - core index']
  #allocation1 [shape = 'u32[144,128]{1,0:T(1,128)}', space=vmem, size = 0x12000, scoped, tag = 'internal scratch']
  %s0 = inlined_call_operand.vmem [shape: f32[512,32], index: 0, kind: input, shape index: {}]
  %s1 = inlined_call_operand.vmem [shape: f32[512,32], index: 1, kind: input, shape index: {}]
  %s2 = inlined_call_operand.vmem [shape: f32[32,32], index: 2, kind: input, shape index: {}]
  %s3 = inlined_call_operand.vmem [shape: f32[1,32], index: 3, kind: input, shape index: {}]
  %s4 = inlined_call_operand.vmem [shape: f32[512,32], index: 4, kind: output, shape index: {}]
  %s5 = sld [smem:[#allocation0]]
  $region49: #{net2d_forward.18} parent=0
    _
  %s7 = ssub.s32 1, %s5
  %s8 = scalar_select 0, %s7, %s5
  loop: start=0, step=1, limit=4
  $region2: #{net2d_forward.18} parent=0 // loop_pre_header
    _
  $region3: #{net2d_forward.18} parent=0 // loop_header
    %s10 = sphi 0, %s14
    %p11 = scmp.ge.s32.totalorder %s10, 4
    %s20 = sphi 0, %s22
    %s23 = sphi 0, %s20
    %s24 = sphi 0, %s23
    %s40 = sphi 0, %s24
    %s46 = sphi 0, %s48
    %s49 = sphi 0, %s46
    %s50 = sphi 0, %s49
    %s66 = sphi 0, %s50
    %s70 = sphi 0, %s70
    %s72 = sphi 0, %s70
    %s73 = sphi 0, %s72
    %s87 = sphi 0, %s73
    %s91 = sphi 0, %s91
    %s93 = sphi 0, %s91
    %s94 = sphi 0, %s93
    %s108 = sphi 0, %s94
    %s114 = sphi 0, %s116
    %s117 = sphi 0, %s114
    %s118 = sphi 0, %s117
    %s134 = sphi 0, %s118
  $region4: #{net2d_forward.18} parent=0 // loop_header_branch
    %13 = sbr.rel (%p11) target = $region8
  $region5: #{net2d_forward.18} parent=0 // loop_body
    %s15 = ssub.s32 %s10, 1
    %s16 = ssub.s32 %s10, 2
    %s17 = sadd.s32 %s10, 1
    %s18 = ssub.s32 %s10, %s17
    %p19 = scmp.eq.s32.totalorder %s18, 0
    %s21 = sadd.s32 %s20, 1
    %s22 = scalar_select %p19, %s20, %s21
    %p25 = pneg %p19
    %p26 = scmp.eq.s32.totalorder %s10, 1
    %p27 = por %p25, %p26
    %p28 = scmp.ne.s32.totalorder %s20, %s23
    %p29 = scmp.eq.s32.totalorder %s10, 0
    %p30 = por %p28, %p29
    %p31 = scmp.ne.s32.totalorder %s20, %s23
    %p32 = scmp.eq.s32.totalorder %s15, 1
    %p33 = por %p31, %p32
    %p34 = scmp.ne.s32.totalorder %s23, %s24
    %p35 = scmp.eq.s32.totalorder %s15, 0
    %p36 = por %p34, %p35
    %p37 = scmp.ne.s32.totalorder %s23, %s24
    %p38 = scmp.eq.s32.totalorder %s16, 1
    %p39 = por %p37, %p38
    %p41 = scmp.ne.s32.totalorder %s24, %s40
    %p42 = scmp.eq.s32.totalorder %s16, 0
    %p43 = por %p41, %p42
    %s44 = ssub.s32 %s10, %s17
    %p45 = scmp.eq.s32.totalorder %s44, 0
    %s47 = sadd.s32 %s46, 1
    %s48 = scalar_select %p45, %s46, %s47
    %p51 = pneg %p45
    %p52 = scmp.eq.s32.totalorder %s10, 1
    %p53 = por %p51, %p52
    %p54 = scmp.ne.s32.totalorder %s46, %s49
    %p55 = scmp.eq.s32.totalorder %s10, 0
    %p56 = por %p54, %p55
    %p57 = scmp.ne.s32.totalorder %s46, %s49
    %p58 = scmp.eq.s32.totalorder %s15, 1
    %p59 = por %p57, %p58
    %p60 = scmp.ne.s32.totalorder %s49, %s50
    %p61 = scmp.eq.s32.totalorder %s15, 0
    %p62 = por %p60, %p61
    %p63 = scmp.ne.s32.totalorder %s49, %s50
    %p64 = scmp.eq.s32.totalorder %s16, 1
    %p65 = por %p63, %p64
    %p67 = scmp.ne.s32.totalorder %s50, %s66
    %p68 = scmp.eq.s32.totalorder %s16, 0
    %p69 = por %p67, %p68
    %s71 = sadd.s32 %s70, 1
    %p74 = scmp.eq.s32.totalorder %s10, 1
    %p75 = scmp.ne.s32.totalorder %s70, %s72
    %p76 = scmp.eq.s32.totalorder %s10, 0
    %p77 = por %p75, %p76
    %p78 = scmp.ne.s32.totalorder %s70, %s72
    %p79 = scmp.eq.s32.totalorder %s15, 1
    %p80 = por %p78, %p79
    %p81 = scmp.ne.s32.totalorder %s72, %s73
    %p82 = scmp.eq.s32.totalorder %s15, 0
    %p83 = por %p81, %p82
    %p84 = scmp.ne.s32.totalorder %s72, %s73
    %p85 = scmp.eq.s32.totalorder %s16, 1
    %p86 = por %p84, %p85
    %p88 = scmp.ne.s32.totalorder %s73, %s87
    %p89 = scmp.eq.s32.totalorder %s16, 0
    %p90 = por %p88, %p89
    %s92 = sadd.s32 %s91, 1
    %p95 = scmp.eq.s32.totalorder %s10, 1
    %p96 = scmp.ne.s32.totalorder %s91, %s93
    %p97 = scmp.eq.s32.totalorder %s10, 0
    %p98 = por %p96, %p97
    %p99 = scmp.ne.s32.totalorder %s91, %s93
    %p100 = scmp.eq.s32.totalorder %s15, 1
    %p101 = por %p99, %p100
    %p102 = scmp.ne.s32.totalorder %s93, %s94
    %p103 = scmp.eq.s32.totalorder %s15, 0
    %p104 = por %p102, %p103
    %p105 = scmp.ne.s32.totalorder %s93, %s94
    %p106 = scmp.eq.s32.totalorder %s16, 1
    %p107 = por %p105, %p106
    %p109 = scmp.ne.s32.totalorder %s94, %s108
    %p110 = scmp.eq.s32.totalorder %s16, 0
    %p111 = por %p109, %p110
    %s112 = ssub.s32 %s10, %s17
    %p113 = scmp.eq.s32.totalorder %s112, 0
    %s115 = sadd.s32 %s114, 1
    %s116 = scalar_select %p113, %s114, %s115
    %p119 = pneg %p113
    %p120 = scmp.eq.s32.totalorder %s10, 1
    %p121 = por %p119, %p120
    %p122 = scmp.ne.s32.totalorder %s114, %s117
    %p123 = scmp.eq.s32.totalorder %s10, 0
    %p124 = por %p122, %p123
    %p125 = scmp.ne.s32.totalorder %s114, %s117
    %p126 = scmp.eq.s32.totalorder %s15, 1
    %p127 = por %p125, %p126
    %p128 = scmp.ne.s32.totalorder %s117, %s118
    %p129 = scmp.eq.s32.totalorder %s15, 0
    %p130 = por %p128, %p129
    %p131 = scmp.ne.s32.totalorder %s117, %s118
    %p132 = scmp.eq.s32.totalorder %s16, 1
    %p133 = por %p131, %p132
    %p135 = scmp.ne.s32.totalorder %s118, %s134
    %p136 = scmp.eq.s32.totalorder %s16, 0
    %p137 = por %p135, %p136
    %p138 = scmp.le.s32.totalorder 1, %s10
    %p139 = scmp.lt.s32.totalorder %s10, 3
    %p140 = pnand %p138, %p139
    %p141 = pneg %p140
    // Predicated region
    $region9: #{net2d_forward.18} parent=5 // pred_check
      _
    $region10: #{net2d_forward.18} parent=5 // pred_check_branch
      %143 = sbr.rel (%p140) target = $region12
    $region11: #{net2d_forward.18} parent=5 // pred_region
      %s144 = ssub.s32 %s10, 1
      // Predicated region
      $region13: #{net2d_forward.18} parent=11 // pred_check
        %p145 = pneg %p83
      $region14: #{net2d_forward.18} parent=11 // pred_check_branch
        %147 = sbr.rel (%p145) target = $region16
      $region15: #{net2d_forward.18} parent=11 // pred_region
        _
      $region16: #{net2d_forward.18} parent=11 // pred_fallthru
        _
      // Predicated region
      $region17: #{net2d_forward.18} parent=11 // pred_check
        %p148 = pneg %p104
      $region18: #{net2d_forward.18} parent=11 // pred_check_branch
        %150 = sbr.rel (%p148) target = $region20
      $region19: #{net2d_forward.18} parent=11 // pred_region
        _
      $region20: #{net2d_forward.18} parent=11 // pred_fallthru
        _
    $region12: #{net2d_forward.18} parent=5 // pred_fallthru
      _
    %p151 = scmp.lt.s32.totalorder %s10, 2
    // Predicated region
    $region21: #{net2d_forward.18} parent=5 // pred_check
      %p152 = pneg %p151
    $region22: #{net2d_forward.18} parent=5 // pred_check_branch
      %154 = sbr.rel (%p152) target = $region24
    $region23: #{net2d_forward.18} parent=5 // pred_region
      // Predicated region
      $region25: #{net2d_forward.18} parent=23 // pred_check
        %p155 = pneg %p30
      $region26: #{net2d_forward.18} parent=23 // pred_check_branch
        %157 = sbr.rel (%p155) target = $region28
      $region27: #{net2d_forward.18} parent=23 // pred_region
        %s158 = smul.u32 32, %s10
        %p159 = scmp.lt.s32.totalorder %s158, 63
        %s160 = scalar_select %p159, %s158, 63
        %s161 = smul.addr %s160, 8
        %s162 = scalar_lea.vmem %s0, %s161
        %s163 = smul.u32 32, %s10
      $region28: #{net2d_forward.18} parent=23 // pred_fallthru
        _
      // Predicated region
      $region29: #{net2d_forward.18} parent=23 // pred_check
        %p164 = pneg %p56
      $region30: #{net2d_forward.18} parent=23 // pred_check_branch
        %166 = sbr.rel (%p164) target = $region32
      $region31: #{net2d_forward.18} parent=23 // pred_region
        %s167 = smul.u32 32, %s10
        %p168 = scmp.lt.s32.totalorder %s167, 63
        %s169 = scalar_select %p168, %s167, 63
        %s170 = smul.addr %s169, 8
        %s171 = scalar_lea.vmem %s1, %s170
        %s172 = smul.u32 32, %s10
      $region32: #{net2d_forward.18} parent=23 // pred_fallthru
        _
    $region24: #{net2d_forward.18} parent=5 // pred_fallthru
      _
    %p173 = scmp.le.s32.totalorder 1, %s10
    %p174 = scmp.lt.s32.totalorder %s10, 3
    %p175 = pnand %p173, %p174
    %p176 = pneg %p175
    // Predicated region
    $region33: #{net2d_forward.18} parent=5 // pred_check
      _
    $region34: #{net2d_forward.18} parent=5 // pred_check_branch
      %178 = sbr.rel (%p175) target = $region36
    $region35: #{net2d_forward.18} parent=5 // pred_region
      %s179 = ssub.s32 %s10, 1
      %s180 = smul.u32 32, %s15
      %p181 = scmp.lt.s32.totalorder %s180, 63
      %s182 = scalar_select %p181, %s180, 63
      %s183 = smul.addr %s182, 8
      %s184 = scalar_lea.vmem %s0, %s183
      %p185 = pneg %p36
      %p186 = pneg %p33
      %s187 = smul.u32 32, %s15
      %p188 = scmp.lt.s32.totalorder %s187, 63
      %s189 = scalar_select %p188, %s187, 63
      %s190 = smul.addr %s189, 8
      %s191 = scalar_lea.vmem %s1, %s190
      %p192 = pneg %p62
      %p193 = pneg %p59
      %p194 = pneg %p83
      %p195 = pneg %p80
      %p196 = pneg %p104
      %p197 = pneg %p101
      %p198 = pneg %p130
      %p199 = pneg %p127
      %s200 = smul.u32 32, %s15
      %p201 = scmp.lt.s32.totalorder %s200, 63
      %s202 = scalar_select %p201, %s200, 63
      %s203 = smul.addr %s202, 8
      %s204 = scalar_lea.vmem %s4, %s203
      %s205 = smul.u32 32, %s15
      %p206 = scmp.lt.s32.totalorder %s205, 63
      %s207 = scalar_select %p206, %s205, 63
      %s208 = smul.addr %s207, 8
      %s209 = scalar_lea.vmem %s0, %s208
      %s210 = smul.u32 32, %s15
      %s211 = smul.u32 32, %s15
      %p212 = scmp.lt.s32.totalorder %s211, 63
      %s213 = scalar_select %p212, %s211, 63
      %s214 = smul.addr %s213, 8
      %s215 = scalar_lea.vmem %s1, %s214
      %s216 = smul.u32 32, %s15
      %s217 = smul.u32 32, %s15
      %p218 = scmp.lt.s32.totalorder %s217, 63
      %s219 = scalar_select %p218, %s217, 63
      %s220 = smul.addr %s219, 8
      %s221 = scalar_lea.vmem %s4, %s220
      %s222 = smul.u32 32, %s15
      %v224 = vld [vmem:[%s209] sm:$0xff]
      %v225 = vld [vmem:[%s209 + $0x8] sm:$0xff]
      %v226 = vld [vmem:[%s209 + $0x10] sm:$0xff]
      %v227 = vld [vmem:[%s209 + $0x18] sm:$0xff]
      %v228 = vld [vmem:[%s209 + $0x20] sm:$0xff]
      %v229 = vld [vmem:[%s209 + $0x28] sm:$0xff]
      %v230 = vld [vmem:[%s209 + $0x30] sm:$0xff]
      %v231 = vld [vmem:[%s209 + $0x38] sm:$0xff]
      %v232 = vld [vmem:[%s209 + $0x40] sm:$0xff]
      %v233 = vld [vmem:[%s209 + $0x48] sm:$0xff]
      %v234 = vld [vmem:[%s209 + $0x50] sm:$0xff]
      %v235 = vld [vmem:[%s209 + $0x58] sm:$0xff]
      %v236 = vld [vmem:[%s209 + $0x60] sm:$0xff]
      %v237 = vld [vmem:[%s209 + $0x68] sm:$0xff]
      %v238 = vld [vmem:[%s209 + $0x70] sm:$0xff]
      %v239 = vld [vmem:[%s209 + $0x78] sm:$0xff]
      %v240 = vld [vmem:[%s209 + $0x80] sm:$0xff]
      %v241 = vld [vmem:[%s209 + $0x88] sm:$0xff]
      %v242 = vld [vmem:[%s209 + $0x90] sm:$0xff]
      %v243 = vld [vmem:[%s209 + $0x98] sm:$0xff]
      %v244 = vld [vmem:[%s209 + $0xa0] sm:$0xff]
      %v245 = vld [vmem:[%s209 + $0xa8] sm:$0xff]
      %v246 = vld [vmem:[%s209 + $0xb0] sm:$0xff]
      %v247 = vld [vmem:[%s209 + $0xb8] sm:$0xff]
      %v248 = vld [vmem:[%s209 + $0xc0] sm:$0xff]
      %v249 = vld [vmem:[%s209 + $0xc8] sm:$0xff]
      %v250 = vld [vmem:[%s209 + $0xd0] sm:$0xff]
      %v251 = vld [vmem:[%s209 + $0xd8] sm:$0xff]
      %v252 = vld [vmem:[%s209 + $0xe0] sm:$0xff]
      %v253 = vld [vmem:[%s209 + $0xe8] sm:$0xff]
      %v254 = vld [vmem:[%s209 + $0xf0] sm:$0xff]
      %v255 = vld [vmem:[%s209 + $0xf8] sm:$0xff]
      %v256 = vpack.c.bf16 %v225, %v224
      %v257 = vpack.c.bf16 %v227, %v226
      %v258 = vpack.c.bf16 %v229, %v228
      %v259 = vpack.c.bf16 %v231, %v230
      %v260 = vpack.c.bf16 %v233, %v232
      %v261 = vpack.c.bf16 %v235, %v234
      %v262 = vpack.c.bf16 %v237, %v236
      %v263 = vpack.c.bf16 %v239, %v238
      %v264 = vpack.c.bf16 %v241, %v240
      %v265 = vpack.c.bf16 %v243, %v242
      %v266 = vpack.c.bf16 %v245, %v244
      %v267 = vpack.c.bf16 %v247, %v246
      %v268 = vpack.c.bf16 %v249, %v248
      %v269 = vpack.c.bf16 %v251, %v250
      %v270 = vpack.c.bf16 %v253, %v252
      %v271 = vpack.c.bf16 %v255, %v254
      %v272 = vld [vmem:[%s2] sm:$0xff]
      %v273 = vld [vmem:[%s2 + $0x8] sm:$0xff]
      %v274 = vld [vmem:[%s2 + $0x10] sm:$0xff]
      %v275 = vld [vmem:[%s2 + $0x18] sm:$0xff]
      %v276 = vpack.c.bf16 %v273, %v272
      %v277 = vpack.c.bf16 %v275, %v274
      %v278 = vld [vmem:[%s3] sm:$0x1]
      %v280 = vlaneseq
      %v281 = vshrl.u32 %v280, 7
      %v282 = vsub.s32 0, %v281
      %v283 = vrot.slane %v278, %v282
      %vm285 = vcmask 261120
      %v287 = vsel %vm285, %v256, 0
      %v290 = vsel %vm285, %v257, 0
      %v293 = vsel %vm285, %v258, 0
      %v296 = vsel %vm285, %v259, 0
      %v299 = vsel %vm285, %v260, 0
      %v302 = vsel %vm285, %v261, 0
      %v305 = vsel %vm285, %v262, 0
      %v308 = vsel %vm285, %v263, 0
      %v311 = vsel %vm285, %v264, 0
      %v314 = vsel %vm285, %v265, 0
      %v317 = vsel %vm285, %v266, 0
      %v320 = vsel %vm285, %v267, 0
      %v323 = vsel %vm285, %v268, 0
      %v326 = vsel %vm285, %v269, 0
      %v329 = vsel %vm285, %v270, 0
      %v332 = vsel %vm285, %v271, 0
      %334 = vmatprep.subr.bf16.mxu0 0
      %335 = vmatpush1.bf16.msra.mxu0 %v276
      %336 = vmatprep.subr.bf16.mxu0 0
      %337 = vmatpush1.bf16.msra.mxu0 %v277
      %338 = vmatprep.subr.bf16.mxu0 0
      %339 = vmatpush1.bf16.msra.mxu0 0
      %340 = vmatprep.subr.bf16.mxu0 0
      %341 = vmatpush1.bf16.msra.mxu0 0
      %342 = vmatprep.subr.bf16.mxu0 0
      %343 = vmatpush1.bf16.msra.mxu0 0
      %344 = vmatprep.subr.bf16.mxu0 0
      %345 = vmatpush1.bf16.msra.mxu0 0
      %346 = vmatprep.subr.bf16.mxu0 0
      %347 = vmatpush1.bf16.msra.mxu0 0
      %348 = vmatprep.subr.bf16.mxu0 0
      %349 = vmatpush1.bf16.msra.mxu0 0
      %350 = vmatprep.subr.bf16.mxu0 0
      %351 = vmatpush1.bf16.msra.mxu0 0
      %352 = vmatprep.subr.bf16.mxu0 0
      %353 = vmatpush1.bf16.msra.mxu0 0
      %354 = vmatprep.subr.bf16.mxu0 0
      %355 = vmatpush1.bf16.msra.mxu0 0
      %356 = vmatprep.subr.bf16.mxu0 0
      %357 = vmatpush1.bf16.msra.mxu0 0
      %358 = vmatprep.subr.bf16.mxu0 0
      %359 = vmatpush1.bf16.msra.mxu0 0
      %360 = vmatprep.subr.bf16.mxu0 0
      %361 = vmatpush1.bf16.msra.mxu0 0
      %362 = vmatprep.subr.bf16.mxu0 0
      %363 = vmatpush1.bf16.msra.mxu0 0
      %364 = vmatprep.subr.bf16.mxu0 0
      %365 = vmatpush1.bf16.msra.mxu0 0
      %366 = vmatprep.mubr.bf16.mxu0 0
      %367 = vmatmul.mubr.bf16.gmra.mrb[0].mxu0 %v287
      %v368 = vpop.f32.mrb[0].mxu0
      %v369 = vadd.f32 %v283, %v368
      %v370 = vpop.f32.mrb[0].mxu0
      %v371 = vpop.f32.mrb[0].mxu0
      %v372 = vadd.f32 %v283, %v371
      %v373 = vpop.f32.mrb[0].mxu0
      %374 = vmatprep.mubr.bf16.mxu0 0
      %375 = vmatmul.mubr.bf16.gmra.mrb[0].mxu0 %v290
      %v376 = vpop.f32.mrb[0].mxu0
      %v377 = vadd.f32 %v283, %v376
      %v378 = vpop.f32.mrb[0].mxu0
      %v379 = vpop.f32.mrb[0].mxu0
      %v380 = vadd.f32 %v283, %v379
      %v381 = vpop.f32.mrb[0].mxu0
      %382 = vmatprep.mubr.bf16.mxu0 0
      %383 = vmatmul.mubr.bf16.gmra.mrb[0].mxu0 %v293
      %v384 = vpop.f32.mrb[0].mxu0
      %v385 = vadd.f32 %v283, %v384
      %v386 = vpop.f32.mrb[0].mxu0
      %v387 = vpop.f32.mrb[0].mxu0
      %v388 = vadd.f32 %v283, %v387
      %v389 = vpop.f32.mrb[0].mxu0
      %390 = vmatprep.mubr.bf16.mxu0 0
      %391 = vmatmul.mubr.bf16.gmra.mrb[0].mxu0 %v296
      %v392 = vpop.f32.mrb[0].mxu0
      %v393 = vadd.f32 %v283, %v392
      %v394 = vpop.f32.mrb[0].mxu0
      %v395 = vpop.f32.mrb[0].mxu0
      %v396 = vadd.f32 %v283, %v395
      %v397 = vpop.f32.mrb[0].mxu0
      %398 = vmatprep.mubr.bf16.mxu0 0
      %399 = vmatmul.mubr.bf16.gmra.mrb[0].mxu0 %v299
      %v400 = vpop.f32.mrb[0].mxu0
      %v401 = vadd.f32 %v283, %v400
      %v402 = vpop.f32.mrb[0].mxu0
      %v403 = vpop.f32.mrb[0].mxu0
      %v404 = vadd.f32 %v283, %v403
      %v405 = vpop.f32.mrb[0].mxu0
      %406 = vmatprep.mubr.bf16.mxu0 0
      %407 = vmatmul.mubr.bf16.gmra.mrb[0].mxu0 %v302
      %v408 = vpop.f32.mrb[0].mxu0
      %v409 = vadd.f32 %v283, %v408
      %v410 = vpop.f32.mrb[0].mxu0
      %v411 = vpop.f32.mrb[0].mxu0
      %v412 = vadd.f32 %v283, %v411
      %v413 = vpop.f32.mrb[0].mxu0
      %414 = vmatprep.mubr.bf16.mxu0 0
      %415 = vmatmul.mubr.bf16.gmra.mrb[0].mxu0 %v305
      %v416 = vpop.f32.mrb[0].mxu0
      %v417 = vadd.f32 %v283, %v416
      %v418 = vpop.f32.mrb[0].mxu0
      %v419 = vpop.f32.mrb[0].mxu0
      %v420 = vadd.f32 %v283, %v419
      %v421 = vpop.f32.mrb[0].mxu0
      %422 = vmatprep.mubr.bf16.mxu0 0
      %423 = vmatmul.mubr.bf16.gmra.mrb[0].mxu0 %v308
      %v424 = vpop.f32.mrb[0].mxu0
      %v425 = vadd.f32 %v283, %v424
      %v426 = vpop.f32.mrb[0].mxu0
      %v427 = vpop.f32.mrb[0].mxu0
      %v428 = vadd.f32 %v283, %v427
      %v429 = vpop.f32.mrb[0].mxu0
      %430 = vmatprep.mubr.bf16.mxu0 0
      %431 = vmatmul.mubr.bf16.gmra.mrb[0].mxu0 %v311
      %v432 = vpop.f32.mrb[0].mxu0
      %v433 = vadd.f32 %v283, %v432
      %v434 = vpop.f32.mrb[0].mxu0
      %v435 = vpop.f32.mrb[0].mxu0
      %v436 = vadd.f32 %v283, %v435
      %v437 = vpop.f32.mrb[0].mxu0
      %438 = vmatprep.mubr.bf16.mxu0 0
      %439 = vmatmul.mubr.bf16.gmra.mrb[0].mxu0 %v314
      %v440 = vpop.f32.mrb[0].mxu0
      %v441 = vadd.f32 %v283, %v440
      %v442 = vpop.f32.mrb[0].mxu0
      %v443 = vpop.f32.mrb[0].mxu0
      %v444 = vadd.f32 %v283, %v443
      %v445 = vpop.f32.mrb[0].mxu0
      %446 = vmatprep.mubr.bf16.mxu0 0
      %447 = vmatmul.mubr.bf16.gmra.mrb[0].mxu0 %v317
      %v448 = vpop.f32.mrb[0].mxu0
      %v449 = vadd.f32 %v283, %v448
      %v450 = vpop.f32.mrb[0].mxu0
      %v451 = vpop.f32.mrb[0].mxu0
      %v452 = vadd.f32 %v283, %v451
      %v453 = vpop.f32.mrb[0].mxu0
      %454 = vmatprep.mubr.bf16.mxu0 0
      %455 = vmatmul.mubr.bf16.gmra.mrb[0].mxu0 %v320
      %v456 = vpop.f32.mrb[0].mxu0
      %v457 = vadd.f32 %v283, %v456
      %v458 = vpop.f32.mrb[0].mxu0
      %v459 = vpop.f32.mrb[0].mxu0
      %v460 = vadd.f32 %v283, %v459
      %v461 = vpop.f32.mrb[0].mxu0
      %462 = vmatprep.mubr.bf16.mxu0 0
      %463 = vmatmul.mubr.bf16.gmra.mrb[0].mxu0 %v323
      %v464 = vpop.f32.mrb[0].mxu0
      %v465 = vadd.f32 %v283, %v464
      %v466 = vpop.f32.mrb[0].mxu0
      %v467 = vpop.f32.mrb[0].mxu0
      %v468 = vadd.f32 %v283, %v467
      %v469 = vpop.f32.mrb[0].mxu0
      %470 = vmatprep.mubr.bf16.mxu0 0
      %471 = vmatmul.mubr.bf16.gmra.mrb[0].mxu0 %v326
      %v472 = vpop.f32.mrb[0].mxu0
      %v473 = vadd.f32 %v283, %v472
      %v474 = vpop.f32.mrb[0].mxu0
      %v475 = vpop.f32.mrb[0].mxu0
      %v476 = vadd.f32 %v283, %v475
      %v477 = vpop.f32.mrb[0].mxu0
      %478 = vmatprep.mubr.bf16.mxu0 0
      %479 = vmatmul.mubr.bf16.gmra.mrb[0].mxu0 %v329
      %v480 = vpop.f32.mrb[0].mxu0
      %v481 = vadd.f32 %v283, %v480
      %v482 = vpop.f32.mrb[0].mxu0
      %v483 = vpop.f32.mrb[0].mxu0
      %v484 = vadd.f32 %v283, %v483
      %v485 = vpop.f32.mrb[0].mxu0
      %486 = vmatprep.mubr.bf16.mxu0 0
      %487 = vmatmul.mubr.bf16.gmra.mrb[0].mxu0 %v332
      %v488 = vpop.f32.mrb[0].mxu0
      %v489 = vadd.f32 %v283, %v488
      %v490 = vpop.f32.mrb[0].mxu0
      %v491 = vpop.f32.mrb[0].mxu0
      %v492 = vadd.f32 %v283, %v491
      %v493 = vpop.f32.mrb[0].mxu0
      %494 = vdwg.mxu0
      %v495 = vld [vmem:[%s215] sm:$0xff]
      %v496 = vld [vmem:[%s215 + $0x8] sm:$0xff]
      %v497 = vld [vmem:[%s215 + $0x10] sm:$0xff]
      %v498 = vld [vmem:[%s215 + $0x18] sm:$0xff]
      %v499 = vld [vmem:[%s215 + $0x20] sm:$0xff]
      %v500 = vld [vmem:[%s215 + $0x28] sm:$0xff]
      %v501 = vld [vmem:[%s215 + $0x30] sm:$0xff]
      %v502 = vld [vmem:[%s215 + $0x38] sm:$0xff]
      %v503 = vld [vmem:[%s215 + $0x40] sm:$0xff]
      %v504 = vld [vmem:[%s215 + $0x48] sm:$0xff]
      %v505 = vld [vmem:[%s215 + $0x50] sm:$0xff]
      %v506 = vld [vmem:[%s215 + $0x58] sm:$0xff]
      %v507 = vld [vmem:[%s215 + $0x60] sm:$0xff]
      %v508 = vld [vmem:[%s215 + $0x68] sm:$0xff]
      %v509 = vld [vmem:[%s215 + $0x70] sm:$0xff]
      %v510 = vld [vmem:[%s215 + $0x78] sm:$0xff]
      %v511 = vld [vmem:[%s215 + $0x80] sm:$0xff]
      %v512 = vld [vmem:[%s215 + $0x88] sm:$0xff]
      %v513 = vld [vmem:[%s215 + $0x90] sm:$0xff]
      %v514 = vld [vmem:[%s215 + $0x98] sm:$0xff]
      %v515 = vld [vmem:[%s215 + $0xa0] sm:$0xff]
      %v516 = vld [vmem:[%s215 + $0xa8] sm:$0xff]
      %v517 = vld [vmem:[%s215 + $0xb0] sm:$0xff]
      %v518 = vld [vmem:[%s215 + $0xb8] sm:$0xff]
      %v519 = vld [vmem:[%s215 + $0xc0] sm:$0xff]
      %v520 = vld [vmem:[%s215 + $0xc8] sm:$0xff]
      %v521 = vld [vmem:[%s215 + $0xd0] sm:$0xff]
      %v522 = vld [vmem:[%s215 + $0xd8] sm:$0xff]
      %v523 = vld [vmem:[%s215 + $0xe0] sm:$0xff]
      %v524 = vld [vmem:[%s215 + $0xe8] sm:$0xff]
      %v525 = vld [vmem:[%s215 + $0xf0] sm:$0xff]
      %v526 = vld [vmem:[%s215 + $0xf8] sm:$0xff]
      %v527 = vadd.f32 %v369, %v495
      %v528 = vadd.f32 %v372, %v496
      %v529 = vadd.f32 %v377, %v497
      %v530 = vadd.f32 %v380, %v498
      %v531 = vadd.f32 %v385, %v499
      %v532 = vadd.f32 %v388, %v500
      %v533 = vadd.f32 %v393, %v501
      %v534 = vadd.f32 %v396, %v502
      %v535 = vadd.f32 %v401, %v503
      %v536 = vadd.f32 %v404, %v504
      %v537 = vadd.f32 %v409, %v505
      %v538 = vadd.f32 %v412, %v506
      %v539 = vadd.f32 %v417, %v507
      %v540 = vadd.f32 %v420, %v508
      %v541 = vadd.f32 %v425, %v509
      %v542 = vadd.f32 %v428, %v510
      %v543 = vadd.f32 %v433, %v511
      %v544 = vadd.f32 %v436, %v512
      %v545 = vadd.f32 %v441, %v513
      %v546 = vadd.f32 %v444, %v514
      %v547 = vadd.f32 %v449, %v515
      %v548 = vadd.f32 %v452, %v516
      %v549 = vadd.f32 %v457, %v517
      %v550 = vadd.f32 %v460, %v518
      %v551 = vadd.f32 %v465, %v519
      %v552 = vadd.f32 %v468, %v520
      %v553 = vadd.f32 %v473, %v521
      %v554 = vadd.f32 %v476, %v522
      %v555 = vadd.f32 %v481, %v523
      %v556 = vadd.f32 %v484, %v524
      %v557 = vadd.f32 %v489, %v525
      %v558 = vadd.f32 %v492, %v526
      %559 = vst.msk [vmem:[%s221] sm:$0xff] %vm285, %v527
      %560 = vst.msk [vmem:[%s221 + $0x8] sm:$0xff] %vm285, %v528
      %561 = vst.msk [vmem:[%s221 + $0x10] sm:$0xff] %vm285, %v529
      %562 = vst.msk [vmem:[%s221 + $0x18] sm:$0xff] %vm285, %v530
      %563 = vst.msk [vmem:[%s221 + $0x20] sm:$0xff] %vm285, %v531
      %564 = vst.msk [vmem:[%s221 + $0x28] sm:$0xff] %vm285, %v532
      %565 = vst.msk [vmem:[%s221 + $0x30] sm:$0xff] %vm285, %v533
      %566 = vst.msk [vmem:[%s221 + $0x38] sm:$0xff] %vm285, %v534
      %567 = vst.msk [vmem:[%s221 + $0x40] sm:$0xff] %vm285, %v535
      %568 = vst.msk [vmem:[%s221 + $0x48] sm:$0xff] %vm285, %v536
      %569 = vst.msk [vmem:[%s221 + $0x50] sm:$0xff] %vm285, %v537
      %570 = vst.msk [vmem:[%s221 + $0x58] sm:$0xff] %vm285, %v538
      %571 = vst.msk [vmem:[%s221 + $0x60] sm:$0xff] %vm285, %v539
      %572 = vst.msk [vmem:[%s221 + $0x68] sm:$0xff] %vm285, %v540
      %573 = vst.msk [vmem:[%s221 + $0x70] sm:$0xff] %vm285, %v541
      %574 = vst.msk [vmem:[%s221 + $0x78] sm:$0xff] %vm285, %v542
      %575 = vst.msk [vmem:[%s221 + $0x80] sm:$0xff] %vm285, %v543
      %576 = vst.msk [vmem:[%s221 + $0x88] sm:$0xff] %vm285, %v544
      %577 = vst.msk [vmem:[%s221 + $0x90] sm:$0xff] %vm285, %v545
      %578 = vst.msk [vmem:[%s221 + $0x98] sm:$0xff] %vm285, %v546
      %579 = vst.msk [vmem:[%s221 + $0xa0] sm:$0xff] %vm285, %v547
      %580 = vst.msk [vmem:[%s221 + $0xa8] sm:$0xff] %vm285, %v548
      %581 = vst.msk [vmem:[%s221 + $0xb0] sm:$0xff] %vm285, %v549
      %582 = vst.msk [vmem:[%s221 + $0xb8] sm:$0xff] %vm285, %v550
      %583 = vst.msk [vmem:[%s221 + $0xc0] sm:$0xff] %vm285, %v551
      %584 = vst.msk [vmem:[%s221 + $0xc8] sm:$0xff] %vm285, %v552
      %585 = vst.msk [vmem:[%s221 + $0xd0] sm:$0xff] %vm285, %v553
      %586 = vst.msk [vmem:[%s221 + $0xd8] sm:$0xff] %vm285, %v554
      %587 = vst.msk [vmem:[%s221 + $0xe0] sm:$0xff] %vm285, %v555
      %588 = vst.msk [vmem:[%s221 + $0xe8] sm:$0xff] %vm285, %v556
      %589 = vst.msk [vmem:[%s221 + $0xf0] sm:$0xff] %vm285, %v557
      %590 = vst.msk [vmem:[%s221 + $0xf8] sm:$0xff] %vm285, %v558
      %s591 = smul.u32 32, %s15
      %p592 = scmp.lt.s32.totalorder %s591, 63
      %s593 = scalar_select %p592, %s591, 63
      %s594 = smul.addr %s593, 8
      %s595 = scalar_lea.vmem %s4, %s594
      // Predicated region
      $region37: #{net2d_forward.18} parent=35 // pred_check
        %p596 = pneg %p127
      $region38: #{net2d_forward.18} parent=35 // pred_check_branch
        %598 = sbr.rel (%p596) target = $region40
      $region39: #{net2d_forward.18} parent=35 // pred_region
        %s599 = smul.u32 32, %s15
      $region40: #{net2d_forward.18} parent=35 // pred_fallthru
        _
    $region36: #{net2d_forward.18} parent=5 // pred_fallthru
      _
    %p600 = scmp.le.s32.totalorder 2, %s10
    // Predicated region
    $region41: #{net2d_forward.18} parent=5 // pred_check
      %p601 = pneg %p600
    $region42: #{net2d_forward.18} parent=5 // pred_check_branch
      %603 = sbr.rel (%p601) target = $region44
    $region43: #{net2d_forward.18} parent=5 // pred_region
      %s604 = ssub.s32 %s10, 2
      // Predicated region
      $region45: #{net2d_forward.18} parent=43 // pred_check
        %p605 = pneg %p133
      $region46: #{net2d_forward.18} parent=43 // pred_check_branch
        %607 = sbr.rel (%p605) target = $region48
      $region47: #{net2d_forward.18} parent=43 // pred_region
        %s608 = smul.u32 32, %s16
        %p609 = scmp.lt.s32.totalorder %s608, 63
        %s610 = scalar_select %p609, %s608, 63
        %s611 = smul.addr %s610, 8
        %s612 = scalar_lea.vmem %s4, %s611
      $region48: #{net2d_forward.18} parent=43 // pred_fallthru
        _
    $region44: #{net2d_forward.18} parent=5 // pred_fallthru
      _
  $region6: #{net2d_forward.18} parent=0 // loop_footer
    %s14 = sadd.s32 1, %s10
  $region7: #{net2d_forward.18} parent=0 // loop_footer_branch
    %9 = sbr.rel target = $region3
  $region8: #{net2d_forward.18} parent=0 // loop_exit
    _

// kernel: net2d_forward.19
$region0: #{net2d_forward.19}
  #allocation0 [shape = 'u32[]', space=smem, size = 0x4, offset = 0x4, fixed_abs, tag = 'smem constant byte address 0x4 - core index']
  #allocation1 [shape = 'u32[144,128]{1,0:T(1,128)}', space=vmem, size = 0x12000, scoped, tag = 'internal scratch']
  #allocation2 [shape = 'f32[1,1]{1,0:T(1,128)S(1)}', space=vmem, size = 0x200, scoped, tag = 'scoped memory for net2d_forward.19']
  %s0 = inlined_call_operand.vmem [shape: f32[512,32], index: 0, kind: input, shape index: {}]
  %s1 = inlined_call_operand.vmem [shape: f32[32,128], index: 1, kind: input, shape index: {}]
  %s2 = inlined_call_operand.vmem [shape: f32[1,128], index: 2, kind: input, shape index: {}]
  %s3 = inlined_call_operand.vmem [shape: f32[128,1], index: 3, kind: input, shape index: {}]
  %s4 = inlined_call_operand.<no memory space> [shape: f32[1,1], index: 4, kind: input, shape index: {}]
  %s5 = inlined_call_operand.vmem [shape: f32[512,1], index: 5, kind: output, shape index: {}]
  %s6 = sld [smem:[#allocation0]]
  $region53: #{net2d_forward.19} parent=0
    _
  %s8 = ssub.s32 1, %s6
  %s9 = scalar_select 0, %s8, %s6
  %v10 = vstv %s4
  %11 = vst [vmem:[#allocation2] sm:$0x1] %v10
  loop: start=0, step=1, limit=4
  $region2: #{net2d_forward.19} parent=0 // loop_pre_header
    _
  $region3: #{net2d_forward.19} parent=0 // loop_header
    %s13 = sphi 0, %s17
    %p14 = scmp.ge.s32.totalorder %s13, 4
    %s23 = sphi 0, %s25
    %s26 = sphi 0, %s23
    %s27 = sphi 0, %s26
    %s43 = sphi 0, %s27
    %s47 = sphi 0, %s47
    %s49 = sphi 0, %s47
    %s50 = sphi 0, %s49
    %s64 = sphi 0, %s50
    %s68 = sphi 0, %s68
    %s70 = sphi 0, %s68
    %s71 = sphi 0, %s70
    %s85 = sphi 0, %s71
    %s89 = sphi 0, %s89
    %s91 = sphi 0, %s89
    %s92 = sphi 0, %s91
    %s106 = sphi 0, %s92
    %s110 = sphi 0, %s110
    %s112 = sphi 0, %s110
    %s113 = sphi 0, %s112
    %s127 = sphi 0, %s113
    %s133 = sphi 0, %s135
    %s136 = sphi 0, %s133
    %s137 = sphi 0, %s136
    %s153 = sphi 0, %s137
  $region4: #{net2d_forward.19} parent=0 // loop_header_branch
    %16 = sbr.rel (%p14) target = $region8
  $region5: #{net2d_forward.19} parent=0 // loop_body
    %s18 = ssub.s32 %s13, 1
    %s19 = ssub.s32 %s13, 2
    %s20 = sadd.s32 %s13, 1
    %s21 = ssub.s32 %s13, %s20
    %p22 = scmp.eq.s32.totalorder %s21, 0
    %s24 = sadd.s32 %s23, 1
    %s25 = scalar_select %p22, %s23, %s24
    %p28 = pneg %p22
    %p29 = scmp.eq.s32.totalorder %s13, 1
    %p30 = por %p28, %p29
    %p31 = scmp.ne.s32.totalorder %s23, %s26
    %p32 = scmp.eq.s32.totalorder %s13, 0
    %p33 = por %p31, %p32
    %p34 = scmp.ne.s32.totalorder %s23, %s26
    %p35 = scmp.eq.s32.totalorder %s18, 1
    %p36 = por %p34, %p35
    %p37 = scmp.ne.s32.totalorder %s26, %s27
    %p38 = scmp.eq.s32.totalorder %s18, 0
    %p39 = por %p37, %p38
    %p40 = scmp.ne.s32.totalorder %s26, %s27
    %p41 = scmp.eq.s32.totalorder %s19, 1
    %p42 = por %p40, %p41
    %p44 = scmp.ne.s32.totalorder %s27, %s43
    %p45 = scmp.eq.s32.totalorder %s19, 0
    %p46 = por %p44, %p45
    %s48 = sadd.s32 %s47, 1
    %p51 = scmp.eq.s32.totalorder %s13, 1
    %p52 = scmp.ne.s32.totalorder %s47, %s49
    %p53 = scmp.eq.s32.totalorder %s13, 0
    %p54 = por %p52, %p53
    %p55 = scmp.ne.s32.totalorder %s47, %s49
    %p56 = scmp.eq.s32.totalorder %s18, 1
    %p57 = por %p55, %p56
    %p58 = scmp.ne.s32.totalorder %s49, %s50
    %p59 = scmp.eq.s32.totalorder %s18, 0
    %p60 = por %p58, %p59
    %p61 = scmp.ne.s32.totalorder %s49, %s50
    %p62 = scmp.eq.s32.totalorder %s19, 1
    %p63 = por %p61, %p62
    %p65 = scmp.ne.s32.totalorder %s50, %s64
    %p66 = scmp.eq.s32.totalorder %s19, 0
    %p67 = por %p65, %p66
    %s69 = sadd.s32 %s68, 1
    %p72 = scmp.eq.s32.totalorder %s13, 1
    %p73 = scmp.ne.s32.totalorder %s68, %s70
    %p74 = scmp.eq.s32.totalorder %s13, 0
    %p75 = por %p73, %p74
    %p76 = scmp.ne.s32.totalorder %s68, %s70
    %p77 = scmp.eq.s32.totalorder %s18, 1
    %p78 = por %p76, %p77
    %p79 = scmp.ne.s32.totalorder %s70, %s71
    %p80 = scmp.eq.s32.totalorder %s18, 0
    %p81 = por %p79, %p80
    %p82 = scmp.ne.s32.totalorder %s70, %s71
    %p83 = scmp.eq.s32.totalorder %s19, 1
    %p84 = por %p82, %p83
    %p86 = scmp.ne.s32.totalorder %s71, %s85
    %p87 = scmp.eq.s32.totalorder %s19, 0
    %p88 = por %p86, %p87
    %s90 = sadd.s32 %s89, 1
    %p93 = scmp.eq.s32.totalorder %s13, 1
    %p94 = scmp.ne.s32.totalorder %s89, %s91
    %p95 = scmp.eq.s32.totalorder %s13, 0
    %p96 = por %p94, %p95
    %p97 = scmp.ne.s32.totalorder %s89, %s91
    %p98 = scmp.eq.s32.totalorder %s18, 1
    %p99 = por %p97, %p98
    %p100 = scmp.ne.s32.totalorder %s91, %s92
    %p101 = scmp.eq.s32.totalorder %s18, 0
    %p102 = por %p100, %p101
    %p103 = scmp.ne.s32.totalorder %s91, %s92
    %p104 = scmp.eq.s32.totalorder %s19, 1
    %p105 = por %p103, %p104
    %p107 = scmp.ne.s32.totalorder %s92, %s106
    %p108 = scmp.eq.s32.totalorder %s19, 0
    %p109 = por %p107, %p108
    %s111 = sadd.s32 %s110, 1
    %p114 = scmp.eq.s32.totalorder %s13, 1
    %p115 = scmp.ne.s32.totalorder %s110, %s112
    %p116 = scmp.eq.s32.totalorder %s13, 0
    %p117 = por %p115, %p116
    %p118 = scmp.ne.s32.totalorder %s110, %s112
    %p119 = scmp.eq.s32.totalorder %s18, 1
    %p120 = por %p118, %p119
    %p121 = scmp.ne.s32.totalorder %s112, %s113
    %p122 = scmp.eq.s32.totalorder %s18, 0
    %p123 = por %p121, %p122
    %p124 = scmp.ne.s32.totalorder %s112, %s113
    %p125 = scmp.eq.s32.totalorder %s19, 1
    %p126 = por %p124, %p125
    %p128 = scmp.ne.s32.totalorder %s113, %s127
    %p129 = scmp.eq.s32.totalorder %s19, 0
    %p130 = por %p128, %p129
    %s131 = ssub.s32 %s13, %s20
    %p132 = scmp.eq.s32.totalorder %s131, 0
    %s134 = sadd.s32 %s133, 1
    %s135 = scalar_select %p132, %s133, %s134
    %p138 = pneg %p132
    %p139 = scmp.eq.s32.totalorder %s13, 1
    %p140 = por %p138, %p139
    %p141 = scmp.ne.s32.totalorder %s133, %s136
    %p142 = scmp.eq.s32.totalorder %s13, 0
    %p143 = por %p141, %p142
    %p144 = scmp.ne.s32.totalorder %s133, %s136
    %p145 = scmp.eq.s32.totalorder %s18, 1
    %p146 = por %p144, %p145
    %p147 = scmp.ne.s32.totalorder %s136, %s137
    %p148 = scmp.eq.s32.totalorder %s18, 0
    %p149 = por %p147, %p148
    %p150 = scmp.ne.s32.totalorder %s136, %s137
    %p151 = scmp.eq.s32.totalorder %s19, 1
    %p152 = por %p150, %p151
    %p154 = scmp.ne.s32.totalorder %s137, %s153
    %p155 = scmp.eq.s32.totalorder %s19, 0
    %p156 = por %p154, %p155
    %p157 = scmp.le.s32.totalorder 1, %s13
    %p158 = scmp.lt.s32.totalorder %s13, 3
    %p159 = pnand %p157, %p158
    %p160 = pneg %p159
    // Predicated region
    $region9: #{net2d_forward.19} parent=5 // pred_check
      _
    $region10: #{net2d_forward.19} parent=5 // pred_check_branch
      %162 = sbr.rel (%p159) target = $region12
    $region11: #{net2d_forward.19} parent=5 // pred_region
      %s163 = ssub.s32 %s13, 1
      // Predicated region
      $region13: #{net2d_forward.19} parent=11 // pred_check
        %p164 = pneg %p60
      $region14: #{net2d_forward.19} parent=11 // pred_check_branch
        %166 = sbr.rel (%p164) target = $region16
      $region15: #{net2d_forward.19} parent=11 // pred_region
        _
      $region16: #{net2d_forward.19} parent=11 // pred_fallthru
        _
      // Predicated region
      $region17: #{net2d_forward.19} parent=11 // pred_check
        %p167 = pneg %p81
      $region18: #{net2d_forward.19} parent=11 // pred_check_branch
        %169 = sbr.rel (%p167) target = $region20
      $region19: #{net2d_forward.19} parent=11 // pred_region
        _
      $region20: #{net2d_forward.19} parent=11 // pred_fallthru
        _
      // Predicated region
      $region21: #{net2d_forward.19} parent=11 // pred_check
        %p170 = pneg %p102
      $region22: #{net2d_forward.19} parent=11 // pred_check_branch
        %172 = sbr.rel (%p170) target = $region24
      $region23: #{net2d_forward.19} parent=11 // pred_region
        _
      $region24: #{net2d_forward.19} parent=11 // pred_fallthru
        _
      // Predicated region
      $region25: #{net2d_forward.19} parent=11 // pred_check
        %p173 = pneg %p123
      $region26: #{net2d_forward.19} parent=11 // pred_check_branch
        %175 = sbr.rel (%p173) target = $region28
      $region27: #{net2d_forward.19} parent=11 // pred_region
        _
      $region28: #{net2d_forward.19} parent=11 // pred_fallthru
        _
    $region12: #{net2d_forward.19} parent=5 // pred_fallthru
      _
    %p176 = scmp.lt.s32.totalorder %s13, 2
    // Predicated region
    $region29: #{net2d_forward.19} parent=5 // pred_check
      %p177 = pneg %p176
    $region30: #{net2d_forward.19} parent=5 // pred_check_branch
      %179 = sbr.rel (%p177) target = $region32
    $region31: #{net2d_forward.19} parent=5 // pred_region
      // Predicated region
      $region33: #{net2d_forward.19} parent=31 // pred_check
        %p180 = pneg %p33
      $region34: #{net2d_forward.19} parent=31 // pred_check_branch
        %182 = sbr.rel (%p180) target = $region36
      $region35: #{net2d_forward.19} parent=31 // pred_region
        %s183 = smul.u32 32, %s13
        %p184 = scmp.lt.s32.totalorder %s183, 63
        %s185 = scalar_select %p184, %s183, 63
        %s186 = smul.addr %s185, 8
        %s187 = scalar_lea.vmem %s0, %s186
        %s188 = smul.u32 32, %s13
      $region36: #{net2d_forward.19} parent=31 // pred_fallthru
        _
    $region32: #{net2d_forward.19} parent=5 // pred_fallthru
      _
    %p189 = scmp.le.s32.totalorder 1, %s13
    %p190 = scmp.lt.s32.totalorder %s13, 3
    %p191 = pnand %p189, %p190
    %p192 = pneg %p191
    // Predicated region
    $region37: #{net2d_forward.19} parent=5 // pred_check
      _
    $region38: #{net2d_forward.19} parent=5 // pred_check_branch
      %194 = sbr.rel (%p191) target = $region40
    $region39: #{net2d_forward.19} parent=5 // pred_region
      %s195 = ssub.s32 %s13, 1
      %s196 = smul.u32 32, %s18
      %p197 = scmp.lt.s32.totalorder %s196, 63
      %s198 = scalar_select %p197, %s196, 63
      %s199 = smul.addr %s198, 8
      %s200 = scalar_lea.vmem %s0, %s199
      %p201 = pneg %p39
      %p202 = pneg %p36
      %p203 = pneg %p60
      %p204 = pneg %p57
      %p205 = pneg %p81
      %p206 = pneg %p78
      %p207 = pneg %p102
      %p208 = pneg %p99
      %p209 = pneg %p123
      %p210 = pneg %p120
      %p211 = pneg %p149
      %p212 = pneg %p146
      %s213 = smul.u32 32, %s18
      %p214 = scmp.lt.s32.totalorder %s213, 63
      %s215 = scalar_select %p214, %s213, 63
      %s216 = smul.addr %s215, 8
      %s217 = scalar_lea.vmem %s5, %s216
      %s218 = smul.u32 32, %s18
      %p219 = scmp.lt.s32.totalorder %s218, 63
      %s220 = scalar_select %p219, %s218, 63
      %s221 = smul.addr %s220, 8
      %s222 = scalar_lea.vmem %s0, %s221
      %s223 = smul.u32 32, %s18
      %s224 = smul.u32 32, %s18
      %p225 = scmp.lt.s32.totalorder %s224, 63
      %s226 = scalar_select %p225, %s224, 63
      %s227 = smul.addr %s226, 8
      %s228 = scalar_lea.vmem %s5, %s227
      %s229 = smul.u32 32, %s18
      %v231 = vld [vmem:[%s222] sm:$0xff]
      %v232 = vld [vmem:[%s222 + $0x8] sm:$0xff]
      %v233 = vld [vmem:[%s222 + $0x10] sm:$0xff]
      %v234 = vld [vmem:[%s222 + $0x18] sm:$0xff]
      %v235 = vld [vmem:[%s222 + $0x20] sm:$0xff]
      %v236 = vld [vmem:[%s222 + $0x28] sm:$0xff]
      %v237 = vld [vmem:[%s222 + $0x30] sm:$0xff]
      %v238 = vld [vmem:[%s222 + $0x38] sm:$0xff]
      %v239 = vld [vmem:[%s222 + $0x40] sm:$0xff]
      %v240 = vld [vmem:[%s222 + $0x48] sm:$0xff]
      %v241 = vld [vmem:[%s222 + $0x50] sm:$0xff]
      %v242 = vld [vmem:[%s222 + $0x58] sm:$0xff]
      %v243 = vld [vmem:[%s222 + $0x60] sm:$0xff]
      %v244 = vld [vmem:[%s222 + $0x68] sm:$0xff]
      %v245 = vld [vmem:[%s222 + $0x70] sm:$0xff]
      %v246 = vld [vmem:[%s222 + $0x78] sm:$0xff]
      %v247 = vld [vmem:[%s222 + $0x80] sm:$0xff]
      %v248 = vld [vmem:[%s222 + $0x88] sm:$0xff]
      %v249 = vld [vmem:[%s222 + $0x90] sm:$0xff]
      %v250 = vld [vmem:[%s222 + $0x98] sm:$0xff]
      %v251 = vld [vmem:[%s222 + $0xa0] sm:$0xff]
      %v252 = vld [vmem:[%s222 + $0xa8] sm:$0xff]
      %v253 = vld [vmem:[%s222 + $0xb0] sm:$0xff]
      %v254 = vld [vmem:[%s222 + $0xb8] sm:$0xff]
      %v255 = vld [vmem:[%s222 + $0xc0] sm:$0xff]
      %v256 = vld [vmem:[%s222 + $0xc8] sm:$0xff]
      %v257 = vld [vmem:[%s222 + $0xd0] sm:$0xff]
      %v258 = vld [vmem:[%s222 + $0xd8] sm:$0xff]
      %v259 = vld [vmem:[%s222 + $0xe0] sm:$0xff]
      %v260 = vld [vmem:[%s222 + $0xe8] sm:$0xff]
      %v261 = vld [vmem:[%s222 + $0xf0] sm:$0xff]
      %v262 = vld [vmem:[%s222 + $0xf8] sm:$0xff]
      %v263 = vpack.c.bf16 %v232, %v231
      %v264 = vpack.c.bf16 %v234, %v233
      %v265 = vpack.c.bf16 %v236, %v235
      %v266 = vpack.c.bf16 %v238, %v237
      %v267 = vpack.c.bf16 %v240, %v239
      %v268 = vpack.c.bf16 %v242, %v241
      %v269 = vpack.c.bf16 %v244, %v243
      %v270 = vpack.c.bf16 %v246, %v245
      %v271 = vpack.c.bf16 %v248, %v247
      %v272 = vpack.c.bf16 %v250, %v249
      %v273 = vpack.c.bf16 %v252, %v251
      %v274 = vpack.c.bf16 %v254, %v253
      %v275 = vpack.c.bf16 %v256, %v255
      %v276 = vpack.c.bf16 %v258, %v257
      %v277 = vpack.c.bf16 %v260, %v259
      %v278 = vpack.c.bf16 %v262, %v261
      %v279 = vld [vmem:[%s1] sm:$0xff]
      %v280 = vld [vmem:[%s1 + $0x8] sm:$0xff]
      %v281 = vld [vmem:[%s1 + $0x10] sm:$0xff]
      %v282 = vld [vmem:[%s1 + $0x18] sm:$0xff]
      %v283 = vpack.c.bf16 %v280, %v279
      %v284 = vpack.c.bf16 %v282, %v281
      %v285 = vld [vmem:[%s2] sm:$0x1]
      %v287 = vlaneseq
      %v288 = vshrl.u32 %v287, 7
      %v289 = vsub.s32 0, %v288
      %v290 = vrot.slane %v285, %v289
      %vm292 = vcmask 261120
      %v294 = vsel %vm292, %v263, 0
      %v297 = vsel %vm292, %v264, 0
      %v300 = vsel %vm292, %v265, 0
      %v303 = vsel %vm292, %v266, 0
      %v306 = vsel %vm292, %v267, 0
      %v309 = vsel %vm292, %v268, 0
      %v312 = vsel %vm292, %v269, 0
      %v315 = vsel %vm292, %v270, 0
      %v318 = vsel %vm292, %v271, 0
      %v321 = vsel %vm292, %v272, 0
      %v324 = vsel %vm292, %v273, 0
      %v327 = vsel %vm292, %v274, 0
      %v330 = vsel %vm292, %v275, 0
      %v333 = vsel %vm292, %v276, 0
      %v336 = vsel %vm292, %v277, 0
      %v339 = vsel %vm292, %v278, 0
      %341 = vmatprep.subr.bf16.mxu0 0
      %342 = vmatpush1.bf16.msra.mxu0 %v283
      %343 = vmatprep.subr.bf16.mxu0 0
      %344 = vmatpush1.bf16.msra.mxu0 %v284
      %345 = vmatprep.subr.bf16.mxu0 0
      %346 = vmatpush1.bf16.msra.mxu0 0
      %347 = vmatprep.subr.bf16.mxu0 0
      %348 = vmatpush1.bf16.msra.mxu0 0
      %349 = vmatprep.subr.bf16.mxu0 0
      %350 = vmatpush1.bf16.msra.mxu0 0
      %351 = vmatprep.subr.bf16.mxu0 0
      %352 = vmatpush1.bf16.msra.mxu0 0
      %353 = vmatprep.subr.bf16.mxu0 0
      %354 = vmatpush1.bf16.msra.mxu0 0
      %355 = vmatprep.subr.bf16.mxu0 0
      %356 = vmatpush1.bf16.msra.mxu0 0
      %357 = vmatprep.subr.bf16.mxu0 0
      %358 = vmatpush1.bf16.msra.mxu0 0
      %359 = vmatprep.subr.bf16.mxu0 0
      %360 = vmatpush1.bf16.msra.mxu0 0
      %361 = vmatprep.subr.bf16.mxu0 0
      %362 = vmatpush1.bf16.msra.mxu0 0
      %363 = vmatprep.subr.bf16.mxu0 0
      %364 = vmatpush1.bf16.msra.mxu0 0
      %365 = vmatprep.subr.bf16.mxu0 0
      %366 = vmatpush1.bf16.msra.mxu0 0
      %367 = vmatprep.subr.bf16.mxu0 0
      %368 = vmatpush1.bf16.msra.mxu0 0
      %369 = vmatprep.subr.bf16.mxu0 0
      %370 = vmatpush1.bf16.msra.mxu0 0
      %371 = vmatprep.subr.bf16.mxu0 0
      %372 = vmatpush1.bf16.msra.mxu0 0
      %373 = vmatprep.mubr.bf16.mxu0 0
      %374 = vmatmul.mubr.bf16.gmra.mrb[0].mxu0 %v294
      %v375 = vpop.f32.mrb[0].mxu0
      %v376 = vadd.f32 %v290, %v375
      %v377 = vpop.f32.mrb[0].mxu0
      %v378 = vpop.f32.mrb[0].mxu0
      %v379 = vadd.f32 %v290, %v378
      %v380 = vpop.f32.mrb[0].mxu0
      %381 = vmatprep.mubr.bf16.mxu0 0
      %382 = vmatmul.mubr.bf16.gmra.mrb[0].mxu0 %v297
      %v383 = vpop.f32.mrb[0].mxu0
      %v384 = vadd.f32 %v290, %v383
      %v385 = vpop.f32.mrb[0].mxu0
      %v386 = vpop.f32.mrb[0].mxu0
      %v387 = vadd.f32 %v290, %v386
      %v388 = vpop.f32.mrb[0].mxu0
      %389 = vmatprep.mubr.bf16.mxu0 0
      %390 = vmatmul.mubr.bf16.gmra.mrb[0].mxu0 %v300
      %v391 = vpop.f32.mrb[0].mxu0
      %v392 = vadd.f32 %v290, %v391
      %v393 = vpop.f32.mrb[0].mxu0
      %v394 = vpop.f32.mrb[0].mxu0
      %v395 = vadd.f32 %v290, %v394
      %v396 = vpop.f32.mrb[0].mxu0
      %397 = vmatprep.mubr.bf16.mxu0 0
      %398 = vmatmul.mubr.bf16.gmra.mrb[0].mxu0 %v303
      %v399 = vpop.f32.mrb[0].mxu0
      %v400 = vadd.f32 %v290, %v399
      %v401 = vpop.f32.mrb[0].mxu0
      %v402 = vpop.f32.mrb[0].mxu0
      %v403 = vadd.f32 %v290, %v402
      %v404 = vpop.f32.mrb[0].mxu0
      %405 = vmatprep.mubr.bf16.mxu0 0
      %406 = vmatmul.mubr.bf16.gmra.mrb[0].mxu0 %v306
      %v407 = vpop.f32.mrb[0].mxu0
      %v408 = vadd.f32 %v290, %v407
      %v409 = vpop.f32.mrb[0].mxu0
      %v410 = vpop.f32.mrb[0].mxu0
      %v411 = vadd.f32 %v290, %v410
      %v412 = vpop.f32.mrb[0].mxu0
      %413 = vmatprep.mubr.bf16.mxu0 0
      %414 = vmatmul.mubr.bf16.gmra.mrb[0].mxu0 %v309
      %v415 = vpop.f32.mrb[0].mxu0
      %v416 = vadd.f32 %v290, %v415
      %v417 = vpop.f32.mrb[0].mxu0
      %v418 = vpop.f32.mrb[0].mxu0
      %v419 = vadd.f32 %v290, %v418
      %v420 = vpop.f32.mrb[0].mxu0
      %421 = vmatprep.mubr.bf16.mxu0 0
      %422 = vmatmul.mubr.bf16.gmra.mrb[0].mxu0 %v312
      %v423 = vpop.f32.mrb[0].mxu0
      %v424 = vadd.f32 %v290, %v423
      %v425 = vpop.f32.mrb[0].mxu0
      %v426 = vpop.f32.mrb[0].mxu0
      %v427 = vadd.f32 %v290, %v426
      %v428 = vpop.f32.mrb[0].mxu0
      %429 = vmatprep.mubr.bf16.mxu0 0
      %430 = vmatmul.mubr.bf16.gmra.mrb[0].mxu0 %v315
      %v431 = vpop.f32.mrb[0].mxu0
      %v432 = vadd.f32 %v290, %v431
      %v433 = vpop.f32.mrb[0].mxu0
      %v434 = vpop.f32.mrb[0].mxu0
      %v435 = vadd.f32 %v290, %v434
      %v436 = vpop.f32.mrb[0].mxu0
      %437 = vmatprep.mubr.bf16.mxu0 0
      %438 = vmatmul.mubr.bf16.gmra.mrb[0].mxu0 %v318
      %v439 = vpop.f32.mrb[0].mxu0
      %v440 = vadd.f32 %v290, %v439
      %v441 = vpop.f32.mrb[0].mxu0
      %v442 = vpop.f32.mrb[0].mxu0
      %v443 = vadd.f32 %v290, %v442
      %v444 = vpop.f32.mrb[0].mxu0
      %445 = vmatprep.mubr.bf16.mxu0 0
      %446 = vmatmul.mubr.bf16.gmra.mrb[0].mxu0 %v321
      %v447 = vpop.f32.mrb[0].mxu0
      %v448 = vadd.f32 %v290, %v447
      %v449 = vpop.f32.mrb[0].mxu0
      %v450 = vpop.f32.mrb[0].mxu0
      %v451 = vadd.f32 %v290, %v450
      %v452 = vpop.f32.mrb[0].mxu0
      %453 = vmatprep.mubr.bf16.mxu0 0
      %454 = vmatmul.mubr.bf16.gmra.mrb[0].mxu0 %v324
      %v455 = vpop.f32.mrb[0].mxu0
      %v456 = vadd.f32 %v290, %v455
      %v457 = vpop.f32.mrb[0].mxu0
      %v458 = vpop.f32.mrb[0].mxu0
      %v459 = vadd.f32 %v290, %v458
      %v460 = vpop.f32.mrb[0].mxu0
      %461 = vmatprep.mubr.bf16.mxu0 0
      %462 = vmatmul.mubr.bf16.gmra.mrb[0].mxu0 %v327
      %v463 = vpop.f32.mrb[0].mxu0
      %v464 = vadd.f32 %v290, %v463
      %v465 = vpop.f32.mrb[0].mxu0
      %v466 = vpop.f32.mrb[0].mxu0
      %v467 = vadd.f32 %v290, %v466
      %v468 = vpop.f32.mrb[0].mxu0
      %469 = vmatprep.mubr.bf16.mxu0 0
      %470 = vmatmul.mubr.bf16.gmra.mrb[0].mxu0 %v330
      %v471 = vpop.f32.mrb[0].mxu0
      %v472 = vadd.f32 %v290, %v471
      %v473 = vpop.f32.mrb[0].mxu0
      %v474 = vpop.f32.mrb[0].mxu0
      %v475 = vadd.f32 %v290, %v474
      %v476 = vpop.f32.mrb[0].mxu0
      %477 = vmatprep.mubr.bf16.mxu0 0
      %478 = vmatmul.mubr.bf16.gmra.mrb[0].mxu0 %v333
      %v479 = vpop.f32.mrb[0].mxu0
      %v480 = vadd.f32 %v290, %v479
      %v481 = vpop.f32.mrb[0].mxu0
      %v482 = vpop.f32.mrb[0].mxu0
      %v483 = vadd.f32 %v290, %v482
      %v484 = vpop.f32.mrb[0].mxu0
      %485 = vmatprep.mubr.bf16.mxu0 0
      %486 = vmatmul.mubr.bf16.gmra.mrb[0].mxu0 %v336
      %v487 = vpop.f32.mrb[0].mxu0
      %v488 = vadd.f32 %v290, %v487
      %v489 = vpop.f32.mrb[0].mxu0
      %v490 = vpop.f32.mrb[0].mxu0
      %v491 = vadd.f32 %v290, %v490
      %v492 = vpop.f32.mrb[0].mxu0
      %493 = vmatprep.mubr.bf16.mxu0 0
      %494 = vmatmul.mubr.bf16.gmra.mrb[0].mxu0 %v339
      %v495 = vpop.f32.mrb[0].mxu0
      %v496 = vadd.f32 %v290, %v495
      %v497 = vpop.f32.mrb[0].mxu0
      %v498 = vpop.f32.mrb[0].mxu0
      %v499 = vadd.f32 %v290, %v498
      %v500 = vpop.f32.mrb[0].mxu0
      %501 = vdwg.mxu0
      %v502 = vmax.f32 %v376, 0.0
      %v503 = vmax.f32 %v379, 0.0
      %v504 = vmax.f32 %v384, 0.0
      %v505 = vmax.f32 %v387, 0.0
      %v506 = vmax.f32 %v392, 0.0
      %v507 = vmax.f32 %v395, 0.0
      %v508 = vmax.f32 %v400, 0.0
      %v509 = vmax.f32 %v403, 0.0
      %v510 = vmax.f32 %v408, 0.0
      %v511 = vmax.f32 %v411, 0.0
      %v512 = vmax.f32 %v416, 0.0
      %v513 = vmax.f32 %v419, 0.0
      %v514 = vmax.f32 %v424, 0.0
      %v515 = vmax.f32 %v427, 0.0
      %v516 = vmax.f32 %v432, 0.0
      %v517 = vmax.f32 %v435, 0.0
      %v518 = vmax.f32 %v440, 0.0
      %v519 = vmax.f32 %v443, 0.0
      %v520 = vmax.f32 %v448, 0.0
      %v521 = vmax.f32 %v451, 0.0
      %v522 = vmax.f32 %v456, 0.0
      %v523 = vmax.f32 %v459, 0.0
      %v524 = vmax.f32 %v464, 0.0
      %v525 = vmax.f32 %v467, 0.0
      %v526 = vmax.f32 %v472, 0.0
      %v527 = vmax.f32 %v475, 0.0
      %v528 = vmax.f32 %v480, 0.0
      %v529 = vmax.f32 %v483, 0.0
      %v530 = vmax.f32 %v488, 0.0
      %v531 = vmax.f32 %v491, 0.0
      %v532 = vmax.f32 %v496, 0.0
      %v533 = vmax.f32 %v499, 0.0
      %v534 = vpack.c.bf16 %v503, %v502
      %v535 = vpack.c.bf16 %v505, %v504
      %v536 = vpack.c.bf16 %v507, %v506
      %v537 = vpack.c.bf16 %v509, %v508
      %v538 = vpack.c.bf16 %v511, %v510
      %v539 = vpack.c.bf16 %v513, %v512
      %v540 = vpack.c.bf16 %v515, %v514
      %v541 = vpack.c.bf16 %v517, %v516
      %v542 = vpack.c.bf16 %v519, %v518
      %v543 = vpack.c.bf16 %v521, %v520
      %v544 = vpack.c.bf16 %v523, %v522
      %v545 = vpack.c.bf16 %v525, %v524
      %v546 = vpack.c.bf16 %v527, %v526
      %v547 = vpack.c.bf16 %v529, %v528
      %v548 = vpack.c.bf16 %v531, %v530
      %v549 = vpack.c.bf16 %v533, %v532
      %v550 = vld [vmem:[%s3] sm:$0xff]
      %v551 = vld [vmem:[%s3 + $0x8] sm:$0xff]
      %v552 = vld [vmem:[%s3 + $0x10] sm:$0xff]
      %v553 = vld [vmem:[%s3 + $0x18] sm:$0xff]
      %v554 = vld [vmem:[%s3 + $0x20] sm:$0xff]
      %v555 = vld [vmem:[%s3 + $0x28] sm:$0xff]
      %v556 = vld [vmem:[%s3 + $0x30] sm:$0xff]
      %v557 = vld [vmem:[%s3 + $0x38] sm:$0xff]
      %v558 = vld [vmem:[%s3 + $0x40] sm:$0xff]
      %v559 = vld [vmem:[%s3 + $0x48] sm:$0xff]
      %v560 = vld [vmem:[%s3 + $0x50] sm:$0xff]
      %v561 = vld [vmem:[%s3 + $0x58] sm:$0xff]
      %v562 = vld [vmem:[%s3 + $0x60] sm:$0xff]
      %v563 = vld [vmem:[%s3 + $0x68] sm:$0xff]
      %v564 = vld [vmem:[%s3 + $0x70] sm:$0xff]
      %v565 = vld [vmem:[%s3 + $0x78] sm:$0xff]
      %v566 = vpack.c.bf16 %v551, %v550
      %v567 = vpack.c.bf16 %v553, %v552
      %v568 = vpack.c.bf16 %v555, %v554
      %v569 = vpack.c.bf16 %v557, %v556
      %v570 = vpack.c.bf16 %v559, %v558
      %v571 = vpack.c.bf16 %v561, %v560
      %v572 = vpack.c.bf16 %v563, %v562
      %v573 = vpack.c.bf16 %v565, %v564
      %v574 = vld [vmem:[#allocation2] sm:$0x1]
      %v576 = vlaneseq
      %v577 = vshrl.u32 %v576, 7
      %v578 = vsub.s32 0, %v577
      %v579 = vrot.slane %v574, %v578
      %581 = vmatprep.subr.bf16.mxu0 0
      %582 = vmatpush1.bf16.msra.mxu0 %v566
      %583 = vmatprep.subr.bf16.mxu0 0
      %584 = vmatpush1.bf16.msra.mxu0 %v567
      %585 = vmatprep.subr.bf16.mxu0 0
      %586 = vmatpush1.bf16.msra.mxu0 %v568
      %587 = vmatprep.subr.bf16.mxu0 0
      %588 = vmatpush1.bf16.msra.mxu0 %v569
      %589 = vmatprep.subr.bf16.mxu0 0
      %590 = vmatpush1.bf16.msra.mxu0 %v570
      %591 = vmatprep.subr.bf16.mxu0 0
      %592 = vmatpush1.bf16.msra.mxu0 %v571
      %593 = vmatprep.subr.bf16.mxu0 0
      %594 = vmatpush1.bf16.msra.mxu0 %v572
      %595 = vmatprep.subr.bf16.mxu0 0
      %596 = vmatpush1.bf16.msra.mxu0 %v573
      %597 = vmatprep.subr.bf16.mxu0 0
      %598 = vmatpush1.bf16.msra.mxu0 0
      %599 = vmatprep.subr.bf16.mxu0 0
      %600 = vmatpush1.bf16.msra.mxu0 0
      %601 = vmatprep.subr.bf16.mxu0 0
      %602 = vmatpush1.bf16.msra.mxu0 0
      %603 = vmatprep.subr.bf16.mxu0 0
      %604 = vmatpush1.bf16.msra.mxu0 0
      %605 = vmatprep.subr.bf16.mxu0 0
      %606 = vmatpush1.bf16.msra.mxu0 0
      %607 = vmatprep.subr.bf16.mxu0 0
      %608 = vmatpush1.bf16.msra.mxu0 0
      %609 = vmatprep.subr.bf16.mxu0 0
      %610 = vmatpush1.bf16.msra.mxu0 0
      %611 = vmatprep.subr.bf16.mxu0 0
      %612 = vmatpush1.bf16.msra.mxu0 0
      %613 = vmatprep.mubr.bf16.mxu0 0
      %614 = vmatmul.mubr.bf16.gmra.mrb[0].mxu0 %v534
      %v615 = vpop.f32.mrb[0].mxu0
      %v616 = vadd.f32 %v579, %v615
      %v617 = vpop.f32.mrb[0].mxu0
      %v618 = vpop.f32.mrb[0].mxu0
      %v619 = vadd.f32 %v579, %v618
      %v620 = vpop.f32.mrb[0].mxu0
      %621 = vmatprep.mubr.bf16.mxu0 0
      %622 = vmatmul.mubr.bf16.gmra.mrb[0].mxu0 %v535
      %v623 = vpop.f32.mrb[0].mxu0
      %v624 = vadd.f32 %v579, %v623
      %v625 = vpop.f32.mrb[0].mxu0
      %v626 = vpop.f32.mrb[0].mxu0
      %v627 = vadd.f32 %v579, %v626
      %v628 = vpop.f32.mrb[0].mxu0
      %629 = vmatprep.mubr.bf16.mxu0 0
      %630 = vmatmul.mubr.bf16.gmra.mrb[0].mxu0 %v536
      %v631 = vpop.f32.mrb[0].mxu0
      %v632 = vadd.f32 %v579, %v631
      %v633 = vpop.f32.mrb[0].mxu0
      %v634 = vpop.f32.mrb[0].mxu0
      %v635 = vadd.f32 %v579, %v634
      %v636 = vpop.f32.mrb[0].mxu0
      %637 = vmatprep.mubr.bf16.mxu0 0
      %638 = vmatmul.mubr.bf16.gmra.mrb[0].mxu0 %v537
      %v639 = vpop.f32.mrb[0].mxu0
      %v640 = vadd.f32 %v579, %v639
      %v641 = vpop.f32.mrb[0].mxu0
      %v642 = vpop.f32.mrb[0].mxu0
      %v643 = vadd.f32 %v579, %v642
      %v644 = vpop.f32.mrb[0].mxu0
      %645 = vmatprep.mubr.bf16.mxu0 0
      %646 = vmatmul.mubr.bf16.gmra.mrb[0].mxu0 %v538
      %v647 = vpop.f32.mrb[0].mxu0
      %v648 = vadd.f32 %v579, %v647
      %v649 = vpop.f32.mrb[0].mxu0
      %v650 = vpop.f32.mrb[0].mxu0
      %v651 = vadd.f32 %v579, %v650
      %v652 = vpop.f32.mrb[0].mxu0
      %653 = vmatprep.mubr.bf16.mxu0 0
      %654 = vmatmul.mubr.bf16.gmra.mrb[0].mxu0 %v539
      %v655 = vpop.f32.mrb[0].mxu0
      %v656 = vadd.f32 %v579, %v655
      %v657 = vpop.f32.mrb[0].mxu0
      %v658 = vpop.f32.mrb[0].mxu0
      %v659 = vadd.f32 %v579, %v658
      %v660 = vpop.f32.mrb[0].mxu0
      %661 = vmatprep.mubr.bf16.mxu0 0
      %662 = vmatmul.mubr.bf16.gmra.mrb[0].mxu0 %v540
      %v663 = vpop.f32.mrb[0].mxu0
      %v664 = vadd.f32 %v579, %v663
      %v665 = vpop.f32.mrb[0].mxu0
      %v666 = vpop.f32.mrb[0].mxu0
      %v667 = vadd.f32 %v579, %v666
      %v668 = vpop.f32.mrb[0].mxu0
      %669 = vmatprep.mubr.bf16.mxu0 0
      %670 = vmatmul.mubr.bf16.gmra.mrb[0].mxu0 %v541
      %v671 = vpop.f32.mrb[0].mxu0
      %v672 = vadd.f32 %v579, %v671
      %v673 = vpop.f32.mrb[0].mxu0
      %v674 = vpop.f32.mrb[0].mxu0
      %v675 = vadd.f32 %v579, %v674
      %v676 = vpop.f32.mrb[0].mxu0
      %677 = vmatprep.mubr.bf16.mxu0 0
      %678 = vmatmul.mubr.bf16.gmra.mrb[0].mxu0 %v542
      %v679 = vpop.f32.mrb[0].mxu0
      %v680 = vadd.f32 %v579, %v679
      %v681 = vpop.f32.mrb[0].mxu0
      %v682 = vpop.f32.mrb[0].mxu0
      %v683 = vadd.f32 %v579, %v682
      %v684 = vpop.f32.mrb[0].mxu0
      %685 = vmatprep.mubr.bf16.mxu0 0
      %686 = vmatmul.mubr.bf16.gmra.mrb[0].mxu0 %v543
      %v687 = vpop.f32.mrb[0].mxu0
      %v688 = vadd.f32 %v579, %v687
      %v689 = vpop.f32.mrb[0].mxu0
      %v690 = vpop.f32.mrb[0].mxu0
      %v691 = vadd.f32 %v579, %v690
      %v692 = vpop.f32.mrb[0].mxu0
      %693 = vmatprep.mubr.bf16.mxu0 0
      %694 = vmatmul.mubr.bf16.gmra.mrb[0].mxu0 %v544
      %v695 = vpop.f32.mrb[0].mxu0
      %v696 = vadd.f32 %v579, %v695
      %v697 = vpop.f32.mrb[0].mxu0
      %v698 = vpop.f32.mrb[0].mxu0
      %v699 = vadd.f32 %v579, %v698
      %v700 = vpop.f32.mrb[0].mxu0
      %701 = vmatprep.mubr.bf16.mxu0 0
      %702 = vmatmul.mubr.bf16.gmra.mrb[0].mxu0 %v545
      %v703 = vpop.f32.mrb[0].mxu0
      %v704 = vadd.f32 %v579, %v703
      %v705 = vpop.f32.mrb[0].mxu0
      %v706 = vpop.f32.mrb[0].mxu0
      %v707 = vadd.f32 %v579, %v706
      %v708 = vpop.f32.mrb[0].mxu0
      %709 = vmatprep.mubr.bf16.mxu0 0
      %710 = vmatmul.mubr.bf16.gmra.mrb[0].mxu0 %v546
      %v711 = vpop.f32.mrb[0].mxu0
      %v712 = vadd.f32 %v579, %v711
      %v713 = vpop.f32.mrb[0].mxu0
      %v714 = vpop.f32.mrb[0].mxu0
      %v715 = vadd.f32 %v579, %v714
      %v716 = vpop.f32.mrb[0].mxu0
      %717 = vmatprep.mubr.bf16.mxu0 0
      %718 = vmatmul.mubr.bf16.gmra.mrb[0].mxu0 %v547
      %v719 = vpop.f32.mrb[0].mxu0
      %v720 = vadd.f32 %v579, %v719
      %v721 = vpop.f32.mrb[0].mxu0
      %v722 = vpop.f32.mrb[0].mxu0
      %v723 = vadd.f32 %v579, %v722
      %v724 = vpop.f32.mrb[0].mxu0
      %725 = vmatprep.mubr.bf16.mxu0 0
      %726 = vmatmul.mubr.bf16.gmra.mrb[0].mxu0 %v548
      %v727 = vpop.f32.mrb[0].mxu0
      %v728 = vadd.f32 %v579, %v727
      %v729 = vpop.f32.mrb[0].mxu0
      %v730 = vpop.f32.mrb[0].mxu0
      %v731 = vadd.f32 %v579, %v730
      %v732 = vpop.f32.mrb[0].mxu0
      %733 = vmatprep.mubr.bf16.mxu0 0
      %734 = vmatmul.mubr.bf16.gmra.mrb[0].mxu0 %v549
      %v735 = vpop.f32.mrb[0].mxu0
      %v736 = vadd.f32 %v579, %v735
      %v737 = vpop.f32.mrb[0].mxu0
      %v738 = vpop.f32.mrb[0].mxu0
      %v739 = vadd.f32 %v579, %v738
      %v740 = vpop.f32.mrb[0].mxu0
      %741 = vdwg.mxu0
      %vm742 = vcmask 7168
      %743 = vst.msk [vmem:[%s228] sm:$0xff] %vm742, %v616
      %744 = vst.msk [vmem:[%s228 + $0x8] sm:$0xff] %vm742, %v619
      %745 = vst.msk [vmem:[%s228 + $0x10] sm:$0xff] %vm742, %v624
      %746 = vst.msk [vmem:[%s228 + $0x18] sm:$0xff] %vm742, %v627
      %747 = vst.msk [vmem:[%s228 + $0x20] sm:$0xff] %vm742, %v632
      %748 = vst.msk [vmem:[%s228 + $0x28] sm:$0xff] %vm742, %v635
      %749 = vst.msk [vmem:[%s228 + $0x30] sm:$0xff] %vm742, %v640
      %750 = vst.msk [vmem:[%s228 + $0x38] sm:$0xff] %vm742, %v643
      %751 = vst.msk [vmem:[%s228 + $0x40] sm:$0xff] %vm742, %v648
      %752 = vst.msk [vmem:[%s228 + $0x48] sm:$0xff] %vm742, %v651
      %753 = vst.msk [vmem:[%s228 + $0x50] sm:$0xff] %vm742, %v656
      %754 = vst.msk [vmem:[%s228 + $0x58] sm:$0xff] %vm742, %v659
      %755 = vst.msk [vmem:[%s228 + $0x60] sm:$0xff] %vm742, %v664
      %756 = vst.msk [vmem:[%s228 + $0x68] sm:$0xff] %vm742, %v667
      %757 = vst.msk [vmem:[%s228 + $0x70] sm:$0xff] %vm742, %v672
      %758 = vst.msk [vmem:[%s228 + $0x78] sm:$0xff] %vm742, %v675
      %759 = vst.msk [vmem:[%s228 + $0x80] sm:$0xff] %vm742, %v680
      %760 = vst.msk [vmem:[%s228 + $0x88] sm:$0xff] %vm742, %v683
      %761 = vst.msk [vmem:[%s228 + $0x90] sm:$0xff] %vm742, %v688
      %762 = vst.msk [vmem:[%s228 + $0x98] sm:$0xff] %vm742, %v691
      %763 = vst.msk [vmem:[%s228 + $0xa0] sm:$0xff] %vm742, %v696
      %764 = vst.msk [vmem:[%s228 + $0xa8] sm:$0xff] %vm742, %v699
      %765 = vst.msk [vmem:[%s228 + $0xb0] sm:$0xff] %vm742, %v704
      %766 = vst.msk [vmem:[%s228 + $0xb8] sm:$0xff] %vm742, %v707
      %767 = vst.msk [vmem:[%s228 + $0xc0] sm:$0xff] %vm742, %v712
      %768 = vst.msk [vmem:[%s228 + $0xc8] sm:$0xff] %vm742, %v715
      %769 = vst.msk [vmem:[%s228 + $0xd0] sm:$0xff] %vm742, %v720
      %770 = vst.msk [vmem:[%s228 + $0xd8] sm:$0xff] %vm742, %v723
      %771 = vst.msk [vmem:[%s228 + $0xe0] sm:$0xff] %vm742, %v728
      %772 = vst.msk [vmem:[%s228 + $0xe8] sm:$0xff] %vm742, %v731
      %773 = vst.msk [vmem:[%s228 + $0xf0] sm:$0xff] %vm742, %v736
      %774 = vst.msk [vmem:[%s228 + $0xf8] sm:$0xff] %vm742, %v739
      %s775 = smul.u32 32, %s18
      %p776 = scmp.lt.s32.totalorder %s775, 63
      %s777 = scalar_select %p776, %s775, 63
      %s778 = smul.addr %s777, 8
      %s779 = scalar_lea.vmem %s5, %s778
      // Predicated region
      $region41: #{net2d_forward.19} parent=39 // pred_check
        %p780 = pneg %p146
      $region42: #{net2d_forward.19} parent=39 // pred_check_branch
        %782 = sbr.rel (%p780) target = $region44
      $region43: #{net2d_forward.19} parent=39 // pred_region
        %s783 = smul.u32 32, %s18
      $region44: #{net2d_forward.19} parent=39 // pred_fallthru
        _
    $region40: #{net2d_forward.19} parent=5 // pred_fallthru
      _
    %p784 = scmp.le.s32.totalorder 2, %s13
    // Predicated region
    $region45: #{net2d_forward.19} parent=5 // pred_check
      %p785 = pneg %p784
    $region46: #{net2d_forward.19} parent=5 // pred_check_branch
      %787 = sbr.rel (%p785) target = $region48
    $region47: #{net2d_forward.19} parent=5 // pred_region
      %s788 = ssub.s32 %s13, 2
      // Predicated region
      $region49: #{net2d_forward.19} parent=47 // pred_check
        %p789 = pneg %p152
      $region50: #{net2d_forward.19} parent=47 // pred_check_branch
        %791 = sbr.rel (%p789) target = $region52
      $region51: #{net2d_forward.19} parent=47 // pred_region
        %s792 = smul.u32 32, %s19
        %p793 = scmp.lt.s32.totalorder %s792, 63
        %s794 = scalar_select %p793, %s792, 63
        %s795 = smul.addr %s794, 8
        %s796 = scalar_lea.vmem %s5, %s795
      $region52: #{net2d_forward.19} parent=47 // pred_fallthru
        _
    $region48: #{net2d_forward.19} parent=5 // pred_fallthru
      _
  $region6: #{net2d_forward.19} parent=0 // loop_footer
    %s17 = sadd.s32 1, %s13
  $region7: #{net2d_forward.19} parent=0 // loop_footer_branch
    %12 = sbr.rel target = $region3
  $region8: #{net2d_forward.19} parent=0 // loop_exit
    _

</llo_original>
